<compile_context>
chip_gen: v7x
topology: tpu7x:2x2x1
jax: 0.10.0
libtpu: 0.0.40
codegen_flags: <defaults>
</compile_context>

<pallas_src>
import functools

import jax
import jax.numpy as jnp
from jax.experimental import pallas as pl
from jax.experimental.pallas import tpu as pltpu


COUT_PAD = 128    # conv output channels zero-padded to a full lane register
NCLS_PAD = 128    # classes zero-padded to a full lane register


# ----------------------------------------------------------------------------
# Fused kernel: im2col conv3x3+BN+ReLU -> global avg pool -> FC -> softmax
# One grid step == one block of Bblk images.
# ----------------------------------------------------------------------------
def fused_classifier_kernel(x_ref, wcol_ref, bc_ref, wf_ref, bf_ref,
                            probs_ref, xpad_ref, col_ref, *, n_classes):
    # x_ref    : (Bblk, H, W, Cin) f32      batch block (grid axis 0, parallel)
    # wcol_ref : (9*Cin, COUT_PAD) bf16     BN-folded conv weight, im2col layout
    # bc_ref   : (1, COUT_PAD)     f32      BN-folded conv bias (padded)
    # wf_ref   : (COUT_PAD, NCLS_PAD) bf16  FC weight (padded)
    # bf_ref   : (1, NCLS_PAD)     f32      FC bias (padded)
    # probs_ref: (1, Bblk, NCLS_PAD) f32    lane-dense softmax output
    # xpad_ref : (Bblk, H+2, W+2, Cin) bf16 zero-halo image scratch (~5 KB)
    # col_ref  : (Bblk, H, W, 9*Cin) bf16   im2col LHS scratch
    bblk, h, w, cin = x_ref.shape
    hw = h * w
    kcol = 9 * cin

    # Zero-halo image in VMEM.  Re-zeroed every step (tiny) instead of zero-once at
    # step 0, which would be wrong under megacore-parallel sharding of the batch axis.
    xpad_ref[...] = jnp.zeros_like(xpad_ref)
    xpad_ref[:, 1:h + 1, 1:w + 1, :] = x_ref[...].astype(jnp.bfloat16)

    # im2col: 9 shifted copies laid out along K (tap-major, cin-minor), matching
    # wcol = folded_conv_w.reshape(9*Cin, Cout).
    # TODO(synk): at real Cin (e.g. 64) build this with pltpu.roll on a lane-flattened
    #             (W*Cin) layout instead of sublane-offset slices.
    for kh in range(3):
        for kw in range(3):
            tap = kh * 3 + kw
            col_ref[:, :, :, tap * cin:(tap + 1) * cin] = \
                xpad_ref[:, kh:kh + h, kw:kw + w, :]

    # Single K=9*Cin bf16 MXU matmul (replaces 9 per-tap K=Cin matmuls accumulating
    # into a 128 KB f32 VMEM scratch).  K is left at 9*Cin: the MXU pads the
    # contraction dim internally, and keeping explicit zero pad columns alive across a
    # parallel grid would just re-introduce per-step zeroing.
    lhs = col_ref[...].reshape(bblk * hw, kcol)                       # bf16
    feat = jnp.dot(lhs, wcol_ref[...], preferred_element_type=jnp.float32)
    feat = jnp.maximum(feat + bc_ref[...], 0.0)                       # BN bias + ReLU, f32

    # AdaptiveAvgPool2d(1): per-image mean over H*W (f32 sublane reductions).
    pooled = jnp.concatenate(
        [jnp.sum(feat[b * hw:(b + 1) * hw, :], axis=0, keepdims=True)
         for b in range(bblk)], axis=0) * (1.0 / hw)                  # (Bblk, COUT_PAD)

    # Adopted FC head (bf16 MXU operands, f32 accumulate).
    logits = jnp.dot(pooled.astype(jnp.bfloat16), wf_ref[...],
                     preferred_element_type=jnp.float32) + bf_ref[...]

    # softmax(dim=1) over the real classes; padded lanes masked to -inf.
    lane = jax.lax.broadcasted_iota(jnp.int32, logits.shape, 1)
    logits = jnp.where(lane < n_classes, logits, -1e30)
    m = jnp.max(logits, axis=1, keepdims=True)
    e = jnp.exp(logits - m)
    probs_ref[0] = e / jnp.sum(e, axis=1, keepdims=True)              # exact normalisation


# ----------------------------------------------------------------------------
# Wrapper glue: BN folding, im2col weight reshape, lane padding, bf16 casts (tiny)
# ----------------------------------------------------------------------------
def _fold_bn_and_pack(params, cin, cout, n_classes, eps=1e-5):
    scale = params["bn_gamma"] * jax.lax.rsqrt(params["bn_var"] + eps)
    w_f = params["conv_w"] * scale[None, None, None, :]               # (3,3,Cin,Cout)
    b_f = params["bn_beta"] - params["bn_mean"] * scale               # (Cout,)
    kcol = 9 * cin
    wcol = jnp.zeros((kcol, COUT_PAD), jnp.float32).at[:, :cout].set(
        w_f.reshape(kcol, cout))
    bc = jnp.zeros((1, COUT_PAD), jnp.float32).at[0, :cout].set(b_f)
    wf = jnp.zeros((COUT_PAD, NCLS_PAD), jnp.float32).at[:cout, :n_classes].set(
        params["fc_w"])
    bf = jnp.zeros((1, NCLS_PAD), jnp.float32).at[0, :n_classes].set(params["fc_b"])
    return wcol.astype(jnp.bfloat16), bc, wf.astype(jnp.bfloat16), bf


@jax.jit
def classify(x_nchw, params):
    # Mirrors Classifier.classify / _classify_simple: model -> softmax -> max(dim=1).
    # Returns (label, confidence, probs); probs returned additionally for verification.
    x_nhwc = jnp.transpose(x_nchw, (0, 2, 3, 1)).astype(jnp.float32)  # NCHW -> NHWC
    B, H, W, Cin = x_nhwc.shape
    Cout = params["conv_w"].shape[-1]
    n_classes = params["fc_w"].shape[-1]
    wcol, bc, wf, bf = _fold_bn_and_pack(params, Cin, Cout, n_classes)

    # Batch blocking: Bblk images per grid step, but keep >=2 grid steps when B>=2 so
    # both v7x TensorCores get work on the "parallel" batch axis.
    bblk = max(1, min(8, B // 2)) if B >= 2 else 1
    nb = -(-B // bblk)
    b_pad = nb * bblk
    if b_pad != B:
        x_nhwc = jnp.pad(x_nhwc, ((0, b_pad - B), (0, 0), (0, 0), (0, 0)))

    kcol = 9 * Cin
    kernel = functools.partial(fused_classifier_kernel, n_classes=n_classes)
    probs_p = pl.pallas_call(
        kernel,
        out_shape=jax.ShapeDtypeStruct((nb, bblk, NCLS_PAD), jnp.float32),
        grid=(nb,),
        in_specs=[
            pl.BlockSpec((bblk, H, W, Cin), lambda b: (b, 0, 0, 0)),
            pl.BlockSpec((kcol, COUT_PAD), lambda b: (0, 0)),
            pl.BlockSpec((1, COUT_PAD), lambda b: (0, 0)),
            pl.BlockSpec((COUT_PAD, NCLS_PAD), lambda b: (0, 0)),
            pl.BlockSpec((1, NCLS_PAD), lambda b: (0, 0)),
        ],
        out_specs=pl.BlockSpec((1, bblk, NCLS_PAD), lambda b: (b, 0, 0)),
        scratch_shapes=[
            pltpu.VMEM((bblk, H + 2, W + 2, Cin), jnp.bfloat16),   # zero-halo image
            pltpu.VMEM((bblk, H, W, kcol), jnp.bfloat16),          # im2col LHS
        ],
        compiler_params=pltpu.CompilerParams(
            dimension_semantics=("parallel",),       # batch axis; megacore shard on v7x
            vmem_limit_bytes=32 * 1024 * 1024,       # fits v5e/v6e/v7x with headroom
        ),
    )(x_nhwc, wcol, bc, wf, bf)

    probs = probs_p.reshape(b_pad, NCLS_PAD)[:B, :n_classes]
    # torch.max(probs, dim=1) -> (confidence, label); argmax in the wrapper is free and
    # avoids last-dim-1 masked stores / XLU reductions inside the kernel.
    label = jnp.argmax(probs, axis=1).astype(jnp.int32)
    confidence = jnp.max(probs, axis=1)
    return label, confidence, probs


# ----------------------------------------------------------------------------
# Pure-JAX reference with matched numerics (bf16 MXU operands, f32 accumulation)
# ----------------------------------------------------------------------------
def _reference(x_nchw, params, eps=1e-5):
    x = jnp.transpose(x_nchw, (0, 2, 3, 1)).astype(jnp.float32)
    scale = params["bn_gamma"] * jax.lax.rsqrt(params["bn_var"] + eps)
    w = (params["conv_w"] * scale[None, None, None, :]).astype(jnp.bfloat16)
    b = params["bn_beta"] - params["bn_mean"] * scale
    y = jax.lax.conv_general_dilated(
        x.astype(jnp.bfloat16), w, (1, 1), "SAME",
        dimension_numbers=("NHWC", "HWIO", "NHWC"),
        preferred_element_type=jnp.float32)
    feat = jnp.maximum(y + b, 0.0)
    pooled = jnp.mean(feat, axis=(1, 2))
    logits = jnp.dot(pooled.astype(jnp.bfloat16), params["fc_w"].astype(jnp.bfloat16),
                     preferred_element_type=jnp.float32) + params["fc_b"]
    probs = jax.nn.softmax(logits, axis=1)
    return jnp.argmax(probs, axis=1).astype(jnp.int32), jnp.max(probs, axis=1), probs


if __name__ == "__main__":
    key = jax.random.PRNGKey(0)
    B, Cin, H, W = 4, 4, 16, 16          # input image batch (NCHW, like PyTorch)
    Cout = 8                             # feature channels of the stem block
    n_classes = 10                       # Classifier(n_classes=10)

    ks = jax.random.split(key, 6)
    x = jax.random.normal(ks[0], (B, Cin, H, W), jnp.float32)

    params = {
        "conv_w": jax.random.normal(ks[1], (3, 3, Cin, Cout), jnp.float32) * 0.1,
        "bn_gamma": jnp.ones((Cout,), jnp.float32),
        "bn_beta": jnp.zeros((Cout,), jnp.float32),
        "bn_mean": jax.random.normal(ks[2], (Cout,), jnp.float32) * 0.05,
        "bn_var": jnp.abs(jax.random.normal(ks[3], (Cout,), jnp.float32)) + 0.5,
        "fc_w": jax.random.normal(ks[4], (Cout, n_classes), jnp.float32) * 0.2,
        "fc_b": jax.random.normal(ks[5], (n_classes,), jnp.float32) * 0.1,
    }

    label, conf, probs = classify(x, params)
    jax.block_until_ready((label, conf, probs))

    ref_label, ref_conf, ref_probs = _reference(x, params)
    assert probs.shape == (B, n_classes)
    assert jnp.allclose(probs, ref_probs, atol=2e-3), (probs, ref_probs)
    assert jnp.allclose(conf, ref_conf, atol=2e-3), (conf, ref_conf)
    # Labels must match unless the reference itself has a numerical near-tie at the top.
    near_tie = ref_probs[jnp.arange(B), label] >= ref_conf - 1e-2
    assert bool(jnp.all((label == ref_label) | near_tie)), (label, ref_label)

    print("KERNEL_OK")
</pallas_src>

<mosaic_0001>
module attributes {stable_mosaic.version = 11 : i64} {
  func.func @fused_classifier_kernel(%arg0: i32, %arg1: memref<2x16x16x4xf32, #tpu.memory_space<vmem>>, %arg2: memref<36x128xbf16, #tpu.memory_space<vmem>>, %arg3: memref<1x128xf32, #tpu.memory_space<vmem>>, %arg4: memref<128x128xbf16, #tpu.memory_space<vmem>>, %arg5: memref<1x128xf32, #tpu.memory_space<vmem>>, %arg6: memref<1x2x128xf32, #tpu.memory_space<vmem>>, %arg7: memref<2x18x18x4xbf16, #tpu.memory_space<vmem>>, %arg8: memref<2x16x16x36xbf16, #tpu.memory_space<vmem>>) attributes {dimension_semantics = [#tpu.dimension_semantics<parallel>], iteration_bounds = array<i64: 2>, scalar_prefetch = 0 : i64, scratch_operands = 2 : i64, tpu.core_type = #tpu.core_type<tc>, window_params = [{transform_indices = @transform_0, window_bounds = array<i64: 2, 16, 16, 4>}, {pipeline_mode = #tpu.pipeline_mode<synchronous>, transform_indices = @transform_1, window_bounds = array<i64: 36, 128>}, {pipeline_mode = #tpu.pipeline_mode<synchronous>, transform_indices = @transform_2, window_bounds = array<i64: 1, 128>}, {pipeline_mode = #tpu.pipeline_mode<synchronous>, transform_indices = @transform_3, window_bounds = array<i64: 128, 128>}, {pipeline_mode = #tpu.pipeline_mode<synchronous>, transform_indices = @transform_4, window_bounds = array<i64: 1, 128>}, {transform_indices = @transform_5, window_bounds = array<i64: 1, 2, 128>}]} {
    %cst = arith.constant 0.000000e+00 : bf16
    %0 = vector.broadcast %cst : bf16 to vector<2x18x18x4xbf16>
    %c0 = arith.constant 0 : index
    %c0_0 = arith.constant 0 : index
    %c0_1 = arith.constant 0 : index
    %c0_2 = arith.constant 0 : index
    %1 = vector.load %arg7[%c0, %c0_0, %c0_1, %c0_2] : memref<2x18x18x4xbf16, #tpu.memory_space<vmem>>, vector<2x18x18x4xbf16>
    tpu.vector_store %arg7[%c0, %c0_0, %c0_1, %c0_2], %0 {strides = array<i32>} : memref<2x18x18x4xbf16, #tpu.memory_space<vmem>>, vector<2x18x18x4xbf16>,
    %c0_3 = arith.constant 0 : index
    %c0_4 = arith.constant 0 : index
    %c0_5 = arith.constant 0 : index
    %c0_6 = arith.constant 0 : index
    %2 = vector.load %arg1[%c0_3, %c0_4, %c0_5, %c0_6] : memref<2x16x16x4xf32, #tpu.memory_space<vmem>>, vector<2x16x16x4xf32>
    %3 = arith.truncf %2 : vector<2x16x16x4xf32> to vector<2x16x16x4xbf16>
    %c0_7 = arith.constant 0 : index
    %c1 = arith.constant 1 : index
    %c1_8 = arith.constant 1 : index
    %c0_9 = arith.constant 0 : index
    %4 = vector.load %arg7[%c0_7, %c1, %c1_8, %c0_9] : memref<2x18x18x4xbf16, #tpu.memory_space<vmem>>, vector<2x16x16x4xbf16>
    tpu.vector_store %arg7[%c0_7, %c1, %c1_8, %c0_9], %3 {strides = array<i32>} : memref<2x18x18x4xbf16, #tpu.memory_space<vmem>>, vector<2x16x16x4xbf16>,
    %c0_10 = arith.constant 0 : index
    %c0_11 = arith.constant 0 : index
    %c0_12 = arith.constant 0 : index
    %c0_13 = arith.constant 0 : index
    %5 = vector.load %arg7[%c0_10, %c0_11, %c0_12, %c0_13] : memref<2x18x18x4xbf16, #tpu.memory_space<vmem>>, vector<2x16x16x4xbf16>
    %c0_14 = arith.constant 0 : index
    %c0_15 = arith.constant 0 : index
    %c0_16 = arith.constant 0 : index
    %c0_17 = arith.constant 0 : index
    %6 = vector.load %arg8[%c0_14, %c0_15, %c0_16, %c0_17] : memref<2x16x16x36xbf16, #tpu.memory_space<vmem>>, vector<2x16x16x4xbf16>
    tpu.vector_store %arg8[%c0_14, %c0_15, %c0_16, %c0_17], %5 {strides = array<i32>} : memref<2x16x16x36xbf16, #tpu.memory_space<vmem>>, vector<2x16x16x4xbf16>,
    %c0_18 = arith.constant 0 : index
    %c0_19 = arith.constant 0 : index
    %c1_20 = arith.constant 1 : index
    %c0_21 = arith.constant 0 : index
    %7 = vector.load %arg7[%c0_18, %c0_19, %c1_20, %c0_21] : memref<2x18x18x4xbf16, #tpu.memory_space<vmem>>, vector<2x16x16x4xbf16>
    %c0_22 = arith.constant 0 : index
    %c0_23 = arith.constant 0 : index
    %c0_24 = arith.constant 0 : index
    %c4 = arith.constant 4 : index
    %8 = vector.load %arg8[%c0_22, %c0_23, %c0_24, %c4] : memref<2x16x16x36xbf16, #tpu.memory_space<vmem>>, vector<2x16x16x4xbf16>
    tpu.vector_store %arg8[%c0_22, %c0_23, %c0_24, %c4], %7 {strides = array<i32>} : memref<2x16x16x36xbf16, #tpu.memory_space<vmem>>, vector<2x16x16x4xbf16>,
    %c0_25 = arith.constant 0 : index
    %c0_26 = arith.constant 0 : index
    %c2 = arith.constant 2 : index
    %c0_27 = arith.constant 0 : index
    %9 = vector.load %arg7[%c0_25, %c0_26, %c2, %c0_27] : memref<2x18x18x4xbf16, #tpu.memory_space<vmem>>, vector<2x16x16x4xbf16>
    %c0_28 = arith.constant 0 : index
    %c0_29 = arith.constant 0 : index
    %c0_30 = arith.constant 0 : index
    %c8 = arith.constant 8 : index
    %10 = vector.load %arg8[%c0_28, %c0_29, %c0_30, %c8] : memref<2x16x16x36xbf16, #tpu.memory_space<vmem>>, vector<2x16x16x4xbf16>
    tpu.vector_store %arg8[%c0_28, %c0_29, %c0_30, %c8], %9 {strides = array<i32>} : memref<2x16x16x36xbf16, #tpu.memory_space<vmem>>, vector<2x16x16x4xbf16>,
    %c0_31 = arith.constant 0 : index
    %c1_32 = arith.constant 1 : index
    %c0_33 = arith.constant 0 : index
    %c0_34 = arith.constant 0 : index
    %11 = vector.load %arg7[%c0_31, %c1_32, %c0_33, %c0_34] : memref<2x18x18x4xbf16, #tpu.memory_space<vmem>>, vector<2x16x16x4xbf16>
    %c0_35 = arith.constant 0 : index
    %c0_36 = arith.constant 0 : index
    %c0_37 = arith.constant 0 : index
    %c12 = arith.constant 12 : index
    %12 = vector.load %arg8[%c0_35, %c0_36, %c0_37, %c12] : memref<2x16x16x36xbf16, #tpu.memory_space<vmem>>, vector<2x16x16x4xbf16>
    tpu.vector_store %arg8[%c0_35, %c0_36, %c0_37, %c12], %11 {strides = array<i32>} : memref<2x16x16x36xbf16, #tpu.memory_space<vmem>>, vector<2x16x16x4xbf16>,
    %c0_38 = arith.constant 0 : index
    %c1_39 = arith.constant 1 : index
    %c1_40 = arith.constant 1 : index
    %c0_41 = arith.constant 0 : index
    %13 = vector.load %arg7[%c0_38, %c1_39, %c1_40, %c0_41] : memref<2x18x18x4xbf16, #tpu.memory_space<vmem>>, vector<2x16x16x4xbf16>
    %c0_42 = arith.constant 0 : index
    %c0_43 = arith.constant 0 : index
    %c0_44 = arith.constant 0 : index
    %c16 = arith.constant 16 : index
    %14 = vector.load %arg8[%c0_42, %c0_43, %c0_44, %c16] : memref<2x16x16x36xbf16, #tpu.memory_space<vmem>>, vector<2x16x16x4xbf16>
    tpu.vector_store %arg8[%c0_42, %c0_43, %c0_44, %c16], %13 {strides = array<i32>} : memref<2x16x16x36xbf16, #tpu.memory_space<vmem>>, vector<2x16x16x4xbf16>,
    %c0_45 = arith.constant 0 : index
    %c1_46 = arith.constant 1 : index
    %c2_47 = arith.constant 2 : index
    %c0_48 = arith.constant 0 : index
    %15 = vector.load %arg7[%c0_45, %c1_46, %c2_47, %c0_48] : memref<2x18x18x4xbf16, #tpu.memory_space<vmem>>, vector<2x16x16x4xbf16>
    %c0_49 = arith.constant 0 : index
    %c0_50 = arith.constant 0 : index
    %c0_51 = arith.constant 0 : index
    %c20 = arith.constant 20 : index
    %16 = vector.load %arg8[%c0_49, %c0_50, %c0_51, %c20] : memref<2x16x16x36xbf16, #tpu.memory_space<vmem>>, vector<2x16x16x4xbf16>
    tpu.vector_store %arg8[%c0_49, %c0_50, %c0_51, %c20], %15 {strides = array<i32>} : memref<2x16x16x36xbf16, #tpu.memory_space<vmem>>, vector<2x16x16x4xbf16>,
    %c0_52 = arith.constant 0 : index
    %c2_53 = arith.constant 2 : index
    %c0_54 = arith.constant 0 : index
    %c0_55 = arith.constant 0 : index
    %17 = vector.load %arg7[%c0_52, %c2_53, %c0_54, %c0_55] : memref<2x18x18x4xbf16, #tpu.memory_space<vmem>>, vector<2x16x16x4xbf16>
    %c0_56 = arith.constant 0 : index
    %c0_57 = arith.constant 0 : index
    %c0_58 = arith.constant 0 : index
    %c24 = arith.constant 24 : index
    %18 = vector.load %arg8[%c0_56, %c0_57, %c0_58, %c24] : memref<2x16x16x36xbf16, #tpu.memory_space<vmem>>, vector<2x16x16x4xbf16>
    tpu.vector_store %arg8[%c0_56, %c0_57, %c0_58, %c24], %17 {strides = array<i32>} : memref<2x16x16x36xbf16, #tpu.memory_space<vmem>>, vector<2x16x16x4xbf16>,
    %c0_59 = arith.constant 0 : index
    %c2_60 = arith.constant 2 : index
    %c1_61 = arith.constant 1 : index
    %c0_62 = arith.constant 0 : index
    %19 = vector.load %arg7[%c0_59, %c2_60, %c1_61, %c0_62] : memref<2x18x18x4xbf16, #tpu.memory_space<vmem>>, vector<2x16x16x4xbf16>
    %c0_63 = arith.constant 0 : index
    %c0_64 = arith.constant 0 : index
    %c0_65 = arith.constant 0 : index
    %c28 = arith.constant 28 : index
    %20 = vector.load %arg8[%c0_63, %c0_64, %c0_65, %c28] : memref<2x16x16x36xbf16, #tpu.memory_space<vmem>>, vector<2x16x16x4xbf16>
    tpu.vector_store %arg8[%c0_63, %c0_64, %c0_65, %c28], %19 {strides = array<i32>} : memref<2x16x16x36xbf16, #tpu.memory_space<vmem>>, vector<2x16x16x4xbf16>,
    %c0_66 = arith.constant 0 : index
    %c2_67 = arith.constant 2 : index
    %c2_68 = arith.constant 2 : index
    %c0_69 = arith.constant 0 : index
    %21 = vector.load %arg7[%c0_66, %c2_67, %c2_68, %c0_69] : memref<2x18x18x4xbf16, #tpu.memory_space<vmem>>, vector<2x16x16x4xbf16>
    %c0_70 = arith.constant 0 : index
    %c0_71 = arith.constant 0 : index
    %c0_72 = arith.constant 0 : index
    %c32 = arith.constant 32 : index
    %22 = vector.load %arg8[%c0_70, %c0_71, %c0_72, %c32] : memref<2x16x16x36xbf16, #tpu.memory_space<vmem>>, vector<2x16x16x4xbf16>
    tpu.vector_store %arg8[%c0_70, %c0_71, %c0_72, %c32], %21 {strides = array<i32>} : memref<2x16x16x36xbf16, #tpu.memory_space<vmem>>, vector<2x16x16x4xbf16>,
    %c0_73 = arith.constant 0 : index
    %c0_74 = arith.constant 0 : index
    %c0_75 = arith.constant 0 : index
    %c0_76 = arith.constant 0 : index
    %23 = vector.load %arg8[%c0_73, %c0_74, %c0_75, %c0_76] : memref<2x16x16x36xbf16, #tpu.memory_space<vmem>>, vector<2x16x16x36xbf16>
    %24 = vector.shape_cast %23 : vector<2x16x16x36xbf16> to vector<512x36xbf16>
    %c0_77 = arith.constant 0 : index
    %c0_78 = arith.constant 0 : index
    %25 = vector.load %arg2[%c0_77, %c0_78] : memref<36x128xbf16, #tpu.memory_space<vmem>>, vector<36x128xbf16>
    %cst_79 = arith.constant dense<0.000000e+00> : vector<512x128xf32>
    %26 = tpu.matmul %24, %25, %cst_79 {dimension_numbers = #tpu.dot_dimension_numbers<[1], [0], [0], [1], [0, 0, 1, 1], [], []>} : vector<512x36xbf16>, vector<36x128xbf16>, vector<512x128xf32> -> vector<512x128xf32>
    %c0_80 = arith.constant 0 : index
    %c0_81 = arith.constant 0 : index
    %27 = vector.load %arg3[%c0_80, %c0_81] : memref<1x128xf32, #tpu.memory_space<vmem>>, vector<1x128xf32>
    %28 = vector.broadcast %27 : vector<1x128xf32> to vector<512x128xf32>
    %29 = arith.addf %26, %28 : vector<512x128xf32>
    %cst_82 = arith.constant 0.000000e+00 : f32
    %30 = vector.broadcast %cst_82 : f32 to vector<512x128xf32>
    %31 = arith.maximumf %29, %30 : vector<512x128xf32>
    %32 = vector.extract_strided_slice %31 {offsets = [0, 0], sizes = [256, 128], strides = [1, 1]} : vector<512x128xf32> to vector<256x128xf32>
    %cst_83 = arith.constant dense<0.000000e+00> : vector<128xf32>
    %33 = vector.multi_reduction <add>, %32, %cst_83 [0] : vector<256x128xf32> to vector<128xf32>
    %34 = vector.shape_cast %33 : vector<128xf32> to vector<1x128xf32>
    %35 = vector.extract_strided_slice %31 {offsets = [256, 0], sizes = [256, 128], strides = [1, 1]} : vector<512x128xf32> to vector<256x128xf32>
    %cst_84 = arith.constant dense<0.000000e+00> : vector<128xf32>
    %36 = vector.multi_reduction <add>, %35, %cst_84 [0] : vector<256x128xf32> to vector<128xf32>
    %37 = vector.shape_cast %36 : vector<128xf32> to vector<1x128xf32>
    %38 = tpu.concatenate %34, %37 in 0 : vector<1x128xf32>, vector<1x128xf32> -> vector<2x128xf32>
    %cst_85 = arith.constant 3.906250e-03 : f32
    %39 = vector.broadcast %cst_85 : f32 to vector<2x128xf32>
    %40 = arith.mulf %38, %39 : vector<2x128xf32>
    %41 = arith.truncf %40 : vector<2x128xf32> to vector<2x128xbf16>
    %c0_86 = arith.constant 0 : index
    %c0_87 = arith.constant 0 : index
    %42 = vector.load %arg4[%c0_86, %c0_87] : memref<128x128xbf16, #tpu.memory_space<vmem>>, vector<128x128xbf16>
    %cst_88 = arith.constant dense<0.000000e+00> : vector<2x128xf32>
    %43 = tpu.matmul %41, %42, %cst_88 {dimension_numbers = #tpu.dot_dimension_numbers<[1], [0], [0], [1], [0, 0, 1, 1], [], []>} : vector<2x128xbf16>, vector<128x128xbf16>, vector<2x128xf32> -> vector<2x128xf32>
    %c0_89 = arith.constant 0 : index
    %c0_90 = arith.constant 0 : index
    %44 = vector.load %arg5[%c0_89, %c0_90] : memref<1x128xf32, #tpu.memory_space<vmem>>, vector<1x128xf32>
    %45 = vector.broadcast %44 : vector<1x128xf32> to vector<2x128xf32>
    %46 = arith.addf %43, %45 : vector<2x128xf32>
    %47 = tpu.iota {dimensions = array<i32: 1>} : vector<2x128xi32>
    %c10_i32 = arith.constant 10 : i32
    %48 = vector.broadcast %c10_i32 : i32 to vector<2x128xi32>
    %49 = arith.cmpi slt, %47, %48 : vector<2x128xi32>
    %cst_91 = arith.constant -1.000000e+30 : f32
    %50 = vector.broadcast %cst_91 : f32 to vector<2x128xf32>
    %51 = arith.select %49, %46, %50 : vector<2x128xi1>, vector<2x128xf32>
    %cst_92 = arith.constant dense<0xFF800000> : vector<2xf32>
    %52 = vector.multi_reduction <maximumf>, %51, %cst_92 [1] : vector<2x128xf32> to vector<2xf32>
    %53 = vector.shape_cast %52 : vector<2xf32> to vector<2x1xf32>
    %54 = vector.broadcast %53 : vector<2x1xf32> to vector<2x128xf32>
    %55 = arith.subf %51, %54 : vector<2x128xf32>
    %56 = math.exp %55 : vector<2x128xf32>
    %cst_93 = arith.constant dense<0.000000e+00> : vector<2xf32>
    %57 = vector.multi_reduction <add>, %56, %cst_93 [1] : vector<2x128xf32> to vector<2xf32>
    %58 = vector.shape_cast %57 : vector<2xf32> to vector<2x1xf32>
    %59 = vector.broadcast %58 : vector<2x1xf32> to vector<2x128xf32>
    %60 = arith.divf %56, %59 : vector<2x128xf32>
    %c0_94 = arith.constant 0 : index
    %c0_95 = arith.constant 0 : index
    %c0_96 = arith.constant 0 : index
    %61 = vector.load %arg6[%c0_94, %c0_95, %c0_96] : memref<1x2x128xf32, #tpu.memory_space<vmem>>, vector<1x2x128xf32>
    %62 = vector.shape_cast %61 : vector<1x2x128xf32> to vector<2x128xf32>
    %63 = vector.shape_cast %60 : vector<2x128xf32> to vector<1x2x128xf32>
    tpu.vector_store %arg6[%c0_94, %c0_95, %c0_96], %63 {strides = array<i32>} : memref<1x2x128xf32, #tpu.memory_space<vmem>>, vector<1x2x128xf32>,
    return
  }
  func.func @transform_0(%arg0: i32) -> (i32, i32, i32, i32) {
    %c0_i32 = arith.constant 0 : i32
    %c0_i32_0 = arith.constant 0 : i32
    %c0_i32_1 = arith.constant 0 : i32
    %c0_i32_2 = arith.constant 0 : i32
    return %arg0, %c0_i32, %c0_i32_0, %c0_i32_1 : i32, i32, i32, i32
  }
  func.func @transform_1(%arg0: i32) -> (i32, i32) {
    %c0_i32 = arith.constant 0 : i32
    %c0_i32_0 = arith.constant 0 : i32
    %c0_i32_1 = arith.constant 0 : i32
    return %c0_i32, %c0_i32_0 : i32, i32
  }
  func.func @transform_2(%arg0: i32) -> (i32, i32) {
    %c0_i32 = arith.constant 0 : i32
    %c0_i32_0 = arith.constant 0 : i32
    %c0_i32_1 = arith.constant 0 : i32
    return %c0_i32, %c0_i32_0 : i32, i32
  }
  func.func @transform_3(%arg0: i32) -> (i32, i32) {
    %c0_i32 = arith.constant 0 : i32
    %c0_i32_0 = arith.constant 0 : i32
    %c0_i32_1 = arith.constant 0 : i32
    return %c0_i32, %c0_i32_0 : i32, i32
  }
  func.func @transform_4(%arg0: i32) -> (i32, i32) {
    %c0_i32 = arith.constant 0 : i32
    %c0_i32_0 = arith.constant 0 : i32
    %c0_i32_1 = arith.constant 0 : i32
    return %c0_i32, %c0_i32_0 : i32, i32
  }
  func.func @transform_5(%arg0: i32) -> (i32, i32, i32) {
    %c0_i32 = arith.constant 0 : i32
    %c0_i32_0 = arith.constant 0 : i32
    %c0_i32_1 = arith.constant 0 : i32
    return %arg0, %c0_i32, %c0_i32_0 : i32, i32, i32
  }
}

</mosaic_0001>

<llo_original>
// kernel: classify.1
$region0: #{classify.1}
  #allocation0 [shape = 'u32[]', space=smem, size = 0x4, offset = 0x4, fixed_abs, tag = 'smem constant byte address 0x4 - core index']
  #allocation1 [shape = 'u32[144,128]{1,0:T(1,128)}', space=vmem, size = 0x12000, scoped, tag = 'internal scratch']
  #allocation2 [shape = 'bf16[2,18,18,4]{3,2,1,0:T(8,128)(2,1)}', space=vmem, size = 0x36000, scoped, tag = 'scratch operand']
  #allocation3 [shape = 'bf16[2,16,16,36]{3,2,1,0:T(16,128)(2,1)}', space=vmem, size = 0x20000, scoped, tag = 'scratch operand']
  %s0 = inlined_call_operand.vmem [shape: f32[4,16,16,4], index: 0, kind: input, shape index: {}]
  %s1 = inlined_call_operand.vmem [shape: bf16[36,128], index: 1, kind: input, shape index: {}]
  %s2 = inlined_call_operand.vmem [shape: f32[1,128], index: 2, kind: input, shape index: {}]
  %s3 = inlined_call_operand.vmem [shape: bf16[128,128], index: 3, kind: input, shape index: {}]
  %s4 = inlined_call_operand.vmem [shape: f32[1,128], index: 4, kind: input, shape index: {}]
  %s5 = inlined_call_operand.vmem [shape: f32[2,2,128], index: 5, kind: output, shape index: {}]
  %s6 = sld [smem:[#allocation0]]
  $region53: #{classify.1} parent=0
    _
  %s8 = ssub.s32 1, %s6
  %s9 = scalar_select 0, %s8, %s6
  loop: start=0, step=1, limit=4
  $region2: #{classify.1} parent=0 // loop_pre_header
    _
  $region3: #{classify.1} parent=0 // loop_header
    %s11 = sphi 0, %s15
    %p12 = scmp.ge.s32.totalorder %s11, 4
    %s21 = sphi 0, %s23
    %s24 = sphi 0, %s21
    %s25 = sphi 0, %s24
    %s41 = sphi 0, %s25
    %s45 = sphi 0, %s45
    %s47 = sphi 0, %s45
    %s48 = sphi 0, %s47
    %s62 = sphi 0, %s48
    %s66 = sphi 0, %s66
    %s68 = sphi 0, %s66
    %s69 = sphi 0, %s68
    %s83 = sphi 0, %s69
    %s87 = sphi 0, %s87
    %s89 = sphi 0, %s87
    %s90 = sphi 0, %s89
    %s104 = sphi 0, %s90
    %s108 = sphi 0, %s108
    %s110 = sphi 0, %s108
    %s111 = sphi 0, %s110
    %s125 = sphi 0, %s111
    %s131 = sphi 0, %s133
    %s134 = sphi 0, %s131
    %s135 = sphi 0, %s134
    %s151 = sphi 0, %s135
  $region4: #{classify.1} parent=0 // loop_header_branch
    %14 = sbr.rel (%p12) target = $region8
  $region5: #{classify.1} parent=0 // loop_body
    %s16 = ssub.s32 %s11, 1
    %s17 = ssub.s32 %s11, 2
    %s18 = sadd.s32 %s11, 1
    %s19 = ssub.s32 %s11, %s18
    %p20 = scmp.eq.s32.totalorder %s19, 0
    %s22 = sadd.s32 %s21, 1
    %s23 = scalar_select %p20, %s21, %s22
    %p26 = pneg %p20
    %p27 = scmp.eq.s32.totalorder %s11, 1
    %p28 = por %p26, %p27
    %p29 = scmp.ne.s32.totalorder %s21, %s24
    %p30 = scmp.eq.s32.totalorder %s11, 0
    %p31 = por %p29, %p30
    %p32 = scmp.ne.s32.totalorder %s21, %s24
    %p33 = scmp.eq.s32.totalorder %s16, 1
    %p34 = por %p32, %p33
    %p35 = scmp.ne.s32.totalorder %s24, %s25
    %p36 = scmp.eq.s32.totalorder %s16, 0
    %p37 = por %p35, %p36
    %p38 = scmp.ne.s32.totalorder %s24, %s25
    %p39 = scmp.eq.s32.totalorder %s17, 1
    %p40 = por %p38, %p39
    %p42 = scmp.ne.s32.totalorder %s25, %s41
    %p43 = scmp.eq.s32.totalorder %s17, 0
    %p44 = por %p42, %p43
    %s46 = sadd.s32 %s45, 1
    %p49 = scmp.eq.s32.totalorder %s11, 1
    %p50 = scmp.ne.s32.totalorder %s45, %s47
    %p51 = scmp.eq.s32.totalorder %s11, 0
    %p52 = por %p50, %p51
    %p53 = scmp.ne.s32.totalorder %s45, %s47
    %p54 = scmp.eq.s32.totalorder %s16, 1
    %p55 = por %p53, %p54
    %p56 = scmp.ne.s32.totalorder %s47, %s48
    %p57 = scmp.eq.s32.totalorder %s16, 0
    %p58 = por %p56, %p57
    %p59 = scmp.ne.s32.totalorder %s47, %s48
    %p60 = scmp.eq.s32.totalorder %s17, 1
    %p61 = por %p59, %p60
    %p63 = scmp.ne.s32.totalorder %s48, %s62
    %p64 = scmp.eq.s32.totalorder %s17, 0
    %p65 = por %p63, %p64
    %s67 = sadd.s32 %s66, 1
    %p70 = scmp.eq.s32.totalorder %s11, 1
    %p71 = scmp.ne.s32.totalorder %s66, %s68
    %p72 = scmp.eq.s32.totalorder %s11, 0
    %p73 = por %p71, %p72
    %p74 = scmp.ne.s32.totalorder %s66, %s68
    %p75 = scmp.eq.s32.totalorder %s16, 1
    %p76 = por %p74, %p75
    %p77 = scmp.ne.s32.totalorder %s68, %s69
    %p78 = scmp.eq.s32.totalorder %s16, 0
    %p79 = por %p77, %p78
    %p80 = scmp.ne.s32.totalorder %s68, %s69
    %p81 = scmp.eq.s32.totalorder %s17, 1
    %p82 = por %p80, %p81
    %p84 = scmp.ne.s32.totalorder %s69, %s83
    %p85 = scmp.eq.s32.totalorder %s17, 0
    %p86 = por %p84, %p85
    %s88 = sadd.s32 %s87, 1
    %p91 = scmp.eq.s32.totalorder %s11, 1
    %p92 = scmp.ne.s32.totalorder %s87, %s89
    %p93 = scmp.eq.s32.totalorder %s11, 0
    %p94 = por %p92, %p93
    %p95 = scmp.ne.s32.totalorder %s87, %s89
    %p96 = scmp.eq.s32.totalorder %s16, 1
    %p97 = por %p95, %p96
    %p98 = scmp.ne.s32.totalorder %s89, %s90
    %p99 = scmp.eq.s32.totalorder %s16, 0
    %p100 = por %p98, %p99
    %p101 = scmp.ne.s32.totalorder %s89, %s90
    %p102 = scmp.eq.s32.totalorder %s17, 1
    %p103 = por %p101, %p102
    %p105 = scmp.ne.s32.totalorder %s90, %s104
    %p106 = scmp.eq.s32.totalorder %s17, 0
    %p107 = por %p105, %p106
    %s109 = sadd.s32 %s108, 1
    %p112 = scmp.eq.s32.totalorder %s11, 1
    %p113 = scmp.ne.s32.totalorder %s108, %s110
    %p114 = scmp.eq.s32.totalorder %s11, 0
    %p115 = por %p113, %p114
    %p116 = scmp.ne.s32.totalorder %s108, %s110
    %p117 = scmp.eq.s32.totalorder %s16, 1
    %p118 = por %p116, %p117
    %p119 = scmp.ne.s32.totalorder %s110, %s111
    %p120 = scmp.eq.s32.totalorder %s16, 0
    %p121 = por %p119, %p120
    %p122 = scmp.ne.s32.totalorder %s110, %s111
    %p123 = scmp.eq.s32.totalorder %s17, 1
    %p124 = por %p122, %p123
    %p126 = scmp.ne.s32.totalorder %s111, %s125
    %p127 = scmp.eq.s32.totalorder %s17, 0
    %p128 = por %p126, %p127
    %s129 = ssub.s32 %s11, %s18
    %p130 = scmp.eq.s32.totalorder %s129, 0
    %s132 = sadd.s32 %s131, 1
    %s133 = scalar_select %p130, %s131, %s132
    %p136 = pneg %p130
    %p137 = scmp.eq.s32.totalorder %s11, 1
    %p138 = por %p136, %p137
    %p139 = scmp.ne.s32.totalorder %s131, %s134
    %p140 = scmp.eq.s32.totalorder %s11, 0
    %p141 = por %p139, %p140
    %p142 = scmp.ne.s32.totalorder %s131, %s134
    %p143 = scmp.eq.s32.totalorder %s16, 1
    %p144 = por %p142, %p143
    %p145 = scmp.ne.s32.totalorder %s134, %s135
    %p146 = scmp.eq.s32.totalorder %s16, 0
    %p147 = por %p145, %p146
    %p148 = scmp.ne.s32.totalorder %s134, %s135
    %p149 = scmp.eq.s32.totalorder %s17, 1
    %p150 = por %p148, %p149
    %p152 = scmp.ne.s32.totalorder %s135, %s151
    %p153 = scmp.eq.s32.totalorder %s17, 0
    %p154 = por %p152, %p153
    %p155 = scmp.le.s32.totalorder 1, %s11
    %p156 = scmp.lt.s32.totalorder %s11, 3
    %p157 = pnand %p155, %p156
    %p158 = pneg %p157
    // Predicated region
    $region9: #{classify.1} parent=5 // pred_check
      _
    $region10: #{classify.1} parent=5 // pred_check_branch
      %160 = sbr.rel (%p157) target = $region12
    $region11: #{classify.1} parent=5 // pred_region
      %s161 = ssub.s32 %s11, 1
      // Predicated region
      $region13: #{classify.1} parent=11 // pred_check
        %p162 = pneg %p58
      $region14: #{classify.1} parent=11 // pred_check_branch
        %164 = sbr.rel (%p162) target = $region16
      $region15: #{classify.1} parent=11 // pred_region
        _
      $region16: #{classify.1} parent=11 // pred_fallthru
        _
      // Predicated region
      $region17: #{classify.1} parent=11 // pred_check
        %p165 = pneg %p79
      $region18: #{classify.1} parent=11 // pred_check_branch
        %167 = sbr.rel (%p165) target = $region20
      $region19: #{classify.1} parent=11 // pred_region
        _
      $region20: #{classify.1} parent=11 // pred_fallthru
        _
      // Predicated region
      $region21: #{classify.1} parent=11 // pred_check
        %p168 = pneg %p100
      $region22: #{classify.1} parent=11 // pred_check_branch
        %170 = sbr.rel (%p168) target = $region24
      $region23: #{classify.1} parent=11 // pred_region
        _
      $region24: #{classify.1} parent=11 // pred_fallthru
        _
      // Predicated region
      $region25: #{classify.1} parent=11 // pred_check
        %p171 = pneg %p121
      $region26: #{classify.1} parent=11 // pred_check_branch
        %173 = sbr.rel (%p171) target = $region28
      $region27: #{classify.1} parent=11 // pred_region
        _
      $region28: #{classify.1} parent=11 // pred_fallthru
        _
    $region12: #{classify.1} parent=5 // pred_fallthru
      _
    %p174 = scmp.lt.s32.totalorder %s11, 2
    // Predicated region
    $region29: #{classify.1} parent=5 // pred_check
      %p175 = pneg %p174
    $region30: #{classify.1} parent=5 // pred_check_branch
      %177 = sbr.rel (%p175) target = $region32
    $region31: #{classify.1} parent=5 // pred_region
      // Predicated region
      $region33: #{classify.1} parent=31 // pred_check
        %p178 = pneg %p31
      $region34: #{classify.1} parent=31 // pred_check_branch
        %180 = sbr.rel (%p178) target = $region36
      $region35: #{classify.1} parent=31 // pred_region
        %s181 = smul.u32 2, %s11
        %p182 = scmp.lt.s32.totalorder %s181, 3
        %s183 = scalar_select %p182, %s181, 3
        %s184 = smul.addr %s183, 32
        %s185 = smul.addr %s184, 8
        %s186 = scalar_lea.vmem %s0, %s185
        %s187 = smul.u32 2, %s11
      $region36: #{classify.1} parent=31 // pred_fallthru
        _
    $region32: #{classify.1} parent=5 // pred_fallthru
      _
    %p188 = scmp.le.s32.totalorder 1, %s11
    %p189 = scmp.lt.s32.totalorder %s11, 3
    %p190 = pnand %p188, %p189
    %p191 = pneg %p190
    // Predicated region
    $region37: #{classify.1} parent=5 // pred_check
      _
    $region38: #{classify.1} parent=5 // pred_check_branch
      %193 = sbr.rel (%p190) target = $region40
    $region39: #{classify.1} parent=5 // pred_region
      %s194 = ssub.s32 %s11, 1
      %s195 = smul.u32 2, %s16
      %p196 = scmp.lt.s32.totalorder %s195, 3
      %s197 = scalar_select %p196, %s195, 3
      %s198 = smul.addr %s197, 32
      %s199 = smul.addr %s198, 8
      %s200 = scalar_lea.vmem %s0, %s199
      %p201 = pneg %p37
      %p202 = pneg %p34
      %p203 = pneg %p58
      %p204 = pneg %p55
      %p205 = pneg %p79
      %p206 = pneg %p76
      %p207 = pneg %p100
      %p208 = pneg %p97
      %p209 = pneg %p121
      %p210 = pneg %p118
      %p211 = pneg %p147
      %p212 = pneg %p144
      %p213 = scmp.lt.s32.totalorder %s16, 1
      %s214 = scalar_select %p213, %s16, 1
      %s215 = smul.addr %s214, 2
      %s216 = scalar_lea.vmem %s5, %s215
      %s217 = smul.u32 2, %s16
      %p218 = scmp.lt.s32.totalorder %s217, 3
      %s219 = scalar_select %p218, %s217, 3
      %s220 = smul.addr %s219, 32
      %s221 = smul.addr %s220, 8
      %s222 = scalar_lea.vmem %s0, %s221
      %s223 = smul.u32 2, %s16
      %p224 = scmp.lt.s32.totalorder %s16, 1
      %s225 = scalar_select %p224, %s16, 1
      %s226 = smul.addr %s225, 2
      %s227 = scalar_lea.vmem %s5, %s226
      %vm229 = vcmask 27648
      %230 = vst.msk [vmem:[#allocation2] sm:$0xf] %vm229, 0
      %231 = vst.msk [vmem:[#allocation2 + $0x4] sm:$0xf] %vm229, 0
      %vm232 = vcmask 24576
      %233 = vst.msk [vmem:[#allocation2 + $0x8] sm:$0x1] %vm232, 0
      %234 = vst.msk [vmem:[#allocation2 + $0xc] sm:$0xf] %vm229, 0
      %235 = vst.msk [vmem:[#allocation2 + $0x10] sm:$0xf] %vm229, 0
      %236 = vst.msk [vmem:[#allocation2 + $0x14] sm:$0x1] %vm232, 0
      %237 = vst.msk [vmem:[#allocation2 + $0x18] sm:$0xf] %vm229, 0
      %238 = vst.msk [vmem:[#allocation2 + $0x1c] sm:$0xf] %vm229, 0
      %239 = vst.msk [vmem:[#allocation2 + $0x20] sm:$0x1] %vm232, 0
      %240 = vst.msk [vmem:[#allocation2 + $0x24] sm:$0xf] %vm229, 0
      %241 = vst.msk [vmem:[#allocation2 + $0x28] sm:$0xf] %vm229, 0
      %242 = vst.msk [vmem:[#allocation2 + $0x2c] sm:$0x1] %vm232, 0
      %243 = vst.msk [vmem:[#allocation2 + $0x30] sm:$0xf] %vm229, 0
      %244 = vst.msk [vmem:[#allocation2 + $0x34] sm:$0xf] %vm229, 0
      %245 = vst.msk [vmem:[#allocation2 + $0x38] sm:$0x1] %vm232, 0
      %246 = vst.msk [vmem:[#allocation2 + $0x3c] sm:$0xf] %vm229, 0
      %247 = vst.msk [vmem:[#allocation2 + $0x40] sm:$0xf] %vm229, 0
      %248 = vst.msk [vmem:[#allocation2 + $0x44] sm:$0x1] %vm232, 0
      %249 = vst.msk [vmem:[#allocation2 + $0x48] sm:$0xf] %vm229, 0
      %250 = vst.msk [vmem:[#allocation2 + $0x4c] sm:$0xf] %vm229, 0
      %251 = vst.msk [vmem:[#allocation2 + $0x50] sm:$0x1] %vm232, 0
      %252 = vst.msk [vmem:[#allocation2 + $0x54] sm:$0xf] %vm229, 0
      %253 = vst.msk [vmem:[#allocation2 + $0x58] sm:$0xf] %vm229, 0
      %254 = vst.msk [vmem:[#allocation2 + $0x5c] sm:$0x1] %vm232, 0
      %255 = vst.msk [vmem:[#allocation2 + $0x60] sm:$0xf] %vm229, 0
      %256 = vst.msk [vmem:[#allocation2 + $0x64] sm:$0xf] %vm229, 0
      %257 = vst.msk [vmem:[#allocation2 + $0x68] sm:$0x1] %vm232, 0
      %258 = vst.msk [vmem:[#allocation2 + $0x6c] sm:$0xf] %vm229, 0
      %259 = vst.msk [vmem:[#allocation2 + $0x70] sm:$0xf] %vm229, 0
      %260 = vst.msk [vmem:[#allocation2 + $0x74] sm:$0x1] %vm232, 0
      %261 = vst.msk [vmem:[#allocation2 + $0x78] sm:$0xf] %vm229, 0
      %262 = vst.msk [vmem:[#allocation2 + $0x7c] sm:$0xf] %vm229, 0
      %263 = vst.msk [vmem:[#allocation2 + $0x80] sm:$0x1] %vm232, 0
      %264 = vst.msk [vmem:[#allocation2 + $0x84] sm:$0xf] %vm229, 0
      %265 = vst.msk [vmem:[#allocation2 + $0x88] sm:$0xf] %vm229, 0
      %266 = vst.msk [vmem:[#allocation2 + $0x8c] sm:$0x1] %vm232, 0
      %267 = vst.msk [vmem:[#allocation2 + $0x90] sm:$0xf] %vm229, 0
      %268 = vst.msk [vmem:[#allocation2 + $0x94] sm:$0xf] %vm229, 0
      %269 = vst.msk [vmem:[#allocation2 + $0x98] sm:$0x1] %vm232, 0
      %270 = vst.msk [vmem:[#allocation2 + $0x9c] sm:$0xf] %vm229, 0
      %271 = vst.msk [vmem:[#allocation2 + $0xa0] sm:$0xf] %vm229, 0
      %272 = vst.msk [vmem:[#allocation2 + $0xa4] sm:$0x1] %vm232, 0
      %273 = vst.msk [vmem:[#allocation2 + $0xa8] sm:$0xf] %vm229, 0
      %274 = vst.msk [vmem:[#allocation2 + $0xac] sm:$0xf] %vm229, 0
      %275 = vst.msk [vmem:[#allocation2 + $0xb0] sm:$0x1] %vm232, 0
      %276 = vst.msk [vmem:[#allocation2 + $0xb4] sm:$0xf] %vm229, 0
      %277 = vst.msk [vmem:[#allocation2 + $0xb8] sm:$0xf] %vm229, 0
      %278 = vst.msk [vmem:[#allocation2 + $0xbc] sm:$0x1] %vm232, 0
      %279 = vst.msk [vmem:[#allocation2 + $0xc0] sm:$0xf] %vm229, 0
      %280 = vst.msk [vmem:[#allocation2 + $0xc4] sm:$0xf] %vm229, 0
      %281 = vst.msk [vmem:[#allocation2 + $0xc8] sm:$0x1] %vm232, 0
      %282 = vst.msk [vmem:[#allocation2 + $0xcc] sm:$0xf] %vm229, 0
      %283 = vst.msk [vmem:[#allocation2 + $0xd0] sm:$0xf] %vm229, 0
      %284 = vst.msk [vmem:[#allocation2 + $0xd4] sm:$0x1] %vm232, 0
      %285 = vst.msk [vmem:[#allocation2 + $0xd8] sm:$0xf] %vm229, 0
      %286 = vst.msk [vmem:[#allocation2 + $0xdc] sm:$0xf] %vm229, 0
      %287 = vst.msk [vmem:[#allocation2 + $0xe0] sm:$0x1] %vm232, 0
      %288 = vst.msk [vmem:[#allocation2 + $0xe4] sm:$0xf] %vm229, 0
      %289 = vst.msk [vmem:[#allocation2 + $0xe8] sm:$0xf] %vm229, 0
      %290 = vst.msk [vmem:[#allocation2 + $0xec] sm:$0x1] %vm232, 0
      %291 = vst.msk [vmem:[#allocation2 + $0xf0] sm:$0xf] %vm229, 0
      %292 = vst.msk [vmem:[#allocation2 + $0xf4] sm:$0xf] %vm229, 0
      %293 = vst.msk [vmem:[#allocation2 + $0xf8] sm:$0x1] %vm232, 0
      %294 = vst.msk [vmem:[#allocation2 + $0xfc] sm:$0xf] %vm229, 0
      %295 = vst.msk [vmem:[#allocation2 + $0x100] sm:$0xf] %vm229, 0
      %296 = vst.msk [vmem:[#allocation2 + $0x104] sm:$0x1] %vm232, 0
      %297 = vst.msk [vmem:[#allocation2 + $0x108] sm:$0xf] %vm229, 0
      %298 = vst.msk [vmem:[#allocation2 + $0x10c] sm:$0xf] %vm229, 0
      %299 = vst.msk [vmem:[#allocation2 + $0x110] sm:$0x1] %vm232, 0
      %300 = vst.msk [vmem:[#allocation2 + $0x114] sm:$0xf] %vm229, 0
      %301 = vst.msk [vmem:[#allocation2 + $0x118] sm:$0xf] %vm229, 0
      %302 = vst.msk [vmem:[#allocation2 + $0x11c] sm:$0x1] %vm232, 0
      %303 = vst.msk [vmem:[#allocation2 + $0x120] sm:$0xf] %vm229, 0
      %304 = vst.msk [vmem:[#allocation2 + $0x124] sm:$0xf] %vm229, 0
      %305 = vst.msk [vmem:[#allocation2 + $0x128] sm:$0x1] %vm232, 0
      %306 = vst.msk [vmem:[#allocation2 + $0x12c] sm:$0xf] %vm229, 0
      %307 = vst.msk [vmem:[#allocation2 + $0x130] sm:$0xf] %vm229, 0
      %308 = vst.msk [vmem:[#allocation2 + $0x134] sm:$0x1] %vm232, 0
      %309 = vst.msk [vmem:[#allocation2 + $0x138] sm:$0xf] %vm229, 0
      %310 = vst.msk [vmem:[#allocation2 + $0x13c] sm:$0xf] %vm229, 0
      %311 = vst.msk [vmem:[#allocation2 + $0x140] sm:$0x1] %vm232, 0
      %312 = vst.msk [vmem:[#allocation2 + $0x144] sm:$0xf] %vm229, 0
      %313 = vst.msk [vmem:[#allocation2 + $0x148] sm:$0xf] %vm229, 0
      %314 = vst.msk [vmem:[#allocation2 + $0x14c] sm:$0x1] %vm232, 0
      %315 = vst.msk [vmem:[#allocation2 + $0x150] sm:$0xf] %vm229, 0
      %316 = vst.msk [vmem:[#allocation2 + $0x154] sm:$0xf] %vm229, 0
      %317 = vst.msk [vmem:[#allocation2 + $0x158] sm:$0x1] %vm232, 0
      %318 = vst.msk [vmem:[#allocation2 + $0x15c] sm:$0xf] %vm229, 0
      %319 = vst.msk [vmem:[#allocation2 + $0x160] sm:$0xf] %vm229, 0
      %320 = vst.msk [vmem:[#allocation2 + $0x164] sm:$0x1] %vm232, 0
      %321 = vst.msk [vmem:[#allocation2 + $0x168] sm:$0xf] %vm229, 0
      %322 = vst.msk [vmem:[#allocation2 + $0x16c] sm:$0xf] %vm229, 0
      %323 = vst.msk [vmem:[#allocation2 + $0x170] sm:$0x1] %vm232, 0
      %324 = vst.msk [vmem:[#allocation2 + $0x174] sm:$0xf] %vm229, 0
      %325 = vst.msk [vmem:[#allocation2 + $0x178] sm:$0xf] %vm229, 0
      %326 = vst.msk [vmem:[#allocation2 + $0x17c] sm:$0x1] %vm232, 0
      %327 = vst.msk [vmem:[#allocation2 + $0x180] sm:$0xf] %vm229, 0
      %328 = vst.msk [vmem:[#allocation2 + $0x184] sm:$0xf] %vm229, 0
      %329 = vst.msk [vmem:[#allocation2 + $0x188] sm:$0x1] %vm232, 0
      %330 = vst.msk [vmem:[#allocation2 + $0x18c] sm:$0xf] %vm229, 0
      %331 = vst.msk [vmem:[#allocation2 + $0x190] sm:$0xf] %vm229, 0
      %332 = vst.msk [vmem:[#allocation2 + $0x194] sm:$0x1] %vm232, 0
      %333 = vst.msk [vmem:[#allocation2 + $0x198] sm:$0xf] %vm229, 0
      %334 = vst.msk [vmem:[#allocation2 + $0x19c] sm:$0xf] %vm229, 0
      %335 = vst.msk [vmem:[#allocation2 + $0x1a0] sm:$0x1] %vm232, 0
      %336 = vst.msk [vmem:[#allocation2 + $0x1a4] sm:$0xf] %vm229, 0
      %337 = vst.msk [vmem:[#allocation2 + $0x1a8] sm:$0xf] %vm229, 0
      %338 = vst.msk [vmem:[#allocation2 + $0x1ac] sm:$0x1] %vm232, 0
      %v339 = vld [vmem:[%s222] sm:$0xff]
      %v340 = vld [vmem:[%s222 + $0x8] sm:$0xff]
      %v341 = vld [vmem:[%s222 + $0x10] sm:$0xff]
      %v342 = vld [vmem:[%s222 + $0x18] sm:$0xff]
      %v343 = vld [vmem:[%s222 + $0x20] sm:$0xff]
      %v344 = vld [vmem:[%s222 + $0x28] sm:$0xff]
      %v345 = vld [vmem:[%s222 + $0x30] sm:$0xff]
      %v346 = vld [vmem:[%s222 + $0x38] sm:$0xff]
      %v347 = vld [vmem:[%s222 + $0x40] sm:$0xff]
      %v348 = vld [vmem:[%s222 + $0x48] sm:$0xff]
      %v349 = vld [vmem:[%s222 + $0x50] sm:$0xff]
      %v350 = vld [vmem:[%s222 + $0x58] sm:$0xff]
      %v351 = vld [vmem:[%s222 + $0x60] sm:$0xff]
      %v352 = vld [vmem:[%s222 + $0x68] sm:$0xff]
      %v353 = vld [vmem:[%s222 + $0x70] sm:$0xff]
      %v354 = vld [vmem:[%s222 + $0x78] sm:$0xff]
      %v355 = vld [vmem:[%s222 + $0x80] sm:$0xff]
      %v356 = vld [vmem:[%s222 + $0x88] sm:$0xff]
      %v357 = vld [vmem:[%s222 + $0x90] sm:$0xff]
      %v358 = vld [vmem:[%s222 + $0x98] sm:$0xff]
      %v359 = vld [vmem:[%s222 + $0xa0] sm:$0xff]
      %v360 = vld [vmem:[%s222 + $0xa8] sm:$0xff]
      %v361 = vld [vmem:[%s222 + $0xb0] sm:$0xff]
      %v362 = vld [vmem:[%s222 + $0xb8] sm:$0xff]
      %v363 = vld [vmem:[%s222 + $0xc0] sm:$0xff]
      %v364 = vld [vmem:[%s222 + $0xc8] sm:$0xff]
      %v365 = vld [vmem:[%s222 + $0xd0] sm:$0xff]
      %v366 = vld [vmem:[%s222 + $0xd8] sm:$0xff]
      %v367 = vld [vmem:[%s222 + $0xe0] sm:$0xff]
      %v368 = vld [vmem:[%s222 + $0xe8] sm:$0xff]
      %v369 = vld [vmem:[%s222 + $0xf0] sm:$0xff]
      %v370 = vld [vmem:[%s222 + $0xf8] sm:$0xff]
      %v371 = vld [vmem:[%s222 + $0x100] sm:$0xff]
      %v372 = vld [vmem:[%s222 + $0x108] sm:$0xff]
      %v373 = vld [vmem:[%s222 + $0x110] sm:$0xff]
      %v374 = vld [vmem:[%s222 + $0x118] sm:$0xff]
      %v375 = vld [vmem:[%s222 + $0x120] sm:$0xff]
      %v376 = vld [vmem:[%s222 + $0x128] sm:$0xff]
      %v377 = vld [vmem:[%s222 + $0x130] sm:$0xff]
      %v378 = vld [vmem:[%s222 + $0x138] sm:$0xff]
      %v379 = vld [vmem:[%s222 + $0x140] sm:$0xff]
      %v380 = vld [vmem:[%s222 + $0x148] sm:$0xff]
      %v381 = vld [vmem:[%s222 + $0x150] sm:$0xff]
      %v382 = vld [vmem:[%s222 + $0x158] sm:$0xff]
      %v383 = vld [vmem:[%s222 + $0x160] sm:$0xff]
      %v384 = vld [vmem:[%s222 + $0x168] sm:$0xff]
      %v385 = vld [vmem:[%s222 + $0x170] sm:$0xff]
      %v386 = vld [vmem:[%s222 + $0x178] sm:$0xff]
      %v387 = vld [vmem:[%s222 + $0x180] sm:$0xff]
      %v388 = vld [vmem:[%s222 + $0x188] sm:$0xff]
      %v389 = vld [vmem:[%s222 + $0x190] sm:$0xff]
      %v390 = vld [vmem:[%s222 + $0x198] sm:$0xff]
      %v391 = vld [vmem:[%s222 + $0x1a0] sm:$0xff]
      %v392 = vld [vmem:[%s222 + $0x1a8] sm:$0xff]
      %v393 = vld [vmem:[%s222 + $0x1b0] sm:$0xff]
      %v394 = vld [vmem:[%s222 + $0x1b8] sm:$0xff]
      %v395 = vld [vmem:[%s222 + $0x1c0] sm:$0xff]
      %v396 = vld [vmem:[%s222 + $0x1c8] sm:$0xff]
      %v397 = vld [vmem:[%s222 + $0x1d0] sm:$0xff]
      %v398 = vld [vmem:[%s222 + $0x1d8] sm:$0xff]
      %v399 = vld [vmem:[%s222 + $0x1e0] sm:$0xff]
      %v400 = vld [vmem:[%s222 + $0x1e8] sm:$0xff]
      %v401 = vld [vmem:[%s222 + $0x1f0] sm:$0xff]
      %v402 = vld [vmem:[%s222 + $0x1f8] sm:$0xff]
      %v403 = vpack.c.bf16 %v340, %v339
      %v404 = vpack.c.bf16 %v342, %v341
      %v405 = vpack.c.bf16 %v344, %v343
      %v406 = vpack.c.bf16 %v346, %v345
      %v407 = vpack.c.bf16 %v348, %v347
      %v408 = vpack.c.bf16 %v350, %v349
      %v409 = vpack.c.bf16 %v352, %v351
      %v410 = vpack.c.bf16 %v354, %v353
      %v411 = vpack.c.bf16 %v356, %v355
      %v412 = vpack.c.bf16 %v358, %v357
      %v413 = vpack.c.bf16 %v360, %v359
      %v414 = vpack.c.bf16 %v362, %v361
      %v415 = vpack.c.bf16 %v364, %v363
      %v416 = vpack.c.bf16 %v366, %v365
      %v417 = vpack.c.bf16 %v368, %v367
      %v418 = vpack.c.bf16 %v370, %v369
      %v419 = vpack.c.bf16 %v372, %v371
      %v420 = vpack.c.bf16 %v374, %v373
      %v421 = vpack.c.bf16 %v376, %v375
      %v422 = vpack.c.bf16 %v378, %v377
      %v423 = vpack.c.bf16 %v380, %v379
      %v424 = vpack.c.bf16 %v382, %v381
      %v425 = vpack.c.bf16 %v384, %v383
      %v426 = vpack.c.bf16 %v386, %v385
      %v427 = vpack.c.bf16 %v388, %v387
      %v428 = vpack.c.bf16 %v390, %v389
      %v429 = vpack.c.bf16 %v392, %v391
      %v430 = vpack.c.bf16 %v394, %v393
      %v431 = vpack.c.bf16 %v396, %v395
      %v432 = vpack.c.bf16 %v398, %v397
      %v433 = vpack.c.bf16 %v400, %v399
      %v434 = vpack.c.bf16 %v402, %v401
      %v467 = vunpack.c.l.b16 %v403
      %v468 = vunpack.c.h.b16 %v403
      %v469 = vunpack.c.l.b16 %v404
      %v470 = vunpack.c.h.b16 %v404
      %v471 = vunpack.c.l.b16 %v405
      %v472 = vunpack.c.h.b16 %v405
      %v473 = vunpack.c.l.b16 %v406
      %v474 = vunpack.c.h.b16 %v406
      %v475 = vunpack.c.l.b16 %v407
      %v476 = vunpack.c.h.b16 %v407
      %v477 = vunpack.c.l.b16 %v408
      %v478 = vunpack.c.h.b16 %v408
      %v479 = vunpack.c.l.b16 %v409
      %v480 = vunpack.c.h.b16 %v409
      %v481 = vunpack.c.l.b16 %v410
      %v482 = vunpack.c.h.b16 %v410
      %v483 = vunpack.c.l.b16 %v411
      %v484 = vunpack.c.h.b16 %v411
      %v485 = vunpack.c.l.b16 %v412
      %v486 = vunpack.c.h.b16 %v412
      %v487 = vunpack.c.l.b16 %v413
      %v488 = vunpack.c.h.b16 %v413
      %v489 = vunpack.c.l.b16 %v414
      %v490 = vunpack.c.h.b16 %v414
      %v491 = vunpack.c.l.b16 %v415
      %v492 = vunpack.c.h.b16 %v415
      %v493 = vunpack.c.l.b16 %v416
      %v494 = vunpack.c.h.b16 %v416
      %v495 = vunpack.c.l.b16 %v417
      %v496 = vunpack.c.h.b16 %v417
      %v497 = vunpack.c.l.b16 %v418
      %v498 = vunpack.c.h.b16 %v418
      %v499 = vunpack.c.l.b16 %v419
      %v500 = vunpack.c.h.b16 %v419
      %v501 = vunpack.c.l.b16 %v420
      %v502 = vunpack.c.h.b16 %v420
      %v503 = vunpack.c.l.b16 %v421
      %v504 = vunpack.c.h.b16 %v421
      %v505 = vunpack.c.l.b16 %v422
      %v506 = vunpack.c.h.b16 %v422
      %v507 = vunpack.c.l.b16 %v423
      %v508 = vunpack.c.h.b16 %v423
      %v509 = vunpack.c.l.b16 %v424
      %v510 = vunpack.c.h.b16 %v424
      %v511 = vunpack.c.l.b16 %v425
      %v512 = vunpack.c.h.b16 %v425
      %v513 = vunpack.c.l.b16 %v426
      %v514 = vunpack.c.h.b16 %v426
      %v515 = vunpack.c.l.b16 %v427
      %v516 = vunpack.c.h.b16 %v427
      %v517 = vunpack.c.l.b16 %v428
      %v518 = vunpack.c.h.b16 %v428
      %v519 = vunpack.c.l.b16 %v429
      %v520 = vunpack.c.h.b16 %v429
      %v521 = vunpack.c.l.b16 %v430
      %v522 = vunpack.c.h.b16 %v430
      %v523 = vunpack.c.l.b16 %v431
      %v524 = vunpack.c.h.b16 %v431
      %v525 = vunpack.c.l.b16 %v432
      %v526 = vunpack.c.h.b16 %v432
      %v527 = vunpack.c.l.b16 %v433
      %v528 = vunpack.c.h.b16 %v433
      %v529 = vunpack.c.l.b16 %v434
      %v530 = vunpack.c.h.b16 %v434
      %v531 = vpack.c.b16 %v467, %v467
      %v532 = vpack.c.b16 %v468, %v468
      %v533 = vpack.c.b16 %v469, %v469
      %v534 = vpack.c.b16 %v470, %v470
      %v535 = vpack.c.b16 %v471, %v471
      %v536 = vpack.c.b16 %v472, %v472
      %v537 = vpack.c.b16 %v473, %v473
      %v538 = vpack.c.b16 %v474, %v474
      %v539 = vpack.c.b16 %v475, %v475
      %v540 = vpack.c.b16 %v476, %v476
      %v541 = vpack.c.b16 %v477, %v477
      %v542 = vpack.c.b16 %v478, %v478
      %v543 = vpack.c.b16 %v479, %v479
      %v544 = vpack.c.b16 %v480, %v480
      %v545 = vpack.c.b16 %v481, %v481
      %v546 = vpack.c.b16 %v482, %v482
      %v547 = vpack.c.b16 %v483, %v483
      %v548 = vpack.c.b16 %v484, %v484
      %v549 = vpack.c.b16 %v485, %v485
      %v550 = vpack.c.b16 %v486, %v486
      %v551 = vpack.c.b16 %v487, %v487
      %v552 = vpack.c.b16 %v488, %v488
      %v553 = vpack.c.b16 %v489, %v489
      %v554 = vpack.c.b16 %v490, %v490
      %v555 = vpack.c.b16 %v491, %v491
      %v556 = vpack.c.b16 %v492, %v492
      %v557 = vpack.c.b16 %v493, %v493
      %v558 = vpack.c.b16 %v494, %v494
      %v559 = vpack.c.b16 %v495, %v495
      %v560 = vpack.c.b16 %v496, %v496
      %v561 = vpack.c.b16 %v497, %v497
      %v562 = vpack.c.b16 %v498, %v498
      %v563 = vpack.c.b16 %v499, %v499
      %v564 = vpack.c.b16 %v500, %v500
      %v565 = vpack.c.b16 %v501, %v501
      %v566 = vpack.c.b16 %v502, %v502
      %v567 = vpack.c.b16 %v503, %v503
      %v568 = vpack.c.b16 %v504, %v504
      %v569 = vpack.c.b16 %v505, %v505
      %v570 = vpack.c.b16 %v506, %v506
      %v571 = vpack.c.b16 %v507, %v507
      %v572 = vpack.c.b16 %v508, %v508
      %v573 = vpack.c.b16 %v509, %v509
      %v574 = vpack.c.b16 %v510, %v510
      %v575 = vpack.c.b16 %v511, %v511
      %v576 = vpack.c.b16 %v512, %v512
      %v577 = vpack.c.b16 %v513, %v513
      %v578 = vpack.c.b16 %v514, %v514
      %v579 = vpack.c.b16 %v515, %v515
      %v580 = vpack.c.b16 %v516, %v516
      %v581 = vpack.c.b16 %v517, %v517
      %v582 = vpack.c.b16 %v518, %v518
      %v583 = vpack.c.b16 %v519, %v519
      %v584 = vpack.c.b16 %v520, %v520
      %v585 = vpack.c.b16 %v521, %v521
      %v586 = vpack.c.b16 %v522, %v522
      %v587 = vpack.c.b16 %v523, %v523
      %v588 = vpack.c.b16 %v524, %v524
      %v589 = vpack.c.b16 %v525, %v525
      %v590 = vpack.c.b16 %v526, %v526
      %v591 = vpack.c.b16 %v527, %v527
      %v592 = vpack.c.b16 %v528, %v528
      %v593 = vpack.c.b16 %v529, %v529
      %v594 = vpack.c.b16 %v530, %v530
      %vm595 = vsmask.f32 256
      %vm596 = vsmask.f32 4368
      %vm597 = vmor %vm595, %vm596
      %v599 = vshrl.u32 %v531, 16
      %v601 = vrot.slane %v599, 7
      %v602 = vshll.u32 %v531, 16
      %v604 = vor.u32 %v601, %v602
      %v605 = vrot.slane %v601, 4
      %v607 = vshrl.u32 %v532, 16
      %v609 = vrot.slane %v607, 7
      %v610 = vshll.u32 %v532, 16
      %v612 = vor.u32 %v609, %v610
      %v613 = vsel %vm597, %v605, %v612
      %v614 = vrot.slane %v609, 4
      %v616 = vshrl.u32 %v533, 16
      %v618 = vrot.slane %v616, 7
      %v619 = vshll.u32 %v533, 16
      %v621 = vor.u32 %v618, %v619
      %v622 = vrot.slane %v618, 4
      %v624 = vshrl.u32 %v534, 16
      %v626 = vrot.slane %v624, 7
      %v627 = vshll.u32 %v534, 16
      %v629 = vor.u32 %v626, %v627
      %v630 = vsel %vm597, %v622, %v629
      %v631 = vrot.slane %v626, 4
      %v633 = vshrl.u32 %v535, 16
      %v635 = vrot.slane %v633, 7
      %v636 = vshll.u32 %v535, 16
      %v638 = vor.u32 %v635, %v636
      %v639 = vrot.slane %v635, 4
      %v641 = vshrl.u32 %v536, 16
      %v643 = vrot.slane %v641, 7
      %v644 = vshll.u32 %v536, 16
      %v646 = vor.u32 %v643, %v644
      %v647 = vsel %vm597, %v639, %v646
      %v648 = vrot.slane %v643, 4
      %v650 = vshrl.u32 %v537, 16
      %v652 = vrot.slane %v650, 7
      %v653 = vshll.u32 %v537, 16
      %v655 = vor.u32 %v652, %v653
      %v656 = vrot.slane %v652, 4
      %v658 = vshrl.u32 %v538, 16
      %v660 = vrot.slane %v658, 7
      %v661 = vshll.u32 %v538, 16
      %v663 = vor.u32 %v660, %v661
      %v664 = vsel %vm597, %v656, %v663
      %v665 = vrot.slane %v660, 4
      %v667 = vshrl.u32 %v539, 16
      %v669 = vrot.slane %v667, 7
      %v670 = vshll.u32 %v539, 16
      %v672 = vor.u32 %v669, %v670
      %v673 = vrot.slane %v669, 4
      %v675 = vshrl.u32 %v540, 16
      %v677 = vrot.slane %v675, 7
      %v678 = vshll.u32 %v540, 16
      %v680 = vor.u32 %v677, %v678
      %v681 = vsel %vm597, %v673, %v680
      %v682 = vrot.slane %v677, 4
      %v684 = vshrl.u32 %v541, 16
      %v686 = vrot.slane %v684, 7
      %v687 = vshll.u32 %v541, 16
      %v689 = vor.u32 %v686, %v687
      %v690 = vrot.slane %v686, 4
      %v692 = vshrl.u32 %v542, 16
      %v694 = vrot.slane %v692, 7
      %v695 = vshll.u32 %v542, 16
      %v697 = vor.u32 %v694, %v695
      %v698 = vsel %vm597, %v690, %v697
      %v699 = vrot.slane %v694, 4
      %v701 = vshrl.u32 %v543, 16
      %v703 = vrot.slane %v701, 7
      %v704 = vshll.u32 %v543, 16
      %v706 = vor.u32 %v703, %v704
      %v707 = vrot.slane %v703, 4
      %v709 = vshrl.u32 %v544, 16
      %v711 = vrot.slane %v709, 7
      %v712 = vshll.u32 %v544, 16
      %v714 = vor.u32 %v711, %v712
      %v715 = vsel %vm597, %v707, %v714
      %v716 = vrot.slane %v711, 4
      %v718 = vshrl.u32 %v545, 16
      %v720 = vrot.slane %v718, 7
      %v721 = vshll.u32 %v545, 16
      %v723 = vor.u32 %v720, %v721
      %v724 = vrot.slane %v720, 4
      %v726 = vshrl.u32 %v546, 16
      %v728 = vrot.slane %v726, 7
      %v729 = vshll.u32 %v546, 16
      %v731 = vor.u32 %v728, %v729
      %v732 = vsel %vm597, %v724, %v731
      %v733 = vrot.slane %v728, 4
      %v735 = vshrl.u32 %v547, 16
      %v737 = vrot.slane %v735, 7
      %v738 = vshll.u32 %v547, 16
      %v740 = vor.u32 %v737, %v738
      %v741 = vrot.slane %v737, 4
      %v743 = vshrl.u32 %v548, 16
      %v745 = vrot.slane %v743, 7
      %v746 = vshll.u32 %v548, 16
      %v748 = vor.u32 %v745, %v746
      %v749 = vsel %vm597, %v741, %v748
      %v750 = vrot.slane %v745, 4
      %v752 = vshrl.u32 %v549, 16
      %v754 = vrot.slane %v752, 7
      %v755 = vshll.u32 %v549, 16
      %v757 = vor.u32 %v754, %v755
      %v758 = vrot.slane %v754, 4
      %v760 = vshrl.u32 %v550, 16
      %v762 = vrot.slane %v760, 7
      %v763 = vshll.u32 %v550, 16
      %v765 = vor.u32 %v762, %v763
      %v766 = vsel %vm597, %v758, %v765
      %v767 = vrot.slane %v762, 4
      %v769 = vshrl.u32 %v551, 16
      %v771 = vrot.slane %v769, 7
      %v772 = vshll.u32 %v551, 16
      %v774 = vor.u32 %v771, %v772
      %v775 = vrot.slane %v771, 4
      %v777 = vshrl.u32 %v552, 16
      %v779 = vrot.slane %v777, 7
      %v780 = vshll.u32 %v552, 16
      %v782 = vor.u32 %v779, %v780
      %v783 = vsel %vm597, %v775, %v782
      %v784 = vrot.slane %v779, 4
      %v786 = vshrl.u32 %v553, 16
      %v788 = vrot.slane %v786, 7
      %v789 = vshll.u32 %v553, 16
      %v791 = vor.u32 %v788, %v789
      %v792 = vrot.slane %v788, 4
      %v794 = vshrl.u32 %v554, 16
      %v796 = vrot.slane %v794, 7
      %v797 = vshll.u32 %v554, 16
      %v799 = vor.u32 %v796, %v797
      %v800 = vsel %vm597, %v792, %v799
      %v801 = vrot.slane %v796, 4
      %v803 = vshrl.u32 %v555, 16
      %v805 = vrot.slane %v803, 7
      %v806 = vshll.u32 %v555, 16
      %v808 = vor.u32 %v805, %v806
      %v809 = vrot.slane %v805, 4
      %v811 = vshrl.u32 %v556, 16
      %v813 = vrot.slane %v811, 7
      %v814 = vshll.u32 %v556, 16
      %v816 = vor.u32 %v813, %v814
      %v817 = vsel %vm597, %v809, %v816
      %v818 = vrot.slane %v813, 4
      %v820 = vshrl.u32 %v557, 16
      %v822 = vrot.slane %v820, 7
      %v823 = vshll.u32 %v557, 16
      %v825 = vor.u32 %v822, %v823
      %v826 = vrot.slane %v822, 4
      %v828 = vshrl.u32 %v558, 16
      %v830 = vrot.slane %v828, 7
      %v831 = vshll.u32 %v558, 16
      %v833 = vor.u32 %v830, %v831
      %v834 = vsel %vm597, %v826, %v833
      %v835 = vrot.slane %v830, 4
      %v837 = vshrl.u32 %v559, 16
      %v839 = vrot.slane %v837, 7
      %v840 = vshll.u32 %v559, 16
      %v842 = vor.u32 %v839, %v840
      %v843 = vrot.slane %v839, 4
      %v845 = vshrl.u32 %v560, 16
      %v847 = vrot.slane %v845, 7
      %v848 = vshll.u32 %v560, 16
      %v850 = vor.u32 %v847, %v848
      %v851 = vsel %vm597, %v843, %v850
      %v852 = vrot.slane %v847, 4
      %v854 = vshrl.u32 %v561, 16
      %v856 = vrot.slane %v854, 7
      %v857 = vshll.u32 %v561, 16
      %v859 = vor.u32 %v856, %v857
      %v860 = vrot.slane %v856, 4
      %v862 = vshrl.u32 %v562, 16
      %v864 = vrot.slane %v862, 7
      %v865 = vshll.u32 %v562, 16
      %v867 = vor.u32 %v864, %v865
      %v868 = vsel %vm597, %v860, %v867
      %v869 = vrot.slane %v864, 4
      %v871 = vshrl.u32 %v563, 16
      %v873 = vrot.slane %v871, 7
      %v874 = vshll.u32 %v563, 16
      %v876 = vor.u32 %v873, %v874
      %v877 = vrot.slane %v873, 4
      %v879 = vshrl.u32 %v564, 16
      %v881 = vrot.slane %v879, 7
      %v882 = vshll.u32 %v564, 16
      %v884 = vor.u32 %v881, %v882
      %v885 = vsel %vm597, %v877, %v884
      %v886 = vrot.slane %v881, 4
      %v888 = vshrl.u32 %v565, 16
      %v890 = vrot.slane %v888, 7
      %v891 = vshll.u32 %v565, 16
      %v893 = vor.u32 %v890, %v891
      %v894 = vrot.slane %v890, 4
      %v896 = vshrl.u32 %v566, 16
      %v898 = vrot.slane %v896, 7
      %v899 = vshll.u32 %v566, 16
      %v901 = vor.u32 %v898, %v899
      %v902 = vsel %vm597, %v894, %v901
      %v903 = vrot.slane %v898, 4
      %v905 = vshrl.u32 %v567, 16
      %v907 = vrot.slane %v905, 7
      %v908 = vshll.u32 %v567, 16
      %v910 = vor.u32 %v907, %v908
      %v911 = vrot.slane %v907, 4
      %v913 = vshrl.u32 %v568, 16
      %v915 = vrot.slane %v913, 7
      %v916 = vshll.u32 %v568, 16
      %v918 = vor.u32 %v915, %v916
      %v919 = vsel %vm597, %v911, %v918
      %v920 = vrot.slane %v915, 4
      %v922 = vshrl.u32 %v569, 16
      %v924 = vrot.slane %v922, 7
      %v925 = vshll.u32 %v569, 16
      %v927 = vor.u32 %v924, %v925
      %v928 = vrot.slane %v924, 4
      %v930 = vshrl.u32 %v570, 16
      %v932 = vrot.slane %v930, 7
      %v933 = vshll.u32 %v570, 16
      %v935 = vor.u32 %v932, %v933
      %v936 = vsel %vm597, %v928, %v935
      %v937 = vrot.slane %v932, 4
      %v939 = vshrl.u32 %v571, 16
      %v941 = vrot.slane %v939, 7
      %v942 = vshll.u32 %v571, 16
      %v944 = vor.u32 %v941, %v942
      %v945 = vrot.slane %v941, 4
      %v947 = vshrl.u32 %v572, 16
      %v949 = vrot.slane %v947, 7
      %v950 = vshll.u32 %v572, 16
      %v952 = vor.u32 %v949, %v950
      %v953 = vsel %vm597, %v945, %v952
      %v954 = vrot.slane %v949, 4
      %v956 = vshrl.u32 %v573, 16
      %v958 = vrot.slane %v956, 7
      %v959 = vshll.u32 %v573, 16
      %v961 = vor.u32 %v958, %v959
      %v962 = vrot.slane %v958, 4
      %v964 = vshrl.u32 %v574, 16
      %v966 = vrot.slane %v964, 7
      %v967 = vshll.u32 %v574, 16
      %v969 = vor.u32 %v966, %v967
      %v970 = vsel %vm597, %v962, %v969
      %v971 = vrot.slane %v966, 4
      %v973 = vshrl.u32 %v575, 16
      %v975 = vrot.slane %v973, 7
      %v976 = vshll.u32 %v575, 16
      %v978 = vor.u32 %v975, %v976
      %v979 = vrot.slane %v975, 4
      %v981 = vshrl.u32 %v576, 16
      %v983 = vrot.slane %v981, 7
      %v984 = vshll.u32 %v576, 16
      %v986 = vor.u32 %v983, %v984
      %v987 = vsel %vm597, %v979, %v986
      %v988 = vrot.slane %v983, 4
      %v990 = vshrl.u32 %v577, 16
      %v992 = vrot.slane %v990, 7
      %v993 = vshll.u32 %v577, 16
      %v995 = vor.u32 %v992, %v993
      %v996 = vrot.slane %v992, 4
      %v998 = vshrl.u32 %v578, 16
      %v1000 = vrot.slane %v998, 7
      %v1001 = vshll.u32 %v578, 16
      %v1003 = vor.u32 %v1000, %v1001
      %v1004 = vsel %vm597, %v996, %v1003
      %v1005 = vrot.slane %v1000, 4
      %v1007 = vshrl.u32 %v579, 16
      %v1009 = vrot.slane %v1007, 7
      %v1010 = vshll.u32 %v579, 16
      %v1012 = vor.u32 %v1009, %v1010
      %v1013 = vrot.slane %v1009, 4
      %v1015 = vshrl.u32 %v580, 16
      %v1017 = vrot.slane %v1015, 7
      %v1018 = vshll.u32 %v580, 16
      %v1020 = vor.u32 %v1017, %v1018
      %v1021 = vsel %vm597, %v1013, %v1020
      %v1022 = vrot.slane %v1017, 4
      %v1024 = vshrl.u32 %v581, 16
      %v1026 = vrot.slane %v1024, 7
      %v1027 = vshll.u32 %v581, 16
      %v1029 = vor.u32 %v1026, %v1027
      %v1030 = vrot.slane %v1026, 4
      %v1032 = vshrl.u32 %v582, 16
      %v1034 = vrot.slane %v1032, 7
      %v1035 = vshll.u32 %v582, 16
      %v1037 = vor.u32 %v1034, %v1035
      %v1038 = vsel %vm597, %v1030, %v1037
      %v1039 = vrot.slane %v1034, 4
      %v1041 = vshrl.u32 %v583, 16
      %v1043 = vrot.slane %v1041, 7
      %v1044 = vshll.u32 %v583, 16
      %v1046 = vor.u32 %v1043, %v1044
      %v1047 = vrot.slane %v1043, 4
      %v1049 = vshrl.u32 %v584, 16
      %v1051 = vrot.slane %v1049, 7
      %v1052 = vshll.u32 %v584, 16
      %v1054 = vor.u32 %v1051, %v1052
      %v1055 = vsel %vm597, %v1047, %v1054
      %v1056 = vrot.slane %v1051, 4
      %v1058 = vshrl.u32 %v585, 16
      %v1060 = vrot.slane %v1058, 7
      %v1061 = vshll.u32 %v585, 16
      %v1063 = vor.u32 %v1060, %v1061
      %v1064 = vrot.slane %v1060, 4
      %v1066 = vshrl.u32 %v586, 16
      %v1068 = vrot.slane %v1066, 7
      %v1069 = vshll.u32 %v586, 16
      %v1071 = vor.u32 %v1068, %v1069
      %v1072 = vsel %vm597, %v1064, %v1071
      %v1073 = vrot.slane %v1068, 4
      %v1075 = vshrl.u32 %v587, 16
      %v1077 = vrot.slane %v1075, 7
      %v1078 = vshll.u32 %v587, 16
      %v1080 = vor.u32 %v1077, %v1078
      %v1081 = vrot.slane %v1077, 4
      %v1083 = vshrl.u32 %v588, 16
      %v1085 = vrot.slane %v1083, 7
      %v1086 = vshll.u32 %v588, 16
      %v1088 = vor.u32 %v1085, %v1086
      %v1089 = vsel %vm597, %v1081, %v1088
      %v1090 = vrot.slane %v1085, 4
      %v1092 = vshrl.u32 %v589, 16
      %v1094 = vrot.slane %v1092, 7
      %v1095 = vshll.u32 %v589, 16
      %v1097 = vor.u32 %v1094, %v1095
      %v1098 = vrot.slane %v1094, 4
      %v1100 = vshrl.u32 %v590, 16
      %v1102 = vrot.slane %v1100, 7
      %v1103 = vshll.u32 %v590, 16
      %v1105 = vor.u32 %v1102, %v1103
      %v1106 = vsel %vm597, %v1098, %v1105
      %v1107 = vrot.slane %v1102, 4
      %v1109 = vshrl.u32 %v591, 16
      %v1111 = vrot.slane %v1109, 7
      %v1112 = vshll.u32 %v591, 16
      %v1114 = vor.u32 %v1111, %v1112
      %v1115 = vrot.slane %v1111, 4
      %v1117 = vshrl.u32 %v592, 16
      %v1119 = vrot.slane %v1117, 7
      %v1120 = vshll.u32 %v592, 16
      %v1122 = vor.u32 %v1119, %v1120
      %v1123 = vsel %vm597, %v1115, %v1122
      %v1124 = vrot.slane %v1119, 4
      %v1126 = vshrl.u32 %v593, 16
      %v1128 = vrot.slane %v1126, 7
      %v1129 = vshll.u32 %v593, 16
      %v1131 = vor.u32 %v1128, %v1129
      %v1132 = vrot.slane %v1128, 4
      %v1134 = vshrl.u32 %v594, 16
      %v1136 = vrot.slane %v1134, 7
      %v1137 = vshll.u32 %v594, 16
      %v1139 = vor.u32 %v1136, %v1137
      %v1140 = vsel %vm597, %v1132, %v1139
      %v1141 = vrot.slane %v1136, 4
      %s1238 = scalar_lea.vmem [#allocation2], 12
      %vm1239 = vcmask 27648
      %vm1240 = vsmask.f32 7938
      %vm1241 = vmand %vm1239, %vm1240
      %v1242 = vld [vmem:[%s1238] sm:$0xf]
      %v1243 = vsel %vm1241, %v604, %v1242
      %1244 = vst [vmem:[%s1238] sm:$0xf] %v1243
      %1245 = vst.msk [vmem:[%s1238 + $0x4] sm:$0xf] %vm229, %v613
      %vm1246 = vcmask 24576
      %vm1247 = vmand %vm1246, %vm595
      %v1248 = vld [vmem:[%s1238 + $0x8] sm:$0x1]
      %v1249 = vsel %vm1247, %v614, %v1248
      %1250 = vst [vmem:[%s1238 + $0x8] sm:$0x1] %v1249
      %v1251 = vld [vmem:[%s1238 + $0xc] sm:$0xf]
      %v1252 = vsel %vm1241, %v621, %v1251
      %1253 = vst [vmem:[%s1238 + $0xc] sm:$0xf] %v1252
      %1254 = vst.msk [vmem:[%s1238 + $0x10] sm:$0xf] %vm229, %v630
      %v1255 = vld [vmem:[%s1238 + $0x14] sm:$0x1]
      %v1256 = vsel %vm1247, %v631, %v1255
      %1257 = vst [vmem:[%s1238 + $0x14] sm:$0x1] %v1256
      %v1258 = vld [vmem:[%s1238 + $0x18] sm:$0xf]
      %v1259 = vsel %vm1241, %v638, %v1258
      %1260 = vst [vmem:[%s1238 + $0x18] sm:$0xf] %v1259
      %1261 = vst.msk [vmem:[%s1238 + $0x1c] sm:$0xf] %vm229, %v647
      %v1262 = vld [vmem:[%s1238 + $0x20] sm:$0x1]
      %v1263 = vsel %vm1247, %v648, %v1262
      %1264 = vst [vmem:[%s1238 + $0x20] sm:$0x1] %v1263
      %v1265 = vld [vmem:[%s1238 + $0x24] sm:$0xf]
      %v1266 = vsel %vm1241, %v655, %v1265
      %1267 = vst [vmem:[%s1238 + $0x24] sm:$0xf] %v1266
      %1268 = vst.msk [vmem:[%s1238 + $0x28] sm:$0xf] %vm229, %v664
      %v1269 = vld [vmem:[%s1238 + $0x2c] sm:$0x1]
      %v1270 = vsel %vm1247, %v665, %v1269
      %1271 = vst [vmem:[%s1238 + $0x2c] sm:$0x1] %v1270
      %v1272 = vld [vmem:[%s1238 + $0x30] sm:$0xf]
      %v1273 = vsel %vm1241, %v672, %v1272
      %1274 = vst [vmem:[%s1238 + $0x30] sm:$0xf] %v1273
      %1275 = vst.msk [vmem:[%s1238 + $0x34] sm:$0xf] %vm229, %v681
      %v1276 = vld [vmem:[%s1238 + $0x38] sm:$0x1]
      %v1277 = vsel %vm1247, %v682, %v1276
      %1278 = vst [vmem:[%s1238 + $0x38] sm:$0x1] %v1277
      %v1279 = vld [vmem:[%s1238 + $0x3c] sm:$0xf]
      %v1280 = vsel %vm1241, %v689, %v1279
      %1281 = vst [vmem:[%s1238 + $0x3c] sm:$0xf] %v1280
      %1282 = vst.msk [vmem:[%s1238 + $0x40] sm:$0xf] %vm229, %v698
      %v1283 = vld [vmem:[%s1238 + $0x44] sm:$0x1]
      %v1284 = vsel %vm1247, %v699, %v1283
      %1285 = vst [vmem:[%s1238 + $0x44] sm:$0x1] %v1284
      %v1286 = vld [vmem:[%s1238 + $0x48] sm:$0xf]
      %v1287 = vsel %vm1241, %v706, %v1286
      %1288 = vst [vmem:[%s1238 + $0x48] sm:$0xf] %v1287
      %1289 = vst.msk [vmem:[%s1238 + $0x4c] sm:$0xf] %vm229, %v715
      %v1290 = vld [vmem:[%s1238 + $0x50] sm:$0x1]
      %v1291 = vsel %vm1247, %v716, %v1290
      %1292 = vst [vmem:[%s1238 + $0x50] sm:$0x1] %v1291
      %v1293 = vld [vmem:[%s1238 + $0x54] sm:$0xf]
      %v1294 = vsel %vm1241, %v723, %v1293
      %1295 = vst [vmem:[%s1238 + $0x54] sm:$0xf] %v1294
      %1296 = vst.msk [vmem:[%s1238 + $0x58] sm:$0xf] %vm229, %v732
      %v1297 = vld [vmem:[%s1238 + $0x5c] sm:$0x1]
      %v1298 = vsel %vm1247, %v733, %v1297
      %1299 = vst [vmem:[%s1238 + $0x5c] sm:$0x1] %v1298
      %v1300 = vld [vmem:[%s1238 + $0x60] sm:$0xf]
      %v1301 = vsel %vm1241, %v740, %v1300
      %1302 = vst [vmem:[%s1238 + $0x60] sm:$0xf] %v1301
      %1303 = vst.msk [vmem:[%s1238 + $0x64] sm:$0xf] %vm229, %v749
      %v1304 = vld [vmem:[%s1238 + $0x68] sm:$0x1]
      %v1305 = vsel %vm1247, %v750, %v1304
      %1306 = vst [vmem:[%s1238 + $0x68] sm:$0x1] %v1305
      %v1307 = vld [vmem:[%s1238 + $0x6c] sm:$0xf]
      %v1308 = vsel %vm1241, %v757, %v1307
      %1309 = vst [vmem:[%s1238 + $0x6c] sm:$0xf] %v1308
      %1310 = vst.msk [vmem:[%s1238 + $0x70] sm:$0xf] %vm229, %v766
      %v1311 = vld [vmem:[%s1238 + $0x74] sm:$0x1]
      %v1312 = vsel %vm1247, %v767, %v1311
      %1313 = vst [vmem:[%s1238 + $0x74] sm:$0x1] %v1312
      %v1314 = vld [vmem:[%s1238 + $0x78] sm:$0xf]
      %v1315 = vsel %vm1241, %v774, %v1314
      %1316 = vst [vmem:[%s1238 + $0x78] sm:$0xf] %v1315
      %1317 = vst.msk [vmem:[%s1238 + $0x7c] sm:$0xf] %vm229, %v783
      %v1318 = vld [vmem:[%s1238 + $0x80] sm:$0x1]
      %v1319 = vsel %vm1247, %v784, %v1318
      %1320 = vst [vmem:[%s1238 + $0x80] sm:$0x1] %v1319
      %v1321 = vld [vmem:[%s1238 + $0x84] sm:$0xf]
      %v1322 = vsel %vm1241, %v791, %v1321
      %1323 = vst [vmem:[%s1238 + $0x84] sm:$0xf] %v1322
      %1324 = vst.msk [vmem:[%s1238 + $0x88] sm:$0xf] %vm229, %v800
      %v1325 = vld [vmem:[%s1238 + $0x8c] sm:$0x1]
      %v1326 = vsel %vm1247, %v801, %v1325
      %1327 = vst [vmem:[%s1238 + $0x8c] sm:$0x1] %v1326
      %v1328 = vld [vmem:[%s1238 + $0x90] sm:$0xf]
      %v1329 = vsel %vm1241, %v808, %v1328
      %1330 = vst [vmem:[%s1238 + $0x90] sm:$0xf] %v1329
      %1331 = vst.msk [vmem:[%s1238 + $0x94] sm:$0xf] %vm229, %v817
      %v1332 = vld [vmem:[%s1238 + $0x98] sm:$0x1]
      %v1333 = vsel %vm1247, %v818, %v1332
      %1334 = vst [vmem:[%s1238 + $0x98] sm:$0x1] %v1333
      %v1335 = vld [vmem:[%s1238 + $0x9c] sm:$0xf]
      %v1336 = vsel %vm1241, %v825, %v1335
      %1337 = vst [vmem:[%s1238 + $0x9c] sm:$0xf] %v1336
      %1338 = vst.msk [vmem:[%s1238 + $0xa0] sm:$0xf] %vm229, %v834
      %v1339 = vld [vmem:[%s1238 + $0xa4] sm:$0x1]
      %v1340 = vsel %vm1247, %v835, %v1339
      %1341 = vst [vmem:[%s1238 + $0xa4] sm:$0x1] %v1340
      %v1342 = vld [vmem:[%s1238 + $0xa8] sm:$0xf]
      %v1343 = vsel %vm1241, %v842, %v1342
      %1344 = vst [vmem:[%s1238 + $0xa8] sm:$0xf] %v1343
      %1345 = vst.msk [vmem:[%s1238 + $0xac] sm:$0xf] %vm229, %v851
      %v1346 = vld [vmem:[%s1238 + $0xb0] sm:$0x1]
      %v1347 = vsel %vm1247, %v852, %v1346
      %1348 = vst [vmem:[%s1238 + $0xb0] sm:$0x1] %v1347
      %v1349 = vld [vmem:[%s1238 + $0xb4] sm:$0xf]
      %v1350 = vsel %vm1241, %v859, %v1349
      %1351 = vst [vmem:[%s1238 + $0xb4] sm:$0xf] %v1350
      %1352 = vst.msk [vmem:[%s1238 + $0xb8] sm:$0xf] %vm229, %v868
      %v1353 = vld [vmem:[%s1238 + $0xbc] sm:$0x1]
      %v1354 = vsel %vm1247, %v869, %v1353
      %1355 = vst [vmem:[%s1238 + $0xbc] sm:$0x1] %v1354
      %v1356 = vld [vmem:[%s1238 + $0xd8] sm:$0xf]
      %v1357 = vsel %vm1241, %v876, %v1356
      %1358 = vst [vmem:[%s1238 + $0xd8] sm:$0xf] %v1357
      %1359 = vst.msk [vmem:[%s1238 + $0xdc] sm:$0xf] %vm229, %v885
      %v1360 = vld [vmem:[%s1238 + $0xe0] sm:$0x1]
      %v1361 = vsel %vm1247, %v886, %v1360
      %1362 = vst [vmem:[%s1238 + $0xe0] sm:$0x1] %v1361
      %v1363 = vld [vmem:[%s1238 + $0xe4] sm:$0xf]
      %v1364 = vsel %vm1241, %v893, %v1363
      %1365 = vst [vmem:[%s1238 + $0xe4] sm:$0xf] %v1364
      %1366 = vst.msk [vmem:[%s1238 + $0xe8] sm:$0xf] %vm229, %v902
      %v1367 = vld [vmem:[%s1238 + $0xec] sm:$0x1]
      %v1368 = vsel %vm1247, %v903, %v1367
      %1369 = vst [vmem:[%s1238 + $0xec] sm:$0x1] %v1368
      %v1370 = vld [vmem:[%s1238 + $0xf0] sm:$0xf]
      %v1371 = vsel %vm1241, %v910, %v1370
      %1372 = vst [vmem:[%s1238 + $0xf0] sm:$0xf] %v1371
      %1373 = vst.msk [vmem:[%s1238 + $0xf4] sm:$0xf] %vm229, %v919
      %v1374 = vld [vmem:[%s1238 + $0xf8] sm:$0x1]
      %v1375 = vsel %vm1247, %v920, %v1374
      %1376 = vst [vmem:[%s1238 + $0xf8] sm:$0x1] %v1375
      %v1377 = vld [vmem:[%s1238 + $0xfc] sm:$0xf]
      %v1378 = vsel %vm1241, %v927, %v1377
      %1379 = vst [vmem:[%s1238 + $0xfc] sm:$0xf] %v1378
      %1380 = vst.msk [vmem:[%s1238 + $0x100] sm:$0xf] %vm229, %v936
      %v1381 = vld [vmem:[%s1238 + $0x104] sm:$0x1]
      %v1382 = vsel %vm1247, %v937, %v1381
      %1383 = vst [vmem:[%s1238 + $0x104] sm:$0x1] %v1382
      %v1384 = vld [vmem:[%s1238 + $0x108] sm:$0xf]
      %v1385 = vsel %vm1241, %v944, %v1384
      %1386 = vst [vmem:[%s1238 + $0x108] sm:$0xf] %v1385
      %1387 = vst.msk [vmem:[%s1238 + $0x10c] sm:$0xf] %vm229, %v953
      %v1388 = vld [vmem:[%s1238 + $0x110] sm:$0x1]
      %v1389 = vsel %vm1247, %v954, %v1388
      %1390 = vst [vmem:[%s1238 + $0x110] sm:$0x1] %v1389
      %v1391 = vld [vmem:[%s1238 + $0x114] sm:$0xf]
      %v1392 = vsel %vm1241, %v961, %v1391
      %1393 = vst [vmem:[%s1238 + $0x114] sm:$0xf] %v1392
      %1394 = vst.msk [vmem:[%s1238 + $0x118] sm:$0xf] %vm229, %v970
      %v1395 = vld [vmem:[%s1238 + $0x11c] sm:$0x1]
      %v1396 = vsel %vm1247, %v971, %v1395
      %1397 = vst [vmem:[%s1238 + $0x11c] sm:$0x1] %v1396
      %v1398 = vld [vmem:[%s1238 + $0x120] sm:$0xf]
      %v1399 = vsel %vm1241, %v978, %v1398
      %1400 = vst [vmem:[%s1238 + $0x120] sm:$0xf] %v1399
      %1401 = vst.msk [vmem:[%s1238 + $0x124] sm:$0xf] %vm229, %v987
      %v1402 = vld [vmem:[%s1238 + $0x128] sm:$0x1]
      %v1403 = vsel %vm1247, %v988, %v1402
      %1404 = vst [vmem:[%s1238 + $0x128] sm:$0x1] %v1403
      %v1405 = vld [vmem:[%s1238 + $0x12c] sm:$0xf]
      %v1406 = vsel %vm1241, %v995, %v1405
      %1407 = vst [vmem:[%s1238 + $0x12c] sm:$0xf] %v1406
      %1408 = vst.msk [vmem:[%s1238 + $0x130] sm:$0xf] %vm229, %v1004
      %v1409 = vld [vmem:[%s1238 + $0x134] sm:$0x1]
      %v1410 = vsel %vm1247, %v1005, %v1409
      %1411 = vst [vmem:[%s1238 + $0x134] sm:$0x1] %v1410
      %v1412 = vld [vmem:[%s1238 + $0x138] sm:$0xf]
      %v1413 = vsel %vm1241, %v1012, %v1412
      %1414 = vst [vmem:[%s1238 + $0x138] sm:$0xf] %v1413
      %1415 = vst.msk [vmem:[%s1238 + $0x13c] sm:$0xf] %vm229, %v1021
      %v1416 = vld [vmem:[%s1238 + $0x140] sm:$0x1]
      %v1417 = vsel %vm1247, %v1022, %v1416
      %1418 = vst [vmem:[%s1238 + $0x140] sm:$0x1] %v1417
      %v1419 = vld [vmem:[%s1238 + $0x144] sm:$0xf]
      %v1420 = vsel %vm1241, %v1029, %v1419
      %1421 = vst [vmem:[%s1238 + $0x144] sm:$0xf] %v1420
      %1422 = vst.msk [vmem:[%s1238 + $0x148] sm:$0xf] %vm229, %v1038
      %v1423 = vld [vmem:[%s1238 + $0x14c] sm:$0x1]
      %v1424 = vsel %vm1247, %v1039, %v1423
      %1425 = vst [vmem:[%s1238 + $0x14c] sm:$0x1] %v1424
      %v1426 = vld [vmem:[%s1238 + $0x150] sm:$0xf]
      %v1427 = vsel %vm1241, %v1046, %v1426
      %1428 = vst [vmem:[%s1238 + $0x150] sm:$0xf] %v1427
      %1429 = vst.msk [vmem:[%s1238 + $0x154] sm:$0xf] %vm229, %v1055
      %v1430 = vld [vmem:[%s1238 + $0x158] sm:$0x1]
      %v1431 = vsel %vm1247, %v1056, %v1430
      %1432 = vst [vmem:[%s1238 + $0x158] sm:$0x1] %v1431
      %v1433 = vld [vmem:[%s1238 + $0x15c] sm:$0xf]
      %v1434 = vsel %vm1241, %v1063, %v1433
      %1435 = vst [vmem:[%s1238 + $0x15c] sm:$0xf] %v1434
      %1436 = vst.msk [vmem:[%s1238 + $0x160] sm:$0xf] %vm229, %v1072
      %v1437 = vld [vmem:[%s1238 + $0x164] sm:$0x1]
      %v1438 = vsel %vm1247, %v1073, %v1437
      %1439 = vst [vmem:[%s1238 + $0x164] sm:$0x1] %v1438
      %v1440 = vld [vmem:[%s1238 + $0x168] sm:$0xf]
      %v1441 = vsel %vm1241, %v1080, %v1440
      %1442 = vst [vmem:[%s1238 + $0x168] sm:$0xf] %v1441
      %1443 = vst.msk [vmem:[%s1238 + $0x16c] sm:$0xf] %vm229, %v1089
      %v1444 = vld [vmem:[%s1238 + $0x170] sm:$0x1]
      %v1445 = vsel %vm1247, %v1090, %v1444
      %1446 = vst [vmem:[%s1238 + $0x170] sm:$0x1] %v1445
      %v1447 = vld [vmem:[%s1238 + $0x174] sm:$0xf]
      %v1448 = vsel %vm1241, %v1097, %v1447
      %1449 = vst [vmem:[%s1238 + $0x174] sm:$0xf] %v1448
      %1450 = vst.msk [vmem:[%s1238 + $0x178] sm:$0xf] %vm229, %v1106
      %v1451 = vld [vmem:[%s1238 + $0x17c] sm:$0x1]
      %v1452 = vsel %vm1247, %v1107, %v1451
      %1453 = vst [vmem:[%s1238 + $0x17c] sm:$0x1] %v1452
      %v1454 = vld [vmem:[%s1238 + $0x180] sm:$0xf]
      %v1455 = vsel %vm1241, %v1114, %v1454
      %1456 = vst [vmem:[%s1238 + $0x180] sm:$0xf] %v1455
      %1457 = vst.msk [vmem:[%s1238 + $0x184] sm:$0xf] %vm229, %v1123
      %v1458 = vld [vmem:[%s1238 + $0x188] sm:$0x1]
      %v1459 = vsel %vm1247, %v1124, %v1458
      %1460 = vst [vmem:[%s1238 + $0x188] sm:$0x1] %v1459
      %v1461 = vld [vmem:[%s1238 + $0x18c] sm:$0xf]
      %v1462 = vsel %vm1241, %v1131, %v1461
      %1463 = vst [vmem:[%s1238 + $0x18c] sm:$0xf] %v1462
      %1464 = vst.msk [vmem:[%s1238 + $0x190] sm:$0xf] %vm229, %v1140
      %v1465 = vld [vmem:[%s1238 + $0x194] sm:$0x1]
      %v1466 = vsel %vm1247, %v1141, %v1465
      %1467 = vst [vmem:[%s1238 + $0x194] sm:$0x1] %v1466
      %v1468 = vld [vmem:[#allocation2] sm:$0xf]
      %v1469 = vld [vmem:[#allocation2 + $0x4] sm:$0xf]
      %v1470 = vld [vmem:[#allocation2 + $0xc] sm:$0xf]
      %v1471 = vld [vmem:[#allocation2 + $0x10] sm:$0xf]
      %v1472 = vld [vmem:[#allocation2 + $0x18] sm:$0xf]
      %v1473 = vld [vmem:[#allocation2 + $0x1c] sm:$0xf]
      %v1474 = vld [vmem:[#allocation2 + $0x24] sm:$0xf]
      %v1475 = vld [vmem:[#allocation2 + $0x28] sm:$0xf]
      %v1476 = vld [vmem:[#allocation2 + $0x30] sm:$0xf]
      %v1477 = vld [vmem:[#allocation2 + $0x34] sm:$0xf]
      %v1478 = vld [vmem:[#allocation2 + $0x3c] sm:$0xf]
      %v1479 = vld [vmem:[#allocation2 + $0x40] sm:$0xf]
      %v1480 = vld [vmem:[#allocation2 + $0x48] sm:$0xf]
      %v1481 = vld [vmem:[#allocation2 + $0x4c] sm:$0xf]
      %v1482 = vld [vmem:[#allocation2 + $0x54] sm:$0xf]
      %v1483 = vld [vmem:[#allocation2 + $0x58] sm:$0xf]
      %v1484 = vld [vmem:[#allocation2 + $0x60] sm:$0xf]
      %v1485 = vld [vmem:[#allocation2 + $0x64] sm:$0xf]
      %v1486 = vld [vmem:[#allocation2 + $0x6c] sm:$0xf]
      %v1487 = vld [vmem:[#allocation2 + $0x70] sm:$0xf]
      %v1488 = vld [vmem:[#allocation2 + $0x78] sm:$0xf]
      %v1489 = vld [vmem:[#allocation2 + $0x7c] sm:$0xf]
      %v1490 = vld [vmem:[#allocation2 + $0x84] sm:$0xf]
      %v1491 = vld [vmem:[#allocation2 + $0x88] sm:$0xf]
      %v1492 = vld [vmem:[#allocation2 + $0x90] sm:$0xf]
      %v1493 = vld [vmem:[#allocation2 + $0x94] sm:$0xf]
      %v1494 = vld [vmem:[#allocation2 + $0x9c] sm:$0xf]
      %v1495 = vld [vmem:[#allocation2 + $0xa0] sm:$0xf]
      %v1496 = vld [vmem:[#allocation2 + $0xa8] sm:$0xf]
      %v1497 = vld [vmem:[#allocation2 + $0xac] sm:$0xf]
      %v1498 = vld [vmem:[#allocation2 + $0xb4] sm:$0xf]
      %v1499 = vld [vmem:[#allocation2 + $0xb8] sm:$0xf]
      %v1500 = vld [vmem:[#allocation2 + $0xd8] sm:$0xf]
      %v1501 = vld [vmem:[#allocation2 + $0xdc] sm:$0xf]
      %v1502 = vld [vmem:[#allocation2 + $0xe4] sm:$0xf]
      %v1503 = vld [vmem:[#allocation2 + $0xe8] sm:$0xf]
      %v1504 = vld [vmem:[#allocation2 + $0xf0] sm:$0xf]
      %v1505 = vld [vmem:[#allocation2 + $0xf4] sm:$0xf]
      %v1506 = vld [vmem:[#allocation2 + $0xfc] sm:$0xf]
      %v1507 = vld [vmem:[#allocation2 + $0x100] sm:$0xf]
      %v1508 = vld [vmem:[#allocation2 + $0x108] sm:$0xf]
      %v1509 = vld [vmem:[#allocation2 + $0x10c] sm:$0xf]
      %v1510 = vld [vmem:[#allocation2 + $0x114] sm:$0xf]
      %v1511 = vld [vmem:[#allocation2 + $0x118] sm:$0xf]
      %v1512 = vld [vmem:[#allocation2 + $0x120] sm:$0xf]
      %v1513 = vld [vmem:[#allocation2 + $0x124] sm:$0xf]
      %v1514 = vld [vmem:[#allocation2 + $0x12c] sm:$0xf]
      %v1515 = vld [vmem:[#allocation2 + $0x130] sm:$0xf]
      %v1516 = vld [vmem:[#allocation2 + $0x138] sm:$0xf]
      %v1517 = vld [vmem:[#allocation2 + $0x13c] sm:$0xf]
      %v1518 = vld [vmem:[#allocation2 + $0x144] sm:$0xf]
      %v1519 = vld [vmem:[#allocation2 + $0x148] sm:$0xf]
      %v1520 = vld [vmem:[#allocation2 + $0x150] sm:$0xf]
      %v1521 = vld [vmem:[#allocation2 + $0x154] sm:$0xf]
      %v1522 = vld [vmem:[#allocation2 + $0x15c] sm:$0xf]
      %v1523 = vld [vmem:[#allocation2 + $0x160] sm:$0xf]
      %v1524 = vld [vmem:[#allocation2 + $0x168] sm:$0xf]
      %v1525 = vld [vmem:[#allocation2 + $0x16c] sm:$0xf]
      %v1526 = vld [vmem:[#allocation2 + $0x174] sm:$0xf]
      %v1527 = vld [vmem:[#allocation2 + $0x178] sm:$0xf]
      %v1528 = vld [vmem:[#allocation2 + $0x180] sm:$0xf]
      %v1529 = vld [vmem:[#allocation2 + $0x184] sm:$0xf]
      %v1530 = vld [vmem:[#allocation2 + $0x18c] sm:$0xf]
      %v1531 = vld [vmem:[#allocation2 + $0x190] sm:$0xf]
      %v1596 = vunpack.c.l.b16 %v1468
      %v1597 = vunpack.c.l.b16 %v1469
      %v1598 = vunpack.c.l.b16 %v1470
      %v1599 = vunpack.c.l.b16 %v1471
      %v1600 = vunpack.c.l.b16 %v1472
      %v1601 = vunpack.c.l.b16 %v1473
      %v1602 = vunpack.c.l.b16 %v1474
      %v1603 = vunpack.c.l.b16 %v1475
      %v1604 = vunpack.c.l.b16 %v1476
      %v1605 = vunpack.c.l.b16 %v1477
      %v1606 = vunpack.c.l.b16 %v1478
      %v1607 = vunpack.c.l.b16 %v1479
      %v1608 = vunpack.c.l.b16 %v1480
      %v1609 = vunpack.c.l.b16 %v1481
      %v1610 = vunpack.c.l.b16 %v1482
      %v1611 = vunpack.c.l.b16 %v1483
      %v1612 = vunpack.c.l.b16 %v1484
      %v1613 = vunpack.c.l.b16 %v1485
      %v1614 = vunpack.c.l.b16 %v1486
      %v1615 = vunpack.c.l.b16 %v1487
      %v1616 = vunpack.c.l.b16 %v1488
      %v1617 = vunpack.c.l.b16 %v1489
      %v1618 = vunpack.c.l.b16 %v1490
      %v1619 = vunpack.c.l.b16 %v1491
      %v1620 = vunpack.c.l.b16 %v1492
      %v1621 = vunpack.c.l.b16 %v1493
      %v1622 = vunpack.c.l.b16 %v1494
      %v1623 = vunpack.c.l.b16 %v1495
      %v1624 = vunpack.c.l.b16 %v1496
      %v1625 = vunpack.c.l.b16 %v1497
      %v1626 = vunpack.c.l.b16 %v1498
      %v1627 = vunpack.c.l.b16 %v1499
      %v1628 = vunpack.c.l.b16 %v1500
      %v1629 = vunpack.c.l.b16 %v1501
      %v1630 = vunpack.c.l.b16 %v1502
      %v1631 = vunpack.c.l.b16 %v1503
      %v1632 = vunpack.c.l.b16 %v1504
      %v1633 = vunpack.c.l.b16 %v1505
      %v1634 = vunpack.c.l.b16 %v1506
      %v1635 = vunpack.c.l.b16 %v1507
      %v1636 = vunpack.c.l.b16 %v1508
      %v1637 = vunpack.c.l.b16 %v1509
      %v1638 = vunpack.c.l.b16 %v1510
      %v1639 = vunpack.c.l.b16 %v1511
      %v1640 = vunpack.c.l.b16 %v1512
      %v1641 = vunpack.c.l.b16 %v1513
      %v1642 = vunpack.c.l.b16 %v1514
      %v1643 = vunpack.c.l.b16 %v1515
      %v1644 = vunpack.c.l.b16 %v1516
      %v1645 = vunpack.c.l.b16 %v1517
      %v1646 = vunpack.c.l.b16 %v1518
      %v1647 = vunpack.c.l.b16 %v1519
      %v1648 = vunpack.c.l.b16 %v1520
      %v1649 = vunpack.c.l.b16 %v1521
      %v1650 = vunpack.c.l.b16 %v1522
      %v1651 = vunpack.c.l.b16 %v1523
      %v1652 = vunpack.c.l.b16 %v1524
      %v1653 = vunpack.c.l.b16 %v1525
      %v1654 = vunpack.c.l.b16 %v1526
      %v1655 = vunpack.c.l.b16 %v1527
      %v1656 = vunpack.c.l.b16 %v1528
      %v1657 = vunpack.c.l.b16 %v1529
      %v1658 = vunpack.c.l.b16 %v1530
      %v1659 = vunpack.c.l.b16 %v1531
      %v1660 = vpack.c.b16 %v1597, %v1596
      %v1661 = vpack.c.b16 %v1599, %v1598
      %v1662 = vpack.c.b16 %v1601, %v1600
      %v1663 = vpack.c.b16 %v1603, %v1602
      %v1664 = vpack.c.b16 %v1605, %v1604
      %v1665 = vpack.c.b16 %v1607, %v1606
      %v1666 = vpack.c.b16 %v1609, %v1608
      %v1667 = vpack.c.b16 %v1611, %v1610
      %v1668 = vpack.c.b16 %v1613, %v1612
      %v1669 = vpack.c.b16 %v1615, %v1614
      %v1670 = vpack.c.b16 %v1617, %v1616
      %v1671 = vpack.c.b16 %v1619, %v1618
      %v1672 = vpack.c.b16 %v1621, %v1620
      %v1673 = vpack.c.b16 %v1623, %v1622
      %v1674 = vpack.c.b16 %v1625, %v1624
      %v1675 = vpack.c.b16 %v1627, %v1626
      %v1676 = vpack.c.b16 %v1629, %v1628
      %v1677 = vpack.c.b16 %v1631, %v1630
      %v1678 = vpack.c.b16 %v1633, %v1632
      %v1679 = vpack.c.b16 %v1635, %v1634
      %v1680 = vpack.c.b16 %v1637, %v1636
      %v1681 = vpack.c.b16 %v1639, %v1638
      %v1682 = vpack.c.b16 %v1641, %v1640
      %v1683 = vpack.c.b16 %v1643, %v1642
      %v1684 = vpack.c.b16 %v1645, %v1644
      %v1685 = vpack.c.b16 %v1647, %v1646
      %v1686 = vpack.c.b16 %v1649, %v1648
      %v1687 = vpack.c.b16 %v1651, %v1650
      %v1688 = vpack.c.b16 %v1653, %v1652
      %v1689 = vpack.c.b16 %v1655, %v1654
      %v1690 = vpack.c.b16 %v1657, %v1656
      %v1691 = vpack.c.b16 %v1659, %v1658
      %vm1724 = vcmask 31744
      %1725 = vst.msk [vmem:[#allocation3] sm:$0xff] %vm1724, %v1660
      %1726 = vst.msk [vmem:[#allocation3 + $0x8] sm:$0xff] %vm1724, %v1661
      %1727 = vst.msk [vmem:[#allocation3 + $0x10] sm:$0xff] %vm1724, %v1662
      %1728 = vst.msk [vmem:[#allocation3 + $0x18] sm:$0xff] %vm1724, %v1663
      %1729 = vst.msk [vmem:[#allocation3 + $0x20] sm:$0xff] %vm1724, %v1664
      %1730 = vst.msk [vmem:[#allocation3 + $0x28] sm:$0xff] %vm1724, %v1665
      %1731 = vst.msk [vmem:[#allocation3 + $0x30] sm:$0xff] %vm1724, %v1666
      %1732 = vst.msk [vmem:[#allocation3 + $0x38] sm:$0xff] %vm1724, %v1667
      %1733 = vst.msk [vmem:[#allocation3 + $0x40] sm:$0xff] %vm1724, %v1668
      %1734 = vst.msk [vmem:[#allocation3 + $0x48] sm:$0xff] %vm1724, %v1669
      %1735 = vst.msk [vmem:[#allocation3 + $0x50] sm:$0xff] %vm1724, %v1670
      %1736 = vst.msk [vmem:[#allocation3 + $0x58] sm:$0xff] %vm1724, %v1671
      %1737 = vst.msk [vmem:[#allocation3 + $0x60] sm:$0xff] %vm1724, %v1672
      %1738 = vst.msk [vmem:[#allocation3 + $0x68] sm:$0xff] %vm1724, %v1673
      %1739 = vst.msk [vmem:[#allocation3 + $0x70] sm:$0xff] %vm1724, %v1674
      %1740 = vst.msk [vmem:[#allocation3 + $0x78] sm:$0xff] %vm1724, %v1675
      %1741 = vst.msk [vmem:[#allocation3 + $0x80] sm:$0xff] %vm1724, %v1676
      %1742 = vst.msk [vmem:[#allocation3 + $0x88] sm:$0xff] %vm1724, %v1677
      %1743 = vst.msk [vmem:[#allocation3 + $0x90] sm:$0xff] %vm1724, %v1678
      %1744 = vst.msk [vmem:[#allocation3 + $0x98] sm:$0xff] %vm1724, %v1679
      %1745 = vst.msk [vmem:[#allocation3 + $0xa0] sm:$0xff] %vm1724, %v1680
      %1746 = vst.msk [vmem:[#allocation3 + $0xa8] sm:$0xff] %vm1724, %v1681
      %1747 = vst.msk [vmem:[#allocation3 + $0xb0] sm:$0xff] %vm1724, %v1682
      %1748 = vst.msk [vmem:[#allocation3 + $0xb8] sm:$0xff] %vm1724, %v1683
      %1749 = vst.msk [vmem:[#allocation3 + $0xc0] sm:$0xff] %vm1724, %v1684
      %1750 = vst.msk [vmem:[#allocation3 + $0xc8] sm:$0xff] %vm1724, %v1685
      %1751 = vst.msk [vmem:[#allocation3 + $0xd0] sm:$0xff] %vm1724, %v1686
      %1752 = vst.msk [vmem:[#allocation3 + $0xd8] sm:$0xff] %vm1724, %v1687
      %1753 = vst.msk [vmem:[#allocation3 + $0xe0] sm:$0xff] %vm1724, %v1688
      %1754 = vst.msk [vmem:[#allocation3 + $0xe8] sm:$0xff] %vm1724, %v1689
      %1755 = vst.msk [vmem:[#allocation3 + $0xf0] sm:$0xff] %vm1724, %v1690
      %1756 = vst.msk [vmem:[#allocation3 + $0xf8] sm:$0xff] %vm1724, %v1691
      %v1757 = vld [vmem:[#allocation2] sm:$0xf]
      %v1758 = vld [vmem:[#allocation2 + $0x4] sm:$0xf]
      %v1759 = vld [vmem:[#allocation2 + $0x8] sm:$0x1]
      %v1760 = vld [vmem:[#allocation2 + $0xc] sm:$0xf]
      %v1761 = vld [vmem:[#allocation2 + $0x10] sm:$0xf]
      %v1762 = vld [vmem:[#allocation2 + $0x14] sm:$0x1]
      %v1763 = vld [vmem:[#allocation2 + $0x18] sm:$0xf]
      %v1764 = vld [vmem:[#allocation2 + $0x1c] sm:$0xf]
      %v1765 = vld [vmem:[#allocation2 + $0x20] sm:$0x1]
      %v1766 = vld [vmem:[#allocation2 + $0x24] sm:$0xf]
      %v1767 = vld [vmem:[#allocation2 + $0x28] sm:$0xf]
      %v1768 = vld [vmem:[#allocation2 + $0x2c] sm:$0x1]
      %v1769 = vld [vmem:[#allocation2 + $0x30] sm:$0xf]
      %v1770 = vld [vmem:[#allocation2 + $0x34] sm:$0xf]
      %v1771 = vld [vmem:[#allocation2 + $0x38] sm:$0x1]
      %v1772 = vld [vmem:[#allocation2 + $0x3c] sm:$0xf]
      %v1773 = vld [vmem:[#allocation2 + $0x40] sm:$0xf]
      %v1774 = vld [vmem:[#allocation2 + $0x44] sm:$0x1]
      %v1775 = vld [vmem:[#allocation2 + $0x48] sm:$0xf]
      %v1776 = vld [vmem:[#allocation2 + $0x4c] sm:$0xf]
      %v1777 = vld [vmem:[#allocation2 + $0x50] sm:$0x1]
      %v1778 = vld [vmem:[#allocation2 + $0x54] sm:$0xf]
      %v1779 = vld [vmem:[#allocation2 + $0x58] sm:$0xf]
      %v1780 = vld [vmem:[#allocation2 + $0x5c] sm:$0x1]
      %v1781 = vld [vmem:[#allocation2 + $0x60] sm:$0xf]
      %v1782 = vld [vmem:[#allocation2 + $0x64] sm:$0xf]
      %v1783 = vld [vmem:[#allocation2 + $0x68] sm:$0x1]
      %v1784 = vld [vmem:[#allocation2 + $0x6c] sm:$0xf]
      %v1785 = vld [vmem:[#allocation2 + $0x70] sm:$0xf]
      %v1786 = vld [vmem:[#allocation2 + $0x74] sm:$0x1]
      %v1787 = vld [vmem:[#allocation2 + $0x78] sm:$0xf]
      %v1788 = vld [vmem:[#allocation2 + $0x7c] sm:$0xf]
      %v1789 = vld [vmem:[#allocation2 + $0x80] sm:$0x1]
      %v1790 = vld [vmem:[#allocation2 + $0x84] sm:$0xf]
      %v1791 = vld [vmem:[#allocation2 + $0x88] sm:$0xf]
      %v1792 = vld [vmem:[#allocation2 + $0x8c] sm:$0x1]
      %v1793 = vld [vmem:[#allocation2 + $0x90] sm:$0xf]
      %v1794 = vld [vmem:[#allocation2 + $0x94] sm:$0xf]
      %v1795 = vld [vmem:[#allocation2 + $0x98] sm:$0x1]
      %v1796 = vld [vmem:[#allocation2 + $0x9c] sm:$0xf]
      %v1797 = vld [vmem:[#allocation2 + $0xa0] sm:$0xf]
      %v1798 = vld [vmem:[#allocation2 + $0xa4] sm:$0x1]
      %v1799 = vld [vmem:[#allocation2 + $0xa8] sm:$0xf]
      %v1800 = vld [vmem:[#allocation2 + $0xac] sm:$0xf]
      %v1801 = vld [vmem:[#allocation2 + $0xb0] sm:$0x1]
      %v1802 = vld [vmem:[#allocation2 + $0xb4] sm:$0xf]
      %v1803 = vld [vmem:[#allocation2 + $0xb8] sm:$0xf]
      %v1804 = vld [vmem:[#allocation2 + $0xbc] sm:$0x1]
      %v1805 = vld [vmem:[#allocation2 + $0xd8] sm:$0xf]
      %v1806 = vld [vmem:[#allocation2 + $0xdc] sm:$0xf]
      %v1807 = vld [vmem:[#allocation2 + $0xe0] sm:$0x1]
      %v1808 = vld [vmem:[#allocation2 + $0xe4] sm:$0xf]
      %v1809 = vld [vmem:[#allocation2 + $0xe8] sm:$0xf]
      %v1810 = vld [vmem:[#allocation2 + $0xec] sm:$0x1]
      %v1811 = vld [vmem:[#allocation2 + $0xf0] sm:$0xf]
      %v1812 = vld [vmem:[#allocation2 + $0xf4] sm:$0xf]
      %v1813 = vld [vmem:[#allocation2 + $0xf8] sm:$0x1]
      %v1814 = vld [vmem:[#allocation2 + $0xfc] sm:$0xf]
      %v1815 = vld [vmem:[#allocation2 + $0x100] sm:$0xf]
      %v1816 = vld [vmem:[#allocation2 + $0x104] sm:$0x1]
      %v1817 = vld [vmem:[#allocation2 + $0x108] sm:$0xf]
      %v1818 = vld [vmem:[#allocation2 + $0x10c] sm:$0xf]
      %v1819 = vld [vmem:[#allocation2 + $0x110] sm:$0x1]
      %v1820 = vld [vmem:[#allocation2 + $0x114] sm:$0xf]
      %v1821 = vld [vmem:[#allocation2 + $0x118] sm:$0xf]
      %v1822 = vld [vmem:[#allocation2 + $0x11c] sm:$0x1]
      %v1823 = vld [vmem:[#allocation2 + $0x120] sm:$0xf]
      %v1824 = vld [vmem:[#allocation2 + $0x124] sm:$0xf]
      %v1825 = vld [vmem:[#allocation2 + $0x128] sm:$0x1]
      %v1826 = vld [vmem:[#allocation2 + $0x12c] sm:$0xf]
      %v1827 = vld [vmem:[#allocation2 + $0x130] sm:$0xf]
      %v1828 = vld [vmem:[#allocation2 + $0x134] sm:$0x1]
      %v1829 = vld [vmem:[#allocation2 + $0x138] sm:$0xf]
      %v1830 = vld [vmem:[#allocation2 + $0x13c] sm:$0xf]
      %v1831 = vld [vmem:[#allocation2 + $0x140] sm:$0x1]
      %v1832 = vld [vmem:[#allocation2 + $0x144] sm:$0xf]
      %v1833 = vld [vmem:[#allocation2 + $0x148] sm:$0xf]
      %v1834 = vld [vmem:[#allocation2 + $0x14c] sm:$0x1]
      %v1835 = vld [vmem:[#allocation2 + $0x150] sm:$0xf]
      %v1836 = vld [vmem:[#allocation2 + $0x154] sm:$0xf]
      %v1837 = vld [vmem:[#allocation2 + $0x158] sm:$0x1]
      %v1838 = vld [vmem:[#allocation2 + $0x15c] sm:$0xf]
      %v1839 = vld [vmem:[#allocation2 + $0x160] sm:$0xf]
      %v1840 = vld [vmem:[#allocation2 + $0x164] sm:$0x1]
      %v1841 = vld [vmem:[#allocation2 + $0x168] sm:$0xf]
      %v1842 = vld [vmem:[#allocation2 + $0x16c] sm:$0xf]
      %v1843 = vld [vmem:[#allocation2 + $0x170] sm:$0x1]
      %v1844 = vld [vmem:[#allocation2 + $0x174] sm:$0xf]
      %v1845 = vld [vmem:[#allocation2 + $0x178] sm:$0xf]
      %v1846 = vld [vmem:[#allocation2 + $0x17c] sm:$0x1]
      %v1847 = vld [vmem:[#allocation2 + $0x180] sm:$0xf]
      %v1848 = vld [vmem:[#allocation2 + $0x184] sm:$0xf]
      %v1849 = vld [vmem:[#allocation2 + $0x188] sm:$0x1]
      %v1850 = vld [vmem:[#allocation2 + $0x18c] sm:$0xf]
      %v1851 = vld [vmem:[#allocation2 + $0x190] sm:$0xf]
      %v1852 = vld [vmem:[#allocation2 + $0x194] sm:$0x1]
      %v1949 = vunpack.c.l.b16 %v1757
      %v1950 = vunpack.c.l.b16 %v1758
      %v1951 = vunpack.c.l.b16 %v1759
      %v1952 = vunpack.c.l.b16 %v1760
      %v1953 = vunpack.c.l.b16 %v1761
      %v1954 = vunpack.c.l.b16 %v1762
      %v1955 = vunpack.c.l.b16 %v1763
      %v1956 = vunpack.c.l.b16 %v1764
      %v1957 = vunpack.c.l.b16 %v1765
      %v1958 = vunpack.c.l.b16 %v1766
      %v1959 = vunpack.c.l.b16 %v1767
      %v1960 = vunpack.c.l.b16 %v1768
      %v1961 = vunpack.c.l.b16 %v1769
      %v1962 = vunpack.c.l.b16 %v1770
      %v1963 = vunpack.c.l.b16 %v1771
      %v1964 = vunpack.c.l.b16 %v1772
      %v1965 = vunpack.c.l.b16 %v1773
      %v1966 = vunpack.c.l.b16 %v1774
      %v1967 = vunpack.c.l.b16 %v1775
      %v1968 = vunpack.c.l.b16 %v1776
      %v1969 = vunpack.c.l.b16 %v1777
      %v1970 = vunpack.c.l.b16 %v1778
      %v1971 = vunpack.c.l.b16 %v1779
      %v1972 = vunpack.c.l.b16 %v1780
      %v1973 = vunpack.c.l.b16 %v1781
      %v1974 = vunpack.c.l.b16 %v1782
      %v1975 = vunpack.c.l.b16 %v1783
      %v1976 = vunpack.c.l.b16 %v1784
      %v1977 = vunpack.c.l.b16 %v1785
      %v1978 = vunpack.c.l.b16 %v1786
      %v1979 = vunpack.c.l.b16 %v1787
      %v1980 = vunpack.c.l.b16 %v1788
      %v1981 = vunpack.c.l.b16 %v1789
      %v1982 = vunpack.c.l.b16 %v1790
      %v1983 = vunpack.c.l.b16 %v1791
      %v1984 = vunpack.c.l.b16 %v1792
      %v1985 = vunpack.c.l.b16 %v1793
      %v1986 = vunpack.c.l.b16 %v1794
      %v1987 = vunpack.c.l.b16 %v1795
      %v1988 = vunpack.c.l.b16 %v1796
      %v1989 = vunpack.c.l.b16 %v1797
      %v1990 = vunpack.c.l.b16 %v1798
      %v1991 = vunpack.c.l.b16 %v1799
      %v1992 = vunpack.c.l.b16 %v1800
      %v1993 = vunpack.c.l.b16 %v1801
      %v1994 = vunpack.c.l.b16 %v1802
      %v1995 = vunpack.c.l.b16 %v1803
      %v1996 = vunpack.c.l.b16 %v1804
      %v1997 = vunpack.c.l.b16 %v1805
      %v1998 = vunpack.c.l.b16 %v1806
      %v1999 = vunpack.c.l.b16 %v1807
      %v2000 = vunpack.c.l.b16 %v1808
      %v2001 = vunpack.c.l.b16 %v1809
      %v2002 = vunpack.c.l.b16 %v1810
      %v2003 = vunpack.c.l.b16 %v1811
      %v2004 = vunpack.c.l.b16 %v1812
      %v2005 = vunpack.c.l.b16 %v1813
      %v2006 = vunpack.c.l.b16 %v1814
      %v2007 = vunpack.c.l.b16 %v1815
      %v2008 = vunpack.c.l.b16 %v1816
      %v2009 = vunpack.c.l.b16 %v1817
      %v2010 = vunpack.c.l.b16 %v1818
      %v2011 = vunpack.c.l.b16 %v1819
      %v2012 = vunpack.c.l.b16 %v1820
      %v2013 = vunpack.c.l.b16 %v1821
      %v2014 = vunpack.c.l.b16 %v1822
      %v2015 = vunpack.c.l.b16 %v1823
      %v2016 = vunpack.c.l.b16 %v1824
      %v2017 = vunpack.c.l.b16 %v1825
      %v2018 = vunpack.c.l.b16 %v1826
      %v2019 = vunpack.c.l.b16 %v1827
      %v2020 = vunpack.c.l.b16 %v1828
      %v2021 = vunpack.c.l.b16 %v1829
      %v2022 = vunpack.c.l.b16 %v1830
      %v2023 = vunpack.c.l.b16 %v1831
      %v2024 = vunpack.c.l.b16 %v1832
      %v2025 = vunpack.c.l.b16 %v1833
      %v2026 = vunpack.c.l.b16 %v1834
      %v2027 = vunpack.c.l.b16 %v1835
      %v2028 = vunpack.c.l.b16 %v1836
      %v2029 = vunpack.c.l.b16 %v1837
      %v2030 = vunpack.c.l.b16 %v1838
      %v2031 = vunpack.c.l.b16 %v1839
      %v2032 = vunpack.c.l.b16 %v1840
      %v2033 = vunpack.c.l.b16 %v1841
      %v2034 = vunpack.c.l.b16 %v1842
      %v2035 = vunpack.c.l.b16 %v1843
      %v2036 = vunpack.c.l.b16 %v1844
      %v2037 = vunpack.c.l.b16 %v1845
      %v2038 = vunpack.c.l.b16 %v1846
      %v2039 = vunpack.c.l.b16 %v1847
      %v2040 = vunpack.c.l.b16 %v1848
      %v2041 = vunpack.c.l.b16 %v1849
      %v2042 = vunpack.c.l.b16 %v1850
      %v2043 = vunpack.c.l.b16 %v1851
      %v2044 = vunpack.c.l.b16 %v1852
      %v2045 = vpack.c.b16 %v1950, %v1949
      %v2046 = vpack.c.b16 %v1951, %v1951
      %v2047 = vpack.c.b16 %v1953, %v1952
      %v2048 = vpack.c.b16 %v1954, %v1954
      %v2049 = vpack.c.b16 %v1956, %v1955
      %v2050 = vpack.c.b16 %v1957, %v1957
      %v2051 = vpack.c.b16 %v1959, %v1958
      %v2052 = vpack.c.b16 %v1960, %v1960
      %v2053 = vpack.c.b16 %v1962, %v1961
      %v2054 = vpack.c.b16 %v1963, %v1963
      %v2055 = vpack.c.b16 %v1965, %v1964
      %v2056 = vpack.c.b16 %v1966, %v1966
      %v2057 = vpack.c.b16 %v1968, %v1967
      %v2058 = vpack.c.b16 %v1969, %v1969
      %v2059 = vpack.c.b16 %v1971, %v1970
      %v2060 = vpack.c.b16 %v1972, %v1972
      %v2061 = vpack.c.b16 %v1974, %v1973
      %v2062 = vpack.c.b16 %v1975, %v1975
      %v2063 = vpack.c.b16 %v1977, %v1976
      %v2064 = vpack.c.b16 %v1978, %v1978
      %v2065 = vpack.c.b16 %v1980, %v1979
      %v2066 = vpack.c.b16 %v1981, %v1981
      %v2067 = vpack.c.b16 %v1983, %v1982
      %v2068 = vpack.c.b16 %v1984, %v1984
      %v2069 = vpack.c.b16 %v1986, %v1985
      %v2070 = vpack.c.b16 %v1987, %v1987
      %v2071 = vpack.c.b16 %v1989, %v1988
      %v2072 = vpack.c.b16 %v1990, %v1990
      %v2073 = vpack.c.b16 %v1992, %v1991
      %v2074 = vpack.c.b16 %v1993, %v1993
      %v2075 = vpack.c.b16 %v1995, %v1994
      %v2076 = vpack.c.b16 %v1996, %v1996
      %v2077 = vpack.c.b16 %v1998, %v1997
      %v2078 = vpack.c.b16 %v1999, %v1999
      %v2079 = vpack.c.b16 %v2001, %v2000
      %v2080 = vpack.c.b16 %v2002, %v2002
      %v2081 = vpack.c.b16 %v2004, %v2003
      %v2082 = vpack.c.b16 %v2005, %v2005
      %v2083 = vpack.c.b16 %v2007, %v2006
      %v2084 = vpack.c.b16 %v2008, %v2008
      %v2085 = vpack.c.b16 %v2010, %v2009
      %v2086 = vpack.c.b16 %v2011, %v2011
      %v2087 = vpack.c.b16 %v2013, %v2012
      %v2088 = vpack.c.b16 %v2014, %v2014
      %v2089 = vpack.c.b16 %v2016, %v2015
      %v2090 = vpack.c.b16 %v2017, %v2017
      %v2091 = vpack.c.b16 %v2019, %v2018
      %v2092 = vpack.c.b16 %v2020, %v2020
      %v2093 = vpack.c.b16 %v2022, %v2021
      %v2094 = vpack.c.b16 %v2023, %v2023
      %v2095 = vpack.c.b16 %v2025, %v2024
      %v2096 = vpack.c.b16 %v2026, %v2026
      %v2097 = vpack.c.b16 %v2028, %v2027
      %v2098 = vpack.c.b16 %v2029, %v2029
      %v2099 = vpack.c.b16 %v2031, %v2030
      %v2100 = vpack.c.b16 %v2032, %v2032
      %v2101 = vpack.c.b16 %v2034, %v2033
      %v2102 = vpack.c.b16 %v2035, %v2035
      %v2103 = vpack.c.b16 %v2037, %v2036
      %v2104 = vpack.c.b16 %v2038, %v2038
      %v2105 = vpack.c.b16 %v2040, %v2039
      %v2106 = vpack.c.b16 %v2041, %v2041
      %v2107 = vpack.c.b16 %v2043, %v2042
      %v2108 = vpack.c.b16 %v2044, %v2044
      %vm2109 = vsmask.f32 7424
      %v2111 = vshrl.u32 %v2045, 16
      %v2113 = vshll.u32 %v2045, 16
      %v2115 = vrot.slane %v2113, 1
      %v2116 = vor.u32 %v2111, %v2115
      %v2118 = vshll.u32 %v2046, 16
      %v2120 = vrot.slane %v2118, 1
      %v2121 = vsel %vm2109, %v2116, %v2120
      %v2123 = vshrl.u32 %v2047, 16
      %v2125 = vshll.u32 %v2047, 16
      %v2127 = vrot.slane %v2125, 1
      %v2128 = vor.u32 %v2123, %v2127
      %v2130 = vshll.u32 %v2048, 16
      %v2132 = vrot.slane %v2130, 1
      %v2133 = vsel %vm2109, %v2128, %v2132
      %v2135 = vshrl.u32 %v2049, 16
      %v2137 = vshll.u32 %v2049, 16
      %v2139 = vrot.slane %v2137, 1
      %v2140 = vor.u32 %v2135, %v2139
      %v2142 = vshll.u32 %v2050, 16
      %v2144 = vrot.slane %v2142, 1
      %v2145 = vsel %vm2109, %v2140, %v2144
      %v2147 = vshrl.u32 %v2051, 16
      %v2149 = vshll.u32 %v2051, 16
      %v2151 = vrot.slane %v2149, 1
      %v2152 = vor.u32 %v2147, %v2151
      %v2154 = vshll.u32 %v2052, 16
      %v2156 = vrot.slane %v2154, 1
      %v2157 = vsel %vm2109, %v2152, %v2156
      %v2159 = vshrl.u32 %v2053, 16
      %v2161 = vshll.u32 %v2053, 16
      %v2163 = vrot.slane %v2161, 1
      %v2164 = vor.u32 %v2159, %v2163
      %v2166 = vshll.u32 %v2054, 16
      %v2168 = vrot.slane %v2166, 1
      %v2169 = vsel %vm2109, %v2164, %v2168
      %v2171 = vshrl.u32 %v2055, 16
      %v2173 = vshll.u32 %v2055, 16
      %v2175 = vrot.slane %v2173, 1
      %v2176 = vor.u32 %v2171, %v2175
      %v2178 = vshll.u32 %v2056, 16
      %v2180 = vrot.slane %v2178, 1
      %v2181 = vsel %vm2109, %v2176, %v2180
      %v2183 = vshrl.u32 %v2057, 16
      %v2185 = vshll.u32 %v2057, 16
      %v2187 = vrot.slane %v2185, 1
      %v2188 = vor.u32 %v2183, %v2187
      %v2190 = vshll.u32 %v2058, 16
      %v2192 = vrot.slane %v2190, 1
      %v2193 = vsel %vm2109, %v2188, %v2192
      %v2195 = vshrl.u32 %v2059, 16
      %v2197 = vshll.u32 %v2059, 16
      %v2199 = vrot.slane %v2197, 1
      %v2200 = vor.u32 %v2195, %v2199
      %v2202 = vshll.u32 %v2060, 16
      %v2204 = vrot.slane %v2202, 1
      %v2205 = vsel %vm2109, %v2200, %v2204
      %v2207 = vshrl.u32 %v2061, 16
      %v2209 = vshll.u32 %v2061, 16
      %v2211 = vrot.slane %v2209, 1
      %v2212 = vor.u32 %v2207, %v2211
      %v2214 = vshll.u32 %v2062, 16
      %v2216 = vrot.slane %v2214, 1
      %v2217 = vsel %vm2109, %v2212, %v2216
      %v2219 = vshrl.u32 %v2063, 16
      %v2221 = vshll.u32 %v2063, 16
      %v2223 = vrot.slane %v2221, 1
      %v2224 = vor.u32 %v2219, %v2223
      %v2226 = vshll.u32 %v2064, 16
      %v2228 = vrot.slane %v2226, 1
      %v2229 = vsel %vm2109, %v2224, %v2228
      %v2231 = vshrl.u32 %v2065, 16
      %v2233 = vshll.u32 %v2065, 16
      %v2235 = vrot.slane %v2233, 1
      %v2236 = vor.u32 %v2231, %v2235
      %v2238 = vshll.u32 %v2066, 16
      %v2240 = vrot.slane %v2238, 1
      %v2241 = vsel %vm2109, %v2236, %v2240
      %v2243 = vshrl.u32 %v2067, 16
      %v2245 = vshll.u32 %v2067, 16
      %v2247 = vrot.slane %v2245, 1
      %v2248 = vor.u32 %v2243, %v2247
      %v2250 = vshll.u32 %v2068, 16
      %v2252 = vrot.slane %v2250, 1
      %v2253 = vsel %vm2109, %v2248, %v2252
      %v2255 = vshrl.u32 %v2069, 16
      %v2257 = vshll.u32 %v2069, 16
      %v2259 = vrot.slane %v2257, 1
      %v2260 = vor.u32 %v2255, %v2259
      %v2262 = vshll.u32 %v2070, 16
      %v2264 = vrot.slane %v2262, 1
      %v2265 = vsel %vm2109, %v2260, %v2264
      %v2267 = vshrl.u32 %v2071, 16
      %v2269 = vshll.u32 %v2071, 16
      %v2271 = vrot.slane %v2269, 1
      %v2272 = vor.u32 %v2267, %v2271
      %v2274 = vshll.u32 %v2072, 16
      %v2276 = vrot.slane %v2274, 1
      %v2277 = vsel %vm2109, %v2272, %v2276
      %v2279 = vshrl.u32 %v2073, 16
      %v2281 = vshll.u32 %v2073, 16
      %v2283 = vrot.slane %v2281, 1
      %v2284 = vor.u32 %v2279, %v2283
      %v2286 = vshll.u32 %v2074, 16
      %v2288 = vrot.slane %v2286, 1
      %v2289 = vsel %vm2109, %v2284, %v2288
      %v2291 = vshrl.u32 %v2075, 16
      %v2293 = vshll.u32 %v2075, 16
      %v2295 = vrot.slane %v2293, 1
      %v2296 = vor.u32 %v2291, %v2295
      %v2298 = vshll.u32 %v2076, 16
      %v2300 = vrot.slane %v2298, 1
      %v2301 = vsel %vm2109, %v2296, %v2300
      %v2303 = vshrl.u32 %v2077, 16
      %v2305 = vshll.u32 %v2077, 16
      %v2307 = vrot.slane %v2305, 1
      %v2308 = vor.u32 %v2303, %v2307
      %v2310 = vshll.u32 %v2078, 16
      %v2312 = vrot.slane %v2310, 1
      %v2313 = vsel %vm2109, %v2308, %v2312
      %v2315 = vshrl.u32 %v2079, 16
      %v2317 = vshll.u32 %v2079, 16
      %v2319 = vrot.slane %v2317, 1
      %v2320 = vor.u32 %v2315, %v2319
      %v2322 = vshll.u32 %v2080, 16
      %v2324 = vrot.slane %v2322, 1
      %v2325 = vsel %vm2109, %v2320, %v2324
      %v2327 = vshrl.u32 %v2081, 16
      %v2329 = vshll.u32 %v2081, 16
      %v2331 = vrot.slane %v2329, 1
      %v2332 = vor.u32 %v2327, %v2331
      %v2334 = vshll.u32 %v2082, 16
      %v2336 = vrot.slane %v2334, 1
      %v2337 = vsel %vm2109, %v2332, %v2336
      %v2339 = vshrl.u32 %v2083, 16
      %v2341 = vshll.u32 %v2083, 16
      %v2343 = vrot.slane %v2341, 1
      %v2344 = vor.u32 %v2339, %v2343
      %v2346 = vshll.u32 %v2084, 16
      %v2348 = vrot.slane %v2346, 1
      %v2349 = vsel %vm2109, %v2344, %v2348
      %v2351 = vshrl.u32 %v2085, 16
      %v2353 = vshll.u32 %v2085, 16
      %v2355 = vrot.slane %v2353, 1
      %v2356 = vor.u32 %v2351, %v2355
      %v2358 = vshll.u32 %v2086, 16
      %v2360 = vrot.slane %v2358, 1
      %v2361 = vsel %vm2109, %v2356, %v2360
      %v2363 = vshrl.u32 %v2087, 16
      %v2365 = vshll.u32 %v2087, 16
      %v2367 = vrot.slane %v2365, 1
      %v2368 = vor.u32 %v2363, %v2367
      %v2370 = vshll.u32 %v2088, 16
      %v2372 = vrot.slane %v2370, 1
      %v2373 = vsel %vm2109, %v2368, %v2372
      %v2375 = vshrl.u32 %v2089, 16
      %v2377 = vshll.u32 %v2089, 16
      %v2379 = vrot.slane %v2377, 1
      %v2380 = vor.u32 %v2375, %v2379
      %v2382 = vshll.u32 %v2090, 16
      %v2384 = vrot.slane %v2382, 1
      %v2385 = vsel %vm2109, %v2380, %v2384
      %v2387 = vshrl.u32 %v2091, 16
      %v2389 = vshll.u32 %v2091, 16
      %v2391 = vrot.slane %v2389, 1
      %v2392 = vor.u32 %v2387, %v2391
      %v2394 = vshll.u32 %v2092, 16
      %v2396 = vrot.slane %v2394, 1
      %v2397 = vsel %vm2109, %v2392, %v2396
      %v2399 = vshrl.u32 %v2093, 16
      %v2401 = vshll.u32 %v2093, 16
      %v2403 = vrot.slane %v2401, 1
      %v2404 = vor.u32 %v2399, %v2403
      %v2406 = vshll.u32 %v2094, 16
      %v2408 = vrot.slane %v2406, 1
      %v2409 = vsel %vm2109, %v2404, %v2408
      %v2411 = vshrl.u32 %v2095, 16
      %v2413 = vshll.u32 %v2095, 16
      %v2415 = vrot.slane %v2413, 1
      %v2416 = vor.u32 %v2411, %v2415
      %v2418 = vshll.u32 %v2096, 16
      %v2420 = vrot.slane %v2418, 1
      %v2421 = vsel %vm2109, %v2416, %v2420
      %v2423 = vshrl.u32 %v2097, 16
      %v2425 = vshll.u32 %v2097, 16
      %v2427 = vrot.slane %v2425, 1
      %v2428 = vor.u32 %v2423, %v2427
      %v2430 = vshll.u32 %v2098, 16
      %v2432 = vrot.slane %v2430, 1
      %v2433 = vsel %vm2109, %v2428, %v2432
      %v2435 = vshrl.u32 %v2099, 16
      %v2437 = vshll.u32 %v2099, 16
      %v2439 = vrot.slane %v2437, 1
      %v2440 = vor.u32 %v2435, %v2439
      %v2442 = vshll.u32 %v2100, 16
      %v2444 = vrot.slane %v2442, 1
      %v2445 = vsel %vm2109, %v2440, %v2444
      %v2447 = vshrl.u32 %v2101, 16
      %v2449 = vshll.u32 %v2101, 16
      %v2451 = vrot.slane %v2449, 1
      %v2452 = vor.u32 %v2447, %v2451
      %v2454 = vshll.u32 %v2102, 16
      %v2456 = vrot.slane %v2454, 1
      %v2457 = vsel %vm2109, %v2452, %v2456
      %v2459 = vshrl.u32 %v2103, 16
      %v2461 = vshll.u32 %v2103, 16
      %v2463 = vrot.slane %v2461, 1
      %v2464 = vor.u32 %v2459, %v2463
      %v2466 = vshll.u32 %v2104, 16
      %v2468 = vrot.slane %v2466, 1
      %v2469 = vsel %vm2109, %v2464, %v2468
      %v2471 = vshrl.u32 %v2105, 16
      %v2473 = vshll.u32 %v2105, 16
      %v2475 = vrot.slane %v2473, 1
      %v2476 = vor.u32 %v2471, %v2475
      %v2478 = vshll.u32 %v2106, 16
      %v2480 = vrot.slane %v2478, 1
      %v2481 = vsel %vm2109, %v2476, %v2480
      %v2483 = vshrl.u32 %v2107, 16
      %v2485 = vshll.u32 %v2107, 16
      %v2487 = vrot.slane %v2485, 1
      %v2488 = vor.u32 %v2483, %v2487
      %v2490 = vshll.u32 %v2108, 16
      %v2492 = vrot.slane %v2490, 1
      %v2493 = vsel %vm2109, %v2488, %v2492
      %2494 = vrot.lane.b32.xlu0 %v2121, 4
      %v2495 = vpop.permute.xlu0 %2494
      %2496 = vrot.lane.b32.xlu0 %v2133, 4
      %v2497 = vpop.permute.xlu0 %2496
      %2498 = vrot.lane.b32.xlu0 %v2145, 4
      %v2499 = vpop.permute.xlu0 %2498
      %2500 = vrot.lane.b32.xlu0 %v2157, 4
      %v2501 = vpop.permute.xlu0 %2500
      %2502 = vrot.lane.b32.xlu0 %v2169, 4
      %v2503 = vpop.permute.xlu0 %2502
      %2504 = vrot.lane.b32.xlu0 %v2181, 4
      %v2505 = vpop.permute.xlu0 %2504
      %2506 = vrot.lane.b32.xlu0 %v2193, 4
      %v2507 = vpop.permute.xlu0 %2506
      %2508 = vrot.lane.b32.xlu0 %v2205, 4
      %v2509 = vpop.permute.xlu0 %2508
      %2510 = vrot.lane.b32.xlu0 %v2217, 4
      %v2511 = vpop.permute.xlu0 %2510
      %2512 = vrot.lane.b32.xlu0 %v2229, 4
      %v2513 = vpop.permute.xlu0 %2512
      %2514 = vrot.lane.b32.xlu0 %v2241, 4
      %v2515 = vpop.permute.xlu0 %2514
      %2516 = vrot.lane.b32.xlu0 %v2253, 4
      %v2517 = vpop.permute.xlu0 %2516
      %2518 = vrot.lane.b32.xlu0 %v2265, 4
      %v2519 = vpop.permute.xlu0 %2518
      %2520 = vrot.lane.b32.xlu0 %v2277, 4
      %v2521 = vpop.permute.xlu0 %2520
      %2522 = vrot.lane.b32.xlu0 %v2289, 4
      %v2523 = vpop.permute.xlu0 %2522
      %2524 = vrot.lane.b32.xlu0 %v2301, 4
      %v2525 = vpop.permute.xlu0 %2524
      %2526 = vrot.lane.b32.xlu0 %v2313, 4
      %v2527 = vpop.permute.xlu0 %2526
      %2528 = vrot.lane.b32.xlu0 %v2325, 4
      %v2529 = vpop.permute.xlu0 %2528
      %2530 = vrot.lane.b32.xlu0 %v2337, 4
      %v2531 = vpop.permute.xlu0 %2530
      %2532 = vrot.lane.b32.xlu0 %v2349, 4
      %v2533 = vpop.permute.xlu0 %2532
      %2534 = vrot.lane.b32.xlu0 %v2361, 4
      %v2535 = vpop.permute.xlu0 %2534
      %2536 = vrot.lane.b32.xlu0 %v2373, 4
      %v2537 = vpop.permute.xlu0 %2536
      %2538 = vrot.lane.b32.xlu0 %v2385, 4
      %v2539 = vpop.permute.xlu0 %2538
      %2540 = vrot.lane.b32.xlu0 %v2397, 4
      %v2541 = vpop.permute.xlu0 %2540
      %2542 = vrot.lane.b32.xlu0 %v2409, 4
      %v2543 = vpop.permute.xlu0 %2542
      %2544 = vrot.lane.b32.xlu0 %v2421, 4
      %v2545 = vpop.permute.xlu0 %2544
      %2546 = vrot.lane.b32.xlu0 %v2433, 4
      %v2547 = vpop.permute.xlu0 %2546
      %2548 = vrot.lane.b32.xlu0 %v2445, 4
      %v2549 = vpop.permute.xlu0 %2548
      %2550 = vrot.lane.b32.xlu0 %v2457, 4
      %v2551 = vpop.permute.xlu0 %2550
      %2552 = vrot.lane.b32.xlu0 %v2469, 4
      %v2553 = vpop.permute.xlu0 %2552
      %2554 = vrot.lane.b32.xlu0 %v2481, 4
      %v2555 = vpop.permute.xlu0 %2554
      %2556 = vrot.lane.b32.xlu0 %v2493, 4
      %v2557 = vpop.permute.xlu0 %2556
      %vm2590 = vcmask 64544
      %2591 = vst.msk [vmem:[#allocation3] sm:$0xff] %vm2590, %v2495
      %2592 = vst.msk [vmem:[#allocation3 + $0x8] sm:$0xff] %vm2590, %v2497
      %2593 = vst.msk [vmem:[#allocation3 + $0x10] sm:$0xff] %vm2590, %v2499
      %2594 = vst.msk [vmem:[#allocation3 + $0x18] sm:$0xff] %vm2590, %v2501
      %2595 = vst.msk [vmem:[#allocation3 + $0x20] sm:$0xff] %vm2590, %v2503
      %2596 = vst.msk [vmem:[#allocation3 + $0x28] sm:$0xff] %vm2590, %v2505
      %2597 = vst.msk [vmem:[#allocation3 + $0x30] sm:$0xff] %vm2590, %v2507
      %2598 = vst.msk [vmem:[#allocation3 + $0x38] sm:$0xff] %vm2590, %v2509
      %2599 = vst.msk [vmem:[#allocation3 + $0x40] sm:$0xff] %vm2590, %v2511
      %2600 = vst.msk [vmem:[#allocation3 + $0x48] sm:$0xff] %vm2590, %v2513
      %2601 = vst.msk [vmem:[#allocation3 + $0x50] sm:$0xff] %vm2590, %v2515
      %2602 = vst.msk [vmem:[#allocation3 + $0x58] sm:$0xff] %vm2590, %v2517
      %2603 = vst.msk [vmem:[#allocation3 + $0x60] sm:$0xff] %vm2590, %v2519
      %2604 = vst.msk [vmem:[#allocation3 + $0x68] sm:$0xff] %vm2590, %v2521
      %2605 = vst.msk [vmem:[#allocation3 + $0x70] sm:$0xff] %vm2590, %v2523
      %2606 = vst.msk [vmem:[#allocation3 + $0x78] sm:$0xff] %vm2590, %v2525
      %2607 = vst.msk [vmem:[#allocation3 + $0x80] sm:$0xff] %vm2590, %v2527
      %2608 = vst.msk [vmem:[#allocation3 + $0x88] sm:$0xff] %vm2590, %v2529
      %2609 = vst.msk [vmem:[#allocation3 + $0x90] sm:$0xff] %vm2590, %v2531
      %2610 = vst.msk [vmem:[#allocation3 + $0x98] sm:$0xff] %vm2590, %v2533
      %2611 = vst.msk [vmem:[#allocation3 + $0xa0] sm:$0xff] %vm2590, %v2535
      %2612 = vst.msk [vmem:[#allocation3 + $0xa8] sm:$0xff] %vm2590, %v2537
      %2613 = vst.msk [vmem:[#allocation3 + $0xb0] sm:$0xff] %vm2590, %v2539
      %2614 = vst.msk [vmem:[#allocation3 + $0xb8] sm:$0xff] %vm2590, %v2541
      %2615 = vst.msk [vmem:[#allocation3 + $0xc0] sm:$0xff] %vm2590, %v2543
      %2616 = vst.msk [vmem:[#allocation3 + $0xc8] sm:$0xff] %vm2590, %v2545
      %2617 = vst.msk [vmem:[#allocation3 + $0xd0] sm:$0xff] %vm2590, %v2547
      %2618 = vst.msk [vmem:[#allocation3 + $0xd8] sm:$0xff] %vm2590, %v2549
      %2619 = vst.msk [vmem:[#allocation3 + $0xe0] sm:$0xff] %vm2590, %v2551
      %2620 = vst.msk [vmem:[#allocation3 + $0xe8] sm:$0xff] %vm2590, %v2553
      %2621 = vst.msk [vmem:[#allocation3 + $0xf0] sm:$0xff] %vm2590, %v2555
      %2622 = vst.msk [vmem:[#allocation3 + $0xf8] sm:$0xff] %vm2590, %v2557
      %v2623 = vld [vmem:[#allocation2] sm:$0xe]
      %v2624 = vld [vmem:[#allocation2 + $0x4] sm:$0xf]
      %v2625 = vld [vmem:[#allocation2 + $0x8] sm:$0x1]
      %v2626 = vld [vmem:[#allocation2 + $0xc] sm:$0xe]
      %v2627 = vld [vmem:[#allocation2 + $0x10] sm:$0xf]
      %v2628 = vld [vmem:[#allocation2 + $0x14] sm:$0x1]
      %v2629 = vld [vmem:[#allocation2 + $0x18] sm:$0xe]
      %v2630 = vld [vmem:[#allocation2 + $0x1c] sm:$0xf]
      %v2631 = vld [vmem:[#allocation2 + $0x20] sm:$0x1]
      %v2632 = vld [vmem:[#allocation2 + $0x24] sm:$0xe]
      %v2633 = vld [vmem:[#allocation2 + $0x28] sm:$0xf]
      %v2634 = vld [vmem:[#allocation2 + $0x2c] sm:$0x1]
      %v2635 = vld [vmem:[#allocation2 + $0x30] sm:$0xe]
      %v2636 = vld [vmem:[#allocation2 + $0x34] sm:$0xf]
      %v2637 = vld [vmem:[#allocation2 + $0x38] sm:$0x1]
      %v2638 = vld [vmem:[#allocation2 + $0x3c] sm:$0xe]
      %v2639 = vld [vmem:[#allocation2 + $0x40] sm:$0xf]
      %v2640 = vld [vmem:[#allocation2 + $0x44] sm:$0x1]
      %v2641 = vld [vmem:[#allocation2 + $0x48] sm:$0xe]
      %v2642 = vld [vmem:[#allocation2 + $0x4c] sm:$0xf]
      %v2643 = vld [vmem:[#allocation2 + $0x50] sm:$0x1]
      %v2644 = vld [vmem:[#allocation2 + $0x54] sm:$0xe]
      %v2645 = vld [vmem:[#allocation2 + $0x58] sm:$0xf]
      %v2646 = vld [vmem:[#allocation2 + $0x5c] sm:$0x1]
      %v2647 = vld [vmem:[#allocation2 + $0x60] sm:$0xe]
      %v2648 = vld [vmem:[#allocation2 + $0x64] sm:$0xf]
      %v2649 = vld [vmem:[#allocation2 + $0x68] sm:$0x1]
      %v2650 = vld [vmem:[#allocation2 + $0x6c] sm:$0xe]
      %v2651 = vld [vmem:[#allocation2 + $0x70] sm:$0xf]
      %v2652 = vld [vmem:[#allocation2 + $0x74] sm:$0x1]
      %v2653 = vld [vmem:[#allocation2 + $0x78] sm:$0xe]
      %v2654 = vld [vmem:[#allocation2 + $0x7c] sm:$0xf]
      %v2655 = vld [vmem:[#allocation2 + $0x80] sm:$0x1]
      %v2656 = vld [vmem:[#allocation2 + $0x84] sm:$0xe]
      %v2657 = vld [vmem:[#allocation2 + $0x88] sm:$0xf]
      %v2658 = vld [vmem:[#allocation2 + $0x8c] sm:$0x1]
      %v2659 = vld [vmem:[#allocation2 + $0x90] sm:$0xe]
      %v2660 = vld [vmem:[#allocation2 + $0x94] sm:$0xf]
      %v2661 = vld [vmem:[#allocation2 + $0x98] sm:$0x1]
      %v2662 = vld [vmem:[#allocation2 + $0x9c] sm:$0xe]
      %v2663 = vld [vmem:[#allocation2 + $0xa0] sm:$0xf]
      %v2664 = vld [vmem:[#allocation2 + $0xa4] sm:$0x1]
      %v2665 = vld [vmem:[#allocation2 + $0xa8] sm:$0xe]
      %v2666 = vld [vmem:[#allocation2 + $0xac] sm:$0xf]
      %v2667 = vld [vmem:[#allocation2 + $0xb0] sm:$0x1]
      %v2668 = vld [vmem:[#allocation2 + $0xb4] sm:$0xe]
      %v2669 = vld [vmem:[#allocation2 + $0xb8] sm:$0xf]
      %v2670 = vld [vmem:[#allocation2 + $0xbc] sm:$0x1]
      %v2671 = vld [vmem:[#allocation2 + $0xd8] sm:$0xe]
      %v2672 = vld [vmem:[#allocation2 + $0xdc] sm:$0xf]
      %v2673 = vld [vmem:[#allocation2 + $0xe0] sm:$0x1]
      %v2674 = vld [vmem:[#allocation2 + $0xe4] sm:$0xe]
      %v2675 = vld [vmem:[#allocation2 + $0xe8] sm:$0xf]
      %v2676 = vld [vmem:[#allocation2 + $0xec] sm:$0x1]
      %v2677 = vld [vmem:[#allocation2 + $0xf0] sm:$0xe]
      %v2678 = vld [vmem:[#allocation2 + $0xf4] sm:$0xf]
      %v2679 = vld [vmem:[#allocation2 + $0xf8] sm:$0x1]
      %v2680 = vld [vmem:[#allocation2 + $0xfc] sm:$0xe]
      %v2681 = vld [vmem:[#allocation2 + $0x100] sm:$0xf]
      %v2682 = vld [vmem:[#allocation2 + $0x104] sm:$0x1]
      %v2683 = vld [vmem:[#allocation2 + $0x108] sm:$0xe]
      %v2684 = vld [vmem:[#allocation2 + $0x10c] sm:$0xf]
      %v2685 = vld [vmem:[#allocation2 + $0x110] sm:$0x1]
      %v2686 = vld [vmem:[#allocation2 + $0x114] sm:$0xe]
      %v2687 = vld [vmem:[#allocation2 + $0x118] sm:$0xf]
      %v2688 = vld [vmem:[#allocation2 + $0x11c] sm:$0x1]
      %v2689 = vld [vmem:[#allocation2 + $0x120] sm:$0xe]
      %v2690 = vld [vmem:[#allocation2 + $0x124] sm:$0xf]
      %v2691 = vld [vmem:[#allocation2 + $0x128] sm:$0x1]
      %v2692 = vld [vmem:[#allocation2 + $0x12c] sm:$0xe]
      %v2693 = vld [vmem:[#allocation2 + $0x130] sm:$0xf]
      %v2694 = vld [vmem:[#allocation2 + $0x134] sm:$0x1]
      %v2695 = vld [vmem:[#allocation2 + $0x138] sm:$0xe]
      %v2696 = vld [vmem:[#allocation2 + $0x13c] sm:$0xf]
      %v2697 = vld [vmem:[#allocation2 + $0x140] sm:$0x1]
      %v2698 = vld [vmem:[#allocation2 + $0x144] sm:$0xe]
      %v2699 = vld [vmem:[#allocation2 + $0x148] sm:$0xf]
      %v2700 = vld [vmem:[#allocation2 + $0x14c] sm:$0x1]
      %v2701 = vld [vmem:[#allocation2 + $0x150] sm:$0xe]
      %v2702 = vld [vmem:[#allocation2 + $0x154] sm:$0xf]
      %v2703 = vld [vmem:[#allocation2 + $0x158] sm:$0x1]
      %v2704 = vld [vmem:[#allocation2 + $0x15c] sm:$0xe]
      %v2705 = vld [vmem:[#allocation2 + $0x160] sm:$0xf]
      %v2706 = vld [vmem:[#allocation2 + $0x164] sm:$0x1]
      %v2707 = vld [vmem:[#allocation2 + $0x168] sm:$0xe]
      %v2708 = vld [vmem:[#allocation2 + $0x16c] sm:$0xf]
      %v2709 = vld [vmem:[#allocation2 + $0x170] sm:$0x1]
      %v2710 = vld [vmem:[#allocation2 + $0x174] sm:$0xe]
      %v2711 = vld [vmem:[#allocation2 + $0x178] sm:$0xf]
      %v2712 = vld [vmem:[#allocation2 + $0x17c] sm:$0x1]
      %v2713 = vld [vmem:[#allocation2 + $0x180] sm:$0xe]
      %v2714 = vld [vmem:[#allocation2 + $0x184] sm:$0xf]
      %v2715 = vld [vmem:[#allocation2 + $0x188] sm:$0x1]
      %v2716 = vld [vmem:[#allocation2 + $0x18c] sm:$0xe]
      %v2717 = vld [vmem:[#allocation2 + $0x190] sm:$0xf]
      %v2718 = vld [vmem:[#allocation2 + $0x194] sm:$0x1]
      %v2815 = vunpack.c.l.b16 %v2623
      %v2816 = vunpack.c.l.b16 %v2624
      %v2817 = vunpack.c.l.b16 %v2625
      %v2818 = vunpack.c.l.b16 %v2626
      %v2819 = vunpack.c.l.b16 %v2627
      %v2820 = vunpack.c.l.b16 %v2628
      %v2821 = vunpack.c.l.b16 %v2629
      %v2822 = vunpack.c.l.b16 %v2630
      %v2823 = vunpack.c.l.b16 %v2631
      %v2824 = vunpack.c.l.b16 %v2632
      %v2825 = vunpack.c.l.b16 %v2633
      %v2826 = vunpack.c.l.b16 %v2634
      %v2827 = vunpack.c.l.b16 %v2635
      %v2828 = vunpack.c.l.b16 %v2636
      %v2829 = vunpack.c.l.b16 %v2637
      %v2830 = vunpack.c.l.b16 %v2638
      %v2831 = vunpack.c.l.b16 %v2639
      %v2832 = vunpack.c.l.b16 %v2640
      %v2833 = vunpack.c.l.b16 %v2641
      %v2834 = vunpack.c.l.b16 %v2642
      %v2835 = vunpack.c.l.b16 %v2643
      %v2836 = vunpack.c.l.b16 %v2644
      %v2837 = vunpack.c.l.b16 %v2645
      %v2838 = vunpack.c.l.b16 %v2646
      %v2839 = vunpack.c.l.b16 %v2647
      %v2840 = vunpack.c.l.b16 %v2648
      %v2841 = vunpack.c.l.b16 %v2649
      %v2842 = vunpack.c.l.b16 %v2650
      %v2843 = vunpack.c.l.b16 %v2651
      %v2844 = vunpack.c.l.b16 %v2652
      %v2845 = vunpack.c.l.b16 %v2653
      %v2846 = vunpack.c.l.b16 %v2654
      %v2847 = vunpack.c.l.b16 %v2655
      %v2848 = vunpack.c.l.b16 %v2656
      %v2849 = vunpack.c.l.b16 %v2657
      %v2850 = vunpack.c.l.b16 %v2658
      %v2851 = vunpack.c.l.b16 %v2659
      %v2852 = vunpack.c.l.b16 %v2660
      %v2853 = vunpack.c.l.b16 %v2661
      %v2854 = vunpack.c.l.b16 %v2662
      %v2855 = vunpack.c.l.b16 %v2663
      %v2856 = vunpack.c.l.b16 %v2664
      %v2857 = vunpack.c.l.b16 %v2665
      %v2858 = vunpack.c.l.b16 %v2666
      %v2859 = vunpack.c.l.b16 %v2667
      %v2860 = vunpack.c.l.b16 %v2668
      %v2861 = vunpack.c.l.b16 %v2669
      %v2862 = vunpack.c.l.b16 %v2670
      %v2863 = vunpack.c.l.b16 %v2671
      %v2864 = vunpack.c.l.b16 %v2672
      %v2865 = vunpack.c.l.b16 %v2673
      %v2866 = vunpack.c.l.b16 %v2674
      %v2867 = vunpack.c.l.b16 %v2675
      %v2868 = vunpack.c.l.b16 %v2676
      %v2869 = vunpack.c.l.b16 %v2677
      %v2870 = vunpack.c.l.b16 %v2678
      %v2871 = vunpack.c.l.b16 %v2679
      %v2872 = vunpack.c.l.b16 %v2680
      %v2873 = vunpack.c.l.b16 %v2681
      %v2874 = vunpack.c.l.b16 %v2682
      %v2875 = vunpack.c.l.b16 %v2683
      %v2876 = vunpack.c.l.b16 %v2684
      %v2877 = vunpack.c.l.b16 %v2685
      %v2878 = vunpack.c.l.b16 %v2686
      %v2879 = vunpack.c.l.b16 %v2687
      %v2880 = vunpack.c.l.b16 %v2688
      %v2881 = vunpack.c.l.b16 %v2689
      %v2882 = vunpack.c.l.b16 %v2690
      %v2883 = vunpack.c.l.b16 %v2691
      %v2884 = vunpack.c.l.b16 %v2692
      %v2885 = vunpack.c.l.b16 %v2693
      %v2886 = vunpack.c.l.b16 %v2694
      %v2887 = vunpack.c.l.b16 %v2695
      %v2888 = vunpack.c.l.b16 %v2696
      %v2889 = vunpack.c.l.b16 %v2697
      %v2890 = vunpack.c.l.b16 %v2698
      %v2891 = vunpack.c.l.b16 %v2699
      %v2892 = vunpack.c.l.b16 %v2700
      %v2893 = vunpack.c.l.b16 %v2701
      %v2894 = vunpack.c.l.b16 %v2702
      %v2895 = vunpack.c.l.b16 %v2703
      %v2896 = vunpack.c.l.b16 %v2704
      %v2897 = vunpack.c.l.b16 %v2705
      %v2898 = vunpack.c.l.b16 %v2706
      %v2899 = vunpack.c.l.b16 %v2707
      %v2900 = vunpack.c.l.b16 %v2708
      %v2901 = vunpack.c.l.b16 %v2709
      %v2902 = vunpack.c.l.b16 %v2710
      %v2903 = vunpack.c.l.b16 %v2711
      %v2904 = vunpack.c.l.b16 %v2712
      %v2905 = vunpack.c.l.b16 %v2713
      %v2906 = vunpack.c.l.b16 %v2714
      %v2907 = vunpack.c.l.b16 %v2715
      %v2908 = vunpack.c.l.b16 %v2716
      %v2909 = vunpack.c.l.b16 %v2717
      %v2910 = vunpack.c.l.b16 %v2718
      %v2911 = vpack.c.b16 %v2816, %v2815
      %v2912 = vpack.c.b16 %v2817, %v2817
      %v2913 = vpack.c.b16 %v2819, %v2818
      %v2914 = vpack.c.b16 %v2820, %v2820
      %v2915 = vpack.c.b16 %v2822, %v2821
      %v2916 = vpack.c.b16 %v2823, %v2823
      %v2917 = vpack.c.b16 %v2825, %v2824
      %v2918 = vpack.c.b16 %v2826, %v2826
      %v2919 = vpack.c.b16 %v2828, %v2827
      %v2920 = vpack.c.b16 %v2829, %v2829
      %v2921 = vpack.c.b16 %v2831, %v2830
      %v2922 = vpack.c.b16 %v2832, %v2832
      %v2923 = vpack.c.b16 %v2834, %v2833
      %v2924 = vpack.c.b16 %v2835, %v2835
      %v2925 = vpack.c.b16 %v2837, %v2836
      %v2926 = vpack.c.b16 %v2838, %v2838
      %v2927 = vpack.c.b16 %v2840, %v2839
      %v2928 = vpack.c.b16 %v2841, %v2841
      %v2929 = vpack.c.b16 %v2843, %v2842
      %v2930 = vpack.c.b16 %v2844, %v2844
      %v2931 = vpack.c.b16 %v2846, %v2845
      %v2932 = vpack.c.b16 %v2847, %v2847
      %v2933 = vpack.c.b16 %v2849, %v2848
      %v2934 = vpack.c.b16 %v2850, %v2850
      %v2935 = vpack.c.b16 %v2852, %v2851
      %v2936 = vpack.c.b16 %v2853, %v2853
      %v2937 = vpack.c.b16 %v2855, %v2854
      %v2938 = vpack.c.b16 %v2856, %v2856
      %v2939 = vpack.c.b16 %v2858, %v2857
      %v2940 = vpack.c.b16 %v2859, %v2859
      %v2941 = vpack.c.b16 %v2861, %v2860
      %v2942 = vpack.c.b16 %v2862, %v2862
      %v2943 = vpack.c.b16 %v2864, %v2863
      %v2944 = vpack.c.b16 %v2865, %v2865
      %v2945 = vpack.c.b16 %v2867, %v2866
      %v2946 = vpack.c.b16 %v2868, %v2868
      %v2947 = vpack.c.b16 %v2870, %v2869
      %v2948 = vpack.c.b16 %v2871, %v2871
      %v2949 = vpack.c.b16 %v2873, %v2872
      %v2950 = vpack.c.b16 %v2874, %v2874
      %v2951 = vpack.c.b16 %v2876, %v2875
      %v2952 = vpack.c.b16 %v2877, %v2877
      %v2953 = vpack.c.b16 %v2879, %v2878
      %v2954 = vpack.c.b16 %v2880, %v2880
      %v2955 = vpack.c.b16 %v2882, %v2881
      %v2956 = vpack.c.b16 %v2883, %v2883
      %v2957 = vpack.c.b16 %v2885, %v2884
      %v2958 = vpack.c.b16 %v2886, %v2886
      %v2959 = vpack.c.b16 %v2888, %v2887
      %v2960 = vpack.c.b16 %v2889, %v2889
      %v2961 = vpack.c.b16 %v2891, %v2890
      %v2962 = vpack.c.b16 %v2892, %v2892
      %v2963 = vpack.c.b16 %v2894, %v2893
      %v2964 = vpack.c.b16 %v2895, %v2895
      %v2965 = vpack.c.b16 %v2897, %v2896
      %v2966 = vpack.c.b16 %v2898, %v2898
      %v2967 = vpack.c.b16 %v2900, %v2899
      %v2968 = vpack.c.b16 %v2901, %v2901
      %v2969 = vpack.c.b16 %v2903, %v2902
      %v2970 = vpack.c.b16 %v2904, %v2904
      %v2971 = vpack.c.b16 %v2906, %v2905
      %v2972 = vpack.c.b16 %v2907, %v2907
      %v2973 = vpack.c.b16 %v2909, %v2908
      %v2974 = vpack.c.b16 %v2910, %v2910
      %vm2975 = vcmask 1046528
      %v2976 = vrot.slane %v2911, 1
      %v2977 = vrot.slane %v2912, 1
      %v2978 = vsel %vm2975, %v2976, %v2977
      %v2979 = vrot.slane %v2913, 1
      %v2980 = vrot.slane %v2914, 1
      %v2981 = vsel %vm2975, %v2979, %v2980
      %v2982 = vrot.slane %v2915, 1
      %v2983 = vrot.slane %v2916, 1
      %v2984 = vsel %vm2975, %v2982, %v2983
      %v2985 = vrot.slane %v2917, 1
      %v2986 = vrot.slane %v2918, 1
      %v2987 = vsel %vm2975, %v2985, %v2986
      %v2988 = vrot.slane %v2919, 1
      %v2989 = vrot.slane %v2920, 1
      %v2990 = vsel %vm2975, %v2988, %v2989
      %v2991 = vrot.slane %v2921, 1
      %v2992 = vrot.slane %v2922, 1
      %v2993 = vsel %vm2975, %v2991, %v2992
      %v2994 = vrot.slane %v2923, 1
      %v2995 = vrot.slane %v2924, 1
      %v2996 = vsel %vm2975, %v2994, %v2995
      %v2997 = vrot.slane %v2925, 1
      %v2998 = vrot.slane %v2926, 1
      %v2999 = vsel %vm2975, %v2997, %v2998
      %v3000 = vrot.slane %v2927, 1
      %v3001 = vrot.slane %v2928, 1
      %v3002 = vsel %vm2975, %v3000, %v3001
      %v3003 = vrot.slane %v2929, 1
      %v3004 = vrot.slane %v2930, 1
      %v3005 = vsel %vm2975, %v3003, %v3004
      %v3006 = vrot.slane %v2931, 1
      %v3007 = vrot.slane %v2932, 1
      %v3008 = vsel %vm2975, %v3006, %v3007
      %v3009 = vrot.slane %v2933, 1
      %v3010 = vrot.slane %v2934, 1
      %v3011 = vsel %vm2975, %v3009, %v3010
      %v3012 = vrot.slane %v2935, 1
      %v3013 = vrot.slane %v2936, 1
      %v3014 = vsel %vm2975, %v3012, %v3013
      %v3015 = vrot.slane %v2937, 1
      %v3016 = vrot.slane %v2938, 1
      %v3017 = vsel %vm2975, %v3015, %v3016
      %v3018 = vrot.slane %v2939, 1
      %v3019 = vrot.slane %v2940, 1
      %v3020 = vsel %vm2975, %v3018, %v3019
      %v3021 = vrot.slane %v2941, 1
      %v3022 = vrot.slane %v2942, 1
      %v3023 = vsel %vm2975, %v3021, %v3022
      %v3024 = vrot.slane %v2943, 1
      %v3025 = vrot.slane %v2944, 1
      %v3026 = vsel %vm2975, %v3024, %v3025
      %v3027 = vrot.slane %v2945, 1
      %v3028 = vrot.slane %v2946, 1
      %v3029 = vsel %vm2975, %v3027, %v3028
      %v3030 = vrot.slane %v2947, 1
      %v3031 = vrot.slane %v2948, 1
      %v3032 = vsel %vm2975, %v3030, %v3031
      %v3033 = vrot.slane %v2949, 1
      %v3034 = vrot.slane %v2950, 1
      %v3035 = vsel %vm2975, %v3033, %v3034
      %v3036 = vrot.slane %v2951, 1
      %v3037 = vrot.slane %v2952, 1
      %v3038 = vsel %vm2975, %v3036, %v3037
      %v3039 = vrot.slane %v2953, 1
      %v3040 = vrot.slane %v2954, 1
      %v3041 = vsel %vm2975, %v3039, %v3040
      %v3042 = vrot.slane %v2955, 1
      %v3043 = vrot.slane %v2956, 1
      %v3044 = vsel %vm2975, %v3042, %v3043
      %v3045 = vrot.slane %v2957, 1
      %v3046 = vrot.slane %v2958, 1
      %v3047 = vsel %vm2975, %v3045, %v3046
      %v3048 = vrot.slane %v2959, 1
      %v3049 = vrot.slane %v2960, 1
      %v3050 = vsel %vm2975, %v3048, %v3049
      %v3051 = vrot.slane %v2961, 1
      %v3052 = vrot.slane %v2962, 1
      %v3053 = vsel %vm2975, %v3051, %v3052
      %v3054 = vrot.slane %v2963, 1
      %v3055 = vrot.slane %v2964, 1
      %v3056 = vsel %vm2975, %v3054, %v3055
      %v3057 = vrot.slane %v2965, 1
      %v3058 = vrot.slane %v2966, 1
      %v3059 = vsel %vm2975, %v3057, %v3058
      %v3060 = vrot.slane %v2967, 1
      %v3061 = vrot.slane %v2968, 1
      %v3062 = vsel %vm2975, %v3060, %v3061
      %v3063 = vrot.slane %v2969, 1
      %v3064 = vrot.slane %v2970, 1
      %v3065 = vsel %vm2975, %v3063, %v3064
      %v3066 = vrot.slane %v2971, 1
      %v3067 = vrot.slane %v2972, 1
      %v3068 = vsel %vm2975, %v3066, %v3067
      %v3069 = vrot.slane %v2973, 1
      %v3070 = vrot.slane %v2974, 1
      %v3071 = vsel %vm2975, %v3069, %v3070
      %3072 = vrot.lane.b32.xlu0 %v2978, 8
      %v3073 = vpop.permute.xlu0 %3072
      %3074 = vrot.lane.b32.xlu0 %v2981, 8
      %v3075 = vpop.permute.xlu0 %3074
      %3076 = vrot.lane.b32.xlu0 %v2984, 8
      %v3077 = vpop.permute.xlu0 %3076
      %3078 = vrot.lane.b32.xlu0 %v2987, 8
      %v3079 = vpop.permute.xlu0 %3078
      %3080 = vrot.lane.b32.xlu0 %v2990, 8
      %v3081 = vpop.permute.xlu0 %3080
      %3082 = vrot.lane.b32.xlu0 %v2993, 8
      %v3083 = vpop.permute.xlu0 %3082
      %3084 = vrot.lane.b32.xlu0 %v2996, 8
      %v3085 = vpop.permute.xlu0 %3084
      %3086 = vrot.lane.b32.xlu0 %v2999, 8
      %v3087 = vpop.permute.xlu0 %3086
      %3088 = vrot.lane.b32.xlu0 %v3002, 8
      %v3089 = vpop.permute.xlu0 %3088
      %3090 = vrot.lane.b32.xlu0 %v3005, 8
      %v3091 = vpop.permute.xlu0 %3090
      %3092 = vrot.lane.b32.xlu0 %v3008, 8
      %v3093 = vpop.permute.xlu0 %3092
      %3094 = vrot.lane.b32.xlu0 %v3011, 8
      %v3095 = vpop.permute.xlu0 %3094
      %3096 = vrot.lane.b32.xlu0 %v3014, 8
      %v3097 = vpop.permute.xlu0 %3096
      %3098 = vrot.lane.b32.xlu0 %v3017, 8
      %v3099 = vpop.permute.xlu0 %3098
      %3100 = vrot.lane.b32.xlu0 %v3020, 8
      %v3101 = vpop.permute.xlu0 %3100
      %3102 = vrot.lane.b32.xlu0 %v3023, 8
      %v3103 = vpop.permute.xlu0 %3102
      %3104 = vrot.lane.b32.xlu0 %v3026, 8
      %v3105 = vpop.permute.xlu0 %3104
      %3106 = vrot.lane.b32.xlu0 %v3029, 8
      %v3107 = vpop.permute.xlu0 %3106
      %3108 = vrot.lane.b32.xlu0 %v3032, 8
      %v3109 = vpop.permute.xlu0 %3108
      %3110 = vrot.lane.b32.xlu0 %v3035, 8
      %v3111 = vpop.permute.xlu0 %3110
      %3112 = vrot.lane.b32.xlu0 %v3038, 8
      %v3113 = vpop.permute.xlu0 %3112
      %3114 = vrot.lane.b32.xlu0 %v3041, 8
      %v3115 = vpop.permute.xlu0 %3114
      %3116 = vrot.lane.b32.xlu0 %v3044, 8
      %v3117 = vpop.permute.xlu0 %3116
      %3118 = vrot.lane.b32.xlu0 %v3047, 8
      %v3119 = vpop.permute.xlu0 %3118
      %3120 = vrot.lane.b32.xlu0 %v3050, 8
      %v3121 = vpop.permute.xlu0 %3120
      %3122 = vrot.lane.b32.xlu0 %v3053, 8
      %v3123 = vpop.permute.xlu0 %3122
      %3124 = vrot.lane.b32.xlu0 %v3056, 8
      %v3125 = vpop.permute.xlu0 %3124
      %3126 = vrot.lane.b32.xlu0 %v3059, 8
      %v3127 = vpop.permute.xlu0 %3126
      %3128 = vrot.lane.b32.xlu0 %v3062, 8
      %v3129 = vpop.permute.xlu0 %3128
      %3130 = vrot.lane.b32.xlu0 %v3065, 8
      %v3131 = vpop.permute.xlu0 %3130
      %3132 = vrot.lane.b32.xlu0 %v3068, 8
      %v3133 = vpop.permute.xlu0 %3132
      %3134 = vrot.lane.b32.xlu0 %v3071, 8
      %v3135 = vpop.permute.xlu0 %3134
      %vm3168 = vcmask 97344
      %3169 = vst.msk [vmem:[#allocation3] sm:$0xff] %vm3168, %v3073
      %3170 = vst.msk [vmem:[#allocation3 + $0x8] sm:$0xff] %vm3168, %v3075
      %3171 = vst.msk [vmem:[#allocation3 + $0x10] sm:$0xff] %vm3168, %v3077
      %3172 = vst.msk [vmem:[#allocation3 + $0x18] sm:$0xff] %vm3168, %v3079
      %3173 = vst.msk [vmem:[#allocation3 + $0x20] sm:$0xff] %vm3168, %v3081
      %3174 = vst.msk [vmem:[#allocation3 + $0x28] sm:$0xff] %vm3168, %v3083
      %3175 = vst.msk [vmem:[#allocation3 + $0x30] sm:$0xff] %vm3168, %v3085
      %3176 = vst.msk [vmem:[#allocation3 + $0x38] sm:$0xff] %vm3168, %v3087
      %3177 = vst.msk [vmem:[#allocation3 + $0x40] sm:$0xff] %vm3168, %v3089
      %3178 = vst.msk [vmem:[#allocation3 + $0x48] sm:$0xff] %vm3168, %v3091
      %3179 = vst.msk [vmem:[#allocation3 + $0x50] sm:$0xff] %vm3168, %v3093
      %3180 = vst.msk [vmem:[#allocation3 + $0x58] sm:$0xff] %vm3168, %v3095
      %3181 = vst.msk [vmem:[#allocation3 + $0x60] sm:$0xff] %vm3168, %v3097
      %3182 = vst.msk [vmem:[#allocation3 + $0x68] sm:$0xff] %vm3168, %v3099
      %3183 = vst.msk [vmem:[#allocation3 + $0x70] sm:$0xff] %vm3168, %v3101
      %3184 = vst.msk [vmem:[#allocation3 + $0x78] sm:$0xff] %vm3168, %v3103
      %3185 = vst.msk [vmem:[#allocation3 + $0x80] sm:$0xff] %vm3168, %v3105
      %3186 = vst.msk [vmem:[#allocation3 + $0x88] sm:$0xff] %vm3168, %v3107
      %3187 = vst.msk [vmem:[#allocation3 + $0x90] sm:$0xff] %vm3168, %v3109
      %3188 = vst.msk [vmem:[#allocation3 + $0x98] sm:$0xff] %vm3168, %v3111
      %3189 = vst.msk [vmem:[#allocation3 + $0xa0] sm:$0xff] %vm3168, %v3113
      %3190 = vst.msk [vmem:[#allocation3 + $0xa8] sm:$0xff] %vm3168, %v3115
      %3191 = vst.msk [vmem:[#allocation3 + $0xb0] sm:$0xff] %vm3168, %v3117
      %3192 = vst.msk [vmem:[#allocation3 + $0xb8] sm:$0xff] %vm3168, %v3119
      %3193 = vst.msk [vmem:[#allocation3 + $0xc0] sm:$0xff] %vm3168, %v3121
      %3194 = vst.msk [vmem:[#allocation3 + $0xc8] sm:$0xff] %vm3168, %v3123
      %3195 = vst.msk [vmem:[#allocation3 + $0xd0] sm:$0xff] %vm3168, %v3125
      %3196 = vst.msk [vmem:[#allocation3 + $0xd8] sm:$0xff] %vm3168, %v3127
      %3197 = vst.msk [vmem:[#allocation3 + $0xe0] sm:$0xff] %vm3168, %v3129
      %3198 = vst.msk [vmem:[#allocation3 + $0xe8] sm:$0xff] %vm3168, %v3131
      %3199 = vst.msk [vmem:[#allocation3 + $0xf0] sm:$0xff] %vm3168, %v3133
      %3200 = vst.msk [vmem:[#allocation3 + $0xf8] sm:$0xff] %vm3168, %v3135
      %v3201 = vld [vmem:[%s1238] sm:$0xf]
      %v3202 = vld [vmem:[%s1238 + $0x4] sm:$0xf]
      %v3203 = vld [vmem:[%s1238 + $0xc] sm:$0xf]
      %v3204 = vld [vmem:[%s1238 + $0x10] sm:$0xf]
      %v3205 = vld [vmem:[%s1238 + $0x18] sm:$0xf]
      %v3206 = vld [vmem:[%s1238 + $0x1c] sm:$0xf]
      %v3207 = vld [vmem:[%s1238 + $0x24] sm:$0xf]
      %v3208 = vld [vmem:[%s1238 + $0x28] sm:$0xf]
      %v3209 = vld [vmem:[%s1238 + $0x30] sm:$0xf]
      %v3210 = vld [vmem:[%s1238 + $0x34] sm:$0xf]
      %v3211 = vld [vmem:[%s1238 + $0x3c] sm:$0xf]
      %v3212 = vld [vmem:[%s1238 + $0x40] sm:$0xf]
      %v3213 = vld [vmem:[%s1238 + $0x48] sm:$0xf]
      %v3214 = vld [vmem:[%s1238 + $0x4c] sm:$0xf]
      %v3215 = vld [vmem:[%s1238 + $0x54] sm:$0xf]
      %v3216 = vld [vmem:[%s1238 + $0x58] sm:$0xf]
      %v3217 = vld [vmem:[%s1238 + $0x60] sm:$0xf]
      %v3218 = vld [vmem:[%s1238 + $0x64] sm:$0xf]
      %v3219 = vld [vmem:[%s1238 + $0x6c] sm:$0xf]
      %v3220 = vld [vmem:[%s1238 + $0x70] sm:$0xf]
      %v3221 = vld [vmem:[%s1238 + $0x78] sm:$0xf]
      %v3222 = vld [vmem:[%s1238 + $0x7c] sm:$0xf]
      %v3223 = vld [vmem:[%s1238 + $0x84] sm:$0xf]
      %v3224 = vld [vmem:[%s1238 + $0x88] sm:$0xf]
      %v3225 = vld [vmem:[%s1238 + $0x90] sm:$0xf]
      %v3226 = vld [vmem:[%s1238 + $0x94] sm:$0xf]
      %v3227 = vld [vmem:[%s1238 + $0x9c] sm:$0xf]
      %v3228 = vld [vmem:[%s1238 + $0xa0] sm:$0xf]
      %v3229 = vld [vmem:[%s1238 + $0xa8] sm:$0xf]
      %v3230 = vld [vmem:[%s1238 + $0xac] sm:$0xf]
      %v3231 = vld [vmem:[%s1238 + $0xb4] sm:$0xf]
      %v3232 = vld [vmem:[%s1238 + $0xb8] sm:$0xf]
      %v3233 = vld [vmem:[%s1238 + $0xd8] sm:$0xf]
      %v3234 = vld [vmem:[%s1238 + $0xdc] sm:$0xf]
      %v3235 = vld [vmem:[%s1238 + $0xe4] sm:$0xf]
      %v3236 = vld [vmem:[%s1238 + $0xe8] sm:$0xf]
      %v3237 = vld [vmem:[%s1238 + $0xf0] sm:$0xf]
      %v3238 = vld [vmem:[%s1238 + $0xf4] sm:$0xf]
      %v3239 = vld [vmem:[%s1238 + $0xfc] sm:$0xf]
      %v3240 = vld [vmem:[%s1238 + $0x100] sm:$0xf]
      %v3241 = vld [vmem:[%s1238 + $0x108] sm:$0xf]
      %v3242 = vld [vmem:[%s1238 + $0x10c] sm:$0xf]
      %v3243 = vld [vmem:[%s1238 + $0x114] sm:$0xf]
      %v3244 = vld [vmem:[%s1238 + $0x118] sm:$0xf]
      %v3245 = vld [vmem:[%s1238 + $0x120] sm:$0xf]
      %v3246 = vld [vmem:[%s1238 + $0x124] sm:$0xf]
      %v3247 = vld [vmem:[%s1238 + $0x12c] sm:$0xf]
      %v3248 = vld [vmem:[%s1238 + $0x130] sm:$0xf]
      %v3249 = vld [vmem:[%s1238 + $0x138] sm:$0xf]
      %v3250 = vld [vmem:[%s1238 + $0x13c] sm:$0xf]
      %v3251 = vld [vmem:[%s1238 + $0x144] sm:$0xf]
      %v3252 = vld [vmem:[%s1238 + $0x148] sm:$0xf]
      %v3253 = vld [vmem:[%s1238 + $0x150] sm:$0xf]
      %v3254 = vld [vmem:[%s1238 + $0x154] sm:$0xf]
      %v3255 = vld [vmem:[%s1238 + $0x15c] sm:$0xf]
      %v3256 = vld [vmem:[%s1238 + $0x160] sm:$0xf]
      %v3257 = vld [vmem:[%s1238 + $0x168] sm:$0xf]
      %v3258 = vld [vmem:[%s1238 + $0x16c] sm:$0xf]
      %v3259 = vld [vmem:[%s1238 + $0x174] sm:$0xf]
      %v3260 = vld [vmem:[%s1238 + $0x178] sm:$0xf]
      %v3261 = vld [vmem:[%s1238 + $0x180] sm:$0xf]
      %v3262 = vld [vmem:[%s1238 + $0x184] sm:$0xf]
      %v3263 = vld [vmem:[%s1238 + $0x18c] sm:$0xf]
      %v3264 = vld [vmem:[%s1238 + $0x190] sm:$0xf]
      %v3329 = vunpack.c.l.b16 %v3201
      %v3330 = vunpack.c.l.b16 %v3202
      %v3331 = vunpack.c.l.b16 %v3203
      %v3332 = vunpack.c.l.b16 %v3204
      %v3333 = vunpack.c.l.b16 %v3205
      %v3334 = vunpack.c.l.b16 %v3206
      %v3335 = vunpack.c.l.b16 %v3207
      %v3336 = vunpack.c.l.b16 %v3208
      %v3337 = vunpack.c.l.b16 %v3209
      %v3338 = vunpack.c.l.b16 %v3210
      %v3339 = vunpack.c.l.b16 %v3211
      %v3340 = vunpack.c.l.b16 %v3212
      %v3341 = vunpack.c.l.b16 %v3213
      %v3342 = vunpack.c.l.b16 %v3214
      %v3343 = vunpack.c.l.b16 %v3215
      %v3344 = vunpack.c.l.b16 %v3216
      %v3345 = vunpack.c.l.b16 %v3217
      %v3346 = vunpack.c.l.b16 %v3218
      %v3347 = vunpack.c.l.b16 %v3219
      %v3348 = vunpack.c.l.b16 %v3220
      %v3349 = vunpack.c.l.b16 %v3221
      %v3350 = vunpack.c.l.b16 %v3222
      %v3351 = vunpack.c.l.b16 %v3223
      %v3352 = vunpack.c.l.b16 %v3224
      %v3353 = vunpack.c.l.b16 %v3225
      %v3354 = vunpack.c.l.b16 %v3226
      %v3355 = vunpack.c.l.b16 %v3227
      %v3356 = vunpack.c.l.b16 %v3228
      %v3357 = vunpack.c.l.b16 %v3229
      %v3358 = vunpack.c.l.b16 %v3230
      %v3359 = vunpack.c.l.b16 %v3231
      %v3360 = vunpack.c.l.b16 %v3232
      %v3361 = vunpack.c.l.b16 %v3233
      %v3362 = vunpack.c.l.b16 %v3234
      %v3363 = vunpack.c.l.b16 %v3235
      %v3364 = vunpack.c.l.b16 %v3236
      %v3365 = vunpack.c.l.b16 %v3237
      %v3366 = vunpack.c.l.b16 %v3238
      %v3367 = vunpack.c.l.b16 %v3239
      %v3368 = vunpack.c.l.b16 %v3240
      %v3369 = vunpack.c.l.b16 %v3241
      %v3370 = vunpack.c.l.b16 %v3242
      %v3371 = vunpack.c.l.b16 %v3243
      %v3372 = vunpack.c.l.b16 %v3244
      %v3373 = vunpack.c.l.b16 %v3245
      %v3374 = vunpack.c.l.b16 %v3246
      %v3375 = vunpack.c.l.b16 %v3247
      %v3376 = vunpack.c.l.b16 %v3248
      %v3377 = vunpack.c.l.b16 %v3249
      %v3378 = vunpack.c.l.b16 %v3250
      %v3379 = vunpack.c.l.b16 %v3251
      %v3380 = vunpack.c.l.b16 %v3252
      %v3381 = vunpack.c.l.b16 %v3253
      %v3382 = vunpack.c.l.b16 %v3254
      %v3383 = vunpack.c.l.b16 %v3255
      %v3384 = vunpack.c.l.b16 %v3256
      %v3385 = vunpack.c.l.b16 %v3257
      %v3386 = vunpack.c.l.b16 %v3258
      %v3387 = vunpack.c.l.b16 %v3259
      %v3388 = vunpack.c.l.b16 %v3260
      %v3389 = vunpack.c.l.b16 %v3261
      %v3390 = vunpack.c.l.b16 %v3262
      %v3391 = vunpack.c.l.b16 %v3263
      %v3392 = vunpack.c.l.b16 %v3264
      %v3393 = vpack.c.b16 %v3330, %v3329
      %v3394 = vpack.c.b16 %v3332, %v3331
      %v3395 = vpack.c.b16 %v3334, %v3333
      %v3396 = vpack.c.b16 %v3336, %v3335
      %v3397 = vpack.c.b16 %v3338, %v3337
      %v3398 = vpack.c.b16 %v3340, %v3339
      %v3399 = vpack.c.b16 %v3342, %v3341
      %v3400 = vpack.c.b16 %v3344, %v3343
      %v3401 = vpack.c.b16 %v3346, %v3345
      %v3402 = vpack.c.b16 %v3348, %v3347
      %v3403 = vpack.c.b16 %v3350, %v3349
      %v3404 = vpack.c.b16 %v3352, %v3351
      %v3405 = vpack.c.b16 %v3354, %v3353
      %v3406 = vpack.c.b16 %v3356, %v3355
      %v3407 = vpack.c.b16 %v3358, %v3357
      %v3408 = vpack.c.b16 %v3360, %v3359
      %v3409 = vpack.c.b16 %v3362, %v3361
      %v3410 = vpack.c.b16 %v3364, %v3363
      %v3411 = vpack.c.b16 %v3366, %v3365
      %v3412 = vpack.c.b16 %v3368, %v3367
      %v3413 = vpack.c.b16 %v3370, %v3369
      %v3414 = vpack.c.b16 %v3372, %v3371
      %v3415 = vpack.c.b16 %v3374, %v3373
      %v3416 = vpack.c.b16 %v3376, %v3375
      %v3417 = vpack.c.b16 %v3378, %v3377
      %v3418 = vpack.c.b16 %v3380, %v3379
      %v3419 = vpack.c.b16 %v3382, %v3381
      %v3420 = vpack.c.b16 %v3384, %v3383
      %v3421 = vpack.c.b16 %v3386, %v3385
      %v3422 = vpack.c.b16 %v3388, %v3387
      %v3423 = vpack.c.b16 %v3390, %v3389
      %v3424 = vpack.c.b16 %v3392, %v3391
      %3425 = vrot.lane.b32.xlu0 %v3393, 12
      %v3426 = vpop.permute.xlu0 %3425
      %3427 = vrot.lane.b32.xlu0 %v3394, 12
      %v3428 = vpop.permute.xlu0 %3427
      %3429 = vrot.lane.b32.xlu0 %v3395, 12
      %v3430 = vpop.permute.xlu0 %3429
      %3431 = vrot.lane.b32.xlu0 %v3396, 12
      %v3432 = vpop.permute.xlu0 %3431
      %3433 = vrot.lane.b32.xlu0 %v3397, 12
      %v3434 = vpop.permute.xlu0 %3433
      %3435 = vrot.lane.b32.xlu0 %v3398, 12
      %v3436 = vpop.permute.xlu0 %3435
      %3437 = vrot.lane.b32.xlu0 %v3399, 12
      %v3438 = vpop.permute.xlu0 %3437
      %3439 = vrot.lane.b32.xlu0 %v3400, 12
      %v3440 = vpop.permute.xlu0 %3439
      %3441 = vrot.lane.b32.xlu0 %v3401, 12
      %v3442 = vpop.permute.xlu0 %3441
      %3443 = vrot.lane.b32.xlu0 %v3402, 12
      %v3444 = vpop.permute.xlu0 %3443
      %3445 = vrot.lane.b32.xlu0 %v3403, 12
      %v3446 = vpop.permute.xlu0 %3445
      %3447 = vrot.lane.b32.xlu0 %v3404, 12
      %v3448 = vpop.permute.xlu0 %3447
      %3449 = vrot.lane.b32.xlu0 %v3405, 12
      %v3450 = vpop.permute.xlu0 %3449
      %3451 = vrot.lane.b32.xlu0 %v3406, 12
      %v3452 = vpop.permute.xlu0 %3451
      %3453 = vrot.lane.b32.xlu0 %v3407, 12
      %v3454 = vpop.permute.xlu0 %3453
      %3455 = vrot.lane.b32.xlu0 %v3408, 12
      %v3456 = vpop.permute.xlu0 %3455
      %3457 = vrot.lane.b32.xlu0 %v3409, 12
      %v3458 = vpop.permute.xlu0 %3457
      %3459 = vrot.lane.b32.xlu0 %v3410, 12
      %v3460 = vpop.permute.xlu0 %3459
      %3461 = vrot.lane.b32.xlu0 %v3411, 12
      %v3462 = vpop.permute.xlu0 %3461
      %3463 = vrot.lane.b32.xlu0 %v3412, 12
      %v3464 = vpop.permute.xlu0 %3463
      %3465 = vrot.lane.b32.xlu0 %v3413, 12
      %v3466 = vpop.permute.xlu0 %3465
      %3467 = vrot.lane.b32.xlu0 %v3414, 12
      %v3468 = vpop.permute.xlu0 %3467
      %3469 = vrot.lane.b32.xlu0 %v3415, 12
      %v3470 = vpop.permute.xlu0 %3469
      %3471 = vrot.lane.b32.xlu0 %v3416, 12
      %v3472 = vpop.permute.xlu0 %3471
      %3473 = vrot.lane.b32.xlu0 %v3417, 12
      %v3474 = vpop.permute.xlu0 %3473
      %3475 = vrot.lane.b32.xlu0 %v3418, 12
      %v3476 = vpop.permute.xlu0 %3475
      %3477 = vrot.lane.b32.xlu0 %v3419, 12
      %v3478 = vpop.permute.xlu0 %3477
      %3479 = vrot.lane.b32.xlu0 %v3420, 12
      %v3480 = vpop.permute.xlu0 %3479
      %3481 = vrot.lane.b32.xlu0 %v3421, 12
      %v3482 = vpop.permute.xlu0 %3481
      %3483 = vrot.lane.b32.xlu0 %v3422, 12
      %v3484 = vpop.permute.xlu0 %3483
      %3485 = vrot.lane.b32.xlu0 %v3423, 12
      %v3486 = vpop.permute.xlu0 %3485
      %3487 = vrot.lane.b32.xlu0 %v3424, 12
      %v3488 = vpop.permute.xlu0 %3487
      %vm3521 = vcmask 130144
      %3522 = vst.msk [vmem:[#allocation3] sm:$0xff] %vm3521, %v3426
      %3523 = vst.msk [vmem:[#allocation3 + $0x8] sm:$0xff] %vm3521, %v3428
      %3524 = vst.msk [vmem:[#allocation3 + $0x10] sm:$0xff] %vm3521, %v3430
      %3525 = vst.msk [vmem:[#allocation3 + $0x18] sm:$0xff] %vm3521, %v3432
      %3526 = vst.msk [vmem:[#allocation3 + $0x20] sm:$0xff] %vm3521, %v3434
      %3527 = vst.msk [vmem:[#allocation3 + $0x28] sm:$0xff] %vm3521, %v3436
      %3528 = vst.msk [vmem:[#allocation3 + $0x30] sm:$0xff] %vm3521, %v3438
      %3529 = vst.msk [vmem:[#allocation3 + $0x38] sm:$0xff] %vm3521, %v3440
      %3530 = vst.msk [vmem:[#allocation3 + $0x40] sm:$0xff] %vm3521, %v3442
      %3531 = vst.msk [vmem:[#allocation3 + $0x48] sm:$0xff] %vm3521, %v3444
      %3532 = vst.msk [vmem:[#allocation3 + $0x50] sm:$0xff] %vm3521, %v3446
      %3533 = vst.msk [vmem:[#allocation3 + $0x58] sm:$0xff] %vm3521, %v3448
      %3534 = vst.msk [vmem:[#allocation3 + $0x60] sm:$0xff] %vm3521, %v3450
      %3535 = vst.msk [vmem:[#allocation3 + $0x68] sm:$0xff] %vm3521, %v3452
      %3536 = vst.msk [vmem:[#allocation3 + $0x70] sm:$0xff] %vm3521, %v3454
      %3537 = vst.msk [vmem:[#allocation3 + $0x78] sm:$0xff] %vm3521, %v3456
      %3538 = vst.msk [vmem:[#allocation3 + $0x80] sm:$0xff] %vm3521, %v3458
      %3539 = vst.msk [vmem:[#allocation3 + $0x88] sm:$0xff] %vm3521, %v3460
      %3540 = vst.msk [vmem:[#allocation3 + $0x90] sm:$0xff] %vm3521, %v3462
      %3541 = vst.msk [vmem:[#allocation3 + $0x98] sm:$0xff] %vm3521, %v3464
      %3542 = vst.msk [vmem:[#allocation3 + $0xa0] sm:$0xff] %vm3521, %v3466
      %3543 = vst.msk [vmem:[#allocation3 + $0xa8] sm:$0xff] %vm3521, %v3468
      %3544 = vst.msk [vmem:[#allocation3 + $0xb0] sm:$0xff] %vm3521, %v3470
      %3545 = vst.msk [vmem:[#allocation3 + $0xb8] sm:$0xff] %vm3521, %v3472
      %3546 = vst.msk [vmem:[#allocation3 + $0xc0] sm:$0xff] %vm3521, %v3474
      %3547 = vst.msk [vmem:[#allocation3 + $0xc8] sm:$0xff] %vm3521, %v3476
      %3548 = vst.msk [vmem:[#allocation3 + $0xd0] sm:$0xff] %vm3521, %v3478
      %3549 = vst.msk [vmem:[#allocation3 + $0xd8] sm:$0xff] %vm3521, %v3480
      %3550 = vst.msk [vmem:[#allocation3 + $0xe0] sm:$0xff] %vm3521, %v3482
      %3551 = vst.msk [vmem:[#allocation3 + $0xe8] sm:$0xff] %vm3521, %v3484
      %3552 = vst.msk [vmem:[#allocation3 + $0xf0] sm:$0xff] %vm3521, %v3486
      %3553 = vst.msk [vmem:[#allocation3 + $0xf8] sm:$0xff] %vm3521, %v3488
      %v3554 = vld [vmem:[%s1238] sm:$0xf]
      %v3555 = vld [vmem:[%s1238 + $0x4] sm:$0xf]
      %v3556 = vld [vmem:[%s1238 + $0x8] sm:$0x1]
      %v3557 = vld [vmem:[%s1238 + $0xc] sm:$0xf]
      %v3558 = vld [vmem:[%s1238 + $0x10] sm:$0xf]
      %v3559 = vld [vmem:[%s1238 + $0x14] sm:$0x1]
      %v3560 = vld [vmem:[%s1238 + $0x18] sm:$0xf]
      %v3561 = vld [vmem:[%s1238 + $0x1c] sm:$0xf]
      %v3562 = vld [vmem:[%s1238 + $0x20] sm:$0x1]
      %v3563 = vld [vmem:[%s1238 + $0x24] sm:$0xf]
      %v3564 = vld [vmem:[%s1238 + $0x28] sm:$0xf]
      %v3565 = vld [vmem:[%s1238 + $0x2c] sm:$0x1]
      %v3566 = vld [vmem:[%s1238 + $0x30] sm:$0xf]
      %v3567 = vld [vmem:[%s1238 + $0x34] sm:$0xf]
      %v3568 = vld [vmem:[%s1238 + $0x38] sm:$0x1]
      %v3569 = vld [vmem:[%s1238 + $0x3c] sm:$0xf]
      %v3570 = vld [vmem:[%s1238 + $0x40] sm:$0xf]
      %v3571 = vld [vmem:[%s1238 + $0x44] sm:$0x1]
      %v3572 = vld [vmem:[%s1238 + $0x48] sm:$0xf]
      %v3573 = vld [vmem:[%s1238 + $0x4c] sm:$0xf]
      %v3574 = vld [vmem:[%s1238 + $0x50] sm:$0x1]
      %v3575 = vld [vmem:[%s1238 + $0x54] sm:$0xf]
      %v3576 = vld [vmem:[%s1238 + $0x58] sm:$0xf]
      %v3577 = vld [vmem:[%s1238 + $0x5c] sm:$0x1]
      %v3578 = vld [vmem:[%s1238 + $0x60] sm:$0xf]
      %v3579 = vld [vmem:[%s1238 + $0x64] sm:$0xf]
      %v3580 = vld [vmem:[%s1238 + $0x68] sm:$0x1]
      %v3581 = vld [vmem:[%s1238 + $0x6c] sm:$0xf]
      %v3582 = vld [vmem:[%s1238 + $0x70] sm:$0xf]
      %v3583 = vld [vmem:[%s1238 + $0x74] sm:$0x1]
      %v3584 = vld [vmem:[%s1238 + $0x78] sm:$0xf]
      %v3585 = vld [vmem:[%s1238 + $0x7c] sm:$0xf]
      %v3586 = vld [vmem:[%s1238 + $0x80] sm:$0x1]
      %v3587 = vld [vmem:[%s1238 + $0x84] sm:$0xf]
      %v3588 = vld [vmem:[%s1238 + $0x88] sm:$0xf]
      %v3589 = vld [vmem:[%s1238 + $0x8c] sm:$0x1]
      %v3590 = vld [vmem:[%s1238 + $0x90] sm:$0xf]
      %v3591 = vld [vmem:[%s1238 + $0x94] sm:$0xf]
      %v3592 = vld [vmem:[%s1238 + $0x98] sm:$0x1]
      %v3593 = vld [vmem:[%s1238 + $0x9c] sm:$0xf]
      %v3594 = vld [vmem:[%s1238 + $0xa0] sm:$0xf]
      %v3595 = vld [vmem:[%s1238 + $0xa4] sm:$0x1]
      %v3596 = vld [vmem:[%s1238 + $0xa8] sm:$0xf]
      %v3597 = vld [vmem:[%s1238 + $0xac] sm:$0xf]
      %v3598 = vld [vmem:[%s1238 + $0xb0] sm:$0x1]
      %v3599 = vld [vmem:[%s1238 + $0xb4] sm:$0xf]
      %v3600 = vld [vmem:[%s1238 + $0xb8] sm:$0xf]
      %v3601 = vld [vmem:[%s1238 + $0xbc] sm:$0x1]
      %v3602 = vld [vmem:[%s1238 + $0xd8] sm:$0xf]
      %v3603 = vld [vmem:[%s1238 + $0xdc] sm:$0xf]
      %v3604 = vld [vmem:[%s1238 + $0xe0] sm:$0x1]
      %v3605 = vld [vmem:[%s1238 + $0xe4] sm:$0xf]
      %v3606 = vld [vmem:[%s1238 + $0xe8] sm:$0xf]
      %v3607 = vld [vmem:[%s1238 + $0xec] sm:$0x1]
      %v3608 = vld [vmem:[%s1238 + $0xf0] sm:$0xf]
      %v3609 = vld [vmem:[%s1238 + $0xf4] sm:$0xf]
      %v3610 = vld [vmem:[%s1238 + $0xf8] sm:$0x1]
      %v3611 = vld [vmem:[%s1238 + $0xfc] sm:$0xf]
      %v3612 = vld [vmem:[%s1238 + $0x100] sm:$0xf]
      %v3613 = vld [vmem:[%s1238 + $0x104] sm:$0x1]
      %v3614 = vld [vmem:[%s1238 + $0x108] sm:$0xf]
      %v3615 = vld [vmem:[%s1238 + $0x10c] sm:$0xf]
      %v3616 = vld [vmem:[%s1238 + $0x110] sm:$0x1]
      %v3617 = vld [vmem:[%s1238 + $0x114] sm:$0xf]
      %v3618 = vld [vmem:[%s1238 + $0x118] sm:$0xf]
      %v3619 = vld [vmem:[%s1238 + $0x11c] sm:$0x1]
      %v3620 = vld [vmem:[%s1238 + $0x120] sm:$0xf]
      %v3621 = vld [vmem:[%s1238 + $0x124] sm:$0xf]
      %v3622 = vld [vmem:[%s1238 + $0x128] sm:$0x1]
      %v3623 = vld [vmem:[%s1238 + $0x12c] sm:$0xf]
      %v3624 = vld [vmem:[%s1238 + $0x130] sm:$0xf]
      %v3625 = vld [vmem:[%s1238 + $0x134] sm:$0x1]
      %v3626 = vld [vmem:[%s1238 + $0x138] sm:$0xf]
      %v3627 = vld [vmem:[%s1238 + $0x13c] sm:$0xf]
      %v3628 = vld [vmem:[%s1238 + $0x140] sm:$0x1]
      %v3629 = vld [vmem:[%s1238 + $0x144] sm:$0xf]
      %v3630 = vld [vmem:[%s1238 + $0x148] sm:$0xf]
      %v3631 = vld [vmem:[%s1238 + $0x14c] sm:$0x1]
      %v3632 = vld [vmem:[%s1238 + $0x150] sm:$0xf]
      %v3633 = vld [vmem:[%s1238 + $0x154] sm:$0xf]
      %v3634 = vld [vmem:[%s1238 + $0x158] sm:$0x1]
      %v3635 = vld [vmem:[%s1238 + $0x15c] sm:$0xf]
      %v3636 = vld [vmem:[%s1238 + $0x160] sm:$0xf]
      %v3637 = vld [vmem:[%s1238 + $0x164] sm:$0x1]
      %v3638 = vld [vmem:[%s1238 + $0x168] sm:$0xf]
      %v3639 = vld [vmem:[%s1238 + $0x16c] sm:$0xf]
      %v3640 = vld [vmem:[%s1238 + $0x170] sm:$0x1]
      %v3641 = vld [vmem:[%s1238 + $0x174] sm:$0xf]
      %v3642 = vld [vmem:[%s1238 + $0x178] sm:$0xf]
      %v3643 = vld [vmem:[%s1238 + $0x17c] sm:$0x1]
      %v3644 = vld [vmem:[%s1238 + $0x180] sm:$0xf]
      %v3645 = vld [vmem:[%s1238 + $0x184] sm:$0xf]
      %v3646 = vld [vmem:[%s1238 + $0x188] sm:$0x1]
      %v3647 = vld [vmem:[%s1238 + $0x18c] sm:$0xf]
      %v3648 = vld [vmem:[%s1238 + $0x190] sm:$0xf]
      %v3649 = vld [vmem:[%s1238 + $0x194] sm:$0x1]
      %v3746 = vunpack.c.l.b16 %v3554
      %v3747 = vunpack.c.l.b16 %v3555
      %v3748 = vunpack.c.l.b16 %v3556
      %v3749 = vunpack.c.l.b16 %v3557
      %v3750 = vunpack.c.l.b16 %v3558
      %v3751 = vunpack.c.l.b16 %v3559
      %v3752 = vunpack.c.l.b16 %v3560
      %v3753 = vunpack.c.l.b16 %v3561
      %v3754 = vunpack.c.l.b16 %v3562
      %v3755 = vunpack.c.l.b16 %v3563
      %v3756 = vunpack.c.l.b16 %v3564
      %v3757 = vunpack.c.l.b16 %v3565
      %v3758 = vunpack.c.l.b16 %v3566
      %v3759 = vunpack.c.l.b16 %v3567
      %v3760 = vunpack.c.l.b16 %v3568
      %v3761 = vunpack.c.l.b16 %v3569
      %v3762 = vunpack.c.l.b16 %v3570
      %v3763 = vunpack.c.l.b16 %v3571
      %v3764 = vunpack.c.l.b16 %v3572
      %v3765 = vunpack.c.l.b16 %v3573
      %v3766 = vunpack.c.l.b16 %v3574
      %v3767 = vunpack.c.l.b16 %v3575
      %v3768 = vunpack.c.l.b16 %v3576
      %v3769 = vunpack.c.l.b16 %v3577
      %v3770 = vunpack.c.l.b16 %v3578
      %v3771 = vunpack.c.l.b16 %v3579
      %v3772 = vunpack.c.l.b16 %v3580
      %v3773 = vunpack.c.l.b16 %v3581
      %v3774 = vunpack.c.l.b16 %v3582
      %v3775 = vunpack.c.l.b16 %v3583
      %v3776 = vunpack.c.l.b16 %v3584
      %v3777 = vunpack.c.l.b16 %v3585
      %v3778 = vunpack.c.l.b16 %v3586
      %v3779 = vunpack.c.l.b16 %v3587
      %v3780 = vunpack.c.l.b16 %v3588
      %v3781 = vunpack.c.l.b16 %v3589
      %v3782 = vunpack.c.l.b16 %v3590
      %v3783 = vunpack.c.l.b16 %v3591
      %v3784 = vunpack.c.l.b16 %v3592
      %v3785 = vunpack.c.l.b16 %v3593
      %v3786 = vunpack.c.l.b16 %v3594
      %v3787 = vunpack.c.l.b16 %v3595
      %v3788 = vunpack.c.l.b16 %v3596
      %v3789 = vunpack.c.l.b16 %v3597
      %v3790 = vunpack.c.l.b16 %v3598
      %v3791 = vunpack.c.l.b16 %v3599
      %v3792 = vunpack.c.l.b16 %v3600
      %v3793 = vunpack.c.l.b16 %v3601
      %v3794 = vunpack.c.l.b16 %v3602
      %v3795 = vunpack.c.l.b16 %v3603
      %v3796 = vunpack.c.l.b16 %v3604
      %v3797 = vunpack.c.l.b16 %v3605
      %v3798 = vunpack.c.l.b16 %v3606
      %v3799 = vunpack.c.l.b16 %v3607
      %v3800 = vunpack.c.l.b16 %v3608
      %v3801 = vunpack.c.l.b16 %v3609
      %v3802 = vunpack.c.l.b16 %v3610
      %v3803 = vunpack.c.l.b16 %v3611
      %v3804 = vunpack.c.l.b16 %v3612
      %v3805 = vunpack.c.l.b16 %v3613
      %v3806 = vunpack.c.l.b16 %v3614
      %v3807 = vunpack.c.l.b16 %v3615
      %v3808 = vunpack.c.l.b16 %v3616
      %v3809 = vunpack.c.l.b16 %v3617
      %v3810 = vunpack.c.l.b16 %v3618
      %v3811 = vunpack.c.l.b16 %v3619
      %v3812 = vunpack.c.l.b16 %v3620
      %v3813 = vunpack.c.l.b16 %v3621
      %v3814 = vunpack.c.l.b16 %v3622
      %v3815 = vunpack.c.l.b16 %v3623
      %v3816 = vunpack.c.l.b16 %v3624
      %v3817 = vunpack.c.l.b16 %v3625
      %v3818 = vunpack.c.l.b16 %v3626
      %v3819 = vunpack.c.l.b16 %v3627
      %v3820 = vunpack.c.l.b16 %v3628
      %v3821 = vunpack.c.l.b16 %v3629
      %v3822 = vunpack.c.l.b16 %v3630
      %v3823 = vunpack.c.l.b16 %v3631
      %v3824 = vunpack.c.l.b16 %v3632
      %v3825 = vunpack.c.l.b16 %v3633
      %v3826 = vunpack.c.l.b16 %v3634
      %v3827 = vunpack.c.l.b16 %v3635
      %v3828 = vunpack.c.l.b16 %v3636
      %v3829 = vunpack.c.l.b16 %v3637
      %v3830 = vunpack.c.l.b16 %v3638
      %v3831 = vunpack.c.l.b16 %v3639
      %v3832 = vunpack.c.l.b16 %v3640
      %v3833 = vunpack.c.l.b16 %v3641
      %v3834 = vunpack.c.l.b16 %v3642
      %v3835 = vunpack.c.l.b16 %v3643
      %v3836 = vunpack.c.l.b16 %v3644
      %v3837 = vunpack.c.l.b16 %v3645
      %v3838 = vunpack.c.l.b16 %v3646
      %v3839 = vunpack.c.l.b16 %v3647
      %v3840 = vunpack.c.l.b16 %v3648
      %v3841 = vunpack.c.l.b16 %v3649
      %v3842 = vpack.c.b16 %v3747, %v3746
      %v3843 = vpack.c.b16 %v3748, %v3748
      %v3844 = vpack.c.b16 %v3750, %v3749
      %v3845 = vpack.c.b16 %v3751, %v3751
      %v3846 = vpack.c.b16 %v3753, %v3752
      %v3847 = vpack.c.b16 %v3754, %v3754
      %v3848 = vpack.c.b16 %v3756, %v3755
      %v3849 = vpack.c.b16 %v3757, %v3757
      %v3850 = vpack.c.b16 %v3759, %v3758
      %v3851 = vpack.c.b16 %v3760, %v3760
      %v3852 = vpack.c.b16 %v3762, %v3761
      %v3853 = vpack.c.b16 %v3763, %v3763
      %v3854 = vpack.c.b16 %v3765, %v3764
      %v3855 = vpack.c.b16 %v3766, %v3766
      %v3856 = vpack.c.b16 %v3768, %v3767
      %v3857 = vpack.c.b16 %v3769, %v3769
      %v3858 = vpack.c.b16 %v3771, %v3770
      %v3859 = vpack.c.b16 %v3772, %v3772
      %v3860 = vpack.c.b16 %v3774, %v3773
      %v3861 = vpack.c.b16 %v3775, %v3775
      %v3862 = vpack.c.b16 %v3777, %v3776
      %v3863 = vpack.c.b16 %v3778, %v3778
      %v3864 = vpack.c.b16 %v3780, %v3779
      %v3865 = vpack.c.b16 %v3781, %v3781
      %v3866 = vpack.c.b16 %v3783, %v3782
      %v3867 = vpack.c.b16 %v3784, %v3784
      %v3868 = vpack.c.b16 %v3786, %v3785
      %v3869 = vpack.c.b16 %v3787, %v3787
      %v3870 = vpack.c.b16 %v3789, %v3788
      %v3871 = vpack.c.b16 %v3790, %v3790
      %v3872 = vpack.c.b16 %v3792, %v3791
      %v3873 = vpack.c.b16 %v3793, %v3793
      %v3874 = vpack.c.b16 %v3795, %v3794
      %v3875 = vpack.c.b16 %v3796, %v3796
      %v3876 = vpack.c.b16 %v3798, %v3797
      %v3877 = vpack.c.b16 %v3799, %v3799
      %v3878 = vpack.c.b16 %v3801, %v3800
      %v3879 = vpack.c.b16 %v3802, %v3802
      %v3880 = vpack.c.b16 %v3804, %v3803
      %v3881 = vpack.c.b16 %v3805, %v3805
      %v3882 = vpack.c.b16 %v3807, %v3806
      %v3883 = vpack.c.b16 %v3808, %v3808
      %v3884 = vpack.c.b16 %v3810, %v3809
      %v3885 = vpack.c.b16 %v3811, %v3811
      %v3886 = vpack.c.b16 %v3813, %v3812
      %v3887 = vpack.c.b16 %v3814, %v3814
      %v3888 = vpack.c.b16 %v3816, %v3815
      %v3889 = vpack.c.b16 %v3817, %v3817
      %v3890 = vpack.c.b16 %v3819, %v3818
      %v3891 = vpack.c.b16 %v3820, %v3820
      %v3892 = vpack.c.b16 %v3822, %v3821
      %v3893 = vpack.c.b16 %v3823, %v3823
      %v3894 = vpack.c.b16 %v3825, %v3824
      %v3895 = vpack.c.b16 %v3826, %v3826
      %v3896 = vpack.c.b16 %v3828, %v3827
      %v3897 = vpack.c.b16 %v3829, %v3829
      %v3898 = vpack.c.b16 %v3831, %v3830
      %v3899 = vpack.c.b16 %v3832, %v3832
      %v3900 = vpack.c.b16 %v3834, %v3833
      %v3901 = vpack.c.b16 %v3835, %v3835
      %v3902 = vpack.c.b16 %v3837, %v3836
      %v3903 = vpack.c.b16 %v3838, %v3838
      %v3904 = vpack.c.b16 %v3840, %v3839
      %v3905 = vpack.c.b16 %v3841, %v3841
      %v3907 = vshrl.u32 %v3842, 16
      %v3909 = vshll.u32 %v3842, 16
      %v3911 = vrot.slane %v3909, 1
      %v3912 = vor.u32 %v3907, %v3911
      %v3914 = vshll.u32 %v3843, 16
      %v3916 = vrot.slane %v3914, 1
      %v3917 = vsel %vm2109, %v3912, %v3916
      %v3919 = vshrl.u32 %v3844, 16
      %v3921 = vshll.u32 %v3844, 16
      %v3923 = vrot.slane %v3921, 1
      %v3924 = vor.u32 %v3919, %v3923
      %v3926 = vshll.u32 %v3845, 16
      %v3928 = vrot.slane %v3926, 1
      %v3929 = vsel %vm2109, %v3924, %v3928
      %v3931 = vshrl.u32 %v3846, 16
      %v3933 = vshll.u32 %v3846, 16
      %v3935 = vrot.slane %v3933, 1
      %v3936 = vor.u32 %v3931, %v3935
      %v3938 = vshll.u32 %v3847, 16
      %v3940 = vrot.slane %v3938, 1
      %v3941 = vsel %vm2109, %v3936, %v3940
      %v3943 = vshrl.u32 %v3848, 16
      %v3945 = vshll.u32 %v3848, 16
      %v3947 = vrot.slane %v3945, 1
      %v3948 = vor.u32 %v3943, %v3947
      %v3950 = vshll.u32 %v3849, 16
      %v3952 = vrot.slane %v3950, 1
      %v3953 = vsel %vm2109, %v3948, %v3952
      %v3955 = vshrl.u32 %v3850, 16
      %v3957 = vshll.u32 %v3850, 16
      %v3959 = vrot.slane %v3957, 1
      %v3960 = vor.u32 %v3955, %v3959
      %v3962 = vshll.u32 %v3851, 16
      %v3964 = vrot.slane %v3962, 1
      %v3965 = vsel %vm2109, %v3960, %v3964
      %v3967 = vshrl.u32 %v3852, 16
      %v3969 = vshll.u32 %v3852, 16
      %v3971 = vrot.slane %v3969, 1
      %v3972 = vor.u32 %v3967, %v3971
      %v3974 = vshll.u32 %v3853, 16
      %v3976 = vrot.slane %v3974, 1
      %v3977 = vsel %vm2109, %v3972, %v3976
      %v3979 = vshrl.u32 %v3854, 16
      %v3981 = vshll.u32 %v3854, 16
      %v3983 = vrot.slane %v3981, 1
      %v3984 = vor.u32 %v3979, %v3983
      %v3986 = vshll.u32 %v3855, 16
      %v3988 = vrot.slane %v3986, 1
      %v3989 = vsel %vm2109, %v3984, %v3988
      %v3991 = vshrl.u32 %v3856, 16
      %v3993 = vshll.u32 %v3856, 16
      %v3995 = vrot.slane %v3993, 1
      %v3996 = vor.u32 %v3991, %v3995
      %v3998 = vshll.u32 %v3857, 16
      %v4000 = vrot.slane %v3998, 1
      %v4001 = vsel %vm2109, %v3996, %v4000
      %v4003 = vshrl.u32 %v3858, 16
      %v4005 = vshll.u32 %v3858, 16
      %v4007 = vrot.slane %v4005, 1
      %v4008 = vor.u32 %v4003, %v4007
      %v4010 = vshll.u32 %v3859, 16
      %v4012 = vrot.slane %v4010, 1
      %v4013 = vsel %vm2109, %v4008, %v4012
      %v4015 = vshrl.u32 %v3860, 16
      %v4017 = vshll.u32 %v3860, 16
      %v4019 = vrot.slane %v4017, 1
      %v4020 = vor.u32 %v4015, %v4019
      %v4022 = vshll.u32 %v3861, 16
      %v4024 = vrot.slane %v4022, 1
      %v4025 = vsel %vm2109, %v4020, %v4024
      %v4027 = vshrl.u32 %v3862, 16
      %v4029 = vshll.u32 %v3862, 16
      %v4031 = vrot.slane %v4029, 1
      %v4032 = vor.u32 %v4027, %v4031
      %v4034 = vshll.u32 %v3863, 16
      %v4036 = vrot.slane %v4034, 1
      %v4037 = vsel %vm2109, %v4032, %v4036
      %v4039 = vshrl.u32 %v3864, 16
      %v4041 = vshll.u32 %v3864, 16
      %v4043 = vrot.slane %v4041, 1
      %v4044 = vor.u32 %v4039, %v4043
      %v4046 = vshll.u32 %v3865, 16
      %v4048 = vrot.slane %v4046, 1
      %v4049 = vsel %vm2109, %v4044, %v4048
      %v4051 = vshrl.u32 %v3866, 16
      %v4053 = vshll.u32 %v3866, 16
      %v4055 = vrot.slane %v4053, 1
      %v4056 = vor.u32 %v4051, %v4055
      %v4058 = vshll.u32 %v3867, 16
      %v4060 = vrot.slane %v4058, 1
      %v4061 = vsel %vm2109, %v4056, %v4060
      %v4063 = vshrl.u32 %v3868, 16
      %v4065 = vshll.u32 %v3868, 16
      %v4067 = vrot.slane %v4065, 1
      %v4068 = vor.u32 %v4063, %v4067
      %v4070 = vshll.u32 %v3869, 16
      %v4072 = vrot.slane %v4070, 1
      %v4073 = vsel %vm2109, %v4068, %v4072
      %v4075 = vshrl.u32 %v3870, 16
      %v4077 = vshll.u32 %v3870, 16
      %v4079 = vrot.slane %v4077, 1
      %v4080 = vor.u32 %v4075, %v4079
      %v4082 = vshll.u32 %v3871, 16
      %v4084 = vrot.slane %v4082, 1
      %v4085 = vsel %vm2109, %v4080, %v4084
      %v4087 = vshrl.u32 %v3872, 16
      %v4089 = vshll.u32 %v3872, 16
      %v4091 = vrot.slane %v4089, 1
      %v4092 = vor.u32 %v4087, %v4091
      %v4094 = vshll.u32 %v3873, 16
      %v4096 = vrot.slane %v4094, 1
      %v4097 = vsel %vm2109, %v4092, %v4096
      %v4099 = vshrl.u32 %v3874, 16
      %v4101 = vshll.u32 %v3874, 16
      %v4103 = vrot.slane %v4101, 1
      %v4104 = vor.u32 %v4099, %v4103
      %v4106 = vshll.u32 %v3875, 16
      %v4108 = vrot.slane %v4106, 1
      %v4109 = vsel %vm2109, %v4104, %v4108
      %v4111 = vshrl.u32 %v3876, 16
      %v4113 = vshll.u32 %v3876, 16
      %v4115 = vrot.slane %v4113, 1
      %v4116 = vor.u32 %v4111, %v4115
      %v4118 = vshll.u32 %v3877, 16
      %v4120 = vrot.slane %v4118, 1
      %v4121 = vsel %vm2109, %v4116, %v4120
      %v4123 = vshrl.u32 %v3878, 16
      %v4125 = vshll.u32 %v3878, 16
      %v4127 = vrot.slane %v4125, 1
      %v4128 = vor.u32 %v4123, %v4127
      %v4130 = vshll.u32 %v3879, 16
      %v4132 = vrot.slane %v4130, 1
      %v4133 = vsel %vm2109, %v4128, %v4132
      %v4135 = vshrl.u32 %v3880, 16
      %v4137 = vshll.u32 %v3880, 16
      %v4139 = vrot.slane %v4137, 1
      %v4140 = vor.u32 %v4135, %v4139
      %v4142 = vshll.u32 %v3881, 16
      %v4144 = vrot.slane %v4142, 1
      %v4145 = vsel %vm2109, %v4140, %v4144
      %v4147 = vshrl.u32 %v3882, 16
      %v4149 = vshll.u32 %v3882, 16
      %v4151 = vrot.slane %v4149, 1
      %v4152 = vor.u32 %v4147, %v4151
      %v4154 = vshll.u32 %v3883, 16
      %v4156 = vrot.slane %v4154, 1
      %v4157 = vsel %vm2109, %v4152, %v4156
      %v4159 = vshrl.u32 %v3884, 16
      %v4161 = vshll.u32 %v3884, 16
      %v4163 = vrot.slane %v4161, 1
      %v4164 = vor.u32 %v4159, %v4163
      %v4166 = vshll.u32 %v3885, 16
      %v4168 = vrot.slane %v4166, 1
      %v4169 = vsel %vm2109, %v4164, %v4168
      %v4171 = vshrl.u32 %v3886, 16
      %v4173 = vshll.u32 %v3886, 16
      %v4175 = vrot.slane %v4173, 1
      %v4176 = vor.u32 %v4171, %v4175
      %v4178 = vshll.u32 %v3887, 16
      %v4180 = vrot.slane %v4178, 1
      %v4181 = vsel %vm2109, %v4176, %v4180
      %v4183 = vshrl.u32 %v3888, 16
      %v4185 = vshll.u32 %v3888, 16
      %v4187 = vrot.slane %v4185, 1
      %v4188 = vor.u32 %v4183, %v4187
      %v4190 = vshll.u32 %v3889, 16
      %v4192 = vrot.slane %v4190, 1
      %v4193 = vsel %vm2109, %v4188, %v4192
      %v4195 = vshrl.u32 %v3890, 16
      %v4197 = vshll.u32 %v3890, 16
      %v4199 = vrot.slane %v4197, 1
      %v4200 = vor.u32 %v4195, %v4199
      %v4202 = vshll.u32 %v3891, 16
      %v4204 = vrot.slane %v4202, 1
      %v4205 = vsel %vm2109, %v4200, %v4204
      %v4207 = vshrl.u32 %v3892, 16
      %v4209 = vshll.u32 %v3892, 16
      %v4211 = vrot.slane %v4209, 1
      %v4212 = vor.u32 %v4207, %v4211
      %v4214 = vshll.u32 %v3893, 16
      %v4216 = vrot.slane %v4214, 1
      %v4217 = vsel %vm2109, %v4212, %v4216
      %v4219 = vshrl.u32 %v3894, 16
      %v4221 = vshll.u32 %v3894, 16
      %v4223 = vrot.slane %v4221, 1
      %v4224 = vor.u32 %v4219, %v4223
      %v4226 = vshll.u32 %v3895, 16
      %v4228 = vrot.slane %v4226, 1
      %v4229 = vsel %vm2109, %v4224, %v4228
      %v4231 = vshrl.u32 %v3896, 16
      %v4233 = vshll.u32 %v3896, 16
      %v4235 = vrot.slane %v4233, 1
      %v4236 = vor.u32 %v4231, %v4235
      %v4238 = vshll.u32 %v3897, 16
      %v4240 = vrot.slane %v4238, 1
      %v4241 = vsel %vm2109, %v4236, %v4240
      %v4243 = vshrl.u32 %v3898, 16
      %v4245 = vshll.u32 %v3898, 16
      %v4247 = vrot.slane %v4245, 1
      %v4248 = vor.u32 %v4243, %v4247
      %v4250 = vshll.u32 %v3899, 16
      %v4252 = vrot.slane %v4250, 1
      %v4253 = vsel %vm2109, %v4248, %v4252
      %v4255 = vshrl.u32 %v3900, 16
      %v4257 = vshll.u32 %v3900, 16
      %v4259 = vrot.slane %v4257, 1
      %v4260 = vor.u32 %v4255, %v4259
      %v4262 = vshll.u32 %v3901, 16
      %v4264 = vrot.slane %v4262, 1
      %v4265 = vsel %vm2109, %v4260, %v4264
      %v4267 = vshrl.u32 %v3902, 16
      %v4269 = vshll.u32 %v3902, 16
      %v4271 = vrot.slane %v4269, 1
      %v4272 = vor.u32 %v4267, %v4271
      %v4274 = vshll.u32 %v3903, 16
      %v4276 = vrot.slane %v4274, 1
      %v4277 = vsel %vm2109, %v4272, %v4276
      %v4279 = vshrl.u32 %v3904, 16
      %v4281 = vshll.u32 %v3904, 16
      %v4283 = vrot.slane %v4281, 1
      %v4284 = vor.u32 %v4279, %v4283
      %v4286 = vshll.u32 %v3905, 16
      %v4288 = vrot.slane %v4286, 1
      %v4289 = vsel %vm2109, %v4284, %v4288
      %4290 = vrot.lane.b32.xlu0 %v3917, 16
      %v4291 = vpop.permute.xlu0 %4290
      %4292 = vrot.lane.b32.xlu0 %v3929, 16
      %v4293 = vpop.permute.xlu0 %4292
      %4294 = vrot.lane.b32.xlu0 %v3941, 16
      %v4295 = vpop.permute.xlu0 %4294
      %4296 = vrot.lane.b32.xlu0 %v3953, 16
      %v4297 = vpop.permute.xlu0 %4296
      %4298 = vrot.lane.b32.xlu0 %v3965, 16
      %v4299 = vpop.permute.xlu0 %4298
      %4300 = vrot.lane.b32.xlu0 %v3977, 16
      %v4301 = vpop.permute.xlu0 %4300
      %4302 = vrot.lane.b32.xlu0 %v3989, 16
      %v4303 = vpop.permute.xlu0 %4302
      %4304 = vrot.lane.b32.xlu0 %v4001, 16
      %v4305 = vpop.permute.xlu0 %4304
      %4306 = vrot.lane.b32.xlu0 %v4013, 16
      %v4307 = vpop.permute.xlu0 %4306
      %4308 = vrot.lane.b32.xlu0 %v4025, 16
      %v4309 = vpop.permute.xlu0 %4308
      %4310 = vrot.lane.b32.xlu0 %v4037, 16
      %v4311 = vpop.permute.xlu0 %4310
      %4312 = vrot.lane.b32.xlu0 %v4049, 16
      %v4313 = vpop.permute.xlu0 %4312
      %4314 = vrot.lane.b32.xlu0 %v4061, 16
      %v4315 = vpop.permute.xlu0 %4314
      %4316 = vrot.lane.b32.xlu0 %v4073, 16
      %v4317 = vpop.permute.xlu0 %4316
      %4318 = vrot.lane.b32.xlu0 %v4085, 16
      %v4319 = vpop.permute.xlu0 %4318
      %4320 = vrot.lane.b32.xlu0 %v4097, 16
      %v4321 = vpop.permute.xlu0 %4320
      %4322 = vrot.lane.b32.xlu0 %v4109, 16
      %v4323 = vpop.permute.xlu0 %4322
      %4324 = vrot.lane.b32.xlu0 %v4121, 16
      %v4325 = vpop.permute.xlu0 %4324
      %4326 = vrot.lane.b32.xlu0 %v4133, 16
      %v4327 = vpop.permute.xlu0 %4326
      %4328 = vrot.lane.b32.xlu0 %v4145, 16
      %v4329 = vpop.permute.xlu0 %4328
      %4330 = vrot.lane.b32.xlu0 %v4157, 16
      %v4331 = vpop.permute.xlu0 %4330
      %4332 = vrot.lane.b32.xlu0 %v4169, 16
      %v4333 = vpop.permute.xlu0 %4332
      %4334 = vrot.lane.b32.xlu0 %v4181, 16
      %v4335 = vpop.permute.xlu0 %4334
      %4336 = vrot.lane.b32.xlu0 %v4193, 16
      %v4337 = vpop.permute.xlu0 %4336
      %4338 = vrot.lane.b32.xlu0 %v4205, 16
      %v4339 = vpop.permute.xlu0 %4338
      %4340 = vrot.lane.b32.xlu0 %v4217, 16
      %v4341 = vpop.permute.xlu0 %4340
      %4342 = vrot.lane.b32.xlu0 %v4229, 16
      %v4343 = vpop.permute.xlu0 %4342
      %4344 = vrot.lane.b32.xlu0 %v4241, 16
      %v4345 = vpop.permute.xlu0 %4344
      %4346 = vrot.lane.b32.xlu0 %v4253, 16
      %v4347 = vpop.permute.xlu0 %4346
      %4348 = vrot.lane.b32.xlu0 %v4265, 16
      %v4349 = vpop.permute.xlu0 %4348
      %4350 = vrot.lane.b32.xlu0 %v4277, 16
      %v4351 = vpop.permute.xlu0 %4350
      %4352 = vrot.lane.b32.xlu0 %v4289, 16
      %v4353 = vpop.permute.xlu0 %4352
      %vm4386 = vcmask 162944
      %4387 = vst.msk [vmem:[#allocation3] sm:$0xff] %vm4386, %v4291
      %4388 = vst.msk [vmem:[#allocation3 + $0x8] sm:$0xff] %vm4386, %v4293
      %4389 = vst.msk [vmem:[#allocation3 + $0x10] sm:$0xff] %vm4386, %v4295
      %4390 = vst.msk [vmem:[#allocation3 + $0x18] sm:$0xff] %vm4386, %v4297
      %4391 = vst.msk [vmem:[#allocation3 + $0x20] sm:$0xff] %vm4386, %v4299
      %4392 = vst.msk [vmem:[#allocation3 + $0x28] sm:$0xff] %vm4386, %v4301
      %4393 = vst.msk [vmem:[#allocation3 + $0x30] sm:$0xff] %vm4386, %v4303
      %4394 = vst.msk [vmem:[#allocation3 + $0x38] sm:$0xff] %vm4386, %v4305
      %4395 = vst.msk [vmem:[#allocation3 + $0x40] sm:$0xff] %vm4386, %v4307
      %4396 = vst.msk [vmem:[#allocation3 + $0x48] sm:$0xff] %vm4386, %v4309
      %4397 = vst.msk [vmem:[#allocation3 + $0x50] sm:$0xff] %vm4386, %v4311
      %4398 = vst.msk [vmem:[#allocation3 + $0x58] sm:$0xff] %vm4386, %v4313
      %4399 = vst.msk [vmem:[#allocation3 + $0x60] sm:$0xff] %vm4386, %v4315
      %4400 = vst.msk [vmem:[#allocation3 + $0x68] sm:$0xff] %vm4386, %v4317
      %4401 = vst.msk [vmem:[#allocation3 + $0x70] sm:$0xff] %vm4386, %v4319
      %4402 = vst.msk [vmem:[#allocation3 + $0x78] sm:$0xff] %vm4386, %v4321
      %4403 = vst.msk [vmem:[#allocation3 + $0x80] sm:$0xff] %vm4386, %v4323
      %4404 = vst.msk [vmem:[#allocation3 + $0x88] sm:$0xff] %vm4386, %v4325
      %4405 = vst.msk [vmem:[#allocation3 + $0x90] sm:$0xff] %vm4386, %v4327
      %4406 = vst.msk [vmem:[#allocation3 + $0x98] sm:$0xff] %vm4386, %v4329
      %4407 = vst.msk [vmem:[#allocation3 + $0xa0] sm:$0xff] %vm4386, %v4331
      %4408 = vst.msk [vmem:[#allocation3 + $0xa8] sm:$0xff] %vm4386, %v4333
      %4409 = vst.msk [vmem:[#allocation3 + $0xb0] sm:$0xff] %vm4386, %v4335
      %4410 = vst.msk [vmem:[#allocation3 + $0xb8] sm:$0xff] %vm4386, %v4337
      %4411 = vst.msk [vmem:[#allocation3 + $0xc0] sm:$0xff] %vm4386, %v4339
      %4412 = vst.msk [vmem:[#allocation3 + $0xc8] sm:$0xff] %vm4386, %v4341
      %4413 = vst.msk [vmem:[#allocation3 + $0xd0] sm:$0xff] %vm4386, %v4343
      %4414 = vst.msk [vmem:[#allocation3 + $0xd8] sm:$0xff] %vm4386, %v4345
      %4415 = vst.msk [vmem:[#allocation3 + $0xe0] sm:$0xff] %vm4386, %v4347
      %4416 = vst.msk [vmem:[#allocation3 + $0xe8] sm:$0xff] %vm4386, %v4349
      %4417 = vst.msk [vmem:[#allocation3 + $0xf0] sm:$0xff] %vm4386, %v4351
      %4418 = vst.msk [vmem:[#allocation3 + $0xf8] sm:$0xff] %vm4386, %v4353
      %v4419 = vld [vmem:[%s1238] sm:$0xe]
      %v4420 = vld [vmem:[%s1238 + $0x4] sm:$0xf]
      %v4421 = vld [vmem:[%s1238 + $0x8] sm:$0x1]
      %v4422 = vld [vmem:[%s1238 + $0xc] sm:$0xe]
      %v4423 = vld [vmem:[%s1238 + $0x10] sm:$0xf]
      %v4424 = vld [vmem:[%s1238 + $0x14] sm:$0x1]
      %v4425 = vld [vmem:[%s1238 + $0x18] sm:$0xe]
      %v4426 = vld [vmem:[%s1238 + $0x1c] sm:$0xf]
      %v4427 = vld [vmem:[%s1238 + $0x20] sm:$0x1]
      %v4428 = vld [vmem:[%s1238 + $0x24] sm:$0xe]
      %v4429 = vld [vmem:[%s1238 + $0x28] sm:$0xf]
      %v4430 = vld [vmem:[%s1238 + $0x2c] sm:$0x1]
      %v4431 = vld [vmem:[%s1238 + $0x30] sm:$0xe]
      %v4432 = vld [vmem:[%s1238 + $0x34] sm:$0xf]
      %v4433 = vld [vmem:[%s1238 + $0x38] sm:$0x1]
      %v4434 = vld [vmem:[%s1238 + $0x3c] sm:$0xe]
      %v4435 = vld [vmem:[%s1238 + $0x40] sm:$0xf]
      %v4436 = vld [vmem:[%s1238 + $0x44] sm:$0x1]
      %v4437 = vld [vmem:[%s1238 + $0x48] sm:$0xe]
      %v4438 = vld [vmem:[%s1238 + $0x4c] sm:$0xf]
      %v4439 = vld [vmem:[%s1238 + $0x50] sm:$0x1]
      %v4440 = vld [vmem:[%s1238 + $0x54] sm:$0xe]
      %v4441 = vld [vmem:[%s1238 + $0x58] sm:$0xf]
      %v4442 = vld [vmem:[%s1238 + $0x5c] sm:$0x1]
      %v4443 = vld [vmem:[%s1238 + $0x60] sm:$0xe]
      %v4444 = vld [vmem:[%s1238 + $0x64] sm:$0xf]
      %v4445 = vld [vmem:[%s1238 + $0x68] sm:$0x1]
      %v4446 = vld [vmem:[%s1238 + $0x6c] sm:$0xe]
      %v4447 = vld [vmem:[%s1238 + $0x70] sm:$0xf]
      %v4448 = vld [vmem:[%s1238 + $0x74] sm:$0x1]
      %v4449 = vld [vmem:[%s1238 + $0x78] sm:$0xe]
      %v4450 = vld [vmem:[%s1238 + $0x7c] sm:$0xf]
      %v4451 = vld [vmem:[%s1238 + $0x80] sm:$0x1]
      %v4452 = vld [vmem:[%s1238 + $0x84] sm:$0xe]
      %v4453 = vld [vmem:[%s1238 + $0x88] sm:$0xf]
      %v4454 = vld [vmem:[%s1238 + $0x8c] sm:$0x1]
      %v4455 = vld [vmem:[%s1238 + $0x90] sm:$0xe]
      %v4456 = vld [vmem:[%s1238 + $0x94] sm:$0xf]
      %v4457 = vld [vmem:[%s1238 + $0x98] sm:$0x1]
      %v4458 = vld [vmem:[%s1238 + $0x9c] sm:$0xe]
      %v4459 = vld [vmem:[%s1238 + $0xa0] sm:$0xf]
      %v4460 = vld [vmem:[%s1238 + $0xa4] sm:$0x1]
      %v4461 = vld [vmem:[%s1238 + $0xa8] sm:$0xe]
      %v4462 = vld [vmem:[%s1238 + $0xac] sm:$0xf]
      %v4463 = vld [vmem:[%s1238 + $0xb0] sm:$0x1]
      %v4464 = vld [vmem:[%s1238 + $0xb4] sm:$0xe]
      %v4465 = vld [vmem:[%s1238 + $0xb8] sm:$0xf]
      %v4466 = vld [vmem:[%s1238 + $0xbc] sm:$0x1]
      %v4467 = vld [vmem:[%s1238 + $0xd8] sm:$0xe]
      %v4468 = vld [vmem:[%s1238 + $0xdc] sm:$0xf]
      %v4469 = vld [vmem:[%s1238 + $0xe0] sm:$0x1]
      %v4470 = vld [vmem:[%s1238 + $0xe4] sm:$0xe]
      %v4471 = vld [vmem:[%s1238 + $0xe8] sm:$0xf]
      %v4472 = vld [vmem:[%s1238 + $0xec] sm:$0x1]
      %v4473 = vld [vmem:[%s1238 + $0xf0] sm:$0xe]
      %v4474 = vld [vmem:[%s1238 + $0xf4] sm:$0xf]
      %v4475 = vld [vmem:[%s1238 + $0xf8] sm:$0x1]
      %v4476 = vld [vmem:[%s1238 + $0xfc] sm:$0xe]
      %v4477 = vld [vmem:[%s1238 + $0x100] sm:$0xf]
      %v4478 = vld [vmem:[%s1238 + $0x104] sm:$0x1]
      %v4479 = vld [vmem:[%s1238 + $0x108] sm:$0xe]
      %v4480 = vld [vmem:[%s1238 + $0x10c] sm:$0xf]
      %v4481 = vld [vmem:[%s1238 + $0x110] sm:$0x1]
      %v4482 = vld [vmem:[%s1238 + $0x114] sm:$0xe]
      %v4483 = vld [vmem:[%s1238 + $0x118] sm:$0xf]
      %v4484 = vld [vmem:[%s1238 + $0x11c] sm:$0x1]
      %v4485 = vld [vmem:[%s1238 + $0x120] sm:$0xe]
      %v4486 = vld [vmem:[%s1238 + $0x124] sm:$0xf]
      %v4487 = vld [vmem:[%s1238 + $0x128] sm:$0x1]
      %v4488 = vld [vmem:[%s1238 + $0x12c] sm:$0xe]
      %v4489 = vld [vmem:[%s1238 + $0x130] sm:$0xf]
      %v4490 = vld [vmem:[%s1238 + $0x134] sm:$0x1]
      %v4491 = vld [vmem:[%s1238 + $0x138] sm:$0xe]
      %v4492 = vld [vmem:[%s1238 + $0x13c] sm:$0xf]
      %v4493 = vld [vmem:[%s1238 + $0x140] sm:$0x1]
      %v4494 = vld [vmem:[%s1238 + $0x144] sm:$0xe]
      %v4495 = vld [vmem:[%s1238 + $0x148] sm:$0xf]
      %v4496 = vld [vmem:[%s1238 + $0x14c] sm:$0x1]
      %v4497 = vld [vmem:[%s1238 + $0x150] sm:$0xe]
      %v4498 = vld [vmem:[%s1238 + $0x154] sm:$0xf]
      %v4499 = vld [vmem:[%s1238 + $0x158] sm:$0x1]
      %v4500 = vld [vmem:[%s1238 + $0x15c] sm:$0xe]
      %v4501 = vld [vmem:[%s1238 + $0x160] sm:$0xf]
      %v4502 = vld [vmem:[%s1238 + $0x164] sm:$0x1]
      %v4503 = vld [vmem:[%s1238 + $0x168] sm:$0xe]
      %v4504 = vld [vmem:[%s1238 + $0x16c] sm:$0xf]
      %v4505 = vld [vmem:[%s1238 + $0x170] sm:$0x1]
      %v4506 = vld [vmem:[%s1238 + $0x174] sm:$0xe]
      %v4507 = vld [vmem:[%s1238 + $0x178] sm:$0xf]
      %v4508 = vld [vmem:[%s1238 + $0x17c] sm:$0x1]
      %v4509 = vld [vmem:[%s1238 + $0x180] sm:$0xe]
      %v4510 = vld [vmem:[%s1238 + $0x184] sm:$0xf]
      %v4511 = vld [vmem:[%s1238 + $0x188] sm:$0x1]
      %v4512 = vld [vmem:[%s1238 + $0x18c] sm:$0xe]
      %v4513 = vld [vmem:[%s1238 + $0x190] sm:$0xf]
      %v4514 = vld [vmem:[%s1238 + $0x194] sm:$0x1]
      %v4611 = vunpack.c.l.b16 %v4419
      %v4612 = vunpack.c.l.b16 %v4420
      %v4613 = vunpack.c.l.b16 %v4421
      %v4614 = vunpack.c.l.b16 %v4422
      %v4615 = vunpack.c.l.b16 %v4423
      %v4616 = vunpack.c.l.b16 %v4424
      %v4617 = vunpack.c.l.b16 %v4425
      %v4618 = vunpack.c.l.b16 %v4426
      %v4619 = vunpack.c.l.b16 %v4427
      %v4620 = vunpack.c.l.b16 %v4428
      %v4621 = vunpack.c.l.b16 %v4429
      %v4622 = vunpack.c.l.b16 %v4430
      %v4623 = vunpack.c.l.b16 %v4431
      %v4624 = vunpack.c.l.b16 %v4432
      %v4625 = vunpack.c.l.b16 %v4433
      %v4626 = vunpack.c.l.b16 %v4434
      %v4627 = vunpack.c.l.b16 %v4435
      %v4628 = vunpack.c.l.b16 %v4436
      %v4629 = vunpack.c.l.b16 %v4437
      %v4630 = vunpack.c.l.b16 %v4438
      %v4631 = vunpack.c.l.b16 %v4439
      %v4632 = vunpack.c.l.b16 %v4440
      %v4633 = vunpack.c.l.b16 %v4441
      %v4634 = vunpack.c.l.b16 %v4442
      %v4635 = vunpack.c.l.b16 %v4443
      %v4636 = vunpack.c.l.b16 %v4444
      %v4637 = vunpack.c.l.b16 %v4445
      %v4638 = vunpack.c.l.b16 %v4446
      %v4639 = vunpack.c.l.b16 %v4447
      %v4640 = vunpack.c.l.b16 %v4448
      %v4641 = vunpack.c.l.b16 %v4449
      %v4642 = vunpack.c.l.b16 %v4450
      %v4643 = vunpack.c.l.b16 %v4451
      %v4644 = vunpack.c.l.b16 %v4452
      %v4645 = vunpack.c.l.b16 %v4453
      %v4646 = vunpack.c.l.b16 %v4454
      %v4647 = vunpack.c.l.b16 %v4455
      %v4648 = vunpack.c.l.b16 %v4456
      %v4649 = vunpack.c.l.b16 %v4457
      %v4650 = vunpack.c.l.b16 %v4458
      %v4651 = vunpack.c.l.b16 %v4459
      %v4652 = vunpack.c.l.b16 %v4460
      %v4653 = vunpack.c.l.b16 %v4461
      %v4654 = vunpack.c.l.b16 %v4462
      %v4655 = vunpack.c.l.b16 %v4463
      %v4656 = vunpack.c.l.b16 %v4464
      %v4657 = vunpack.c.l.b16 %v4465
      %v4658 = vunpack.c.l.b16 %v4466
      %v4659 = vunpack.c.l.b16 %v4467
      %v4660 = vunpack.c.l.b16 %v4468
      %v4661 = vunpack.c.l.b16 %v4469
      %v4662 = vunpack.c.l.b16 %v4470
      %v4663 = vunpack.c.l.b16 %v4471
      %v4664 = vunpack.c.l.b16 %v4472
      %v4665 = vunpack.c.l.b16 %v4473
      %v4666 = vunpack.c.l.b16 %v4474
      %v4667 = vunpack.c.l.b16 %v4475
      %v4668 = vunpack.c.l.b16 %v4476
      %v4669 = vunpack.c.l.b16 %v4477
      %v4670 = vunpack.c.l.b16 %v4478
      %v4671 = vunpack.c.l.b16 %v4479
      %v4672 = vunpack.c.l.b16 %v4480
      %v4673 = vunpack.c.l.b16 %v4481
      %v4674 = vunpack.c.l.b16 %v4482
      %v4675 = vunpack.c.l.b16 %v4483
      %v4676 = vunpack.c.l.b16 %v4484
      %v4677 = vunpack.c.l.b16 %v4485
      %v4678 = vunpack.c.l.b16 %v4486
      %v4679 = vunpack.c.l.b16 %v4487
      %v4680 = vunpack.c.l.b16 %v4488
      %v4681 = vunpack.c.l.b16 %v4489
      %v4682 = vunpack.c.l.b16 %v4490
      %v4683 = vunpack.c.l.b16 %v4491
      %v4684 = vunpack.c.l.b16 %v4492
      %v4685 = vunpack.c.l.b16 %v4493
      %v4686 = vunpack.c.l.b16 %v4494
      %v4687 = vunpack.c.l.b16 %v4495
      %v4688 = vunpack.c.l.b16 %v4496
      %v4689 = vunpack.c.l.b16 %v4497
      %v4690 = vunpack.c.l.b16 %v4498
      %v4691 = vunpack.c.l.b16 %v4499
      %v4692 = vunpack.c.l.b16 %v4500
      %v4693 = vunpack.c.l.b16 %v4501
      %v4694 = vunpack.c.l.b16 %v4502
      %v4695 = vunpack.c.l.b16 %v4503
      %v4696 = vunpack.c.l.b16 %v4504
      %v4697 = vunpack.c.l.b16 %v4505
      %v4698 = vunpack.c.l.b16 %v4506
      %v4699 = vunpack.c.l.b16 %v4507
      %v4700 = vunpack.c.l.b16 %v4508
      %v4701 = vunpack.c.l.b16 %v4509
      %v4702 = vunpack.c.l.b16 %v4510
      %v4703 = vunpack.c.l.b16 %v4511
      %v4704 = vunpack.c.l.b16 %v4512
      %v4705 = vunpack.c.l.b16 %v4513
      %v4706 = vunpack.c.l.b16 %v4514
      %v4707 = vpack.c.b16 %v4612, %v4611
      %v4708 = vpack.c.b16 %v4613, %v4613
      %v4709 = vpack.c.b16 %v4615, %v4614
      %v4710 = vpack.c.b16 %v4616, %v4616
      %v4711 = vpack.c.b16 %v4618, %v4617
      %v4712 = vpack.c.b16 %v4619, %v4619
      %v4713 = vpack.c.b16 %v4621, %v4620
      %v4714 = vpack.c.b16 %v4622, %v4622
      %v4715 = vpack.c.b16 %v4624, %v4623
      %v4716 = vpack.c.b16 %v4625, %v4625
      %v4717 = vpack.c.b16 %v4627, %v4626
      %v4718 = vpack.c.b16 %v4628, %v4628
      %v4719 = vpack.c.b16 %v4630, %v4629
      %v4720 = vpack.c.b16 %v4631, %v4631
      %v4721 = vpack.c.b16 %v4633, %v4632
      %v4722 = vpack.c.b16 %v4634, %v4634
      %v4723 = vpack.c.b16 %v4636, %v4635
      %v4724 = vpack.c.b16 %v4637, %v4637
      %v4725 = vpack.c.b16 %v4639, %v4638
      %v4726 = vpack.c.b16 %v4640, %v4640
      %v4727 = vpack.c.b16 %v4642, %v4641
      %v4728 = vpack.c.b16 %v4643, %v4643
      %v4729 = vpack.c.b16 %v4645, %v4644
      %v4730 = vpack.c.b16 %v4646, %v4646
      %v4731 = vpack.c.b16 %v4648, %v4647
      %v4732 = vpack.c.b16 %v4649, %v4649
      %v4733 = vpack.c.b16 %v4651, %v4650
      %v4734 = vpack.c.b16 %v4652, %v4652
      %v4735 = vpack.c.b16 %v4654, %v4653
      %v4736 = vpack.c.b16 %v4655, %v4655
      %v4737 = vpack.c.b16 %v4657, %v4656
      %v4738 = vpack.c.b16 %v4658, %v4658
      %v4739 = vpack.c.b16 %v4660, %v4659
      %v4740 = vpack.c.b16 %v4661, %v4661
      %v4741 = vpack.c.b16 %v4663, %v4662
      %v4742 = vpack.c.b16 %v4664, %v4664
      %v4743 = vpack.c.b16 %v4666, %v4665
      %v4744 = vpack.c.b16 %v4667, %v4667
      %v4745 = vpack.c.b16 %v4669, %v4668
      %v4746 = vpack.c.b16 %v4670, %v4670
      %v4747 = vpack.c.b16 %v4672, %v4671
      %v4748 = vpack.c.b16 %v4673, %v4673
      %v4749 = vpack.c.b16 %v4675, %v4674
      %v4750 = vpack.c.b16 %v4676, %v4676
      %v4751 = vpack.c.b16 %v4678, %v4677
      %v4752 = vpack.c.b16 %v4679, %v4679
      %v4753 = vpack.c.b16 %v4681, %v4680
      %v4754 = vpack.c.b16 %v4682, %v4682
      %v4755 = vpack.c.b16 %v4684, %v4683
      %v4756 = vpack.c.b16 %v4685, %v4685
      %v4757 = vpack.c.b16 %v4687, %v4686
      %v4758 = vpack.c.b16 %v4688, %v4688
      %v4759 = vpack.c.b16 %v4690, %v4689
      %v4760 = vpack.c.b16 %v4691, %v4691
      %v4761 = vpack.c.b16 %v4693, %v4692
      %v4762 = vpack.c.b16 %v4694, %v4694
      %v4763 = vpack.c.b16 %v4696, %v4695
      %v4764 = vpack.c.b16 %v4697, %v4697
      %v4765 = vpack.c.b16 %v4699, %v4698
      %v4766 = vpack.c.b16 %v4700, %v4700
      %v4767 = vpack.c.b16 %v4702, %v4701
      %v4768 = vpack.c.b16 %v4703, %v4703
      %v4769 = vpack.c.b16 %v4705, %v4704
      %v4770 = vpack.c.b16 %v4706, %v4706
      %v4771 = vrot.slane %v4707, 1
      %v4772 = vrot.slane %v4708, 1
      %v4773 = vsel %vm2975, %v4771, %v4772
      %v4774 = vrot.slane %v4709, 1
      %v4775 = vrot.slane %v4710, 1
      %v4776 = vsel %vm2975, %v4774, %v4775
      %v4777 = vrot.slane %v4711, 1
      %v4778 = vrot.slane %v4712, 1
      %v4779 = vsel %vm2975, %v4777, %v4778
      %v4780 = vrot.slane %v4713, 1
      %v4781 = vrot.slane %v4714, 1
      %v4782 = vsel %vm2975, %v4780, %v4781
      %v4783 = vrot.slane %v4715, 1
      %v4784 = vrot.slane %v4716, 1
      %v4785 = vsel %vm2975, %v4783, %v4784
      %v4786 = vrot.slane %v4717, 1
      %v4787 = vrot.slane %v4718, 1
      %v4788 = vsel %vm2975, %v4786, %v4787
      %v4789 = vrot.slane %v4719, 1
      %v4790 = vrot.slane %v4720, 1
      %v4791 = vsel %vm2975, %v4789, %v4790
      %v4792 = vrot.slane %v4721, 1
      %v4793 = vrot.slane %v4722, 1
      %v4794 = vsel %vm2975, %v4792, %v4793
      %v4795 = vrot.slane %v4723, 1
      %v4796 = vrot.slane %v4724, 1
      %v4797 = vsel %vm2975, %v4795, %v4796
      %v4798 = vrot.slane %v4725, 1
      %v4799 = vrot.slane %v4726, 1
      %v4800 = vsel %vm2975, %v4798, %v4799
      %v4801 = vrot.slane %v4727, 1
      %v4802 = vrot.slane %v4728, 1
      %v4803 = vsel %vm2975, %v4801, %v4802
      %v4804 = vrot.slane %v4729, 1
      %v4805 = vrot.slane %v4730, 1
      %v4806 = vsel %vm2975, %v4804, %v4805
      %v4807 = vrot.slane %v4731, 1
      %v4808 = vrot.slane %v4732, 1
      %v4809 = vsel %vm2975, %v4807, %v4808
      %v4810 = vrot.slane %v4733, 1
      %v4811 = vrot.slane %v4734, 1
      %v4812 = vsel %vm2975, %v4810, %v4811
      %v4813 = vrot.slane %v4735, 1
      %v4814 = vrot.slane %v4736, 1
      %v4815 = vsel %vm2975, %v4813, %v4814
      %v4816 = vrot.slane %v4737, 1
      %v4817 = vrot.slane %v4738, 1
      %v4818 = vsel %vm2975, %v4816, %v4817
      %v4819 = vrot.slane %v4739, 1
      %v4820 = vrot.slane %v4740, 1
      %v4821 = vsel %vm2975, %v4819, %v4820
      %v4822 = vrot.slane %v4741, 1
      %v4823 = vrot.slane %v4742, 1
      %v4824 = vsel %vm2975, %v4822, %v4823
      %v4825 = vrot.slane %v4743, 1
      %v4826 = vrot.slane %v4744, 1
      %v4827 = vsel %vm2975, %v4825, %v4826
      %v4828 = vrot.slane %v4745, 1
      %v4829 = vrot.slane %v4746, 1
      %v4830 = vsel %vm2975, %v4828, %v4829
      %v4831 = vrot.slane %v4747, 1
      %v4832 = vrot.slane %v4748, 1
      %v4833 = vsel %vm2975, %v4831, %v4832
      %v4834 = vrot.slane %v4749, 1
      %v4835 = vrot.slane %v4750, 1
      %v4836 = vsel %vm2975, %v4834, %v4835
      %v4837 = vrot.slane %v4751, 1
      %v4838 = vrot.slane %v4752, 1
      %v4839 = vsel %vm2975, %v4837, %v4838
      %v4840 = vrot.slane %v4753, 1
      %v4841 = vrot.slane %v4754, 1
      %v4842 = vsel %vm2975, %v4840, %v4841
      %v4843 = vrot.slane %v4755, 1
      %v4844 = vrot.slane %v4756, 1
      %v4845 = vsel %vm2975, %v4843, %v4844
      %v4846 = vrot.slane %v4757, 1
      %v4847 = vrot.slane %v4758, 1
      %v4848 = vsel %vm2975, %v4846, %v4847
      %v4849 = vrot.slane %v4759, 1
      %v4850 = vrot.slane %v4760, 1
      %v4851 = vsel %vm2975, %v4849, %v4850
      %v4852 = vrot.slane %v4761, 1
      %v4853 = vrot.slane %v4762, 1
      %v4854 = vsel %vm2975, %v4852, %v4853
      %v4855 = vrot.slane %v4763, 1
      %v4856 = vrot.slane %v4764, 1
      %v4857 = vsel %vm2975, %v4855, %v4856
      %v4858 = vrot.slane %v4765, 1
      %v4859 = vrot.slane %v4766, 1
      %v4860 = vsel %vm2975, %v4858, %v4859
      %v4861 = vrot.slane %v4767, 1
      %v4862 = vrot.slane %v4768, 1
      %v4863 = vsel %vm2975, %v4861, %v4862
      %v4864 = vrot.slane %v4769, 1
      %v4865 = vrot.slane %v4770, 1
      %v4866 = vsel %vm2975, %v4864, %v4865
      %4867 = vrot.lane.b32.xlu0 %v4773, 20
      %v4868 = vpop.permute.xlu0 %4867
      %4869 = vrot.lane.b32.xlu0 %v4776, 20
      %v4870 = vpop.permute.xlu0 %4869
      %4871 = vrot.lane.b32.xlu0 %v4779, 20
      %v4872 = vpop.permute.xlu0 %4871
      %4873 = vrot.lane.b32.xlu0 %v4782, 20
      %v4874 = vpop.permute.xlu0 %4873
      %4875 = vrot.lane.b32.xlu0 %v4785, 20
      %v4876 = vpop.permute.xlu0 %4875
      %4877 = vrot.lane.b32.xlu0 %v4788, 20
      %v4878 = vpop.permute.xlu0 %4877
      %4879 = vrot.lane.b32.xlu0 %v4791, 20
      %v4880 = vpop.permute.xlu0 %4879
      %4881 = vrot.lane.b32.xlu0 %v4794, 20
      %v4882 = vpop.permute.xlu0 %4881
      %4883 = vrot.lane.b32.xlu0 %v4797, 20
      %v4884 = vpop.permute.xlu0 %4883
      %4885 = vrot.lane.b32.xlu0 %v4800, 20
      %v4886 = vpop.permute.xlu0 %4885
      %4887 = vrot.lane.b32.xlu0 %v4803, 20
      %v4888 = vpop.permute.xlu0 %4887
      %4889 = vrot.lane.b32.xlu0 %v4806, 20
      %v4890 = vpop.permute.xlu0 %4889
      %4891 = vrot.lane.b32.xlu0 %v4809, 20
      %v4892 = vpop.permute.xlu0 %4891
      %4893 = vrot.lane.b32.xlu0 %v4812, 20
      %v4894 = vpop.permute.xlu0 %4893
      %4895 = vrot.lane.b32.xlu0 %v4815, 20
      %v4896 = vpop.permute.xlu0 %4895
      %4897 = vrot.lane.b32.xlu0 %v4818, 20
      %v4898 = vpop.permute.xlu0 %4897
      %4899 = vrot.lane.b32.xlu0 %v4821, 20
      %v4900 = vpop.permute.xlu0 %4899
      %4901 = vrot.lane.b32.xlu0 %v4824, 20
      %v4902 = vpop.permute.xlu0 %4901
      %4903 = vrot.lane.b32.xlu0 %v4827, 20
      %v4904 = vpop.permute.xlu0 %4903
      %4905 = vrot.lane.b32.xlu0 %v4830, 20
      %v4906 = vpop.permute.xlu0 %4905
      %4907 = vrot.lane.b32.xlu0 %v4833, 20
      %v4908 = vpop.permute.xlu0 %4907
      %4909 = vrot.lane.b32.xlu0 %v4836, 20
      %v4910 = vpop.permute.xlu0 %4909
      %4911 = vrot.lane.b32.xlu0 %v4839, 20
      %v4912 = vpop.permute.xlu0 %4911
      %4913 = vrot.lane.b32.xlu0 %v4842, 20
      %v4914 = vpop.permute.xlu0 %4913
      %4915 = vrot.lane.b32.xlu0 %v4845, 20
      %v4916 = vpop.permute.xlu0 %4915
      %4917 = vrot.lane.b32.xlu0 %v4848, 20
      %v4918 = vpop.permute.xlu0 %4917
      %4919 = vrot.lane.b32.xlu0 %v4851, 20
      %v4920 = vpop.permute.xlu0 %4919
      %4921 = vrot.lane.b32.xlu0 %v4854, 20
      %v4922 = vpop.permute.xlu0 %4921
      %4923 = vrot.lane.b32.xlu0 %v4857, 20
      %v4924 = vpop.permute.xlu0 %4923
      %4925 = vrot.lane.b32.xlu0 %v4860, 20
      %v4926 = vpop.permute.xlu0 %4925
      %4927 = vrot.lane.b32.xlu0 %v4863, 20
      %v4928 = vpop.permute.xlu0 %4927
      %4929 = vrot.lane.b32.xlu0 %v4866, 20
      %v4930 = vpop.permute.xlu0 %4929
      %vm4963 = vcmask 195744
      %4964 = vst.msk [vmem:[#allocation3] sm:$0xff] %vm4963, %v4868
      %4965 = vst.msk [vmem:[#allocation3 + $0x8] sm:$0xff] %vm4963, %v4870
      %4966 = vst.msk [vmem:[#allocation3 + $0x10] sm:$0xff] %vm4963, %v4872
      %4967 = vst.msk [vmem:[#allocation3 + $0x18] sm:$0xff] %vm4963, %v4874
      %4968 = vst.msk [vmem:[#allocation3 + $0x20] sm:$0xff] %vm4963, %v4876
      %4969 = vst.msk [vmem:[#allocation3 + $0x28] sm:$0xff] %vm4963, %v4878
      %4970 = vst.msk [vmem:[#allocation3 + $0x30] sm:$0xff] %vm4963, %v4880
      %4971 = vst.msk [vmem:[#allocation3 + $0x38] sm:$0xff] %vm4963, %v4882
      %4972 = vst.msk [vmem:[#allocation3 + $0x40] sm:$0xff] %vm4963, %v4884
      %4973 = vst.msk [vmem:[#allocation3 + $0x48] sm:$0xff] %vm4963, %v4886
      %4974 = vst.msk [vmem:[#allocation3 + $0x50] sm:$0xff] %vm4963, %v4888
      %4975 = vst.msk [vmem:[#allocation3 + $0x58] sm:$0xff] %vm4963, %v4890
      %4976 = vst.msk [vmem:[#allocation3 + $0x60] sm:$0xff] %vm4963, %v4892
      %4977 = vst.msk [vmem:[#allocation3 + $0x68] sm:$0xff] %vm4963, %v4894
      %4978 = vst.msk [vmem:[#allocation3 + $0x70] sm:$0xff] %vm4963, %v4896
      %4979 = vst.msk [vmem:[#allocation3 + $0x78] sm:$0xff] %vm4963, %v4898
      %4980 = vst.msk [vmem:[#allocation3 + $0x80] sm:$0xff] %vm4963, %v4900
      %4981 = vst.msk [vmem:[#allocation3 + $0x88] sm:$0xff] %vm4963, %v4902
      %4982 = vst.msk [vmem:[#allocation3 + $0x90] sm:$0xff] %vm4963, %v4904
      %4983 = vst.msk [vmem:[#allocation3 + $0x98] sm:$0xff] %vm4963, %v4906
      %4984 = vst.msk [vmem:[#allocation3 + $0xa0] sm:$0xff] %vm4963, %v4908
      %4985 = vst.msk [vmem:[#allocation3 + $0xa8] sm:$0xff] %vm4963, %v4910
      %4986 = vst.msk [vmem:[#allocation3 + $0xb0] sm:$0xff] %vm4963, %v4912
      %4987 = vst.msk [vmem:[#allocation3 + $0xb8] sm:$0xff] %vm4963, %v4914
      %4988 = vst.msk [vmem:[#allocation3 + $0xc0] sm:$0xff] %vm4963, %v4916
      %4989 = vst.msk [vmem:[#allocation3 + $0xc8] sm:$0xff] %vm4963, %v4918
      %4990 = vst.msk [vmem:[#allocation3 + $0xd0] sm:$0xff] %vm4963, %v4920
      %4991 = vst.msk [vmem:[#allocation3 + $0xd8] sm:$0xff] %vm4963, %v4922
      %4992 = vst.msk [vmem:[#allocation3 + $0xe0] sm:$0xff] %vm4963, %v4924
      %4993 = vst.msk [vmem:[#allocation3 + $0xe8] sm:$0xff] %vm4963, %v4926
      %4994 = vst.msk [vmem:[#allocation3 + $0xf0] sm:$0xff] %vm4963, %v4928
      %4995 = vst.msk [vmem:[#allocation3 + $0xf8] sm:$0xff] %vm4963, %v4930
      %s4996 = scalar_lea.vmem [#allocation2], 24
      %v4997 = vld [vmem:[%s4996] sm:$0xf]
      %v4998 = vld [vmem:[%s4996 + $0x4] sm:$0xf]
      %v4999 = vld [vmem:[%s4996 + $0xc] sm:$0xf]
      %v5000 = vld [vmem:[%s4996 + $0x10] sm:$0xf]
      %v5001 = vld [vmem:[%s4996 + $0x18] sm:$0xf]
      %v5002 = vld [vmem:[%s4996 + $0x1c] sm:$0xf]
      %v5003 = vld [vmem:[%s4996 + $0x24] sm:$0xf]
      %v5004 = vld [vmem:[%s4996 + $0x28] sm:$0xf]
      %v5005 = vld [vmem:[%s4996 + $0x30] sm:$0xf]
      %v5006 = vld [vmem:[%s4996 + $0x34] sm:$0xf]
      %v5007 = vld [vmem:[%s4996 + $0x3c] sm:$0xf]
      %v5008 = vld [vmem:[%s4996 + $0x40] sm:$0xf]
      %v5009 = vld [vmem:[%s4996 + $0x48] sm:$0xf]
      %v5010 = vld [vmem:[%s4996 + $0x4c] sm:$0xf]
      %v5011 = vld [vmem:[%s4996 + $0x54] sm:$0xf]
      %v5012 = vld [vmem:[%s4996 + $0x58] sm:$0xf]
      %v5013 = vld [vmem:[%s4996 + $0x60] sm:$0xf]
      %v5014 = vld [vmem:[%s4996 + $0x64] sm:$0xf]
      %v5015 = vld [vmem:[%s4996 + $0x6c] sm:$0xf]
      %v5016 = vld [vmem:[%s4996 + $0x70] sm:$0xf]
      %v5017 = vld [vmem:[%s4996 + $0x78] sm:$0xf]
      %v5018 = vld [vmem:[%s4996 + $0x7c] sm:$0xf]
      %v5019 = vld [vmem:[%s4996 + $0x84] sm:$0xf]
      %v5020 = vld [vmem:[%s4996 + $0x88] sm:$0xf]
      %v5021 = vld [vmem:[%s4996 + $0x90] sm:$0xf]
      %v5022 = vld [vmem:[%s4996 + $0x94] sm:$0xf]
      %v5023 = vld [vmem:[%s4996 + $0x9c] sm:$0xf]
      %v5024 = vld [vmem:[%s4996 + $0xa0] sm:$0xf]
      %v5025 = vld [vmem:[%s4996 + $0xa8] sm:$0xf]
      %v5026 = vld [vmem:[%s4996 + $0xac] sm:$0xf]
      %v5027 = vld [vmem:[%s4996 + $0xb4] sm:$0xf]
      %v5028 = vld [vmem:[%s4996 + $0xb8] sm:$0xf]
      %v5029 = vld [vmem:[%s4996 + $0xd8] sm:$0xf]
      %v5030 = vld [vmem:[%s4996 + $0xdc] sm:$0xf]
      %v5031 = vld [vmem:[%s4996 + $0xe4] sm:$0xf]
      %v5032 = vld [vmem:[%s4996 + $0xe8] sm:$0xf]
      %v5033 = vld [vmem:[%s4996 + $0xf0] sm:$0xf]
      %v5034 = vld [vmem:[%s4996 + $0xf4] sm:$0xf]
      %v5035 = vld [vmem:[%s4996 + $0xfc] sm:$0xf]
      %v5036 = vld [vmem:[%s4996 + $0x100] sm:$0xf]
      %v5037 = vld [vmem:[%s4996 + $0x108] sm:$0xf]
      %v5038 = vld [vmem:[%s4996 + $0x10c] sm:$0xf]
      %v5039 = vld [vmem:[%s4996 + $0x114] sm:$0xf]
      %v5040 = vld [vmem:[%s4996 + $0x118] sm:$0xf]
      %v5041 = vld [vmem:[%s4996 + $0x120] sm:$0xf]
      %v5042 = vld [vmem:[%s4996 + $0x124] sm:$0xf]
      %v5043 = vld [vmem:[%s4996 + $0x12c] sm:$0xf]
      %v5044 = vld [vmem:[%s4996 + $0x130] sm:$0xf]
      %v5045 = vld [vmem:[%s4996 + $0x138] sm:$0xf]
      %v5046 = vld [vmem:[%s4996 + $0x13c] sm:$0xf]
      %v5047 = vld [vmem:[%s4996 + $0x144] sm:$0xf]
      %v5048 = vld [vmem:[%s4996 + $0x148] sm:$0xf]
      %v5049 = vld [vmem:[%s4996 + $0x150] sm:$0xf]
      %v5050 = vld [vmem:[%s4996 + $0x154] sm:$0xf]
      %v5051 = vld [vmem:[%s4996 + $0x15c] sm:$0xf]
      %v5052 = vld [vmem:[%s4996 + $0x160] sm:$0xf]
      %v5053 = vld [vmem:[%s4996 + $0x168] sm:$0xf]
      %v5054 = vld [vmem:[%s4996 + $0x16c] sm:$0xf]
      %v5055 = vld [vmem:[%s4996 + $0x174] sm:$0xf]
      %v5056 = vld [vmem:[%s4996 + $0x178] sm:$0xf]
      %v5057 = vld [vmem:[%s4996 + $0x180] sm:$0xf]
      %v5058 = vld [vmem:[%s4996 + $0x184] sm:$0xf]
      %v5059 = vld [vmem:[%s4996 + $0x18c] sm:$0xf]
      %v5060 = vld [vmem:[%s4996 + $0x190] sm:$0xf]
      %v5125 = vunpack.c.l.b16 %v4997
      %v5126 = vunpack.c.l.b16 %v4998
      %v5127 = vunpack.c.l.b16 %v4999
      %v5128 = vunpack.c.l.b16 %v5000
      %v5129 = vunpack.c.l.b16 %v5001
      %v5130 = vunpack.c.l.b16 %v5002
      %v5131 = vunpack.c.l.b16 %v5003
      %v5132 = vunpack.c.l.b16 %v5004
      %v5133 = vunpack.c.l.b16 %v5005
      %v5134 = vunpack.c.l.b16 %v5006
      %v5135 = vunpack.c.l.b16 %v5007
      %v5136 = vunpack.c.l.b16 %v5008
      %v5137 = vunpack.c.l.b16 %v5009
      %v5138 = vunpack.c.l.b16 %v5010
      %v5139 = vunpack.c.l.b16 %v5011
      %v5140 = vunpack.c.l.b16 %v5012
      %v5141 = vunpack.c.l.b16 %v5013
      %v5142 = vunpack.c.l.b16 %v5014
      %v5143 = vunpack.c.l.b16 %v5015
      %v5144 = vunpack.c.l.b16 %v5016
      %v5145 = vunpack.c.l.b16 %v5017
      %v5146 = vunpack.c.l.b16 %v5018
      %v5147 = vunpack.c.l.b16 %v5019
      %v5148 = vunpack.c.l.b16 %v5020
      %v5149 = vunpack.c.l.b16 %v5021
      %v5150 = vunpack.c.l.b16 %v5022
      %v5151 = vunpack.c.l.b16 %v5023
      %v5152 = vunpack.c.l.b16 %v5024
      %v5153 = vunpack.c.l.b16 %v5025
      %v5154 = vunpack.c.l.b16 %v5026
      %v5155 = vunpack.c.l.b16 %v5027
      %v5156 = vunpack.c.l.b16 %v5028
      %v5157 = vunpack.c.l.b16 %v5029
      %v5158 = vunpack.c.l.b16 %v5030
      %v5159 = vunpack.c.l.b16 %v5031
      %v5160 = vunpack.c.l.b16 %v5032
      %v5161 = vunpack.c.l.b16 %v5033
      %v5162 = vunpack.c.l.b16 %v5034
      %v5163 = vunpack.c.l.b16 %v5035
      %v5164 = vunpack.c.l.b16 %v5036
      %v5165 = vunpack.c.l.b16 %v5037
      %v5166 = vunpack.c.l.b16 %v5038
      %v5167 = vunpack.c.l.b16 %v5039
      %v5168 = vunpack.c.l.b16 %v5040
      %v5169 = vunpack.c.l.b16 %v5041
      %v5170 = vunpack.c.l.b16 %v5042
      %v5171 = vunpack.c.l.b16 %v5043
      %v5172 = vunpack.c.l.b16 %v5044
      %v5173 = vunpack.c.l.b16 %v5045
      %v5174 = vunpack.c.l.b16 %v5046
      %v5175 = vunpack.c.l.b16 %v5047
      %v5176 = vunpack.c.l.b16 %v5048
      %v5177 = vunpack.c.l.b16 %v5049
      %v5178 = vunpack.c.l.b16 %v5050
      %v5179 = vunpack.c.l.b16 %v5051
      %v5180 = vunpack.c.l.b16 %v5052
      %v5181 = vunpack.c.l.b16 %v5053
      %v5182 = vunpack.c.l.b16 %v5054
      %v5183 = vunpack.c.l.b16 %v5055
      %v5184 = vunpack.c.l.b16 %v5056
      %v5185 = vunpack.c.l.b16 %v5057
      %v5186 = vunpack.c.l.b16 %v5058
      %v5187 = vunpack.c.l.b16 %v5059
      %v5188 = vunpack.c.l.b16 %v5060
      %v5189 = vpack.c.b16 %v5126, %v5125
      %v5190 = vpack.c.b16 %v5128, %v5127
      %v5191 = vpack.c.b16 %v5130, %v5129
      %v5192 = vpack.c.b16 %v5132, %v5131
      %v5193 = vpack.c.b16 %v5134, %v5133
      %v5194 = vpack.c.b16 %v5136, %v5135
      %v5195 = vpack.c.b16 %v5138, %v5137
      %v5196 = vpack.c.b16 %v5140, %v5139
      %v5197 = vpack.c.b16 %v5142, %v5141
      %v5198 = vpack.c.b16 %v5144, %v5143
      %v5199 = vpack.c.b16 %v5146, %v5145
      %v5200 = vpack.c.b16 %v5148, %v5147
      %v5201 = vpack.c.b16 %v5150, %v5149
      %v5202 = vpack.c.b16 %v5152, %v5151
      %v5203 = vpack.c.b16 %v5154, %v5153
      %v5204 = vpack.c.b16 %v5156, %v5155
      %v5205 = vpack.c.b16 %v5158, %v5157
      %v5206 = vpack.c.b16 %v5160, %v5159
      %v5207 = vpack.c.b16 %v5162, %v5161
      %v5208 = vpack.c.b16 %v5164, %v5163
      %v5209 = vpack.c.b16 %v5166, %v5165
      %v5210 = vpack.c.b16 %v5168, %v5167
      %v5211 = vpack.c.b16 %v5170, %v5169
      %v5212 = vpack.c.b16 %v5172, %v5171
      %v5213 = vpack.c.b16 %v5174, %v5173
      %v5214 = vpack.c.b16 %v5176, %v5175
      %v5215 = vpack.c.b16 %v5178, %v5177
      %v5216 = vpack.c.b16 %v5180, %v5179
      %v5217 = vpack.c.b16 %v5182, %v5181
      %v5218 = vpack.c.b16 %v5184, %v5183
      %v5219 = vpack.c.b16 %v5186, %v5185
      %v5220 = vpack.c.b16 %v5188, %v5187
      %5221 = vrot.lane.b32.xlu0 %v5189, 24
      %v5222 = vpop.permute.xlu0 %5221
      %5223 = vrot.lane.b32.xlu0 %v5190, 24
      %v5224 = vpop.permute.xlu0 %5223
      %5225 = vrot.lane.b32.xlu0 %v5191, 24
      %v5226 = vpop.permute.xlu0 %5225
      %5227 = vrot.lane.b32.xlu0 %v5192, 24
      %v5228 = vpop.permute.xlu0 %5227
      %5229 = vrot.lane.b32.xlu0 %v5193, 24
      %v5230 = vpop.permute.xlu0 %5229
      %5231 = vrot.lane.b32.xlu0 %v5194, 24
      %v5232 = vpop.permute.xlu0 %5231
      %5233 = vrot.lane.b32.xlu0 %v5195, 24
      %v5234 = vpop.permute.xlu0 %5233
      %5235 = vrot.lane.b32.xlu0 %v5196, 24
      %v5236 = vpop.permute.xlu0 %5235
      %5237 = vrot.lane.b32.xlu0 %v5197, 24
      %v5238 = vpop.permute.xlu0 %5237
      %5239 = vrot.lane.b32.xlu0 %v5198, 24
      %v5240 = vpop.permute.xlu0 %5239
      %5241 = vrot.lane.b32.xlu0 %v5199, 24
      %v5242 = vpop.permute.xlu0 %5241
      %5243 = vrot.lane.b32.xlu0 %v5200, 24
      %v5244 = vpop.permute.xlu0 %5243
      %5245 = vrot.lane.b32.xlu0 %v5201, 24
      %v5246 = vpop.permute.xlu0 %5245
      %5247 = vrot.lane.b32.xlu0 %v5202, 24
      %v5248 = vpop.permute.xlu0 %5247
      %5249 = vrot.lane.b32.xlu0 %v5203, 24
      %v5250 = vpop.permute.xlu0 %5249
      %5251 = vrot.lane.b32.xlu0 %v5204, 24
      %v5252 = vpop.permute.xlu0 %5251
      %5253 = vrot.lane.b32.xlu0 %v5205, 24
      %v5254 = vpop.permute.xlu0 %5253
      %5255 = vrot.lane.b32.xlu0 %v5206, 24
      %v5256 = vpop.permute.xlu0 %5255
      %5257 = vrot.lane.b32.xlu0 %v5207, 24
      %v5258 = vpop.permute.xlu0 %5257
      %5259 = vrot.lane.b32.xlu0 %v5208, 24
      %v5260 = vpop.permute.xlu0 %5259
      %5261 = vrot.lane.b32.xlu0 %v5209, 24
      %v5262 = vpop.permute.xlu0 %5261
      %5263 = vrot.lane.b32.xlu0 %v5210, 24
      %v5264 = vpop.permute.xlu0 %5263
      %5265 = vrot.lane.b32.xlu0 %v5211, 24
      %v5266 = vpop.permute.xlu0 %5265
      %5267 = vrot.lane.b32.xlu0 %v5212, 24
      %v5268 = vpop.permute.xlu0 %5267
      %5269 = vrot.lane.b32.xlu0 %v5213, 24
      %v5270 = vpop.permute.xlu0 %5269
      %5271 = vrot.lane.b32.xlu0 %v5214, 24
      %v5272 = vpop.permute.xlu0 %5271
      %5273 = vrot.lane.b32.xlu0 %v5215, 24
      %v5274 = vpop.permute.xlu0 %5273
      %5275 = vrot.lane.b32.xlu0 %v5216, 24
      %v5276 = vpop.permute.xlu0 %5275
      %5277 = vrot.lane.b32.xlu0 %v5217, 24
      %v5278 = vpop.permute.xlu0 %5277
      %5279 = vrot.lane.b32.xlu0 %v5218, 24
      %v5280 = vpop.permute.xlu0 %5279
      %5281 = vrot.lane.b32.xlu0 %v5219, 24
      %v5282 = vpop.permute.xlu0 %5281
      %5283 = vrot.lane.b32.xlu0 %v5220, 24
      %v5284 = vpop.permute.xlu0 %5283
      %vm5317 = vcmask 228544
      %5318 = vst.msk [vmem:[#allocation3] sm:$0xff] %vm5317, %v5222
      %5319 = vst.msk [vmem:[#allocation3 + $0x8] sm:$0xff] %vm5317, %v5224
      %5320 = vst.msk [vmem:[#allocation3 + $0x10] sm:$0xff] %vm5317, %v5226
      %5321 = vst.msk [vmem:[#allocation3 + $0x18] sm:$0xff] %vm5317, %v5228
      %5322 = vst.msk [vmem:[#allocation3 + $0x20] sm:$0xff] %vm5317, %v5230
      %5323 = vst.msk [vmem:[#allocation3 + $0x28] sm:$0xff] %vm5317, %v5232
      %5324 = vst.msk [vmem:[#allocation3 + $0x30] sm:$0xff] %vm5317, %v5234
      %5325 = vst.msk [vmem:[#allocation3 + $0x38] sm:$0xff] %vm5317, %v5236
      %5326 = vst.msk [vmem:[#allocation3 + $0x40] sm:$0xff] %vm5317, %v5238
      %5327 = vst.msk [vmem:[#allocation3 + $0x48] sm:$0xff] %vm5317, %v5240
      %5328 = vst.msk [vmem:[#allocation3 + $0x50] sm:$0xff] %vm5317, %v5242
      %5329 = vst.msk [vmem:[#allocation3 + $0x58] sm:$0xff] %vm5317, %v5244
      %5330 = vst.msk [vmem:[#allocation3 + $0x60] sm:$0xff] %vm5317, %v5246
      %5331 = vst.msk [vmem:[#allocation3 + $0x68] sm:$0xff] %vm5317, %v5248
      %5332 = vst.msk [vmem:[#allocation3 + $0x70] sm:$0xff] %vm5317, %v5250
      %5333 = vst.msk [vmem:[#allocation3 + $0x78] sm:$0xff] %vm5317, %v5252
      %5334 = vst.msk [vmem:[#allocation3 + $0x80] sm:$0xff] %vm5317, %v5254
      %5335 = vst.msk [vmem:[#allocation3 + $0x88] sm:$0xff] %vm5317, %v5256
      %5336 = vst.msk [vmem:[#allocation3 + $0x90] sm:$0xff] %vm5317, %v5258
      %5337 = vst.msk [vmem:[#allocation3 + $0x98] sm:$0xff] %vm5317, %v5260
      %5338 = vst.msk [vmem:[#allocation3 + $0xa0] sm:$0xff] %vm5317, %v5262
      %5339 = vst.msk [vmem:[#allocation3 + $0xa8] sm:$0xff] %vm5317, %v5264
      %5340 = vst.msk [vmem:[#allocation3 + $0xb0] sm:$0xff] %vm5317, %v5266
      %5341 = vst.msk [vmem:[#allocation3 + $0xb8] sm:$0xff] %vm5317, %v5268
      %5342 = vst.msk [vmem:[#allocation3 + $0xc0] sm:$0xff] %vm5317, %v5270
      %5343 = vst.msk [vmem:[#allocation3 + $0xc8] sm:$0xff] %vm5317, %v5272
      %5344 = vst.msk [vmem:[#allocation3 + $0xd0] sm:$0xff] %vm5317, %v5274
      %5345 = vst.msk [vmem:[#allocation3 + $0xd8] sm:$0xff] %vm5317, %v5276
      %5346 = vst.msk [vmem:[#allocation3 + $0xe0] sm:$0xff] %vm5317, %v5278
      %5347 = vst.msk [vmem:[#allocation3 + $0xe8] sm:$0xff] %vm5317, %v5280
      %5348 = vst.msk [vmem:[#allocation3 + $0xf0] sm:$0xff] %vm5317, %v5282
      %5349 = vst.msk [vmem:[#allocation3 + $0xf8] sm:$0xff] %vm5317, %v5284
      %v5350 = vld [vmem:[%s4996] sm:$0xf]
      %v5351 = vld [vmem:[%s4996 + $0x4] sm:$0xf]
      %v5352 = vld [vmem:[%s4996 + $0x8] sm:$0x1]
      %v5353 = vld [vmem:[%s4996 + $0xc] sm:$0xf]
      %v5354 = vld [vmem:[%s4996 + $0x10] sm:$0xf]
      %v5355 = vld [vmem:[%s4996 + $0x14] sm:$0x1]
      %v5356 = vld [vmem:[%s4996 + $0x18] sm:$0xf]
      %v5357 = vld [vmem:[%s4996 + $0x1c] sm:$0xf]
      %v5358 = vld [vmem:[%s4996 + $0x20] sm:$0x1]
      %v5359 = vld [vmem:[%s4996 + $0x24] sm:$0xf]
      %v5360 = vld [vmem:[%s4996 + $0x28] sm:$0xf]
      %v5361 = vld [vmem:[%s4996 + $0x2c] sm:$0x1]
      %v5362 = vld [vmem:[%s4996 + $0x30] sm:$0xf]
      %v5363 = vld [vmem:[%s4996 + $0x34] sm:$0xf]
      %v5364 = vld [vmem:[%s4996 + $0x38] sm:$0x1]
      %v5365 = vld [vmem:[%s4996 + $0x3c] sm:$0xf]
      %v5366 = vld [vmem:[%s4996 + $0x40] sm:$0xf]
      %v5367 = vld [vmem:[%s4996 + $0x44] sm:$0x1]
      %v5368 = vld [vmem:[%s4996 + $0x48] sm:$0xf]
      %v5369 = vld [vmem:[%s4996 + $0x4c] sm:$0xf]
      %v5370 = vld [vmem:[%s4996 + $0x50] sm:$0x1]
      %v5371 = vld [vmem:[%s4996 + $0x54] sm:$0xf]
      %v5372 = vld [vmem:[%s4996 + $0x58] sm:$0xf]
      %v5373 = vld [vmem:[%s4996 + $0x5c] sm:$0x1]
      %v5374 = vld [vmem:[%s4996 + $0x60] sm:$0xf]
      %v5375 = vld [vmem:[%s4996 + $0x64] sm:$0xf]
      %v5376 = vld [vmem:[%s4996 + $0x68] sm:$0x1]
      %v5377 = vld [vmem:[%s4996 + $0x6c] sm:$0xf]
      %v5378 = vld [vmem:[%s4996 + $0x70] sm:$0xf]
      %v5379 = vld [vmem:[%s4996 + $0x74] sm:$0x1]
      %v5380 = vld [vmem:[%s4996 + $0x78] sm:$0xf]
      %v5381 = vld [vmem:[%s4996 + $0x7c] sm:$0xf]
      %v5382 = vld [vmem:[%s4996 + $0x80] sm:$0x1]
      %v5383 = vld [vmem:[%s4996 + $0x84] sm:$0xf]
      %v5384 = vld [vmem:[%s4996 + $0x88] sm:$0xf]
      %v5385 = vld [vmem:[%s4996 + $0x8c] sm:$0x1]
      %v5386 = vld [vmem:[%s4996 + $0x90] sm:$0xf]
      %v5387 = vld [vmem:[%s4996 + $0x94] sm:$0xf]
      %v5388 = vld [vmem:[%s4996 + $0x98] sm:$0x1]
      %v5389 = vld [vmem:[%s4996 + $0x9c] sm:$0xf]
      %v5390 = vld [vmem:[%s4996 + $0xa0] sm:$0xf]
      %v5391 = vld [vmem:[%s4996 + $0xa4] sm:$0x1]
      %v5392 = vld [vmem:[%s4996 + $0xa8] sm:$0xf]
      %v5393 = vld [vmem:[%s4996 + $0xac] sm:$0xf]
      %v5394 = vld [vmem:[%s4996 + $0xb0] sm:$0x1]
      %v5395 = vld [vmem:[%s4996 + $0xb4] sm:$0xf]
      %v5396 = vld [vmem:[%s4996 + $0xb8] sm:$0xf]
      %v5397 = vld [vmem:[%s4996 + $0xbc] sm:$0x1]
      %v5398 = vld [vmem:[%s4996 + $0xd8] sm:$0xf]
      %v5399 = vld [vmem:[%s4996 + $0xdc] sm:$0xf]
      %v5400 = vld [vmem:[%s4996 + $0xe0] sm:$0x1]
      %v5401 = vld [vmem:[%s4996 + $0xe4] sm:$0xf]
      %v5402 = vld [vmem:[%s4996 + $0xe8] sm:$0xf]
      %v5403 = vld [vmem:[%s4996 + $0xec] sm:$0x1]
      %v5404 = vld [vmem:[%s4996 + $0xf0] sm:$0xf]
      %v5405 = vld [vmem:[%s4996 + $0xf4] sm:$0xf]
      %v5406 = vld [vmem:[%s4996 + $0xf8] sm:$0x1]
      %v5407 = vld [vmem:[%s4996 + $0xfc] sm:$0xf]
      %v5408 = vld [vmem:[%s4996 + $0x100] sm:$0xf]
      %v5409 = vld [vmem:[%s4996 + $0x104] sm:$0x1]
      %v5410 = vld [vmem:[%s4996 + $0x108] sm:$0xf]
      %v5411 = vld [vmem:[%s4996 + $0x10c] sm:$0xf]
      %v5412 = vld [vmem:[%s4996 + $0x110] sm:$0x1]
      %v5413 = vld [vmem:[%s4996 + $0x114] sm:$0xf]
      %v5414 = vld [vmem:[%s4996 + $0x118] sm:$0xf]
      %v5415 = vld [vmem:[%s4996 + $0x11c] sm:$0x1]
      %v5416 = vld [vmem:[%s4996 + $0x120] sm:$0xf]
      %v5417 = vld [vmem:[%s4996 + $0x124] sm:$0xf]
      %v5418 = vld [vmem:[%s4996 + $0x128] sm:$0x1]
      %v5419 = vld [vmem:[%s4996 + $0x12c] sm:$0xf]
      %v5420 = vld [vmem:[%s4996 + $0x130] sm:$0xf]
      %v5421 = vld [vmem:[%s4996 + $0x134] sm:$0x1]
      %v5422 = vld [vmem:[%s4996 + $0x138] sm:$0xf]
      %v5423 = vld [vmem:[%s4996 + $0x13c] sm:$0xf]
      %v5424 = vld [vmem:[%s4996 + $0x140] sm:$0x1]
      %v5425 = vld [vmem:[%s4996 + $0x144] sm:$0xf]
      %v5426 = vld [vmem:[%s4996 + $0x148] sm:$0xf]
      %v5427 = vld [vmem:[%s4996 + $0x14c] sm:$0x1]
      %v5428 = vld [vmem:[%s4996 + $0x150] sm:$0xf]
      %v5429 = vld [vmem:[%s4996 + $0x154] sm:$0xf]
      %v5430 = vld [vmem:[%s4996 + $0x158] sm:$0x1]
      %v5431 = vld [vmem:[%s4996 + $0x15c] sm:$0xf]
      %v5432 = vld [vmem:[%s4996 + $0x160] sm:$0xf]
      %v5433 = vld [vmem:[%s4996 + $0x164] sm:$0x1]
      %v5434 = vld [vmem:[%s4996 + $0x168] sm:$0xf]
      %v5435 = vld [vmem:[%s4996 + $0x16c] sm:$0xf]
      %v5436 = vld [vmem:[%s4996 + $0x170] sm:$0x1]
      %v5437 = vld [vmem:[%s4996 + $0x174] sm:$0xf]
      %v5438 = vld [vmem:[%s4996 + $0x178] sm:$0xf]
      %v5439 = vld [vmem:[%s4996 + $0x17c] sm:$0x1]
      %v5440 = vld [vmem:[%s4996 + $0x180] sm:$0xf]
      %v5441 = vld [vmem:[%s4996 + $0x184] sm:$0xf]
      %v5442 = vld [vmem:[%s4996 + $0x188] sm:$0x1]
      %v5443 = vld [vmem:[%s4996 + $0x18c] sm:$0xf]
      %v5444 = vld [vmem:[%s4996 + $0x190] sm:$0xf]
      %v5445 = vld [vmem:[%s4996 + $0x194] sm:$0x1]
      %v5542 = vunpack.c.l.b16 %v5350
      %v5543 = vunpack.c.l.b16 %v5351
      %v5544 = vunpack.c.l.b16 %v5352
      %v5545 = vunpack.c.l.b16 %v5353
      %v5546 = vunpack.c.l.b16 %v5354
      %v5547 = vunpack.c.l.b16 %v5355
      %v5548 = vunpack.c.l.b16 %v5356
      %v5549 = vunpack.c.l.b16 %v5357
      %v5550 = vunpack.c.l.b16 %v5358
      %v5551 = vunpack.c.l.b16 %v5359
      %v5552 = vunpack.c.l.b16 %v5360
      %v5553 = vunpack.c.l.b16 %v5361
      %v5554 = vunpack.c.l.b16 %v5362
      %v5555 = vunpack.c.l.b16 %v5363
      %v5556 = vunpack.c.l.b16 %v5364
      %v5557 = vunpack.c.l.b16 %v5365
      %v5558 = vunpack.c.l.b16 %v5366
      %v5559 = vunpack.c.l.b16 %v5367
      %v5560 = vunpack.c.l.b16 %v5368
      %v5561 = vunpack.c.l.b16 %v5369
      %v5562 = vunpack.c.l.b16 %v5370
      %v5563 = vunpack.c.l.b16 %v5371
      %v5564 = vunpack.c.l.b16 %v5372
      %v5565 = vunpack.c.l.b16 %v5373
      %v5566 = vunpack.c.l.b16 %v5374
      %v5567 = vunpack.c.l.b16 %v5375
      %v5568 = vunpack.c.l.b16 %v5376
      %v5569 = vunpack.c.l.b16 %v5377
      %v5570 = vunpack.c.l.b16 %v5378
      %v5571 = vunpack.c.l.b16 %v5379
      %v5572 = vunpack.c.l.b16 %v5380
      %v5573 = vunpack.c.l.b16 %v5381
      %v5574 = vunpack.c.l.b16 %v5382
      %v5575 = vunpack.c.l.b16 %v5383
      %v5576 = vunpack.c.l.b16 %v5384
      %v5577 = vunpack.c.l.b16 %v5385
      %v5578 = vunpack.c.l.b16 %v5386
      %v5579 = vunpack.c.l.b16 %v5387
      %v5580 = vunpack.c.l.b16 %v5388
      %v5581 = vunpack.c.l.b16 %v5389
      %v5582 = vunpack.c.l.b16 %v5390
      %v5583 = vunpack.c.l.b16 %v5391
      %v5584 = vunpack.c.l.b16 %v5392
      %v5585 = vunpack.c.l.b16 %v5393
      %v5586 = vunpack.c.l.b16 %v5394
      %v5587 = vunpack.c.l.b16 %v5395
      %v5588 = vunpack.c.l.b16 %v5396
      %v5589 = vunpack.c.l.b16 %v5397
      %v5590 = vunpack.c.l.b16 %v5398
      %v5591 = vunpack.c.l.b16 %v5399
      %v5592 = vunpack.c.l.b16 %v5400
      %v5593 = vunpack.c.l.b16 %v5401
      %v5594 = vunpack.c.l.b16 %v5402
      %v5595 = vunpack.c.l.b16 %v5403
      %v5596 = vunpack.c.l.b16 %v5404
      %v5597 = vunpack.c.l.b16 %v5405
      %v5598 = vunpack.c.l.b16 %v5406
      %v5599 = vunpack.c.l.b16 %v5407
      %v5600 = vunpack.c.l.b16 %v5408
      %v5601 = vunpack.c.l.b16 %v5409
      %v5602 = vunpack.c.l.b16 %v5410
      %v5603 = vunpack.c.l.b16 %v5411
      %v5604 = vunpack.c.l.b16 %v5412
      %v5605 = vunpack.c.l.b16 %v5413
      %v5606 = vunpack.c.l.b16 %v5414
      %v5607 = vunpack.c.l.b16 %v5415
      %v5608 = vunpack.c.l.b16 %v5416
      %v5609 = vunpack.c.l.b16 %v5417
      %v5610 = vunpack.c.l.b16 %v5418
      %v5611 = vunpack.c.l.b16 %v5419
      %v5612 = vunpack.c.l.b16 %v5420
      %v5613 = vunpack.c.l.b16 %v5421
      %v5614 = vunpack.c.l.b16 %v5422
      %v5615 = vunpack.c.l.b16 %v5423
      %v5616 = vunpack.c.l.b16 %v5424
      %v5617 = vunpack.c.l.b16 %v5425
      %v5618 = vunpack.c.l.b16 %v5426
      %v5619 = vunpack.c.l.b16 %v5427
      %v5620 = vunpack.c.l.b16 %v5428
      %v5621 = vunpack.c.l.b16 %v5429
      %v5622 = vunpack.c.l.b16 %v5430
      %v5623 = vunpack.c.l.b16 %v5431
      %v5624 = vunpack.c.l.b16 %v5432
      %v5625 = vunpack.c.l.b16 %v5433
      %v5626 = vunpack.c.l.b16 %v5434
      %v5627 = vunpack.c.l.b16 %v5435
      %v5628 = vunpack.c.l.b16 %v5436
      %v5629 = vunpack.c.l.b16 %v5437
      %v5630 = vunpack.c.l.b16 %v5438
      %v5631 = vunpack.c.l.b16 %v5439
      %v5632 = vunpack.c.l.b16 %v5440
      %v5633 = vunpack.c.l.b16 %v5441
      %v5634 = vunpack.c.l.b16 %v5442
      %v5635 = vunpack.c.l.b16 %v5443
      %v5636 = vunpack.c.l.b16 %v5444
      %v5637 = vunpack.c.l.b16 %v5445
      %v5638 = vpack.c.b16 %v5543, %v5542
      %v5639 = vpack.c.b16 %v5544, %v5544
      %v5640 = vpack.c.b16 %v5546, %v5545
      %v5641 = vpack.c.b16 %v5547, %v5547
      %v5642 = vpack.c.b16 %v5549, %v5548
      %v5643 = vpack.c.b16 %v5550, %v5550
      %v5644 = vpack.c.b16 %v5552, %v5551
      %v5645 = vpack.c.b16 %v5553, %v5553
      %v5646 = vpack.c.b16 %v5555, %v5554
      %v5647 = vpack.c.b16 %v5556, %v5556
      %v5648 = vpack.c.b16 %v5558, %v5557
      %v5649 = vpack.c.b16 %v5559, %v5559
      %v5650 = vpack.c.b16 %v5561, %v5560
      %v5651 = vpack.c.b16 %v5562, %v5562
      %v5652 = vpack.c.b16 %v5564, %v5563
      %v5653 = vpack.c.b16 %v5565, %v5565
      %v5654 = vpack.c.b16 %v5567, %v5566
      %v5655 = vpack.c.b16 %v5568, %v5568
      %v5656 = vpack.c.b16 %v5570, %v5569
      %v5657 = vpack.c.b16 %v5571, %v5571
      %v5658 = vpack.c.b16 %v5573, %v5572
      %v5659 = vpack.c.b16 %v5574, %v5574
      %v5660 = vpack.c.b16 %v5576, %v5575
      %v5661 = vpack.c.b16 %v5577, %v5577
      %v5662 = vpack.c.b16 %v5579, %v5578
      %v5663 = vpack.c.b16 %v5580, %v5580
      %v5664 = vpack.c.b16 %v5582, %v5581
      %v5665 = vpack.c.b16 %v5583, %v5583
      %v5666 = vpack.c.b16 %v5585, %v5584
      %v5667 = vpack.c.b16 %v5586, %v5586
      %v5668 = vpack.c.b16 %v5588, %v5587
      %v5669 = vpack.c.b16 %v5589, %v5589
      %v5670 = vpack.c.b16 %v5591, %v5590
      %v5671 = vpack.c.b16 %v5592, %v5592
      %v5672 = vpack.c.b16 %v5594, %v5593
      %v5673 = vpack.c.b16 %v5595, %v5595
      %v5674 = vpack.c.b16 %v5597, %v5596
      %v5675 = vpack.c.b16 %v5598, %v5598
      %v5676 = vpack.c.b16 %v5600, %v5599
      %v5677 = vpack.c.b16 %v5601, %v5601
      %v5678 = vpack.c.b16 %v5603, %v5602
      %v5679 = vpack.c.b16 %v5604, %v5604
      %v5680 = vpack.c.b16 %v5606, %v5605
      %v5681 = vpack.c.b16 %v5607, %v5607
      %v5682 = vpack.c.b16 %v5609, %v5608
      %v5683 = vpack.c.b16 %v5610, %v5610
      %v5684 = vpack.c.b16 %v5612, %v5611
      %v5685 = vpack.c.b16 %v5613, %v5613
      %v5686 = vpack.c.b16 %v5615, %v5614
      %v5687 = vpack.c.b16 %v5616, %v5616
      %v5688 = vpack.c.b16 %v5618, %v5617
      %v5689 = vpack.c.b16 %v5619, %v5619
      %v5690 = vpack.c.b16 %v5621, %v5620
      %v5691 = vpack.c.b16 %v5622, %v5622
      %v5692 = vpack.c.b16 %v5624, %v5623
      %v5693 = vpack.c.b16 %v5625, %v5625
      %v5694 = vpack.c.b16 %v5627, %v5626
      %v5695 = vpack.c.b16 %v5628, %v5628
      %v5696 = vpack.c.b16 %v5630, %v5629
      %v5697 = vpack.c.b16 %v5631, %v5631
      %v5698 = vpack.c.b16 %v5633, %v5632
      %v5699 = vpack.c.b16 %v5634, %v5634
      %v5700 = vpack.c.b16 %v5636, %v5635
      %v5701 = vpack.c.b16 %v5637, %v5637
      %v5703 = vshrl.u32 %v5638, 16
      %v5705 = vshll.u32 %v5638, 16
      %v5707 = vrot.slane %v5705, 1
      %v5708 = vor.u32 %v5703, %v5707
      %v5710 = vshll.u32 %v5639, 16
      %v5712 = vrot.slane %v5710, 1
      %v5713 = vsel %vm2109, %v5708, %v5712
      %v5715 = vshrl.u32 %v5640, 16
      %v5717 = vshll.u32 %v5640, 16
      %v5719 = vrot.slane %v5717, 1
      %v5720 = vor.u32 %v5715, %v5719
      %v5722 = vshll.u32 %v5641, 16
      %v5724 = vrot.slane %v5722, 1
      %v5725 = vsel %vm2109, %v5720, %v5724
      %v5727 = vshrl.u32 %v5642, 16
      %v5729 = vshll.u32 %v5642, 16
      %v5731 = vrot.slane %v5729, 1
      %v5732 = vor.u32 %v5727, %v5731
      %v5734 = vshll.u32 %v5643, 16
      %v5736 = vrot.slane %v5734, 1
      %v5737 = vsel %vm2109, %v5732, %v5736
      %v5739 = vshrl.u32 %v5644, 16
      %v5741 = vshll.u32 %v5644, 16
      %v5743 = vrot.slane %v5741, 1
      %v5744 = vor.u32 %v5739, %v5743
      %v5746 = vshll.u32 %v5645, 16
      %v5748 = vrot.slane %v5746, 1
      %v5749 = vsel %vm2109, %v5744, %v5748
      %v5751 = vshrl.u32 %v5646, 16
      %v5753 = vshll.u32 %v5646, 16
      %v5755 = vrot.slane %v5753, 1
      %v5756 = vor.u32 %v5751, %v5755
      %v5758 = vshll.u32 %v5647, 16
      %v5760 = vrot.slane %v5758, 1
      %v5761 = vsel %vm2109, %v5756, %v5760
      %v5763 = vshrl.u32 %v5648, 16
      %v5765 = vshll.u32 %v5648, 16
      %v5767 = vrot.slane %v5765, 1
      %v5768 = vor.u32 %v5763, %v5767
      %v5770 = vshll.u32 %v5649, 16
      %v5772 = vrot.slane %v5770, 1
      %v5773 = vsel %vm2109, %v5768, %v5772
      %v5775 = vshrl.u32 %v5650, 16
      %v5777 = vshll.u32 %v5650, 16
      %v5779 = vrot.slane %v5777, 1
      %v5780 = vor.u32 %v5775, %v5779
      %v5782 = vshll.u32 %v5651, 16
      %v5784 = vrot.slane %v5782, 1
      %v5785 = vsel %vm2109, %v5780, %v5784
      %v5787 = vshrl.u32 %v5652, 16
      %v5789 = vshll.u32 %v5652, 16
      %v5791 = vrot.slane %v5789, 1
      %v5792 = vor.u32 %v5787, %v5791
      %v5794 = vshll.u32 %v5653, 16
      %v5796 = vrot.slane %v5794, 1
      %v5797 = vsel %vm2109, %v5792, %v5796
      %v5799 = vshrl.u32 %v5654, 16
      %v5801 = vshll.u32 %v5654, 16
      %v5803 = vrot.slane %v5801, 1
      %v5804 = vor.u32 %v5799, %v5803
      %v5806 = vshll.u32 %v5655, 16
      %v5808 = vrot.slane %v5806, 1
      %v5809 = vsel %vm2109, %v5804, %v5808
      %v5811 = vshrl.u32 %v5656, 16
      %v5813 = vshll.u32 %v5656, 16
      %v5815 = vrot.slane %v5813, 1
      %v5816 = vor.u32 %v5811, %v5815
      %v5818 = vshll.u32 %v5657, 16
      %v5820 = vrot.slane %v5818, 1
      %v5821 = vsel %vm2109, %v5816, %v5820
      %v5823 = vshrl.u32 %v5658, 16
      %v5825 = vshll.u32 %v5658, 16
      %v5827 = vrot.slane %v5825, 1
      %v5828 = vor.u32 %v5823, %v5827
      %v5830 = vshll.u32 %v5659, 16
      %v5832 = vrot.slane %v5830, 1
      %v5833 = vsel %vm2109, %v5828, %v5832
      %v5835 = vshrl.u32 %v5660, 16
      %v5837 = vshll.u32 %v5660, 16
      %v5839 = vrot.slane %v5837, 1
      %v5840 = vor.u32 %v5835, %v5839
      %v5842 = vshll.u32 %v5661, 16
      %v5844 = vrot.slane %v5842, 1
      %v5845 = vsel %vm2109, %v5840, %v5844
      %v5847 = vshrl.u32 %v5662, 16
      %v5849 = vshll.u32 %v5662, 16
      %v5851 = vrot.slane %v5849, 1
      %v5852 = vor.u32 %v5847, %v5851
      %v5854 = vshll.u32 %v5663, 16
      %v5856 = vrot.slane %v5854, 1
      %v5857 = vsel %vm2109, %v5852, %v5856
      %v5859 = vshrl.u32 %v5664, 16
      %v5861 = vshll.u32 %v5664, 16
      %v5863 = vrot.slane %v5861, 1
      %v5864 = vor.u32 %v5859, %v5863
      %v5866 = vshll.u32 %v5665, 16
      %v5868 = vrot.slane %v5866, 1
      %v5869 = vsel %vm2109, %v5864, %v5868
      %v5871 = vshrl.u32 %v5666, 16
      %v5873 = vshll.u32 %v5666, 16
      %v5875 = vrot.slane %v5873, 1
      %v5876 = vor.u32 %v5871, %v5875
      %v5878 = vshll.u32 %v5667, 16
      %v5880 = vrot.slane %v5878, 1
      %v5881 = vsel %vm2109, %v5876, %v5880
      %v5883 = vshrl.u32 %v5668, 16
      %v5885 = vshll.u32 %v5668, 16
      %v5887 = vrot.slane %v5885, 1
      %v5888 = vor.u32 %v5883, %v5887
      %v5890 = vshll.u32 %v5669, 16
      %v5892 = vrot.slane %v5890, 1
      %v5893 = vsel %vm2109, %v5888, %v5892
      %v5895 = vshrl.u32 %v5670, 16
      %v5897 = vshll.u32 %v5670, 16
      %v5899 = vrot.slane %v5897, 1
      %v5900 = vor.u32 %v5895, %v5899
      %v5902 = vshll.u32 %v5671, 16
      %v5904 = vrot.slane %v5902, 1
      %v5905 = vsel %vm2109, %v5900, %v5904
      %v5907 = vshrl.u32 %v5672, 16
      %v5909 = vshll.u32 %v5672, 16
      %v5911 = vrot.slane %v5909, 1
      %v5912 = vor.u32 %v5907, %v5911
      %v5914 = vshll.u32 %v5673, 16
      %v5916 = vrot.slane %v5914, 1
      %v5917 = vsel %vm2109, %v5912, %v5916
      %v5919 = vshrl.u32 %v5674, 16
      %v5921 = vshll.u32 %v5674, 16
      %v5923 = vrot.slane %v5921, 1
      %v5924 = vor.u32 %v5919, %v5923
      %v5926 = vshll.u32 %v5675, 16
      %v5928 = vrot.slane %v5926, 1
      %v5929 = vsel %vm2109, %v5924, %v5928
      %v5931 = vshrl.u32 %v5676, 16
      %v5933 = vshll.u32 %v5676, 16
      %v5935 = vrot.slane %v5933, 1
      %v5936 = vor.u32 %v5931, %v5935
      %v5938 = vshll.u32 %v5677, 16
      %v5940 = vrot.slane %v5938, 1
      %v5941 = vsel %vm2109, %v5936, %v5940
      %v5943 = vshrl.u32 %v5678, 16
      %v5945 = vshll.u32 %v5678, 16
      %v5947 = vrot.slane %v5945, 1
      %v5948 = vor.u32 %v5943, %v5947
      %v5950 = vshll.u32 %v5679, 16
      %v5952 = vrot.slane %v5950, 1
      %v5953 = vsel %vm2109, %v5948, %v5952
      %v5955 = vshrl.u32 %v5680, 16
      %v5957 = vshll.u32 %v5680, 16
      %v5959 = vrot.slane %v5957, 1
      %v5960 = vor.u32 %v5955, %v5959
      %v5962 = vshll.u32 %v5681, 16
      %v5964 = vrot.slane %v5962, 1
      %v5965 = vsel %vm2109, %v5960, %v5964
      %v5967 = vshrl.u32 %v5682, 16
      %v5969 = vshll.u32 %v5682, 16
      %v5971 = vrot.slane %v5969, 1
      %v5972 = vor.u32 %v5967, %v5971
      %v5974 = vshll.u32 %v5683, 16
      %v5976 = vrot.slane %v5974, 1
      %v5977 = vsel %vm2109, %v5972, %v5976
      %v5979 = vshrl.u32 %v5684, 16
      %v5981 = vshll.u32 %v5684, 16
      %v5983 = vrot.slane %v5981, 1
      %v5984 = vor.u32 %v5979, %v5983
      %v5986 = vshll.u32 %v5685, 16
      %v5988 = vrot.slane %v5986, 1
      %v5989 = vsel %vm2109, %v5984, %v5988
      %v5991 = vshrl.u32 %v5686, 16
      %v5993 = vshll.u32 %v5686, 16
      %v5995 = vrot.slane %v5993, 1
      %v5996 = vor.u32 %v5991, %v5995
      %v5998 = vshll.u32 %v5687, 16
      %v6000 = vrot.slane %v5998, 1
      %v6001 = vsel %vm2109, %v5996, %v6000
      %v6003 = vshrl.u32 %v5688, 16
      %v6005 = vshll.u32 %v5688, 16
      %v6007 = vrot.slane %v6005, 1
      %v6008 = vor.u32 %v6003, %v6007
      %v6010 = vshll.u32 %v5689, 16
      %v6012 = vrot.slane %v6010, 1
      %v6013 = vsel %vm2109, %v6008, %v6012
      %v6015 = vshrl.u32 %v5690, 16
      %v6017 = vshll.u32 %v5690, 16
      %v6019 = vrot.slane %v6017, 1
      %v6020 = vor.u32 %v6015, %v6019
      %v6022 = vshll.u32 %v5691, 16
      %v6024 = vrot.slane %v6022, 1
      %v6025 = vsel %vm2109, %v6020, %v6024
      %v6027 = vshrl.u32 %v5692, 16
      %v6029 = vshll.u32 %v5692, 16
      %v6031 = vrot.slane %v6029, 1
      %v6032 = vor.u32 %v6027, %v6031
      %v6034 = vshll.u32 %v5693, 16
      %v6036 = vrot.slane %v6034, 1
      %v6037 = vsel %vm2109, %v6032, %v6036
      %v6039 = vshrl.u32 %v5694, 16
      %v6041 = vshll.u32 %v5694, 16
      %v6043 = vrot.slane %v6041, 1
      %v6044 = vor.u32 %v6039, %v6043
      %v6046 = vshll.u32 %v5695, 16
      %v6048 = vrot.slane %v6046, 1
      %v6049 = vsel %vm2109, %v6044, %v6048
      %v6051 = vshrl.u32 %v5696, 16
      %v6053 = vshll.u32 %v5696, 16
      %v6055 = vrot.slane %v6053, 1
      %v6056 = vor.u32 %v6051, %v6055
      %v6058 = vshll.u32 %v5697, 16
      %v6060 = vrot.slane %v6058, 1
      %v6061 = vsel %vm2109, %v6056, %v6060
      %v6063 = vshrl.u32 %v5698, 16
      %v6065 = vshll.u32 %v5698, 16
      %v6067 = vrot.slane %v6065, 1
      %v6068 = vor.u32 %v6063, %v6067
      %v6070 = vshll.u32 %v5699, 16
      %v6072 = vrot.slane %v6070, 1
      %v6073 = vsel %vm2109, %v6068, %v6072
      %v6075 = vshrl.u32 %v5700, 16
      %v6077 = vshll.u32 %v5700, 16
      %v6079 = vrot.slane %v6077, 1
      %v6080 = vor.u32 %v6075, %v6079
      %v6082 = vshll.u32 %v5701, 16
      %v6084 = vrot.slane %v6082, 1
      %v6085 = vsel %vm2109, %v6080, %v6084
      %6086 = vrot.lane.b32.xlu0 %v5713, 28
      %v6087 = vpop.permute.xlu0 %6086
      %6088 = vrot.lane.b32.xlu0 %v5725, 28
      %v6089 = vpop.permute.xlu0 %6088
      %6090 = vrot.lane.b32.xlu0 %v5737, 28
      %v6091 = vpop.permute.xlu0 %6090
      %6092 = vrot.lane.b32.xlu0 %v5749, 28
      %v6093 = vpop.permute.xlu0 %6092
      %6094 = vrot.lane.b32.xlu0 %v5761, 28
      %v6095 = vpop.permute.xlu0 %6094
      %6096 = vrot.lane.b32.xlu0 %v5773, 28
      %v6097 = vpop.permute.xlu0 %6096
      %6098 = vrot.lane.b32.xlu0 %v5785, 28
      %v6099 = vpop.permute.xlu0 %6098
      %6100 = vrot.lane.b32.xlu0 %v5797, 28
      %v6101 = vpop.permute.xlu0 %6100
      %6102 = vrot.lane.b32.xlu0 %v5809, 28
      %v6103 = vpop.permute.xlu0 %6102
      %6104 = vrot.lane.b32.xlu0 %v5821, 28
      %v6105 = vpop.permute.xlu0 %6104
      %6106 = vrot.lane.b32.xlu0 %v5833, 28
      %v6107 = vpop.permute.xlu0 %6106
      %6108 = vrot.lane.b32.xlu0 %v5845, 28
      %v6109 = vpop.permute.xlu0 %6108
      %6110 = vrot.lane.b32.xlu0 %v5857, 28
      %v6111 = vpop.permute.xlu0 %6110
      %6112 = vrot.lane.b32.xlu0 %v5869, 28
      %v6113 = vpop.permute.xlu0 %6112
      %6114 = vrot.lane.b32.xlu0 %v5881, 28
      %v6115 = vpop.permute.xlu0 %6114
      %6116 = vrot.lane.b32.xlu0 %v5893, 28
      %v6117 = vpop.permute.xlu0 %6116
      %6118 = vrot.lane.b32.xlu0 %v5905, 28
      %v6119 = vpop.permute.xlu0 %6118
      %6120 = vrot.lane.b32.xlu0 %v5917, 28
      %v6121 = vpop.permute.xlu0 %6120
      %6122 = vrot.lane.b32.xlu0 %v5929, 28
      %v6123 = vpop.permute.xlu0 %6122
      %6124 = vrot.lane.b32.xlu0 %v5941, 28
      %v6125 = vpop.permute.xlu0 %6124
      %6126 = vrot.lane.b32.xlu0 %v5953, 28
      %v6127 = vpop.permute.xlu0 %6126
      %6128 = vrot.lane.b32.xlu0 %v5965, 28
      %v6129 = vpop.permute.xlu0 %6128
      %6130 = vrot.lane.b32.xlu0 %v5977, 28
      %v6131 = vpop.permute.xlu0 %6130
      %6132 = vrot.lane.b32.xlu0 %v5989, 28
      %v6133 = vpop.permute.xlu0 %6132
      %6134 = vrot.lane.b32.xlu0 %v6001, 28
      %v6135 = vpop.permute.xlu0 %6134
      %6136 = vrot.lane.b32.xlu0 %v6013, 28
      %v6137 = vpop.permute.xlu0 %6136
      %6138 = vrot.lane.b32.xlu0 %v6025, 28
      %v6139 = vpop.permute.xlu0 %6138
      %6140 = vrot.lane.b32.xlu0 %v6037, 28
      %v6141 = vpop.permute.xlu0 %6140
      %6142 = vrot.lane.b32.xlu0 %v6049, 28
      %v6143 = vpop.permute.xlu0 %6142
      %6144 = vrot.lane.b32.xlu0 %v6061, 28
      %v6145 = vpop.permute.xlu0 %6144
      %6146 = vrot.lane.b32.xlu0 %v6073, 28
      %v6147 = vpop.permute.xlu0 %6146
      %6148 = vrot.lane.b32.xlu0 %v6085, 28
      %v6149 = vpop.permute.xlu0 %6148
      %vm6182 = vcmask 261344
      %6183 = vst.msk [vmem:[#allocation3] sm:$0xff] %vm6182, %v6087
      %6184 = vst.msk [vmem:[#allocation3 + $0x8] sm:$0xff] %vm6182, %v6089
      %6185 = vst.msk [vmem:[#allocation3 + $0x10] sm:$0xff] %vm6182, %v6091
      %6186 = vst.msk [vmem:[#allocation3 + $0x18] sm:$0xff] %vm6182, %v6093
      %6187 = vst.msk [vmem:[#allocation3 + $0x20] sm:$0xff] %vm6182, %v6095
      %6188 = vst.msk [vmem:[#allocation3 + $0x28] sm:$0xff] %vm6182, %v6097
      %6189 = vst.msk [vmem:[#allocation3 + $0x30] sm:$0xff] %vm6182, %v6099
      %6190 = vst.msk [vmem:[#allocation3 + $0x38] sm:$0xff] %vm6182, %v6101
      %6191 = vst.msk [vmem:[#allocation3 + $0x40] sm:$0xff] %vm6182, %v6103
      %6192 = vst.msk [vmem:[#allocation3 + $0x48] sm:$0xff] %vm6182, %v6105
      %6193 = vst.msk [vmem:[#allocation3 + $0x50] sm:$0xff] %vm6182, %v6107
      %6194 = vst.msk [vmem:[#allocation3 + $0x58] sm:$0xff] %vm6182, %v6109
      %6195 = vst.msk [vmem:[#allocation3 + $0x60] sm:$0xff] %vm6182, %v6111
      %6196 = vst.msk [vmem:[#allocation3 + $0x68] sm:$0xff] %vm6182, %v6113
      %6197 = vst.msk [vmem:[#allocation3 + $0x70] sm:$0xff] %vm6182, %v6115
      %6198 = vst.msk [vmem:[#allocation3 + $0x78] sm:$0xff] %vm6182, %v6117
      %6199 = vst.msk [vmem:[#allocation3 + $0x80] sm:$0xff] %vm6182, %v6119
      %6200 = vst.msk [vmem:[#allocation3 + $0x88] sm:$0xff] %vm6182, %v6121
      %6201 = vst.msk [vmem:[#allocation3 + $0x90] sm:$0xff] %vm6182, %v6123
      %6202 = vst.msk [vmem:[#allocation3 + $0x98] sm:$0xff] %vm6182, %v6125
      %6203 = vst.msk [vmem:[#allocation3 + $0xa0] sm:$0xff] %vm6182, %v6127
      %6204 = vst.msk [vmem:[#allocation3 + $0xa8] sm:$0xff] %vm6182, %v6129
      %6205 = vst.msk [vmem:[#allocation3 + $0xb0] sm:$0xff] %vm6182, %v6131
      %6206 = vst.msk [vmem:[#allocation3 + $0xb8] sm:$0xff] %vm6182, %v6133
      %6207 = vst.msk [vmem:[#allocation3 + $0xc0] sm:$0xff] %vm6182, %v6135
      %6208 = vst.msk [vmem:[#allocation3 + $0xc8] sm:$0xff] %vm6182, %v6137
      %6209 = vst.msk [vmem:[#allocation3 + $0xd0] sm:$0xff] %vm6182, %v6139
      %6210 = vst.msk [vmem:[#allocation3 + $0xd8] sm:$0xff] %vm6182, %v6141
      %6211 = vst.msk [vmem:[#allocation3 + $0xe0] sm:$0xff] %vm6182, %v6143
      %6212 = vst.msk [vmem:[#allocation3 + $0xe8] sm:$0xff] %vm6182, %v6145
      %6213 = vst.msk [vmem:[#allocation3 + $0xf0] sm:$0xff] %vm6182, %v6147
      %6214 = vst.msk [vmem:[#allocation3 + $0xf8] sm:$0xff] %vm6182, %v6149
      %v6215 = vld [vmem:[%s4996] sm:$0xe]
      %v6216 = vld [vmem:[%s4996 + $0x4] sm:$0xf]
      %v6217 = vld [vmem:[%s4996 + $0x8] sm:$0x1]
      %v6218 = vld [vmem:[%s4996 + $0xc] sm:$0xe]
      %v6219 = vld [vmem:[%s4996 + $0x10] sm:$0xf]
      %v6220 = vld [vmem:[%s4996 + $0x14] sm:$0x1]
      %v6221 = vld [vmem:[%s4996 + $0x18] sm:$0xe]
      %v6222 = vld [vmem:[%s4996 + $0x1c] sm:$0xf]
      %v6223 = vld [vmem:[%s4996 + $0x20] sm:$0x1]
      %v6224 = vld [vmem:[%s4996 + $0x24] sm:$0xe]
      %v6225 = vld [vmem:[%s4996 + $0x28] sm:$0xf]
      %v6226 = vld [vmem:[%s4996 + $0x2c] sm:$0x1]
      %v6227 = vld [vmem:[%s4996 + $0x30] sm:$0xe]
      %v6228 = vld [vmem:[%s4996 + $0x34] sm:$0xf]
      %v6229 = vld [vmem:[%s4996 + $0x38] sm:$0x1]
      %v6230 = vld [vmem:[%s4996 + $0x3c] sm:$0xe]
      %v6231 = vld [vmem:[%s4996 + $0x40] sm:$0xf]
      %v6232 = vld [vmem:[%s4996 + $0x44] sm:$0x1]
      %v6233 = vld [vmem:[%s4996 + $0x48] sm:$0xe]
      %v6234 = vld [vmem:[%s4996 + $0x4c] sm:$0xf]
      %v6235 = vld [vmem:[%s4996 + $0x50] sm:$0x1]
      %v6236 = vld [vmem:[%s4996 + $0x54] sm:$0xe]
      %v6237 = vld [vmem:[%s4996 + $0x58] sm:$0xf]
      %v6238 = vld [vmem:[%s4996 + $0x5c] sm:$0x1]
      %v6239 = vld [vmem:[%s4996 + $0x60] sm:$0xe]
      %v6240 = vld [vmem:[%s4996 + $0x64] sm:$0xf]
      %v6241 = vld [vmem:[%s4996 + $0x68] sm:$0x1]
      %v6242 = vld [vmem:[%s4996 + $0x6c] sm:$0xe]
      %v6243 = vld [vmem:[%s4996 + $0x70] sm:$0xf]
      %v6244 = vld [vmem:[%s4996 + $0x74] sm:$0x1]
      %v6245 = vld [vmem:[%s4996 + $0x78] sm:$0xe]
      %v6246 = vld [vmem:[%s4996 + $0x7c] sm:$0xf]
      %v6247 = vld [vmem:[%s4996 + $0x80] sm:$0x1]
      %v6248 = vld [vmem:[%s4996 + $0x84] sm:$0xe]
      %v6249 = vld [vmem:[%s4996 + $0x88] sm:$0xf]
      %v6250 = vld [vmem:[%s4996 + $0x8c] sm:$0x1]
      %v6251 = vld [vmem:[%s4996 + $0x90] sm:$0xe]
      %v6252 = vld [vmem:[%s4996 + $0x94] sm:$0xf]
      %v6253 = vld [vmem:[%s4996 + $0x98] sm:$0x1]
      %v6254 = vld [vmem:[%s4996 + $0x9c] sm:$0xe]
      %v6255 = vld [vmem:[%s4996 + $0xa0] sm:$0xf]
      %v6256 = vld [vmem:[%s4996 + $0xa4] sm:$0x1]
      %v6257 = vld [vmem:[%s4996 + $0xa8] sm:$0xe]
      %v6258 = vld [vmem:[%s4996 + $0xac] sm:$0xf]
      %v6259 = vld [vmem:[%s4996 + $0xb0] sm:$0x1]
      %v6260 = vld [vmem:[%s4996 + $0xb4] sm:$0xe]
      %v6261 = vld [vmem:[%s4996 + $0xb8] sm:$0xf]
      %v6262 = vld [vmem:[%s4996 + $0xbc] sm:$0x1]
      %v6263 = vld [vmem:[%s4996 + $0xd8] sm:$0xe]
      %v6264 = vld [vmem:[%s4996 + $0xdc] sm:$0xf]
      %v6265 = vld [vmem:[%s4996 + $0xe0] sm:$0x1]
      %v6266 = vld [vmem:[%s4996 + $0xe4] sm:$0xe]
      %v6267 = vld [vmem:[%s4996 + $0xe8] sm:$0xf]
      %v6268 = vld [vmem:[%s4996 + $0xec] sm:$0x1]
      %v6269 = vld [vmem:[%s4996 + $0xf0] sm:$0xe]
      %v6270 = vld [vmem:[%s4996 + $0xf4] sm:$0xf]
      %v6271 = vld [vmem:[%s4996 + $0xf8] sm:$0x1]
      %v6272 = vld [vmem:[%s4996 + $0xfc] sm:$0xe]
      %v6273 = vld [vmem:[%s4996 + $0x100] sm:$0xf]
      %v6274 = vld [vmem:[%s4996 + $0x104] sm:$0x1]
      %v6275 = vld [vmem:[%s4996 + $0x108] sm:$0xe]
      %v6276 = vld [vmem:[%s4996 + $0x10c] sm:$0xf]
      %v6277 = vld [vmem:[%s4996 + $0x110] sm:$0x1]
      %v6278 = vld [vmem:[%s4996 + $0x114] sm:$0xe]
      %v6279 = vld [vmem:[%s4996 + $0x118] sm:$0xf]
      %v6280 = vld [vmem:[%s4996 + $0x11c] sm:$0x1]
      %v6281 = vld [vmem:[%s4996 + $0x120] sm:$0xe]
      %v6282 = vld [vmem:[%s4996 + $0x124] sm:$0xf]
      %v6283 = vld [vmem:[%s4996 + $0x128] sm:$0x1]
      %v6284 = vld [vmem:[%s4996 + $0x12c] sm:$0xe]
      %v6285 = vld [vmem:[%s4996 + $0x130] sm:$0xf]
      %v6286 = vld [vmem:[%s4996 + $0x134] sm:$0x1]
      %v6287 = vld [vmem:[%s4996 + $0x138] sm:$0xe]
      %v6288 = vld [vmem:[%s4996 + $0x13c] sm:$0xf]
      %v6289 = vld [vmem:[%s4996 + $0x140] sm:$0x1]
      %v6290 = vld [vmem:[%s4996 + $0x144] sm:$0xe]
      %v6291 = vld [vmem:[%s4996 + $0x148] sm:$0xf]
      %v6292 = vld [vmem:[%s4996 + $0x14c] sm:$0x1]
      %v6293 = vld [vmem:[%s4996 + $0x150] sm:$0xe]
      %v6294 = vld [vmem:[%s4996 + $0x154] sm:$0xf]
      %v6295 = vld [vmem:[%s4996 + $0x158] sm:$0x1]
      %v6296 = vld [vmem:[%s4996 + $0x15c] sm:$0xe]
      %v6297 = vld [vmem:[%s4996 + $0x160] sm:$0xf]
      %v6298 = vld [vmem:[%s4996 + $0x164] sm:$0x1]
      %v6299 = vld [vmem:[%s4996 + $0x168] sm:$0xe]
      %v6300 = vld [vmem:[%s4996 + $0x16c] sm:$0xf]
      %v6301 = vld [vmem:[%s4996 + $0x170] sm:$0x1]
      %v6302 = vld [vmem:[%s4996 + $0x174] sm:$0xe]
      %v6303 = vld [vmem:[%s4996 + $0x178] sm:$0xf]
      %v6304 = vld [vmem:[%s4996 + $0x17c] sm:$0x1]
      %v6305 = vld [vmem:[%s4996 + $0x180] sm:$0xe]
      %v6306 = vld [vmem:[%s4996 + $0x184] sm:$0xf]
      %v6307 = vld [vmem:[%s4996 + $0x188] sm:$0x1]
      %v6308 = vld [vmem:[%s4996 + $0x18c] sm:$0xe]
      %v6309 = vld [vmem:[%s4996 + $0x190] sm:$0xf]
      %v6310 = vld [vmem:[%s4996 + $0x194] sm:$0x1]
      %v6407 = vunpack.c.l.b16 %v6215
      %v6408 = vunpack.c.l.b16 %v6216
      %v6409 = vunpack.c.l.b16 %v6217
      %v6410 = vunpack.c.l.b16 %v6218
      %v6411 = vunpack.c.l.b16 %v6219
      %v6412 = vunpack.c.l.b16 %v6220
      %v6413 = vunpack.c.l.b16 %v6221
      %v6414 = vunpack.c.l.b16 %v6222
      %v6415 = vunpack.c.l.b16 %v6223
      %v6416 = vunpack.c.l.b16 %v6224
      %v6417 = vunpack.c.l.b16 %v6225
      %v6418 = vunpack.c.l.b16 %v6226
      %v6419 = vunpack.c.l.b16 %v6227
      %v6420 = vunpack.c.l.b16 %v6228
      %v6421 = vunpack.c.l.b16 %v6229
      %v6422 = vunpack.c.l.b16 %v6230
      %v6423 = vunpack.c.l.b16 %v6231
      %v6424 = vunpack.c.l.b16 %v6232
      %v6425 = vunpack.c.l.b16 %v6233
      %v6426 = vunpack.c.l.b16 %v6234
      %v6427 = vunpack.c.l.b16 %v6235
      %v6428 = vunpack.c.l.b16 %v6236
      %v6429 = vunpack.c.l.b16 %v6237
      %v6430 = vunpack.c.l.b16 %v6238
      %v6431 = vunpack.c.l.b16 %v6239
      %v6432 = vunpack.c.l.b16 %v6240
      %v6433 = vunpack.c.l.b16 %v6241
      %v6434 = vunpack.c.l.b16 %v6242
      %v6435 = vunpack.c.l.b16 %v6243
      %v6436 = vunpack.c.l.b16 %v6244
      %v6437 = vunpack.c.l.b16 %v6245
      %v6438 = vunpack.c.l.b16 %v6246
      %v6439 = vunpack.c.l.b16 %v6247
      %v6440 = vunpack.c.l.b16 %v6248
      %v6441 = vunpack.c.l.b16 %v6249
      %v6442 = vunpack.c.l.b16 %v6250
      %v6443 = vunpack.c.l.b16 %v6251
      %v6444 = vunpack.c.l.b16 %v6252
      %v6445 = vunpack.c.l.b16 %v6253
      %v6446 = vunpack.c.l.b16 %v6254
      %v6447 = vunpack.c.l.b16 %v6255
      %v6448 = vunpack.c.l.b16 %v6256
      %v6449 = vunpack.c.l.b16 %v6257
      %v6450 = vunpack.c.l.b16 %v6258
      %v6451 = vunpack.c.l.b16 %v6259
      %v6452 = vunpack.c.l.b16 %v6260
      %v6453 = vunpack.c.l.b16 %v6261
      %v6454 = vunpack.c.l.b16 %v6262
      %v6455 = vunpack.c.l.b16 %v6263
      %v6456 = vunpack.c.l.b16 %v6264
      %v6457 = vunpack.c.l.b16 %v6265
      %v6458 = vunpack.c.l.b16 %v6266
      %v6459 = vunpack.c.l.b16 %v6267
      %v6460 = vunpack.c.l.b16 %v6268
      %v6461 = vunpack.c.l.b16 %v6269
      %v6462 = vunpack.c.l.b16 %v6270
      %v6463 = vunpack.c.l.b16 %v6271
      %v6464 = vunpack.c.l.b16 %v6272
      %v6465 = vunpack.c.l.b16 %v6273
      %v6466 = vunpack.c.l.b16 %v6274
      %v6467 = vunpack.c.l.b16 %v6275
      %v6468 = vunpack.c.l.b16 %v6276
      %v6469 = vunpack.c.l.b16 %v6277
      %v6470 = vunpack.c.l.b16 %v6278
      %v6471 = vunpack.c.l.b16 %v6279
      %v6472 = vunpack.c.l.b16 %v6280
      %v6473 = vunpack.c.l.b16 %v6281
      %v6474 = vunpack.c.l.b16 %v6282
      %v6475 = vunpack.c.l.b16 %v6283
      %v6476 = vunpack.c.l.b16 %v6284
      %v6477 = vunpack.c.l.b16 %v6285
      %v6478 = vunpack.c.l.b16 %v6286
      %v6479 = vunpack.c.l.b16 %v6287
      %v6480 = vunpack.c.l.b16 %v6288
      %v6481 = vunpack.c.l.b16 %v6289
      %v6482 = vunpack.c.l.b16 %v6290
      %v6483 = vunpack.c.l.b16 %v6291
      %v6484 = vunpack.c.l.b16 %v6292
      %v6485 = vunpack.c.l.b16 %v6293
      %v6486 = vunpack.c.l.b16 %v6294
      %v6487 = vunpack.c.l.b16 %v6295
      %v6488 = vunpack.c.l.b16 %v6296
      %v6489 = vunpack.c.l.b16 %v6297
      %v6490 = vunpack.c.l.b16 %v6298
      %v6491 = vunpack.c.l.b16 %v6299
      %v6492 = vunpack.c.l.b16 %v6300
      %v6493 = vunpack.c.l.b16 %v6301
      %v6494 = vunpack.c.l.b16 %v6302
      %v6495 = vunpack.c.l.b16 %v6303
      %v6496 = vunpack.c.l.b16 %v6304
      %v6497 = vunpack.c.l.b16 %v6305
      %v6498 = vunpack.c.l.b16 %v6306
      %v6499 = vunpack.c.l.b16 %v6307
      %v6500 = vunpack.c.l.b16 %v6308
      %v6501 = vunpack.c.l.b16 %v6309
      %v6502 = vunpack.c.l.b16 %v6310
      %v6503 = vpack.c.b16 %v6408, %v6407
      %v6504 = vpack.c.b16 %v6409, %v6409
      %v6505 = vpack.c.b16 %v6411, %v6410
      %v6506 = vpack.c.b16 %v6412, %v6412
      %v6507 = vpack.c.b16 %v6414, %v6413
      %v6508 = vpack.c.b16 %v6415, %v6415
      %v6509 = vpack.c.b16 %v6417, %v6416
      %v6510 = vpack.c.b16 %v6418, %v6418
      %v6511 = vpack.c.b16 %v6420, %v6419
      %v6512 = vpack.c.b16 %v6421, %v6421
      %v6513 = vpack.c.b16 %v6423, %v6422
      %v6514 = vpack.c.b16 %v6424, %v6424
      %v6515 = vpack.c.b16 %v6426, %v6425
      %v6516 = vpack.c.b16 %v6427, %v6427
      %v6517 = vpack.c.b16 %v6429, %v6428
      %v6518 = vpack.c.b16 %v6430, %v6430
      %v6519 = vpack.c.b16 %v6432, %v6431
      %v6520 = vpack.c.b16 %v6433, %v6433
      %v6521 = vpack.c.b16 %v6435, %v6434
      %v6522 = vpack.c.b16 %v6436, %v6436
      %v6523 = vpack.c.b16 %v6438, %v6437
      %v6524 = vpack.c.b16 %v6439, %v6439
      %v6525 = vpack.c.b16 %v6441, %v6440
      %v6526 = vpack.c.b16 %v6442, %v6442
      %v6527 = vpack.c.b16 %v6444, %v6443
      %v6528 = vpack.c.b16 %v6445, %v6445
      %v6529 = vpack.c.b16 %v6447, %v6446
      %v6530 = vpack.c.b16 %v6448, %v6448
      %v6531 = vpack.c.b16 %v6450, %v6449
      %v6532 = vpack.c.b16 %v6451, %v6451
      %v6533 = vpack.c.b16 %v6453, %v6452
      %v6534 = vpack.c.b16 %v6454, %v6454
      %v6535 = vpack.c.b16 %v6456, %v6455
      %v6536 = vpack.c.b16 %v6457, %v6457
      %v6537 = vpack.c.b16 %v6459, %v6458
      %v6538 = vpack.c.b16 %v6460, %v6460
      %v6539 = vpack.c.b16 %v6462, %v6461
      %v6540 = vpack.c.b16 %v6463, %v6463
      %v6541 = vpack.c.b16 %v6465, %v6464
      %v6542 = vpack.c.b16 %v6466, %v6466
      %v6543 = vpack.c.b16 %v6468, %v6467
      %v6544 = vpack.c.b16 %v6469, %v6469
      %v6545 = vpack.c.b16 %v6471, %v6470
      %v6546 = vpack.c.b16 %v6472, %v6472
      %v6547 = vpack.c.b16 %v6474, %v6473
      %v6548 = vpack.c.b16 %v6475, %v6475
      %v6549 = vpack.c.b16 %v6477, %v6476
      %v6550 = vpack.c.b16 %v6478, %v6478
      %v6551 = vpack.c.b16 %v6480, %v6479
      %v6552 = vpack.c.b16 %v6481, %v6481
      %v6553 = vpack.c.b16 %v6483, %v6482
      %v6554 = vpack.c.b16 %v6484, %v6484
      %v6555 = vpack.c.b16 %v6486, %v6485
      %v6556 = vpack.c.b16 %v6487, %v6487
      %v6557 = vpack.c.b16 %v6489, %v6488
      %v6558 = vpack.c.b16 %v6490, %v6490
      %v6559 = vpack.c.b16 %v6492, %v6491
      %v6560 = vpack.c.b16 %v6493, %v6493
      %v6561 = vpack.c.b16 %v6495, %v6494
      %v6562 = vpack.c.b16 %v6496, %v6496
      %v6563 = vpack.c.b16 %v6498, %v6497
      %v6564 = vpack.c.b16 %v6499, %v6499
      %v6565 = vpack.c.b16 %v6501, %v6500
      %v6566 = vpack.c.b16 %v6502, %v6502
      %v6567 = vrot.slane %v6503, 1
      %v6568 = vrot.slane %v6504, 1
      %v6569 = vsel %vm2975, %v6567, %v6568
      %v6570 = vrot.slane %v6505, 1
      %v6571 = vrot.slane %v6506, 1
      %v6572 = vsel %vm2975, %v6570, %v6571
      %v6573 = vrot.slane %v6507, 1
      %v6574 = vrot.slane %v6508, 1
      %v6575 = vsel %vm2975, %v6573, %v6574
      %v6576 = vrot.slane %v6509, 1
      %v6577 = vrot.slane %v6510, 1
      %v6578 = vsel %vm2975, %v6576, %v6577
      %v6579 = vrot.slane %v6511, 1
      %v6580 = vrot.slane %v6512, 1
      %v6581 = vsel %vm2975, %v6579, %v6580
      %v6582 = vrot.slane %v6513, 1
      %v6583 = vrot.slane %v6514, 1
      %v6584 = vsel %vm2975, %v6582, %v6583
      %v6585 = vrot.slane %v6515, 1
      %v6586 = vrot.slane %v6516, 1
      %v6587 = vsel %vm2975, %v6585, %v6586
      %v6588 = vrot.slane %v6517, 1
      %v6589 = vrot.slane %v6518, 1
      %v6590 = vsel %vm2975, %v6588, %v6589
      %v6591 = vrot.slane %v6519, 1
      %v6592 = vrot.slane %v6520, 1
      %v6593 = vsel %vm2975, %v6591, %v6592
      %v6594 = vrot.slane %v6521, 1
      %v6595 = vrot.slane %v6522, 1
      %v6596 = vsel %vm2975, %v6594, %v6595
      %v6597 = vrot.slane %v6523, 1
      %v6598 = vrot.slane %v6524, 1
      %v6599 = vsel %vm2975, %v6597, %v6598
      %v6600 = vrot.slane %v6525, 1
      %v6601 = vrot.slane %v6526, 1
      %v6602 = vsel %vm2975, %v6600, %v6601
      %v6603 = vrot.slane %v6527, 1
      %v6604 = vrot.slane %v6528, 1
      %v6605 = vsel %vm2975, %v6603, %v6604
      %v6606 = vrot.slane %v6529, 1
      %v6607 = vrot.slane %v6530, 1
      %v6608 = vsel %vm2975, %v6606, %v6607
      %v6609 = vrot.slane %v6531, 1
      %v6610 = vrot.slane %v6532, 1
      %v6611 = vsel %vm2975, %v6609, %v6610
      %v6612 = vrot.slane %v6533, 1
      %v6613 = vrot.slane %v6534, 1
      %v6614 = vsel %vm2975, %v6612, %v6613
      %v6615 = vrot.slane %v6535, 1
      %v6616 = vrot.slane %v6536, 1
      %v6617 = vsel %vm2975, %v6615, %v6616
      %v6618 = vrot.slane %v6537, 1
      %v6619 = vrot.slane %v6538, 1
      %v6620 = vsel %vm2975, %v6618, %v6619
      %v6621 = vrot.slane %v6539, 1
      %v6622 = vrot.slane %v6540, 1
      %v6623 = vsel %vm2975, %v6621, %v6622
      %v6624 = vrot.slane %v6541, 1
      %v6625 = vrot.slane %v6542, 1
      %v6626 = vsel %vm2975, %v6624, %v6625
      %v6627 = vrot.slane %v6543, 1
      %v6628 = vrot.slane %v6544, 1
      %v6629 = vsel %vm2975, %v6627, %v6628
      %v6630 = vrot.slane %v6545, 1
      %v6631 = vrot.slane %v6546, 1
      %v6632 = vsel %vm2975, %v6630, %v6631
      %v6633 = vrot.slane %v6547, 1
      %v6634 = vrot.slane %v6548, 1
      %v6635 = vsel %vm2975, %v6633, %v6634
      %v6636 = vrot.slane %v6549, 1
      %v6637 = vrot.slane %v6550, 1
      %v6638 = vsel %vm2975, %v6636, %v6637
      %v6639 = vrot.slane %v6551, 1
      %v6640 = vrot.slane %v6552, 1
      %v6641 = vsel %vm2975, %v6639, %v6640
      %v6642 = vrot.slane %v6553, 1
      %v6643 = vrot.slane %v6554, 1
      %v6644 = vsel %vm2975, %v6642, %v6643
      %v6645 = vrot.slane %v6555, 1
      %v6646 = vrot.slane %v6556, 1
      %v6647 = vsel %vm2975, %v6645, %v6646
      %v6648 = vrot.slane %v6557, 1
      %v6649 = vrot.slane %v6558, 1
      %v6650 = vsel %vm2975, %v6648, %v6649
      %v6651 = vrot.slane %v6559, 1
      %v6652 = vrot.slane %v6560, 1
      %v6653 = vsel %vm2975, %v6651, %v6652
      %v6654 = vrot.slane %v6561, 1
      %v6655 = vrot.slane %v6562, 1
      %v6656 = vsel %vm2975, %v6654, %v6655
      %v6657 = vrot.slane %v6563, 1
      %v6658 = vrot.slane %v6564, 1
      %v6659 = vsel %vm2975, %v6657, %v6658
      %v6660 = vrot.slane %v6565, 1
      %v6661 = vrot.slane %v6566, 1
      %v6662 = vsel %vm2975, %v6660, %v6661
      %6663 = vrot.lane.b32.xlu0 %v6569, 32
      %v6664 = vpop.permute.xlu0 %6663
      %6665 = vrot.lane.b32.xlu0 %v6572, 32
      %v6666 = vpop.permute.xlu0 %6665
      %6667 = vrot.lane.b32.xlu0 %v6575, 32
      %v6668 = vpop.permute.xlu0 %6667
      %6669 = vrot.lane.b32.xlu0 %v6578, 32
      %v6670 = vpop.permute.xlu0 %6669
      %6671 = vrot.lane.b32.xlu0 %v6581, 32
      %v6672 = vpop.permute.xlu0 %6671
      %6673 = vrot.lane.b32.xlu0 %v6584, 32
      %v6674 = vpop.permute.xlu0 %6673
      %6675 = vrot.lane.b32.xlu0 %v6587, 32
      %v6676 = vpop.permute.xlu0 %6675
      %6677 = vrot.lane.b32.xlu0 %v6590, 32
      %v6678 = vpop.permute.xlu0 %6677
      %6679 = vrot.lane.b32.xlu0 %v6593, 32
      %v6680 = vpop.permute.xlu0 %6679
      %6681 = vrot.lane.b32.xlu0 %v6596, 32
      %v6682 = vpop.permute.xlu0 %6681
      %6683 = vrot.lane.b32.xlu0 %v6599, 32
      %v6684 = vpop.permute.xlu0 %6683
      %6685 = vrot.lane.b32.xlu0 %v6602, 32
      %v6686 = vpop.permute.xlu0 %6685
      %6687 = vrot.lane.b32.xlu0 %v6605, 32
      %v6688 = vpop.permute.xlu0 %6687
      %6689 = vrot.lane.b32.xlu0 %v6608, 32
      %v6690 = vpop.permute.xlu0 %6689
      %6691 = vrot.lane.b32.xlu0 %v6611, 32
      %v6692 = vpop.permute.xlu0 %6691
      %6693 = vrot.lane.b32.xlu0 %v6614, 32
      %v6694 = vpop.permute.xlu0 %6693
      %6695 = vrot.lane.b32.xlu0 %v6617, 32
      %v6696 = vpop.permute.xlu0 %6695
      %6697 = vrot.lane.b32.xlu0 %v6620, 32
      %v6698 = vpop.permute.xlu0 %6697
      %6699 = vrot.lane.b32.xlu0 %v6623, 32
      %v6700 = vpop.permute.xlu0 %6699
      %6701 = vrot.lane.b32.xlu0 %v6626, 32
      %v6702 = vpop.permute.xlu0 %6701
      %6703 = vrot.lane.b32.xlu0 %v6629, 32
      %v6704 = vpop.permute.xlu0 %6703
      %6705 = vrot.lane.b32.xlu0 %v6632, 32
      %v6706 = vpop.permute.xlu0 %6705
      %6707 = vrot.lane.b32.xlu0 %v6635, 32
      %v6708 = vpop.permute.xlu0 %6707
      %6709 = vrot.lane.b32.xlu0 %v6638, 32
      %v6710 = vpop.permute.xlu0 %6709
      %6711 = vrot.lane.b32.xlu0 %v6641, 32
      %v6712 = vpop.permute.xlu0 %6711
      %6713 = vrot.lane.b32.xlu0 %v6644, 32
      %v6714 = vpop.permute.xlu0 %6713
      %6715 = vrot.lane.b32.xlu0 %v6647, 32
      %v6716 = vpop.permute.xlu0 %6715
      %6717 = vrot.lane.b32.xlu0 %v6650, 32
      %v6718 = vpop.permute.xlu0 %6717
      %6719 = vrot.lane.b32.xlu0 %v6653, 32
      %v6720 = vpop.permute.xlu0 %6719
      %6721 = vrot.lane.b32.xlu0 %v6656, 32
      %v6722 = vpop.permute.xlu0 %6721
      %6723 = vrot.lane.b32.xlu0 %v6659, 32
      %v6724 = vpop.permute.xlu0 %6723
      %6725 = vrot.lane.b32.xlu0 %v6662, 32
      %v6726 = vpop.permute.xlu0 %6725
      %vm6759 = vcmask 294144
      %6760 = vst.msk [vmem:[#allocation3] sm:$0xff] %vm6759, %v6664
      %6761 = vst.msk [vmem:[#allocation3 + $0x8] sm:$0xff] %vm6759, %v6666
      %6762 = vst.msk [vmem:[#allocation3 + $0x10] sm:$0xff] %vm6759, %v6668
      %6763 = vst.msk [vmem:[#allocation3 + $0x18] sm:$0xff] %vm6759, %v6670
      %6764 = vst.msk [vmem:[#allocation3 + $0x20] sm:$0xff] %vm6759, %v6672
      %6765 = vst.msk [vmem:[#allocation3 + $0x28] sm:$0xff] %vm6759, %v6674
      %6766 = vst.msk [vmem:[#allocation3 + $0x30] sm:$0xff] %vm6759, %v6676
      %6767 = vst.msk [vmem:[#allocation3 + $0x38] sm:$0xff] %vm6759, %v6678
      %6768 = vst.msk [vmem:[#allocation3 + $0x40] sm:$0xff] %vm6759, %v6680
      %6769 = vst.msk [vmem:[#allocation3 + $0x48] sm:$0xff] %vm6759, %v6682
      %6770 = vst.msk [vmem:[#allocation3 + $0x50] sm:$0xff] %vm6759, %v6684
      %6771 = vst.msk [vmem:[#allocation3 + $0x58] sm:$0xff] %vm6759, %v6686
      %6772 = vst.msk [vmem:[#allocation3 + $0x60] sm:$0xff] %vm6759, %v6688
      %6773 = vst.msk [vmem:[#allocation3 + $0x68] sm:$0xff] %vm6759, %v6690
      %6774 = vst.msk [vmem:[#allocation3 + $0x70] sm:$0xff] %vm6759, %v6692
      %6775 = vst.msk [vmem:[#allocation3 + $0x78] sm:$0xff] %vm6759, %v6694
      %6776 = vst.msk [vmem:[#allocation3 + $0x80] sm:$0xff] %vm6759, %v6696
      %6777 = vst.msk [vmem:[#allocation3 + $0x88] sm:$0xff] %vm6759, %v6698
      %6778 = vst.msk [vmem:[#allocation3 + $0x90] sm:$0xff] %vm6759, %v6700
      %6779 = vst.msk [vmem:[#allocation3 + $0x98] sm:$0xff] %vm6759, %v6702
      %6780 = vst.msk [vmem:[#allocation3 + $0xa0] sm:$0xff] %vm6759, %v6704
      %6781 = vst.msk [vmem:[#allocation3 + $0xa8] sm:$0xff] %vm6759, %v6706
      %6782 = vst.msk [vmem:[#allocation3 + $0xb0] sm:$0xff] %vm6759, %v6708
      %6783 = vst.msk [vmem:[#allocation3 + $0xb8] sm:$0xff] %vm6759, %v6710
      %6784 = vst.msk [vmem:[#allocation3 + $0xc0] sm:$0xff] %vm6759, %v6712
      %6785 = vst.msk [vmem:[#allocation3 + $0xc8] sm:$0xff] %vm6759, %v6714
      %6786 = vst.msk [vmem:[#allocation3 + $0xd0] sm:$0xff] %vm6759, %v6716
      %6787 = vst.msk [vmem:[#allocation3 + $0xd8] sm:$0xff] %vm6759, %v6718
      %6788 = vst.msk [vmem:[#allocation3 + $0xe0] sm:$0xff] %vm6759, %v6720
      %6789 = vst.msk [vmem:[#allocation3 + $0xe8] sm:$0xff] %vm6759, %v6722
      %6790 = vst.msk [vmem:[#allocation3 + $0xf0] sm:$0xff] %vm6759, %v6724
      %6791 = vst.msk [vmem:[#allocation3 + $0xf8] sm:$0xff] %vm6759, %v6726
      %v6792 = vld [vmem:[#allocation3] sm:$0xff]
      %v6793 = vld [vmem:[#allocation3 + $0x8] sm:$0xff]
      %v6794 = vld [vmem:[#allocation3 + $0x10] sm:$0xff]
      %v6795 = vld [vmem:[#allocation3 + $0x18] sm:$0xff]
      %v6796 = vld [vmem:[#allocation3 + $0x20] sm:$0xff]
      %v6797 = vld [vmem:[#allocation3 + $0x28] sm:$0xff]
      %v6798 = vld [vmem:[#allocation3 + $0x30] sm:$0xff]
      %v6799 = vld [vmem:[#allocation3 + $0x38] sm:$0xff]
      %v6800 = vld [vmem:[#allocation3 + $0x40] sm:$0xff]
      %v6801 = vld [vmem:[#allocation3 + $0x48] sm:$0xff]
      %v6802 = vld [vmem:[#allocation3 + $0x50] sm:$0xff]
      %v6803 = vld [vmem:[#allocation3 + $0x58] sm:$0xff]
      %v6804 = vld [vmem:[#allocation3 + $0x60] sm:$0xff]
      %v6805 = vld [vmem:[#allocation3 + $0x68] sm:$0xff]
      %v6806 = vld [vmem:[#allocation3 + $0x70] sm:$0xff]
      %v6807 = vld [vmem:[#allocation3 + $0x78] sm:$0xff]
      %v6808 = vld [vmem:[#allocation3 + $0x80] sm:$0xff]
      %v6809 = vld [vmem:[#allocation3 + $0x88] sm:$0xff]
      %v6810 = vld [vmem:[#allocation3 + $0x90] sm:$0xff]
      %v6811 = vld [vmem:[#allocation3 + $0x98] sm:$0xff]
      %v6812 = vld [vmem:[#allocation3 + $0xa0] sm:$0xff]
      %v6813 = vld [vmem:[#allocation3 + $0xa8] sm:$0xff]
      %v6814 = vld [vmem:[#allocation3 + $0xb0] sm:$0xff]
      %v6815 = vld [vmem:[#allocation3 + $0xb8] sm:$0xff]
      %v6816 = vld [vmem:[#allocation3 + $0xc0] sm:$0xff]
      %v6817 = vld [vmem:[#allocation3 + $0xc8] sm:$0xff]
      %v6818 = vld [vmem:[#allocation3 + $0xd0] sm:$0xff]
      %v6819 = vld [vmem:[#allocation3 + $0xd8] sm:$0xff]
      %v6820 = vld [vmem:[#allocation3 + $0xe0] sm:$0xff]
      %v6821 = vld [vmem:[#allocation3 + $0xe8] sm:$0xff]
      %v6822 = vld [vmem:[#allocation3 + $0xf0] sm:$0xff]
      %v6823 = vld [vmem:[#allocation3 + $0xf8] sm:$0xff]
      %v6824 = vld [vmem:[%s1] sm:$0xf]
      %v6825 = vld [vmem:[%s1 + $0x4] sm:$0xf]
      %v6826 = vld [vmem:[%s1 + $0x8] sm:$0xf]
      %v6827 = vld [vmem:[%s1 + $0xc] sm:$0xf]
      %v6828 = vld [vmem:[%s1 + $0x10] sm:$0x3]
      %v6829 = vld [vmem:[%s2] sm:$0x1]
      %v6831 = vlaneseq
      %v6832 = vshrl.u32 %v6831, 7
      %v6833 = vsub.s32 0, %v6832
      %v6834 = vrot.slane %v6829, %v6833
      %v6841 = vunpack.c.l.b16 %v6824
      %v6842 = vunpack.c.l.b16 %v6825
      %v6843 = vunpack.c.l.b16 %v6826
      %v6844 = vunpack.c.l.b16 %v6827
      %v6845 = vunpack.c.l.b16 %v6828
      %v6846 = vpack.c.b16 %v6842, %v6841
      %v6847 = vpack.c.b16 %v6844, %v6843
      %v6848 = vpack.c.b16 %v6845, %v6845
      %vm6851 = vcmask 293888
      %v6853 = vsel %vm6851, %v6792, 0
      %v6856 = vsel %vm6851, %v6793, 0
      %v6859 = vsel %vm6851, %v6794, 0
      %v6862 = vsel %vm6851, %v6795, 0
      %v6865 = vsel %vm6851, %v6796, 0
      %v6868 = vsel %vm6851, %v6797, 0
      %v6871 = vsel %vm6851, %v6798, 0
      %v6874 = vsel %vm6851, %v6799, 0
      %v6877 = vsel %vm6851, %v6800, 0
      %v6880 = vsel %vm6851, %v6801, 0
      %v6883 = vsel %vm6851, %v6802, 0
      %v6886 = vsel %vm6851, %v6803, 0
      %v6889 = vsel %vm6851, %v6804, 0
      %v6892 = vsel %vm6851, %v6805, 0
      %v6895 = vsel %vm6851, %v6806, 0
      %v6898 = vsel %vm6851, %v6807, 0
      %v6901 = vsel %vm6851, %v6808, 0
      %v6904 = vsel %vm6851, %v6809, 0
      %v6907 = vsel %vm6851, %v6810, 0
      %v6910 = vsel %vm6851, %v6811, 0
      %v6913 = vsel %vm6851, %v6812, 0
      %v6916 = vsel %vm6851, %v6813, 0
      %v6919 = vsel %vm6851, %v6814, 0
      %v6922 = vsel %vm6851, %v6815, 0
      %v6925 = vsel %vm6851, %v6816, 0
      %v6928 = vsel %vm6851, %v6817, 0
      %v6931 = vsel %vm6851, %v6818, 0
      %v6934 = vsel %vm6851, %v6819, 0
      %v6937 = vsel %vm6851, %v6820, 0
      %v6940 = vsel %vm6851, %v6821, 0
      %v6943 = vsel %vm6851, %v6822, 0
      %v6946 = vsel %vm6851, %v6823, 0
      %vm6948 = vcmask 1041408
      %v6950 = vsel %vm6948, %v6848, 0
      %6952 = vmatprep.subr.bf16.mxu0 0
      %6953 = vmatpush1.bf16.msra.mxu0 %v6846
      %6954 = vmatprep.subr.bf16.mxu0 0
      %6955 = vmatpush1.bf16.msra.mxu0 %v6847
      %6956 = vmatprep.subr.bf16.mxu0 0
      %6957 = vmatpush1.bf16.msra.mxu0 %v6950
      %6958 = vmatprep.subr.bf16.mxu0 0
      %6959 = vmatpush1.bf16.msra.mxu0 0
      %6960 = vmatprep.subr.bf16.mxu0 0
      %6961 = vmatpush1.bf16.msra.mxu0 0
      %6962 = vmatprep.subr.bf16.mxu0 0
      %6963 = vmatpush1.bf16.msra.mxu0 0
      %6964 = vmatprep.subr.bf16.mxu0 0
      %6965 = vmatpush1.bf16.msra.mxu0 0
      %6966 = vmatprep.subr.bf16.mxu0 0
      %6967 = vmatpush1.bf16.msra.mxu0 0
      %6968 = vmatprep.subr.bf16.mxu0 0
      %6969 = vmatpush1.bf16.msra.mxu0 0
      %6970 = vmatprep.subr.bf16.mxu0 0
      %6971 = vmatpush1.bf16.msra.mxu0 0
      %6972 = vmatprep.subr.bf16.mxu0 0
      %6973 = vmatpush1.bf16.msra.mxu0 0
      %6974 = vmatprep.subr.bf16.mxu0 0
      %6975 = vmatpush1.bf16.msra.mxu0 0
      %6976 = vmatprep.subr.bf16.mxu0 0
      %6977 = vmatpush1.bf16.msra.mxu0 0
      %6978 = vmatprep.subr.bf16.mxu0 0
      %6979 = vmatpush1.bf16.msra.mxu0 0
      %6980 = vmatprep.subr.bf16.mxu0 0
      %6981 = vmatpush1.bf16.msra.mxu0 0
      %6982 = vmatprep.subr.bf16.mxu0 0
      %6983 = vmatpush1.bf16.msra.mxu0 0
      %6984 = vmatprep.mubr.bf16.mxu0 0
      %6985 = vmatmul.mubr.bf16.gmra.mrb[0].mxu0 %v6853
      %v6986 = vpop.f32.mrb[0].mxu0
      %v6987 = vadd.f32 %v6834, %v6986
      %v6988 = vpop.f32.mrb[0].mxu0
      %v6989 = vpop.f32.mrb[0].mxu0
      %v6990 = vadd.f32 %v6834, %v6989
      %v6991 = vpop.f32.mrb[0].mxu0
      %6992 = vmatprep.mubr.bf16.mxu0 0
      %6993 = vmatmul.mubr.bf16.gmra.mrb[0].mxu0 %v6856
      %v6994 = vpop.f32.mrb[0].mxu0
      %v6995 = vadd.f32 %v6834, %v6994
      %v6996 = vpop.f32.mrb[0].mxu0
      %v6997 = vpop.f32.mrb[0].mxu0
      %v6998 = vadd.f32 %v6834, %v6997
      %v6999 = vpop.f32.mrb[0].mxu0
      %7000 = vmatprep.mubr.bf16.mxu0 0
      %7001 = vmatmul.mubr.bf16.gmra.mrb[0].mxu0 %v6859
      %v7002 = vpop.f32.mrb[0].mxu0
      %v7003 = vadd.f32 %v6834, %v7002
      %v7004 = vpop.f32.mrb[0].mxu0
      %v7005 = vpop.f32.mrb[0].mxu0
      %v7006 = vadd.f32 %v6834, %v7005
      %v7007 = vpop.f32.mrb[0].mxu0
      %7008 = vmatprep.mubr.bf16.mxu0 0
      %7009 = vmatmul.mubr.bf16.gmra.mrb[0].mxu0 %v6862
      %v7010 = vpop.f32.mrb[0].mxu0
      %v7011 = vadd.f32 %v6834, %v7010
      %v7012 = vpop.f32.mrb[0].mxu0
      %v7013 = vpop.f32.mrb[0].mxu0
      %v7014 = vadd.f32 %v6834, %v7013
      %v7015 = vpop.f32.mrb[0].mxu0
      %7016 = vmatprep.mubr.bf16.mxu0 0
      %7017 = vmatmul.mubr.bf16.gmra.mrb[0].mxu0 %v6865
      %v7018 = vpop.f32.mrb[0].mxu0
      %v7019 = vadd.f32 %v6834, %v7018
      %v7020 = vpop.f32.mrb[0].mxu0
      %v7021 = vpop.f32.mrb[0].mxu0
      %v7022 = vadd.f32 %v6834, %v7021
      %v7023 = vpop.f32.mrb[0].mxu0
      %7024 = vmatprep.mubr.bf16.mxu0 0
      %7025 = vmatmul.mubr.bf16.gmra.mrb[0].mxu0 %v6868
      %v7026 = vpop.f32.mrb[0].mxu0
      %v7027 = vadd.f32 %v6834, %v7026
      %v7028 = vpop.f32.mrb[0].mxu0
      %v7029 = vpop.f32.mrb[0].mxu0
      %v7030 = vadd.f32 %v6834, %v7029
      %v7031 = vpop.f32.mrb[0].mxu0
      %7032 = vmatprep.mubr.bf16.mxu0 0
      %7033 = vmatmul.mubr.bf16.gmra.mrb[0].mxu0 %v6871
      %v7034 = vpop.f32.mrb[0].mxu0
      %v7035 = vadd.f32 %v6834, %v7034
      %v7036 = vpop.f32.mrb[0].mxu0
      %v7037 = vpop.f32.mrb[0].mxu0
      %v7038 = vadd.f32 %v6834, %v7037
      %v7039 = vpop.f32.mrb[0].mxu0
      %7040 = vmatprep.mubr.bf16.mxu0 0
      %7041 = vmatmul.mubr.bf16.gmra.mrb[0].mxu0 %v6874
      %v7042 = vpop.f32.mrb[0].mxu0
      %v7043 = vadd.f32 %v6834, %v7042
      %v7044 = vpop.f32.mrb[0].mxu0
      %v7045 = vpop.f32.mrb[0].mxu0
      %v7046 = vadd.f32 %v6834, %v7045
      %v7047 = vpop.f32.mrb[0].mxu0
      %7048 = vmatprep.mubr.bf16.mxu0 0
      %7049 = vmatmul.mubr.bf16.gmra.mrb[0].mxu0 %v6877
      %v7050 = vpop.f32.mrb[0].mxu0
      %v7051 = vadd.f32 %v6834, %v7050
      %v7052 = vpop.f32.mrb[0].mxu0
      %v7053 = vpop.f32.mrb[0].mxu0
      %v7054 = vadd.f32 %v6834, %v7053
      %v7055 = vpop.f32.mrb[0].mxu0
      %7056 = vmatprep.mubr.bf16.mxu0 0
      %7057 = vmatmul.mubr.bf16.gmra.mrb[0].mxu0 %v6880
      %v7058 = vpop.f32.mrb[0].mxu0
      %v7059 = vadd.f32 %v6834, %v7058
      %v7060 = vpop.f32.mrb[0].mxu0
      %v7061 = vpop.f32.mrb[0].mxu0
      %v7062 = vadd.f32 %v6834, %v7061
      %v7063 = vpop.f32.mrb[0].mxu0
      %7064 = vmatprep.mubr.bf16.mxu0 0
      %7065 = vmatmul.mubr.bf16.gmra.mrb[0].mxu0 %v6883
      %v7066 = vpop.f32.mrb[0].mxu0
      %v7067 = vadd.f32 %v6834, %v7066
      %v7068 = vpop.f32.mrb[0].mxu0
      %v7069 = vpop.f32.mrb[0].mxu0
      %v7070 = vadd.f32 %v6834, %v7069
      %v7071 = vpop.f32.mrb[0].mxu0
      %7072 = vmatprep.mubr.bf16.mxu0 0
      %7073 = vmatmul.mubr.bf16.gmra.mrb[0].mxu0 %v6886
      %v7074 = vpop.f32.mrb[0].mxu0
      %v7075 = vadd.f32 %v6834, %v7074
      %v7076 = vpop.f32.mrb[0].mxu0
      %v7077 = vpop.f32.mrb[0].mxu0
      %v7078 = vadd.f32 %v6834, %v7077
      %v7079 = vpop.f32.mrb[0].mxu0
      %7080 = vmatprep.mubr.bf16.mxu0 0
      %7081 = vmatmul.mubr.bf16.gmra.mrb[0].mxu0 %v6889
      %v7082 = vpop.f32.mrb[0].mxu0
      %v7083 = vadd.f32 %v6834, %v7082
      %v7084 = vpop.f32.mrb[0].mxu0
      %v7085 = vpop.f32.mrb[0].mxu0
      %v7086 = vadd.f32 %v6834, %v7085
      %v7087 = vpop.f32.mrb[0].mxu0
      %7088 = vmatprep.mubr.bf16.mxu0 0
      %7089 = vmatmul.mubr.bf16.gmra.mrb[0].mxu0 %v6892
      %v7090 = vpop.f32.mrb[0].mxu0
      %v7091 = vadd.f32 %v6834, %v7090
      %v7092 = vpop.f32.mrb[0].mxu0
      %v7093 = vpop.f32.mrb[0].mxu0
      %v7094 = vadd.f32 %v6834, %v7093
      %v7095 = vpop.f32.mrb[0].mxu0
      %7096 = vmatprep.mubr.bf16.mxu0 0
      %7097 = vmatmul.mubr.bf16.gmra.mrb[0].mxu0 %v6895
      %v7098 = vpop.f32.mrb[0].mxu0
      %v7099 = vadd.f32 %v6834, %v7098
      %v7100 = vpop.f32.mrb[0].mxu0
      %v7101 = vpop.f32.mrb[0].mxu0
      %v7102 = vadd.f32 %v6834, %v7101
      %v7103 = vpop.f32.mrb[0].mxu0
      %7104 = vmatprep.mubr.bf16.mxu0 0
      %7105 = vmatmul.mubr.bf16.gmra.mrb[0].mxu0 %v6898
      %v7106 = vpop.f32.mrb[0].mxu0
      %v7107 = vadd.f32 %v6834, %v7106
      %v7108 = vpop.f32.mrb[0].mxu0
      %v7109 = vpop.f32.mrb[0].mxu0
      %v7110 = vadd.f32 %v6834, %v7109
      %v7111 = vpop.f32.mrb[0].mxu0
      %7112 = vmatprep.mubr.bf16.mxu0 0
      %7113 = vmatmul.mubr.bf16.gmra.mrb[0].mxu0 %v6901
      %v7114 = vpop.f32.mrb[0].mxu0
      %v7115 = vadd.f32 %v6834, %v7114
      %v7116 = vpop.f32.mrb[0].mxu0
      %v7117 = vpop.f32.mrb[0].mxu0
      %v7118 = vadd.f32 %v6834, %v7117
      %v7119 = vpop.f32.mrb[0].mxu0
      %7120 = vmatprep.mubr.bf16.mxu0 0
      %7121 = vmatmul.mubr.bf16.gmra.mrb[0].mxu0 %v6904
      %v7122 = vpop.f32.mrb[0].mxu0
      %v7123 = vadd.f32 %v6834, %v7122
      %v7124 = vpop.f32.mrb[0].mxu0
      %v7125 = vpop.f32.mrb[0].mxu0
      %v7126 = vadd.f32 %v6834, %v7125
      %v7127 = vpop.f32.mrb[0].mxu0
      %7128 = vmatprep.mubr.bf16.mxu0 0
      %7129 = vmatmul.mubr.bf16.gmra.mrb[0].mxu0 %v6907
      %v7130 = vpop.f32.mrb[0].mxu0
      %v7131 = vadd.f32 %v6834, %v7130
      %v7132 = vpop.f32.mrb[0].mxu0
      %v7133 = vpop.f32.mrb[0].mxu0
      %v7134 = vadd.f32 %v6834, %v7133
      %v7135 = vpop.f32.mrb[0].mxu0
      %7136 = vmatprep.mubr.bf16.mxu0 0
      %7137 = vmatmul.mubr.bf16.gmra.mrb[0].mxu0 %v6910
      %v7138 = vpop.f32.mrb[0].mxu0
      %v7139 = vadd.f32 %v6834, %v7138
      %v7140 = vpop.f32.mrb[0].mxu0
      %v7141 = vpop.f32.mrb[0].mxu0
      %v7142 = vadd.f32 %v6834, %v7141
      %v7143 = vpop.f32.mrb[0].mxu0
      %7144 = vmatprep.mubr.bf16.mxu0 0
      %7145 = vmatmul.mubr.bf16.gmra.mrb[0].mxu0 %v6913
      %v7146 = vpop.f32.mrb[0].mxu0
      %v7147 = vadd.f32 %v6834, %v7146
      %v7148 = vpop.f32.mrb[0].mxu0
      %v7149 = vpop.f32.mrb[0].mxu0
      %v7150 = vadd.f32 %v6834, %v7149
      %v7151 = vpop.f32.mrb[0].mxu0
      %7152 = vmatprep.mubr.bf16.mxu0 0
      %7153 = vmatmul.mubr.bf16.gmra.mrb[0].mxu0 %v6916
      %v7154 = vpop.f32.mrb[0].mxu0
      %v7155 = vadd.f32 %v6834, %v7154
      %v7156 = vpop.f32.mrb[0].mxu0
      %v7157 = vpop.f32.mrb[0].mxu0
      %v7158 = vadd.f32 %v6834, %v7157
      %v7159 = vpop.f32.mrb[0].mxu0
      %7160 = vmatprep.mubr.bf16.mxu0 0
      %7161 = vmatmul.mubr.bf16.gmra.mrb[0].mxu0 %v6919
      %v7162 = vpop.f32.mrb[0].mxu0
      %v7163 = vadd.f32 %v6834, %v7162
      %v7164 = vpop.f32.mrb[0].mxu0
      %v7165 = vpop.f32.mrb[0].mxu0
      %v7166 = vadd.f32 %v6834, %v7165
      %v7167 = vpop.f32.mrb[0].mxu0
      %7168 = vmatprep.mubr.bf16.mxu0 0
      %7169 = vmatmul.mubr.bf16.gmra.mrb[0].mxu0 %v6922
      %v7170 = vpop.f32.mrb[0].mxu0
      %v7171 = vadd.f32 %v6834, %v7170
      %v7172 = vpop.f32.mrb[0].mxu0
      %v7173 = vpop.f32.mrb[0].mxu0
      %v7174 = vadd.f32 %v6834, %v7173
      %v7175 = vpop.f32.mrb[0].mxu0
      %7176 = vmatprep.mubr.bf16.mxu0 0
      %7177 = vmatmul.mubr.bf16.gmra.mrb[0].mxu0 %v6925
      %v7178 = vpop.f32.mrb[0].mxu0
      %v7179 = vadd.f32 %v6834, %v7178
      %v7180 = vpop.f32.mrb[0].mxu0
      %v7181 = vpop.f32.mrb[0].mxu0
      %v7182 = vadd.f32 %v6834, %v7181
      %v7183 = vpop.f32.mrb[0].mxu0
      %7184 = vmatprep.mubr.bf16.mxu0 0
      %7185 = vmatmul.mubr.bf16.gmra.mrb[0].mxu0 %v6928
      %v7186 = vpop.f32.mrb[0].mxu0
      %v7187 = vadd.f32 %v6834, %v7186
      %v7188 = vpop.f32.mrb[0].mxu0
      %v7189 = vpop.f32.mrb[0].mxu0
      %v7190 = vadd.f32 %v6834, %v7189
      %v7191 = vpop.f32.mrb[0].mxu0
      %7192 = vmatprep.mubr.bf16.mxu0 0
      %7193 = vmatmul.mubr.bf16.gmra.mrb[0].mxu0 %v6931
      %v7194 = vpop.f32.mrb[0].mxu0
      %v7195 = vadd.f32 %v6834, %v7194
      %v7196 = vpop.f32.mrb[0].mxu0
      %v7197 = vpop.f32.mrb[0].mxu0
      %v7198 = vadd.f32 %v6834, %v7197
      %v7199 = vpop.f32.mrb[0].mxu0
      %7200 = vmatprep.mubr.bf16.mxu0 0
      %7201 = vmatmul.mubr.bf16.gmra.mrb[0].mxu0 %v6934
      %v7202 = vpop.f32.mrb[0].mxu0
      %v7203 = vadd.f32 %v6834, %v7202
      %v7204 = vpop.f32.mrb[0].mxu0
      %v7205 = vpop.f32.mrb[0].mxu0
      %v7206 = vadd.f32 %v6834, %v7205
      %v7207 = vpop.f32.mrb[0].mxu0
      %7208 = vmatprep.mubr.bf16.mxu0 0
      %7209 = vmatmul.mubr.bf16.gmra.mrb[0].mxu0 %v6937
      %v7210 = vpop.f32.mrb[0].mxu0
      %v7211 = vadd.f32 %v6834, %v7210
      %v7212 = vpop.f32.mrb[0].mxu0
      %v7213 = vpop.f32.mrb[0].mxu0
      %v7214 = vadd.f32 %v6834, %v7213
      %v7215 = vpop.f32.mrb[0].mxu0
      %7216 = vmatprep.mubr.bf16.mxu0 0
      %7217 = vmatmul.mubr.bf16.gmra.mrb[0].mxu0 %v6940
      %v7218 = vpop.f32.mrb[0].mxu0
      %v7219 = vadd.f32 %v6834, %v7218
      %v7220 = vpop.f32.mrb[0].mxu0
      %v7221 = vpop.f32.mrb[0].mxu0
      %v7222 = vadd.f32 %v6834, %v7221
      %v7223 = vpop.f32.mrb[0].mxu0
      %7224 = vmatprep.mubr.bf16.mxu0 0
      %7225 = vmatmul.mubr.bf16.gmra.mrb[0].mxu0 %v6943
      %v7226 = vpop.f32.mrb[0].mxu0
      %v7227 = vadd.f32 %v6834, %v7226
      %v7228 = vpop.f32.mrb[0].mxu0
      %v7229 = vpop.f32.mrb[0].mxu0
      %v7230 = vadd.f32 %v6834, %v7229
      %v7231 = vpop.f32.mrb[0].mxu0
      %7232 = vmatprep.mubr.bf16.mxu0 0
      %7233 = vmatmul.mubr.bf16.gmra.mrb[0].mxu0 %v6946
      %v7234 = vpop.f32.mrb[0].mxu0
      %v7235 = vadd.f32 %v6834, %v7234
      %v7236 = vpop.f32.mrb[0].mxu0
      %v7237 = vpop.f32.mrb[0].mxu0
      %v7238 = vadd.f32 %v6834, %v7237
      %v7239 = vpop.f32.mrb[0].mxu0
      %7240 = vdwg.mxu0
      %v7241 = vmax.f32 %v6987, 0.0
      %v7242 = vmax.f32 %v6990, 0.0
      %v7243 = vmax.f32 %v6995, 0.0
      %v7244 = vmax.f32 %v6998, 0.0
      %v7245 = vmax.f32 %v7003, 0.0
      %v7246 = vmax.f32 %v7006, 0.0
      %v7247 = vmax.f32 %v7011, 0.0
      %v7248 = vmax.f32 %v7014, 0.0
      %v7249 = vmax.f32 %v7019, 0.0
      %v7250 = vmax.f32 %v7022, 0.0
      %v7251 = vmax.f32 %v7027, 0.0
      %v7252 = vmax.f32 %v7030, 0.0
      %v7253 = vmax.f32 %v7035, 0.0
      %v7254 = vmax.f32 %v7038, 0.0
      %v7255 = vmax.f32 %v7043, 0.0
      %v7256 = vmax.f32 %v7046, 0.0
      %v7257 = vmax.f32 %v7051, 0.0
      %v7258 = vmax.f32 %v7054, 0.0
      %v7259 = vmax.f32 %v7059, 0.0
      %v7260 = vmax.f32 %v7062, 0.0
      %v7261 = vmax.f32 %v7067, 0.0
      %v7262 = vmax.f32 %v7070, 0.0
      %v7263 = vmax.f32 %v7075, 0.0
      %v7264 = vmax.f32 %v7078, 0.0
      %v7265 = vmax.f32 %v7083, 0.0
      %v7266 = vmax.f32 %v7086, 0.0
      %v7267 = vmax.f32 %v7091, 0.0
      %v7268 = vmax.f32 %v7094, 0.0
      %v7269 = vmax.f32 %v7099, 0.0
      %v7270 = vmax.f32 %v7102, 0.0
      %v7271 = vmax.f32 %v7107, 0.0
      %v7272 = vmax.f32 %v7110, 0.0
      %v7273 = vmax.f32 %v7115, 0.0
      %v7274 = vmax.f32 %v7118, 0.0
      %v7275 = vmax.f32 %v7123, 0.0
      %v7276 = vmax.f32 %v7126, 0.0
      %v7277 = vmax.f32 %v7131, 0.0
      %v7278 = vmax.f32 %v7134, 0.0
      %v7279 = vmax.f32 %v7139, 0.0
      %v7280 = vmax.f32 %v7142, 0.0
      %v7281 = vmax.f32 %v7147, 0.0
      %v7282 = vmax.f32 %v7150, 0.0
      %v7283 = vmax.f32 %v7155, 0.0
      %v7284 = vmax.f32 %v7158, 0.0
      %v7285 = vmax.f32 %v7163, 0.0
      %v7286 = vmax.f32 %v7166, 0.0
      %v7287 = vmax.f32 %v7171, 0.0
      %v7288 = vmax.f32 %v7174, 0.0
      %v7289 = vmax.f32 %v7179, 0.0
      %v7290 = vmax.f32 %v7182, 0.0
      %v7291 = vmax.f32 %v7187, 0.0
      %v7292 = vmax.f32 %v7190, 0.0
      %v7293 = vmax.f32 %v7195, 0.0
      %v7294 = vmax.f32 %v7198, 0.0
      %v7295 = vmax.f32 %v7203, 0.0
      %v7296 = vmax.f32 %v7206, 0.0
      %v7297 = vmax.f32 %v7211, 0.0
      %v7298 = vmax.f32 %v7214, 0.0
      %v7299 = vmax.f32 %v7219, 0.0
      %v7300 = vmax.f32 %v7222, 0.0
      %v7301 = vmax.f32 %v7227, 0.0
      %v7302 = vmax.f32 %v7230, 0.0
      %v7303 = vmax.f32 %v7235, 0.0
      %v7304 = vmax.f32 %v7238, 0.0
      %v7305 = vadd.f32 %v7241, %v7242
      %v7306 = vadd.f32 %v7305, %v7243
      %v7307 = vadd.f32 %v7306, %v7244
      %v7308 = vadd.f32 %v7307, %v7245
      %v7309 = vadd.f32 %v7308, %v7246
      %v7310 = vadd.f32 %v7309, %v7247
      %v7311 = vadd.f32 %v7310, %v7248
      %v7312 = vadd.f32 %v7311, %v7249
      %v7313 = vadd.f32 %v7312, %v7250
      %v7314 = vadd.f32 %v7313, %v7251
      %v7315 = vadd.f32 %v7314, %v7252
      %v7316 = vadd.f32 %v7315, %v7253
      %v7317 = vadd.f32 %v7316, %v7254
      %v7318 = vadd.f32 %v7317, %v7255
      %v7319 = vadd.f32 %v7318, %v7256
      %v7320 = vadd.f32 %v7319, %v7257
      %v7321 = vadd.f32 %v7320, %v7258
      %v7322 = vadd.f32 %v7321, %v7259
      %v7323 = vadd.f32 %v7322, %v7260
      %v7324 = vadd.f32 %v7323, %v7261
      %v7325 = vadd.f32 %v7324, %v7262
      %v7326 = vadd.f32 %v7325, %v7263
      %v7327 = vadd.f32 %v7326, %v7264
      %v7328 = vadd.f32 %v7327, %v7265
      %v7329 = vadd.f32 %v7328, %v7266
      %v7330 = vadd.f32 %v7329, %v7267
      %v7331 = vadd.f32 %v7330, %v7268
      %v7332 = vadd.f32 %v7331, %v7269
      %v7333 = vadd.f32 %v7332, %v7270
      %v7334 = vadd.f32 %v7333, %v7271
      %v7335 = vadd.f32 %v7334, %v7272
      %v7336 = vrot.slane %v7335, 4
      %v7337 = vadd.f32 %v7335, %v7336
      %v7338 = vrot.slane %v7337, 2
      %v7339 = vadd.f32 %v7337, %v7338
      %v7340 = vrot.slane %v7339, 1
      %v7341 = vadd.f32 %v7339, %v7340
      %v7342 = vadd.f32 %v7273, %v7274
      %v7343 = vadd.f32 %v7342, %v7275
      %v7344 = vadd.f32 %v7343, %v7276
      %v7345 = vadd.f32 %v7344, %v7277
      %v7346 = vadd.f32 %v7345, %v7278
      %v7347 = vadd.f32 %v7346, %v7279
      %v7348 = vadd.f32 %v7347, %v7280
      %v7349 = vadd.f32 %v7348, %v7281
      %v7350 = vadd.f32 %v7349, %v7282
      %v7351 = vadd.f32 %v7350, %v7283
      %v7352 = vadd.f32 %v7351, %v7284
      %v7353 = vadd.f32 %v7352, %v7285
      %v7354 = vadd.f32 %v7353, %v7286
      %v7355 = vadd.f32 %v7354, %v7287
      %v7356 = vadd.f32 %v7355, %v7288
      %v7357 = vadd.f32 %v7356, %v7289
      %v7358 = vadd.f32 %v7357, %v7290
      %v7359 = vadd.f32 %v7358, %v7291
      %v7360 = vadd.f32 %v7359, %v7292
      %v7361 = vadd.f32 %v7360, %v7293
      %v7362 = vadd.f32 %v7361, %v7294
      %v7363 = vadd.f32 %v7362, %v7295
      %v7364 = vadd.f32 %v7363, %v7296
      %v7365 = vadd.f32 %v7364, %v7297
      %v7366 = vadd.f32 %v7365, %v7298
      %v7367 = vadd.f32 %v7366, %v7299
      %v7368 = vadd.f32 %v7367, %v7300
      %v7369 = vadd.f32 %v7368, %v7301
      %v7370 = vadd.f32 %v7369, %v7302
      %v7371 = vadd.f32 %v7370, %v7303
      %v7372 = vadd.f32 %v7371, %v7304
      %v7373 = vrot.slane %v7372, 4
      %v7374 = vadd.f32 %v7372, %v7373
      %v7375 = vrot.slane %v7374, 2
      %v7376 = vadd.f32 %v7374, %v7375
      %v7377 = vrot.slane %v7376, 1
      %v7378 = vadd.f32 %v7376, %v7377
      %vm7379 = vcmask 1040384
      %v7380 = vsel %vm7379, %v7341, %v7378
      %v7381 = vmul.f32 %v7380, 0.00390625
      %v7382 = vpack.c.bf16 %v7381, %v7381
      %v7383 = vld [vmem:[%s3] sm:$0xf]
      %v7384 = vld [vmem:[%s3 + $0x4] sm:$0xf]
      %v7385 = vld [vmem:[%s3 + $0x8] sm:$0xf]
      %v7386 = vld [vmem:[%s3 + $0xc] sm:$0xf]
      %v7387 = vld [vmem:[%s3 + $0x10] sm:$0xf]
      %v7388 = vld [vmem:[%s3 + $0x14] sm:$0xf]
      %v7389 = vld [vmem:[%s3 + $0x18] sm:$0xf]
      %v7390 = vld [vmem:[%s3 + $0x1c] sm:$0xf]
      %v7391 = vld [vmem:[%s3 + $0x20] sm:$0xf]
      %v7392 = vld [vmem:[%s3 + $0x24] sm:$0xf]
      %v7393 = vld [vmem:[%s3 + $0x28] sm:$0xf]
      %v7394 = vld [vmem:[%s3 + $0x2c] sm:$0xf]
      %v7395 = vld [vmem:[%s3 + $0x30] sm:$0xf]
      %v7396 = vld [vmem:[%s3 + $0x34] sm:$0xf]
      %v7397 = vld [vmem:[%s3 + $0x38] sm:$0xf]
      %v7398 = vld [vmem:[%s3 + $0x3c] sm:$0xf]
      %v7399 = vld [vmem:[%s4] sm:$0x1]
      %v7401 = vlaneseq
      %v7402 = vshrl.u32 %v7401, 7
      %v7403 = vsub.s32 0, %v7402
      %v7404 = vrot.slane %v7399, %v7403
      %v7422 = vunpack.c.l.b16 %v7383
      %v7423 = vunpack.c.l.b16 %v7384
      %v7424 = vunpack.c.l.b16 %v7385
      %v7425 = vunpack.c.l.b16 %v7386
      %v7426 = vunpack.c.l.b16 %v7387
      %v7427 = vunpack.c.l.b16 %v7388
      %v7428 = vunpack.c.l.b16 %v7389
      %v7429 = vunpack.c.l.b16 %v7390
      %v7430 = vunpack.c.l.b16 %v7391
      %v7431 = vunpack.c.l.b16 %v7392
      %v7432 = vunpack.c.l.b16 %v7393
      %v7433 = vunpack.c.l.b16 %v7394
      %v7434 = vunpack.c.l.b16 %v7395
      %v7435 = vunpack.c.l.b16 %v7396
      %v7436 = vunpack.c.l.b16 %v7397
      %v7437 = vunpack.c.l.b16 %v7398
      %v7438 = vpack.c.b16 %v7423, %v7422
      %v7439 = vpack.c.b16 %v7425, %v7424
      %v7440 = vpack.c.b16 %v7427, %v7426
      %v7441 = vpack.c.b16 %v7429, %v7428
      %v7442 = vpack.c.b16 %v7431, %v7430
      %v7443 = vpack.c.b16 %v7433, %v7432
      %v7444 = vpack.c.b16 %v7435, %v7434
      %v7445 = vpack.c.b16 %v7437, %v7436
      %7454 = vmatprep.subr.bf16.mxu0 0
      %7455 = vmatpush1.bf16.msra.mxu0 %v7438
      %7456 = vmatprep.subr.bf16.mxu0 0
      %7457 = vmatpush1.bf16.msra.mxu0 %v7439
      %7458 = vmatprep.subr.bf16.mxu0 0
      %7459 = vmatpush1.bf16.msra.mxu0 %v7440
      %7460 = vmatprep.subr.bf16.mxu0 0
      %7461 = vmatpush1.bf16.msra.mxu0 %v7441
      %7462 = vmatprep.subr.bf16.mxu0 0
      %7463 = vmatpush1.bf16.msra.mxu0 %v7442
      %7464 = vmatprep.subr.bf16.mxu0 0
      %7465 = vmatpush1.bf16.msra.mxu0 %v7443
      %7466 = vmatprep.subr.bf16.mxu0 0
      %7467 = vmatpush1.bf16.msra.mxu0 %v7444
      %7468 = vmatprep.subr.bf16.mxu0 0
      %7469 = vmatpush1.bf16.msra.mxu0 %v7445
      %7470 = vmatprep.subr.bf16.mxu0 0
      %7471 = vmatpush1.bf16.msra.mxu0 0
      %7472 = vmatprep.subr.bf16.mxu0 0
      %7473 = vmatpush1.bf16.msra.mxu0 0
      %7474 = vmatprep.subr.bf16.mxu0 0
      %7475 = vmatpush1.bf16.msra.mxu0 0
      %7476 = vmatprep.subr.bf16.mxu0 0
      %7477 = vmatpush1.bf16.msra.mxu0 0
      %7478 = vmatprep.subr.bf16.mxu0 0
      %7479 = vmatpush1.bf16.msra.mxu0 0
      %7480 = vmatprep.subr.bf16.mxu0 0
      %7481 = vmatpush1.bf16.msra.mxu0 0
      %7482 = vmatprep.subr.bf16.mxu0 0
      %7483 = vmatpush1.bf16.msra.mxu0 0
      %7484 = vmatprep.subr.bf16.mxu0 0
      %7485 = vmatpush1.bf16.msra.mxu0 0
      %7486 = vmatprep.mubr.bf16.mxu0 0
      %7487 = vmatmul.mubr.bf16.gmra.mrb[0].mxu0 %v7382
      %v7488 = vpop.f32.mrb[0].mxu0
      %v7489 = vadd.f32 %v7404, %v7488
      %v7490 = vpop.f32.mrb[0].mxu0
      %v7491 = vpop.f32.mrb[0].mxu0
      %v7492 = vpop.f32.mrb[0].mxu0
      %7493 = vdwg.mxu0
      %v7494 = vlaneseq
      %v7495 = vand.u32 %v7494, 127
      %vm7496 = vcmp.lt.s32.totalorder %v7495, 10
      %v7497 = vsel %vm7496, %v7489, -1e+30
      %v7498 = vsel %vm6948, %v7497, -inf
      %7499 = vmax.xlane.f32.xlu0 %v7498
      %v7500 = vpop.xlane.xlu0 %7499
      %v7501 = vsub.f32 %v7497, %v7500
      %v7502 = vmul.f32 %v7501, 1.442695
      %v7503 = vpow.pop %v7502
      %v7504 = vsel %vm6948, %v7503, 0.0
      %7505 = vadd.xlane.f32.xlu0 %v7504
      %v7506 = vpop.xlane.xlu0 %7505
      %v7507 = vrcp.pop %v7506
      %v7508 = vmul.f32 %v7503, %v7507
      %7509 = vst [vmem:[%s227] sm:$0x3] %v7508
      %p7510 = scmp.lt.s32.totalorder %s16, 1
      %s7511 = scalar_select %p7510, %s16, 1
      %s7512 = smul.addr %s7511, 2
      %s7513 = scalar_lea.vmem %s5, %s7512
      // Predicated region
      $region41: #{classify.1} parent=39 // pred_check
        %p7514 = pneg %p144
      $region42: #{classify.1} parent=39 // pred_check_branch
        %7516 = sbr.rel (%p7514) target = $region44
      $region43: #{classify.1} parent=39 // pred_region
        _
      $region44: #{classify.1} parent=39 // pred_fallthru
        _
    $region40: #{classify.1} parent=5 // pred_fallthru
      _
    %p7517 = scmp.le.s32.totalorder 2, %s11
    // Predicated region
    $region45: #{classify.1} parent=5 // pred_check
      %p7518 = pneg %p7517
    $region46: #{classify.1} parent=5 // pred_check_branch
      %7520 = sbr.rel (%p7518) target = $region48
    $region47: #{classify.1} parent=5 // pred_region
      %s7521 = ssub.s32 %s11, 2
      // Predicated region
      $region49: #{classify.1} parent=47 // pred_check
        %p7522 = pneg %p150
      $region50: #{classify.1} parent=47 // pred_check_branch
        %7524 = sbr.rel (%p7522) target = $region52
      $region51: #{classify.1} parent=47 // pred_region
        %p7525 = scmp.lt.s32.totalorder %s17, 1
        %s7526 = scalar_select %p7525, %s17, 1
        %s7527 = smul.addr %s7526, 2
        %s7528 = scalar_lea.vmem %s5, %s7527
      $region52: #{classify.1} parent=47 // pred_fallthru
        _
    $region48: #{classify.1} parent=5 // pred_fallthru
      _
  $region6: #{classify.1} parent=0 // loop_footer
    %s15 = sadd.s32 1, %s11
  $region7: #{classify.1} parent=0 // loop_footer_branch
    %10 = sbr.rel target = $region3
  $region8: #{classify.1} parent=0 // loop_exit
    _

</llo_original>
